<compile_context>
chip_gen: v7x
topology: tpu7x:2x2x1
jax: 0.10.0
libtpu: 0.0.40
codegen_flags: <defaults>
</compile_context>

<pallas_src>
import jax
import jax.numpy as jnp
from jax.experimental import pallas as pl
from jax.experimental.pallas import tpu as pltpu


def _const_spec(a):
    nd = a.ndim
    return pl.BlockSpec(a.shape, lambda b, _nd=nd: (0,) * _nd)


def attention_module_v5(x_low, x_high, params, *, dilation=4):
    """x_low: (B, Cl, H, W), x_high: (B, Ch, H, W), float32 NCHW. H % 3 == W % 3 == 0."""
    (w_dc, n1_scale, n1_shift, w_ca1, w_ca2, w_psi, w_fus, n2_scale, n2_shift) = params
    B, Cl, H, W = x_low.shape
    Bh, Ch, Hh, Wh = x_high.shape
    P = w_dc.shape[0]
    Pr = w_ca1.shape[0]
    assert (Bh, Hh, Wh) == (B, H, W), "x_low / x_high batch & spatial dims must match"
    assert Ch == P, "concat channels must equal planes*2 (requires inplanes_high == planes)"
    assert H % 3 == 0 and W % 3 == 0, "AdaptiveAvgPool2d((3,3)) exactness needs H, W % 3 == 0"
    HW = H * W

    # ---- free reshapes: NCHW -> (B, C, H*W); no HBM transposes anywhere ------------
    xl_flat = x_low.reshape(B, Cl, HW)
    xh_flat = x_high.reshape(B, Ch, HW)

    # ---- tap offsets for the dilated 3x3 conv ---------------------------------------
    taps = [(di, dj) for di in (-dilation, 0, dilation) for dj in (-dilation, 0, dilation)]
    shifts = [(-(di * W + dj)) % HW for (di, dj) in taps]

    # conv weight (P, Cl, 3, 3) -> (9, P, Cl) tap-major, BatchNorm scale folded in.
    w_dc_t = (jnp.transpose(w_dc, (2, 3, 0, 1)).reshape(9, P, Cl)
              * n1_scale[None, :, None]).astype(jnp.float32)
    b1 = n1_shift.reshape(P, 1).astype(jnp.float32)
    w_fus_f = (w_fus * n2_scale[:, None]).astype(jnp.float32)
    b2 = n2_shift.reshape(P, 1).astype(jnp.float32)

    # ca first conv (3x3 over the 3x3 pooled map == full (C, 9) contraction), split into
    # the x_low-half and x_high-half of the concatenated channels: (Pr, C, 9).
    w_ca1_l = w_ca1[:, :P].reshape(Pr, P, 9).astype(jnp.float32)
    w_ca1_h = w_ca1[:, P:].reshape(Pr, Ch, 9).astype(jnp.float32)

    # destination-validity masks (zero padding of the dilated conv), one per tap: (9, HW).
    yy, xx = jnp.meshgrid(jnp.arange(H), jnp.arange(W), indexing="ij")
    masks = jnp.stack([
        (((yy + di) >= 0) & ((yy + di) < H) & ((xx + dj) >= 0) & ((xx + dj) < W))
        .reshape(HW).astype(jnp.float32)
        for (di, dj) in taps])                                         # (9, HW)

    # AdaptiveAvgPool2d((3,3)) as a matmul operand: (HW, 9), column k = bin (k//3, k%3).
    bh, bw = H // 3, W // 3
    bins = ((yy // bh) * 3 + (xx // bw)).reshape(HW)
    pmat = jax.nn.one_hot(bins, 9, dtype=jnp.float32) / float(bh * bw)  # (HW, 9)

    def kernel(xl_ref, xh_ref, m_ref, pm_ref, wdc_ref, b1_ref,
               w1l_ref, w1h_ref, w2_ref, wpsi_ref, wfus_ref, b2_ref, o_ref):
        xlo = xl_ref[0]          # (Cl, HW) f32
        xhi = xh_ref[0]          # (Ch, HW) f32

        # (1) downchannels: dilated 3x3 conv (pad=4, dil=4, no bias) + BN + ReLU.
        #     Each tap is one MXU GEMM; its spatial offset is applied to the GEMM
        #     result with an XLU roll + precomputed border mask (zero padding).
        acc = jnp.zeros((P, HW), jnp.float32)
        for k in range(9):
            prod = jnp.dot(wdc_ref[k], xlo, preferred_element_type=jnp.float32)   # (P, HW)
            if shifts[k] != 0:
                prod = pltpu.roll(prod, shift=shifts[k], axis=1) * m_ref[k:k + 1, :]
            acc = acc + prod
        xl = jnp.maximum(acc + b1_ref[...], 0.0)                                   # (P, HW)

        # (2) channel attention: adaptive avg-pool(3,3) of cat([xl, x_high]) as two GEMMs
        #     against the pooling matrix, then the "valid" 3x3 conv == full contraction
        #     over (channel, tap), ReLU, 1x1 conv, sigmoid.
        pooled_l = jnp.dot(xl, pm_ref[...], preferred_element_type=jnp.float32)    # (P, 9)
        pooled_h = jnp.dot(xhi, pm_ref[...], preferred_element_type=jnp.float32)   # (Ch, 9)
        tl = jnp.sum(w1l_ref[...] * pooled_l[None, :, :], axis=2)                  # (Pr, P)
        th = jnp.sum(w1h_ref[...] * pooled_h[None, :, :], axis=2)                  # (Pr, Ch)
        hvec = jnp.sum(tl, axis=1, keepdims=True) + jnp.sum(th, axis=1, keepdims=True)
        hvec = jnp.maximum(hvec, 0.0)                                              # (Pr, 1)
        ca = jax.nn.sigmoid(
            jnp.dot(w2_ref[...], hvec, preferred_element_type=jnp.float32))        # (P, 1)

        # (3) spatial attention: 1x1 conv Ch->1 (no bias) + sigmoid, one GEMM.
        sa = jax.nn.sigmoid(
            jnp.dot(wpsi_ref[...], xhi, preferred_element_type=jnp.float32))       # (1, HW)

        # (4) fused combine + fusion 1x1 conv (+BN) + ReLU + residual.
        x_f = xl * (ca + sa)                                                       # (P, HW)
        y = jnp.dot(wfus_ref[...], x_f, preferred_element_type=jnp.float32)        # (P, HW)
        y = jnp.maximum(y + b2_ref[...], 0.0)
        o_ref[0] = (xl + y).astype(o_ref.dtype)

    out = pl.pallas_call(
        kernel,
        out_shape=jax.ShapeDtypeStruct((B, P, HW), jnp.float32),
        grid=(B,),
        in_specs=[
            pl.BlockSpec((1, Cl, HW), lambda b: (b, 0, 0)),   # x_low  (lane-dense last dim)
            pl.BlockSpec((1, Ch, HW), lambda b: (b, 0, 0)),   # x_high
            _const_spec(masks),
            _const_spec(pmat),
            _const_spec(w_dc_t),
            _const_spec(b1),
            _const_spec(w_ca1_l),
            _const_spec(w_ca1_h),
            _const_spec(w_ca2),
            _const_spec(w_psi),
            _const_spec(w_fus_f),
            _const_spec(b2),
        ],
        out_specs=pl.BlockSpec((1, P, HW), lambda b: (b, 0, 0)),
        compiler_params=pltpu.CompilerParams(dimension_semantics=("parallel",)),
    )(xl_flat, xh_flat, masks, pmat, w_dc_t, b1, w_ca1_l, w_ca1_h,
      w_ca2, w_psi, w_fus_f, b2)

    return out.reshape(B, P, H, W)   # free reshape back to NCHW


def _reference(x_low, x_high, params, dilation=4):
    """Plain-JAX reference of the PyTorch forward (NCHW, inference-mode BN)."""
    (w_dc, n1_scale, n1_shift, w_ca1, w_ca2, w_psi, w_fus, n2_scale, n2_shift) = params
    hi = jax.lax.Precision.HIGHEST
    xl = jax.lax.conv_general_dilated(
        x_low, w_dc, window_strides=(1, 1),
        padding=((dilation, dilation), (dilation, dilation)),
        rhs_dilation=(dilation, dilation),
        dimension_numbers=("NCHW", "OIHW", "NCHW"), precision=hi)
    xl = xl * n1_scale[None, :, None, None] + n1_shift[None, :, None, None]
    xl = jnp.maximum(xl, 0.0)
    x_cat = jnp.concatenate([xl, x_high], axis=1)
    B, Ccat, H, W = x_cat.shape
    pooled = x_cat.reshape(B, Ccat, 3, H // 3, 3, W // 3).mean(axis=(3, 5))   # (B, Ccat, 3, 3)
    h = jnp.maximum(jnp.einsum("ocij,bcij->bo", w_ca1, pooled, precision=hi), 0.0)
    ca = jax.nn.sigmoid(jnp.einsum("oc,bc->bo", w_ca2, h, precision=hi))       # (B, P)
    sa = jax.nn.sigmoid(jnp.einsum("c,bchw->bhw", w_psi[0], x_high, precision=hi))
    x_f = xl * ca[:, :, None, None] + xl * sa[:, None, :, :]
    y = jnp.einsum("oc,bchw->bohw", w_fus, x_f, precision=hi)
    y = y * n2_scale[None, :, None, None] + n2_shift[None, :, None, None]
    y = jnp.maximum(y, 0.0)
    return xl + y


def make_params(key, inplanes_low, inplanes_high, planes, reduction):
    pr = max(planes // reduction, 1)
    f = jnp.float32
    ks = jax.random.split(key, 9)
    w_dc = 0.1 * jax.random.normal(ks[0], (planes, inplanes_low, 3, 3), f)   # downchannels conv
    n1_scale = 1.0 + 0.1 * jax.random.normal(ks[1], (planes,), f)            # BN1 (eval, folded)
    n1_shift = 0.1 * jax.random.normal(ks[2], (planes,), f)
    w_ca1 = 0.1 * jax.random.normal(ks[3], (pr, planes + inplanes_high, 3, 3), f)
    w_ca2 = 0.1 * jax.random.normal(ks[4], (planes, pr), f)
    w_psi = 0.1 * jax.random.normal(ks[5], (1, inplanes_high), f)
    w_fus = 0.1 * jax.random.normal(ks[6], (planes, planes), f)
    n2_scale = 1.0 + 0.1 * jax.random.normal(ks[7], (planes,), f)            # BN2 (eval, folded)
    n2_shift = 0.1 * jax.random.normal(ks[8], (planes,), f)
    return (w_dc, n1_scale, n1_shift, w_ca1, w_ca2, w_psi, w_fus, n2_scale, n2_shift)


if __name__ == "__main__":
    key = jax.random.PRNGKey(0)
    kl, kh, kp = jax.random.split(key, 3)

    B = 2
    inplanes_low, inplanes_high, planes, reduction = 16, 8, 8, 2
    H = W = 48   # multiples of 3 (exact adaptive pool); H*W = 2304 = 18*128 -> lane-dense

    x_low = jax.random.normal(kl, (B, inplanes_low, H, W), jnp.float32)
    x_high = jax.random.normal(kh, (B, inplanes_high, H, W), jnp.float32)
    params = make_params(kp, inplanes_low, inplanes_high, planes, reduction)

    out = jax.block_until_ready(attention_module_v5(x_low, x_high, params))
    ref = jax.block_until_ready(_reference(x_low, x_high, params))

    assert out.shape == (B, planes, H, W)
    # Tolerance leaves headroom for the MXU's multi-pass decomposition of fp32 matmuls.
    assert jnp.allclose(out, ref, rtol=5e-3, atol=5e-3), float(jnp.max(jnp.abs(out - ref)))
    print("KERNEL_OK")
</pallas_src>

<mosaic_0001>
module attributes {stable_mosaic.version = 11 : i64} {
  func.func @kernel(%arg0: i32, %arg1: memref<1x16x2304xf32, #tpu.memory_space<vmem>>, %arg2: memref<1x8x2304xf32, #tpu.memory_space<vmem>>, %arg3: memref<9x2304xf32, #tpu.memory_space<vmem>>, %arg4: memref<2304x9xf32, #tpu.memory_space<vmem>>, %arg5: memref<9x8x16xf32, #tpu.memory_space<vmem>>, %arg6: memref<8x1xf32, #tpu.memory_space<vmem>>, %arg7: memref<4x8x9xf32, #tpu.memory_space<vmem>>, %arg8: memref<4x8x9xf32, #tpu.memory_space<vmem>>, %arg9: memref<8x4xf32, #tpu.memory_space<vmem>>, %arg10: memref<1x8xf32, #tpu.memory_space<vmem>>, %arg11: memref<8x8xf32, #tpu.memory_space<vmem>>, %arg12: memref<8x1xf32, #tpu.memory_space<vmem>>, %arg13: memref<1x8x2304xf32, #tpu.memory_space<vmem>>) attributes {dimension_semantics = [#tpu.dimension_semantics<parallel>], iteration_bounds = array<i64: 2>, scalar_prefetch = 0 : i64, scratch_operands = 0 : i64, tpu.core_type = #tpu.core_type<tc>, window_params = [{transform_indices = @transform_0, window_bounds = array<i64: 1, 16, 2304>}, {transform_indices = @transform_1, window_bounds = array<i64: 1, 8, 2304>}, {pipeline_mode = #tpu.pipeline_mode<synchronous>, transform_indices = @transform_2, window_bounds = array<i64: 9, 2304>}, {pipeline_mode = #tpu.pipeline_mode<synchronous>, transform_indices = @transform_3, window_bounds = array<i64: 2304, 9>}, {pipeline_mode = #tpu.pipeline_mode<synchronous>, transform_indices = @transform_4, window_bounds = array<i64: 9, 8, 16>}, {pipeline_mode = #tpu.pipeline_mode<synchronous>, transform_indices = @transform_5, window_bounds = array<i64: 8, 1>}, {pipeline_mode = #tpu.pipeline_mode<synchronous>, transform_indices = @transform_6, window_bounds = array<i64: 4, 8, 9>}, {pipeline_mode = #tpu.pipeline_mode<synchronous>, transform_indices = @transform_7, window_bounds = array<i64: 4, 8, 9>}, {pipeline_mode = #tpu.pipeline_mode<synchronous>, transform_indices = @transform_8, window_bounds = array<i64: 8, 4>}, {pipeline_mode = #tpu.pipeline_mode<synchronous>, transform_indices = @transform_9, window_bounds = array<i64: 1, 8>}, {pipeline_mode = #tpu.pipeline_mode<synchronous>, transform_indices = @transform_10, window_bounds = array<i64: 8, 8>}, {pipeline_mode = #tpu.pipeline_mode<synchronous>, transform_indices = @transform_11, window_bounds = array<i64: 8, 1>}, {transform_indices = @transform_12, window_bounds = array<i64: 1, 8, 2304>}]} {
    %c0 = arith.constant 0 : index
    %c0_0 = arith.constant 0 : index
    %c0_1 = arith.constant 0 : index
    %0 = vector.load %arg1[%c0, %c0_0, %c0_1] : memref<1x16x2304xf32, #tpu.memory_space<vmem>>, vector<1x16x2304xf32>
    %1 = vector.shape_cast %0 : vector<1x16x2304xf32> to vector<16x2304xf32>
    %c0_2 = arith.constant 0 : index
    %c0_3 = arith.constant 0 : index
    %c0_4 = arith.constant 0 : index
    %2 = vector.load %arg2[%c0_2, %c0_3, %c0_4] : memref<1x8x2304xf32, #tpu.memory_space<vmem>>, vector<1x8x2304xf32>
    %3 = vector.shape_cast %2 : vector<1x8x2304xf32> to vector<8x2304xf32>
    %cst = arith.constant 0.000000e+00 : f32
    %4 = vector.broadcast %cst : f32 to vector<8x2304xf32>
    %c0_5 = arith.constant 0 : index
    %c0_6 = arith.constant 0 : index
    %c0_7 = arith.constant 0 : index
    %5 = vector.load %arg5[%c0_5, %c0_6, %c0_7] : memref<9x8x16xf32, #tpu.memory_space<vmem>>, vector<1x8x16xf32>
    %6 = vector.shape_cast %5 : vector<1x8x16xf32> to vector<8x16xf32>
    %cst_8 = arith.constant dense<0.000000e+00> : vector<8x2304xf32>
    %7 = tpu.matmul %6, %1, %cst_8 {dimension_numbers = #tpu.dot_dimension_numbers<[1], [0], [0], [1], [0, 0, 1, 1], [], []>} : vector<8x16xf32>, vector<16x2304xf32>, vector<8x2304xf32> -> vector<8x2304xf32>
    %c196_i32 = arith.constant 196 : i32
    %8 = tpu.dynamic_rotate %7 by %c196_i32 dim 1 : vector<8x2304xf32>, i32 -> vector<8x2304xf32>
    %c0_9 = arith.constant 0 : index
    %c0_10 = arith.constant 0 : index
    %9 = vector.load %arg3[%c0_9, %c0_10] : memref<9x2304xf32, #tpu.memory_space<vmem>>, vector<1x2304xf32>
    %10 = vector.broadcast %9 : vector<1x2304xf32> to vector<8x2304xf32>
    %11 = arith.mulf %8, %10 : vector<8x2304xf32>
    %12 = arith.addf %4, %11 : vector<8x2304xf32>
    %c1 = arith.constant 1 : index
    %c0_11 = arith.constant 0 : index
    %c0_12 = arith.constant 0 : index
    %13 = vector.load %arg5[%c1, %c0_11, %c0_12] : memref<9x8x16xf32, #tpu.memory_space<vmem>>, vector<1x8x16xf32>
    %14 = vector.shape_cast %13 : vector<1x8x16xf32> to vector<8x16xf32>
    %cst_13 = arith.constant dense<0.000000e+00> : vector<8x2304xf32>
    %15 = tpu.matmul %14, %1, %cst_13 {dimension_numbers = #tpu.dot_dimension_numbers<[1], [0], [0], [1], [0, 0, 1, 1], [], []>} : vector<8x16xf32>, vector<16x2304xf32>, vector<8x2304xf32> -> vector<8x2304xf32>
    %c192_i32 = arith.constant 192 : i32
    %16 = tpu.dynamic_rotate %15 by %c192_i32 dim 1 : vector<8x2304xf32>, i32 -> vector<8x2304xf32>
    %c1_14 = arith.constant 1 : index
    %c0_15 = arith.constant 0 : index
    %17 = vector.load %arg3[%c1_14, %c0_15] : memref<9x2304xf32, #tpu.memory_space<vmem>>, vector<1x2304xf32>
    %18 = vector.broadcast %17 : vector<1x2304xf32> to vector<8x2304xf32>
    %19 = arith.mulf %16, %18 : vector<8x2304xf32>
    %20 = arith.addf %12, %19 : vector<8x2304xf32>
    %c2 = arith.constant 2 : index
    %c0_16 = arith.constant 0 : index
    %c0_17 = arith.constant 0 : index
    %21 = vector.load %arg5[%c2, %c0_16, %c0_17] : memref<9x8x16xf32, #tpu.memory_space<vmem>>, vector<1x8x16xf32>
    %22 = vector.shape_cast %21 : vector<1x8x16xf32> to vector<8x16xf32>
    %cst_18 = arith.constant dense<0.000000e+00> : vector<8x2304xf32>
    %23 = tpu.matmul %22, %1, %cst_18 {dimension_numbers = #tpu.dot_dimension_numbers<[1], [0], [0], [1], [0, 0, 1, 1], [], []>} : vector<8x16xf32>, vector<16x2304xf32>, vector<8x2304xf32> -> vector<8x2304xf32>
    %c188_i32 = arith.constant 188 : i32
    %24 = tpu.dynamic_rotate %23 by %c188_i32 dim 1 : vector<8x2304xf32>, i32 -> vector<8x2304xf32>
    %c2_19 = arith.constant 2 : index
    %c0_20 = arith.constant 0 : index
    %25 = vector.load %arg3[%c2_19, %c0_20] : memref<9x2304xf32, #tpu.memory_space<vmem>>, vector<1x2304xf32>
    %26 = vector.broadcast %25 : vector<1x2304xf32> to vector<8x2304xf32>
    %27 = arith.mulf %24, %26 : vector<8x2304xf32>
    %28 = arith.addf %20, %27 : vector<8x2304xf32>
    %c3 = arith.constant 3 : index
    %c0_21 = arith.constant 0 : index
    %c0_22 = arith.constant 0 : index
    %29 = vector.load %arg5[%c3, %c0_21, %c0_22] : memref<9x8x16xf32, #tpu.memory_space<vmem>>, vector<1x8x16xf32>
    %30 = vector.shape_cast %29 : vector<1x8x16xf32> to vector<8x16xf32>
    %cst_23 = arith.constant dense<0.000000e+00> : vector<8x2304xf32>
    %31 = tpu.matmul %30, %1, %cst_23 {dimension_numbers = #tpu.dot_dimension_numbers<[1], [0], [0], [1], [0, 0, 1, 1], [], []>} : vector<8x16xf32>, vector<16x2304xf32>, vector<8x2304xf32> -> vector<8x2304xf32>
    %c4_i32 = arith.constant 4 : i32
    %32 = tpu.dynamic_rotate %31 by %c4_i32 dim 1 : vector<8x2304xf32>, i32 -> vector<8x2304xf32>
    %c3_24 = arith.constant 3 : index
    %c0_25 = arith.constant 0 : index
    %33 = vector.load %arg3[%c3_24, %c0_25] : memref<9x2304xf32, #tpu.memory_space<vmem>>, vector<1x2304xf32>
    %34 = vector.broadcast %33 : vector<1x2304xf32> to vector<8x2304xf32>
    %35 = arith.mulf %32, %34 : vector<8x2304xf32>
    %36 = arith.addf %28, %35 : vector<8x2304xf32>
    %c4 = arith.constant 4 : index
    %c0_26 = arith.constant 0 : index
    %c0_27 = arith.constant 0 : index
    %37 = vector.load %arg5[%c4, %c0_26, %c0_27] : memref<9x8x16xf32, #tpu.memory_space<vmem>>, vector<1x8x16xf32>
    %38 = vector.shape_cast %37 : vector<1x8x16xf32> to vector<8x16xf32>
    %cst_28 = arith.constant dense<0.000000e+00> : vector<8x2304xf32>
    %39 = tpu.matmul %38, %1, %cst_28 {dimension_numbers = #tpu.dot_dimension_numbers<[1], [0], [0], [1], [0, 0, 1, 1], [], []>} : vector<8x16xf32>, vector<16x2304xf32>, vector<8x2304xf32> -> vector<8x2304xf32>
    %40 = arith.addf %36, %39 : vector<8x2304xf32>
    %c5 = arith.constant 5 : index
    %c0_29 = arith.constant 0 : index
    %c0_30 = arith.constant 0 : index
    %41 = vector.load %arg5[%c5, %c0_29, %c0_30] : memref<9x8x16xf32, #tpu.memory_space<vmem>>, vector<1x8x16xf32>
    %42 = vector.shape_cast %41 : vector<1x8x16xf32> to vector<8x16xf32>
    %cst_31 = arith.constant dense<0.000000e+00> : vector<8x2304xf32>
    %43 = tpu.matmul %42, %1, %cst_31 {dimension_numbers = #tpu.dot_dimension_numbers<[1], [0], [0], [1], [0, 0, 1, 1], [], []>} : vector<8x16xf32>, vector<16x2304xf32>, vector<8x2304xf32> -> vector<8x2304xf32>
    %c2300_i32 = arith.constant 2300 : i32
    %44 = tpu.dynamic_rotate %43 by %c2300_i32 dim 1 : vector<8x2304xf32>, i32 -> vector<8x2304xf32>
    %c5_32 = arith.constant 5 : index
    %c0_33 = arith.constant 0 : index
    %45 = vector.load %arg3[%c5_32, %c0_33] : memref<9x2304xf32, #tpu.memory_space<vmem>>, vector<1x2304xf32>
    %46 = vector.broadcast %45 : vector<1x2304xf32> to vector<8x2304xf32>
    %47 = arith.mulf %44, %46 : vector<8x2304xf32>
    %48 = arith.addf %40, %47 : vector<8x2304xf32>
    %c6 = arith.constant 6 : index
    %c0_34 = arith.constant 0 : index
    %c0_35 = arith.constant 0 : index
    %49 = vector.load %arg5[%c6, %c0_34, %c0_35] : memref<9x8x16xf32, #tpu.memory_space<vmem>>, vector<1x8x16xf32>
    %50 = vector.shape_cast %49 : vector<1x8x16xf32> to vector<8x16xf32>
    %cst_36 = arith.constant dense<0.000000e+00> : vector<8x2304xf32>
    %51 = tpu.matmul %50, %1, %cst_36 {dimension_numbers = #tpu.dot_dimension_numbers<[1], [0], [0], [1], [0, 0, 1, 1], [], []>} : vector<8x16xf32>, vector<16x2304xf32>, vector<8x2304xf32> -> vector<8x2304xf32>
    %c2116_i32 = arith.constant 2116 : i32
    %52 = tpu.dynamic_rotate %51 by %c2116_i32 dim 1 : vector<8x2304xf32>, i32 -> vector<8x2304xf32>
    %c6_37 = arith.constant 6 : index
    %c0_38 = arith.constant 0 : index
    %53 = vector.load %arg3[%c6_37, %c0_38] : memref<9x2304xf32, #tpu.memory_space<vmem>>, vector<1x2304xf32>
    %54 = vector.broadcast %53 : vector<1x2304xf32> to vector<8x2304xf32>
    %55 = arith.mulf %52, %54 : vector<8x2304xf32>
    %56 = arith.addf %48, %55 : vector<8x2304xf32>
    %c7 = arith.constant 7 : index
    %c0_39 = arith.constant 0 : index
    %c0_40 = arith.constant 0 : index
    %57 = vector.load %arg5[%c7, %c0_39, %c0_40] : memref<9x8x16xf32, #tpu.memory_space<vmem>>, vector<1x8x16xf32>
    %58 = vector.shape_cast %57 : vector<1x8x16xf32> to vector<8x16xf32>
    %cst_41 = arith.constant dense<0.000000e+00> : vector<8x2304xf32>
    %59 = tpu.matmul %58, %1, %cst_41 {dimension_numbers = #tpu.dot_dimension_numbers<[1], [0], [0], [1], [0, 0, 1, 1], [], []>} : vector<8x16xf32>, vector<16x2304xf32>, vector<8x2304xf32> -> vector<8x2304xf32>
    %c2112_i32 = arith.constant 2112 : i32
    %60 = tpu.dynamic_rotate %59 by %c2112_i32 dim 1 : vector<8x2304xf32>, i32 -> vector<8x2304xf32>
    %c7_42 = arith.constant 7 : index
    %c0_43 = arith.constant 0 : index
    %61 = vector.load %arg3[%c7_42, %c0_43] : memref<9x2304xf32, #tpu.memory_space<vmem>>, vector<1x2304xf32>
    %62 = vector.broadcast %61 : vector<1x2304xf32> to vector<8x2304xf32>
    %63 = arith.mulf %60, %62 : vector<8x2304xf32>
    %64 = arith.addf %56, %63 : vector<8x2304xf32>
    %c8 = arith.constant 8 : index
    %c0_44 = arith.constant 0 : index
    %c0_45 = arith.constant 0 : index
    %65 = vector.load %arg5[%c8, %c0_44, %c0_45] : memref<9x8x16xf32, #tpu.memory_space<vmem>>, vector<1x8x16xf32>
    %66 = vector.shape_cast %65 : vector<1x8x16xf32> to vector<8x16xf32>
    %cst_46 = arith.constant dense<0.000000e+00> : vector<8x2304xf32>
    %67 = tpu.matmul %66, %1, %cst_46 {dimension_numbers = #tpu.dot_dimension_numbers<[1], [0], [0], [1], [0, 0, 1, 1], [], []>} : vector<8x16xf32>, vector<16x2304xf32>, vector<8x2304xf32> -> vector<8x2304xf32>
    %c2108_i32 = arith.constant 2108 : i32
    %68 = tpu.dynamic_rotate %67 by %c2108_i32 dim 1 : vector<8x2304xf32>, i32 -> vector<8x2304xf32>
    %c8_47 = arith.constant 8 : index
    %c0_48 = arith.constant 0 : index
    %69 = vector.load %arg3[%c8_47, %c0_48] : memref<9x2304xf32, #tpu.memory_space<vmem>>, vector<1x2304xf32>
    %70 = vector.broadcast %69 : vector<1x2304xf32> to vector<8x2304xf32>
    %71 = arith.mulf %68, %70 : vector<8x2304xf32>
    %72 = arith.addf %64, %71 : vector<8x2304xf32>
    %c0_49 = arith.constant 0 : index
    %c0_50 = arith.constant 0 : index
    %73 = vector.load %arg6[%c0_49, %c0_50] : memref<8x1xf32, #tpu.memory_space<vmem>>, vector<8x1xf32>
    %74 = vector.broadcast %73 : vector<8x1xf32> to vector<8x2304xf32>
    %75 = arith.addf %72, %74 : vector<8x2304xf32>
    %cst_51 = arith.constant 0.000000e+00 : f32
    %76 = vector.broadcast %cst_51 : f32 to vector<8x2304xf32>
    %77 = arith.maximumf %75, %76 : vector<8x2304xf32>
    %c0_52 = arith.constant 0 : index
    %c0_53 = arith.constant 0 : index
    %78 = vector.load %arg4[%c0_52, %c0_53] : memref<2304x9xf32, #tpu.memory_space<vmem>>, vector<2304x9xf32>
    %cst_54 = arith.constant dense<0.000000e+00> : vector<8x9xf32>
    %79 = tpu.matmul %77, %78, %cst_54 {dimension_numbers = #tpu.dot_dimension_numbers<[1], [0], [0], [1], [0, 0, 1, 1], [], []>} : vector<8x2304xf32>, vector<2304x9xf32>, vector<8x9xf32> -> vector<8x9xf32>
    %c0_55 = arith.constant 0 : index
    %c0_56 = arith.constant 0 : index
    %80 = vector.load %arg4[%c0_55, %c0_56] : memref<2304x9xf32, #tpu.memory_space<vmem>>, vector<2304x9xf32>
    %cst_57 = arith.constant dense<0.000000e+00> : vector<8x9xf32>
    %81 = tpu.matmul %3, %80, %cst_57 {dimension_numbers = #tpu.dot_dimension_numbers<[1], [0], [0], [1], [0, 0, 1, 1], [], []>} : vector<8x2304xf32>, vector<2304x9xf32>, vector<8x9xf32> -> vector<8x9xf32>
    %c0_58 = arith.constant 0 : index
    %c0_59 = arith.constant 0 : index
    %c0_60 = arith.constant 0 : index
    %82 = vector.load %arg7[%c0_58, %c0_59, %c0_60] : memref<4x8x9xf32, #tpu.memory_space<vmem>>, vector<4x8x9xf32>
    %83 = vector.shape_cast %79 : vector<8x9xf32> to vector<1x8x9xf32>
    %84 = vector.broadcast %83 : vector<1x8x9xf32> to vector<4x8x9xf32>
    %85 = arith.mulf %82, %84 : vector<4x8x9xf32>
    %cst_61 = arith.constant dense<0.000000e+00> : vector<4x8xf32>
    %86 = vector.multi_reduction <add>, %85, %cst_61 [2] : vector<4x8x9xf32> to vector<4x8xf32>
    %c0_62 = arith.constant 0 : index
    %c0_63 = arith.constant 0 : index
    %c0_64 = arith.constant 0 : index
    %87 = vector.load %arg8[%c0_62, %c0_63, %c0_64] : memref<4x8x9xf32, #tpu.memory_space<vmem>>, vector<4x8x9xf32>
    %88 = vector.shape_cast %81 : vector<8x9xf32> to vector<1x8x9xf32>
    %89 = vector.broadcast %88 : vector<1x8x9xf32> to vector<4x8x9xf32>
    %90 = arith.mulf %87, %89 : vector<4x8x9xf32>
    %cst_65 = arith.constant dense<0.000000e+00> : vector<4x8xf32>
    %91 = vector.multi_reduction <add>, %90, %cst_65 [2] : vector<4x8x9xf32> to vector<4x8xf32>
    %cst_66 = arith.constant dense<0.000000e+00> : vector<4xf32>
    %92 = vector.multi_reduction <add>, %86, %cst_66 [1] : vector<4x8xf32> to vector<4xf32>
    %93 = vector.shape_cast %92 : vector<4xf32> to vector<4x1xf32>
    %cst_67 = arith.constant dense<0.000000e+00> : vector<4xf32>
    %94 = vector.multi_reduction <add>, %91, %cst_67 [1] : vector<4x8xf32> to vector<4xf32>
    %95 = vector.shape_cast %94 : vector<4xf32> to vector<4x1xf32>
    %96 = arith.addf %93, %95 : vector<4x1xf32>
    %cst_68 = arith.constant 0.000000e+00 : f32
    %97 = vector.broadcast %cst_68 : f32 to vector<4x1xf32>
    %98 = arith.maximumf %96, %97 : vector<4x1xf32>
    %c0_69 = arith.constant 0 : index
    %c0_70 = arith.constant 0 : index
    %99 = vector.load %arg9[%c0_69, %c0_70] : memref<8x4xf32, #tpu.memory_space<vmem>>, vector<8x4xf32>
    %cst_71 = arith.constant dense<0.000000e+00> : vector<8x1xf32>
    %100 = tpu.matmul %99, %98, %cst_71 {dimension_numbers = #tpu.dot_dimension_numbers<[1], [0], [0], [1], [0, 0, 1, 1], [], []>} : vector<8x4xf32>, vector<4x1xf32>, vector<8x1xf32> -> vector<8x1xf32>
    %101 = arith.negf %100 : vector<8x1xf32>
    %102 = math.exp %101 : vector<8x1xf32>
    %cst_72 = arith.constant 1.000000e+00 : f32
    %103 = vector.broadcast %cst_72 : f32 to vector<8x1xf32>
    %104 = arith.addf %103, %102 : vector<8x1xf32>
    %105 = arith.divf %103, %104 : vector<8x1xf32>
    %c0_73 = arith.constant 0 : index
    %c0_74 = arith.constant 0 : index
    %106 = vector.load %arg10[%c0_73, %c0_74] : memref<1x8xf32, #tpu.memory_space<vmem>>, vector<1x8xf32>
    %cst_75 = arith.constant dense<0.000000e+00> : vector<1x2304xf32>
    %107 = tpu.matmul %106, %3, %cst_75 {dimension_numbers = #tpu.dot_dimension_numbers<[1], [0], [0], [1], [0, 0, 1, 1], [], []>} : vector<1x8xf32>, vector<8x2304xf32>, vector<1x2304xf32> -> vector<1x2304xf32>
    %108 = arith.negf %107 : vector<1x2304xf32>
    %109 = math.exp %108 : vector<1x2304xf32>
    %cst_76 = arith.constant 1.000000e+00 : f32
    %110 = vector.broadcast %cst_76 : f32 to vector<1x2304xf32>
    %111 = arith.addf %110, %109 : vector<1x2304xf32>
    %112 = arith.divf %110, %111 : vector<1x2304xf32>
    %113 = vector.broadcast %105 : vector<8x1xf32> to vector<8x2304xf32>
    %114 = vector.broadcast %112 : vector<1x2304xf32> to vector<8x2304xf32>
    %115 = arith.addf %113, %114 : vector<8x2304xf32>
    %116 = arith.mulf %77, %115 : vector<8x2304xf32>
    %c0_77 = arith.constant 0 : index
    %c0_78 = arith.constant 0 : index
    %117 = vector.load %arg11[%c0_77, %c0_78] : memref<8x8xf32, #tpu.memory_space<vmem>>, vector<8x8xf32>
    %cst_79 = arith.constant dense<0.000000e+00> : vector<8x2304xf32>
    %118 = tpu.matmul %117, %116, %cst_79 {dimension_numbers = #tpu.dot_dimension_numbers<[1], [0], [0], [1], [0, 0, 1, 1], [], []>} : vector<8x8xf32>, vector<8x2304xf32>, vector<8x2304xf32> -> vector<8x2304xf32>
    %c0_80 = arith.constant 0 : index
    %c0_81 = arith.constant 0 : index
    %119 = vector.load %arg12[%c0_80, %c0_81] : memref<8x1xf32, #tpu.memory_space<vmem>>, vector<8x1xf32>
    %120 = vector.broadcast %119 : vector<8x1xf32> to vector<8x2304xf32>
    %121 = arith.addf %118, %120 : vector<8x2304xf32>
    %cst_82 = arith.constant 0.000000e+00 : f32
    %122 = vector.broadcast %cst_82 : f32 to vector<8x2304xf32>
    %123 = arith.maximumf %121, %122 : vector<8x2304xf32>
    %124 = arith.addf %77, %123 : vector<8x2304xf32>
    %c0_83 = arith.constant 0 : index
    %c0_84 = arith.constant 0 : index
    %c0_85 = arith.constant 0 : index
    %125 = vector.load %arg13[%c0_83, %c0_84, %c0_85] : memref<1x8x2304xf32, #tpu.memory_space<vmem>>, vector<1x8x2304xf32>
    %126 = vector.shape_cast %125 : vector<1x8x2304xf32> to vector<8x2304xf32>
    %127 = vector.shape_cast %124 : vector<8x2304xf32> to vector<1x8x2304xf32>
    tpu.vector_store %arg13[%c0_83, %c0_84, %c0_85], %127 {strides = array<i32>} : memref<1x8x2304xf32, #tpu.memory_space<vmem>>, vector<1x8x2304xf32>,
    return
  }
  func.func @transform_0(%arg0: i32) -> (i32, i32, i32) {
    %c0_i32 = arith.constant 0 : i32
    %c0_i32_0 = arith.constant 0 : i32
    %c0_i32_1 = arith.constant 0 : i32
    return %arg0, %c0_i32, %c0_i32_0 : i32, i32, i32
  }
  func.func @transform_1(%arg0: i32) -> (i32, i32, i32) {
    %c0_i32 = arith.constant 0 : i32
    %c0_i32_0 = arith.constant 0 : i32
    %c0_i32_1 = arith.constant 0 : i32
    return %arg0, %c0_i32, %c0_i32_0 : i32, i32, i32
  }
  func.func @transform_2(%arg0: i32) -> (i32, i32) {
    %c0_i32 = arith.constant 0 : i32
    %c0_i32_0 = arith.constant 0 : i32
    %c0_i32_1 = arith.constant 0 : i32
    return %c0_i32, %c0_i32_0 : i32, i32
  }
  func.func @transform_3(%arg0: i32) -> (i32, i32) {
    %c0_i32 = arith.constant 0 : i32
    %c0_i32_0 = arith.constant 0 : i32
    %c0_i32_1 = arith.constant 0 : i32
    return %c0_i32, %c0_i32_0 : i32, i32
  }
  func.func @transform_4(%arg0: i32) -> (i32, i32, i32) {
    %c0_i32 = arith.constant 0 : i32
    %c0_i32_0 = arith.constant 0 : i32
    %c0_i32_1 = arith.constant 0 : i32
    %c0_i32_2 = arith.constant 0 : i32
    return %c0_i32, %c0_i32_0, %c0_i32_1 : i32, i32, i32
  }
  func.func @transform_5(%arg0: i32) -> (i32, i32) {
    %c0_i32 = arith.constant 0 : i32
    %c0_i32_0 = arith.constant 0 : i32
    %c0_i32_1 = arith.constant 0 : i32
    return %c0_i32, %c0_i32_0 : i32, i32
  }
  func.func @transform_6(%arg0: i32) -> (i32, i32, i32) {
    %c0_i32 = arith.constant 0 : i32
    %c0_i32_0 = arith.constant 0 : i32
    %c0_i32_1 = arith.constant 0 : i32
    %c0_i32_2 = arith.constant 0 : i32
    return %c0_i32, %c0_i32_0, %c0_i32_1 : i32, i32, i32
  }
  func.func @transform_7(%arg0: i32) -> (i32, i32, i32) {
    %c0_i32 = arith.constant 0 : i32
    %c0_i32_0 = arith.constant 0 : i32
    %c0_i32_1 = arith.constant 0 : i32
    %c0_i32_2 = arith.constant 0 : i32
    return %c0_i32, %c0_i32_0, %c0_i32_1 : i32, i32, i32
  }
  func.func @transform_8(%arg0: i32) -> (i32, i32) {
    %c0_i32 = arith.constant 0 : i32
    %c0_i32_0 = arith.constant 0 : i32
    %c0_i32_1 = arith.constant 0 : i32
    return %c0_i32, %c0_i32_0 : i32, i32
  }
  func.func @transform_9(%arg0: i32) -> (i32, i32) {
    %c0_i32 = arith.constant 0 : i32
    %c0_i32_0 = arith.constant 0 : i32
    %c0_i32_1 = arith.constant 0 : i32
    return %c0_i32, %c0_i32_0 : i32, i32
  }
  func.func @transform_10(%arg0: i32) -> (i32, i32) {
    %c0_i32 = arith.constant 0 : i32
    %c0_i32_0 = arith.constant 0 : i32
    %c0_i32_1 = arith.constant 0 : i32
    return %c0_i32, %c0_i32_0 : i32, i32
  }
  func.func @transform_11(%arg0: i32) -> (i32, i32) {
    %c0_i32 = arith.constant 0 : i32
    %c0_i32_0 = arith.constant 0 : i32
    %c0_i32_1 = arith.constant 0 : i32
    return %c0_i32, %c0_i32_0 : i32, i32
  }
  func.func @transform_12(%arg0: i32) -> (i32, i32, i32) {
    %c0_i32 = arith.constant 0 : i32
    %c0_i32_0 = arith.constant 0 : i32
    %c0_i32_1 = arith.constant 0 : i32
    return %arg0, %c0_i32, %c0_i32_0 : i32, i32, i32
  }
}

</mosaic_0001>

<llo_original>
// kernel: tpu_custom_call.1
$region0: #{tpu_custom_call.1}
  #allocation0 [shape = 'u32[]', space=smem, size = 0x4, offset = 0x4, fixed_abs, tag = 'smem constant byte address 0x4 - core index']
  #allocation1 [shape = 'u32[144,128]{1,0:T(1,128)}', space=vmem, size = 0x12000, scoped, tag = 'internal scratch']
  %s0 = inlined_call_operand.vmem [shape: f32[2,16,2304], index: 0, kind: input, shape index: {}]
  %s1 = inlined_call_operand.vmem [shape: f32[2,8,2304], index: 1, kind: input, shape index: {}]
  %s2 = inlined_call_operand.vmem [shape: f32[9,2304], index: 2, kind: input, shape index: {}]
  %s3 = inlined_call_operand.vmem [shape: f32[2304,9], index: 3, kind: input, shape index: {}]
  %s4 = inlined_call_operand.vmem [shape: f32[9,8,16], index: 4, kind: input, shape index: {}]
  %s5 = inlined_call_operand.vmem [shape: f32[8,1], index: 5, kind: input, shape index: {}]
  %s6 = inlined_call_operand.vmem [shape: f32[4,8,9], index: 6, kind: input, shape index: {}]
  %s7 = inlined_call_operand.vmem [shape: f32[4,8,9], index: 7, kind: input, shape index: {}]
  %s8 = inlined_call_operand.vmem [shape: f32[8,4], index: 8, kind: input, shape index: {}]
  %s9 = inlined_call_operand.vmem [shape: f32[1,8], index: 9, kind: input, shape index: {}]
  %s10 = inlined_call_operand.vmem [shape: f32[8,8], index: 10, kind: input, shape index: {}]
  %s11 = inlined_call_operand.vmem [shape: f32[8,1], index: 11, kind: input, shape index: {}]
  %s12 = inlined_call_operand.hbm [shape: f32[2,8,2304], index: 12, kind: output, shape index: {}]
  %s13 = sld [smem:[#allocation0]]
  $region81: #{tpu_custom_call.1} parent=0
    _
  %s15 = ssub.s32 1, %s13
  %s16 = scalar_select 0, %s15, %s13
  $region1: #{tpu_custom_call.1} parent=0
    #allocation2 [shape = 'u8[147456]{0}', space=vmem, size = 0x24000, scoped, tag = 'output window, operand 0']
    #allocation3 [shape = 's32[2]{0}', space=sflag, size = 0x8, scoped, tag = 'scoped memory for tpu_custom_call.1']
    %17 = vsyncpa [#allocation3], 0
    %s18 = scalar_lea.sflag [#allocation3], 1
    %19 = vsyncpa %s18, 0
    loop: start=0, step=1, limit=4
    $region2: #{tpu_custom_call.1} parent=1 // loop_pre_header
      _
    $region3: #{tpu_custom_call.1} parent=1 // loop_header
      %s21 = sphi 0, %s25
      %p22 = scmp.ge.s32.totalorder %s21, 4
      %s31 = sphi 0, %s33
      %s34 = sphi 0, %s31
      %s35 = sphi 0, %s34
      %s51 = sphi 0, %s35
      %s57 = sphi 0, %s59
      %s60 = sphi 0, %s57
      %s61 = sphi 0, %s60
      %s77 = sphi 0, %s61
      %s81 = sphi 0, %s81
      %s83 = sphi 0, %s81
      %s84 = sphi 0, %s83
      %s98 = sphi 0, %s84
      %s102 = sphi 0, %s102
      %s104 = sphi 0, %s102
      %s105 = sphi 0, %s104
      %s119 = sphi 0, %s105
      %s123 = sphi 0, %s123
      %s125 = sphi 0, %s123
      %s126 = sphi 0, %s125
      %s140 = sphi 0, %s126
      %s144 = sphi 0, %s144
      %s146 = sphi 0, %s144
      %s147 = sphi 0, %s146
      %s161 = sphi 0, %s147
      %s165 = sphi 0, %s165
      %s167 = sphi 0, %s165
      %s168 = sphi 0, %s167
      %s182 = sphi 0, %s168
      %s186 = sphi 0, %s186
      %s188 = sphi 0, %s186
      %s189 = sphi 0, %s188
      %s203 = sphi 0, %s189
      %s207 = sphi 0, %s207
      %s209 = sphi 0, %s207
      %s210 = sphi 0, %s209
      %s224 = sphi 0, %s210
      %s228 = sphi 0, %s228
      %s230 = sphi 0, %s228
      %s231 = sphi 0, %s230
      %s245 = sphi 0, %s231
      %s249 = sphi 0, %s249
      %s251 = sphi 0, %s249
      %s252 = sphi 0, %s251
      %s266 = sphi 0, %s252
      %s270 = sphi 0, %s270
      %s272 = sphi 0, %s270
      %s273 = sphi 0, %s272
      %s287 = sphi 0, %s273
      %s293 = sphi 0, %s295
      %s296 = sphi 0, %s293
      %s297 = sphi 0, %s296
      %s313 = sphi 0, %s297
    $region4: #{tpu_custom_call.1} parent=1 // loop_header_branch
      %24 = sbr.rel (%p22) target = $region8
    $region5: #{tpu_custom_call.1} parent=1 // loop_body
      %s26 = ssub.s32 %s21, 1
      %s27 = ssub.s32 %s21, 2
      %s28 = sadd.s32 %s21, 1
      %s29 = ssub.s32 %s21, %s28
      %p30 = scmp.eq.s32.totalorder %s29, 0
      %s32 = sadd.s32 %s31, 1
      %s33 = scalar_select %p30, %s31, %s32
      %p36 = pneg %p30
      %p37 = scmp.eq.s32.totalorder %s21, 1
      %p38 = por %p36, %p37
      %p39 = scmp.ne.s32.totalorder %s31, %s34
      %p40 = scmp.eq.s32.totalorder %s21, 0
      %p41 = por %p39, %p40
      %p42 = scmp.ne.s32.totalorder %s31, %s34
      %p43 = scmp.eq.s32.totalorder %s26, 1
      %p44 = por %p42, %p43
      %p45 = scmp.ne.s32.totalorder %s34, %s35
      %p46 = scmp.eq.s32.totalorder %s26, 0
      %p47 = por %p45, %p46
      %p48 = scmp.ne.s32.totalorder %s34, %s35
      %p49 = scmp.eq.s32.totalorder %s27, 1
      %p50 = por %p48, %p49
      %p52 = scmp.ne.s32.totalorder %s35, %s51
      %p53 = scmp.eq.s32.totalorder %s27, 0
      %p54 = por %p52, %p53
      %s55 = ssub.s32 %s21, %s28
      %p56 = scmp.eq.s32.totalorder %s55, 0
      %s58 = sadd.s32 %s57, 1
      %s59 = scalar_select %p56, %s57, %s58
      %p62 = pneg %p56
      %p63 = scmp.eq.s32.totalorder %s21, 1
      %p64 = por %p62, %p63
      %p65 = scmp.ne.s32.totalorder %s57, %s60
      %p66 = scmp.eq.s32.totalorder %s21, 0
      %p67 = por %p65, %p66
      %p68 = scmp.ne.s32.totalorder %s57, %s60
      %p69 = scmp.eq.s32.totalorder %s26, 1
      %p70 = por %p68, %p69
      %p71 = scmp.ne.s32.totalorder %s60, %s61
      %p72 = scmp.eq.s32.totalorder %s26, 0
      %p73 = por %p71, %p72
      %p74 = scmp.ne.s32.totalorder %s60, %s61
      %p75 = scmp.eq.s32.totalorder %s27, 1
      %p76 = por %p74, %p75
      %p78 = scmp.ne.s32.totalorder %s61, %s77
      %p79 = scmp.eq.s32.totalorder %s27, 0
      %p80 = por %p78, %p79
      %s82 = sadd.s32 %s81, 1
      %p85 = scmp.eq.s32.totalorder %s21, 1
      %p86 = scmp.ne.s32.totalorder %s81, %s83
      %p87 = scmp.eq.s32.totalorder %s21, 0
      %p88 = por %p86, %p87
      %p89 = scmp.ne.s32.totalorder %s81, %s83
      %p90 = scmp.eq.s32.totalorder %s26, 1
      %p91 = por %p89, %p90
      %p92 = scmp.ne.s32.totalorder %s83, %s84
      %p93 = scmp.eq.s32.totalorder %s26, 0
      %p94 = por %p92, %p93
      %p95 = scmp.ne.s32.totalorder %s83, %s84
      %p96 = scmp.eq.s32.totalorder %s27, 1
      %p97 = por %p95, %p96
      %p99 = scmp.ne.s32.totalorder %s84, %s98
      %p100 = scmp.eq.s32.totalorder %s27, 0
      %p101 = por %p99, %p100
      %s103 = sadd.s32 %s102, 1
      %p106 = scmp.eq.s32.totalorder %s21, 1
      %p107 = scmp.ne.s32.totalorder %s102, %s104
      %p108 = scmp.eq.s32.totalorder %s21, 0
      %p109 = por %p107, %p108
      %p110 = scmp.ne.s32.totalorder %s102, %s104
      %p111 = scmp.eq.s32.totalorder %s26, 1
      %p112 = por %p110, %p111
      %p113 = scmp.ne.s32.totalorder %s104, %s105
      %p114 = scmp.eq.s32.totalorder %s26, 0
      %p115 = por %p113, %p114
      %p116 = scmp.ne.s32.totalorder %s104, %s105
      %p117 = scmp.eq.s32.totalorder %s27, 1
      %p118 = por %p116, %p117
      %p120 = scmp.ne.s32.totalorder %s105, %s119
      %p121 = scmp.eq.s32.totalorder %s27, 0
      %p122 = por %p120, %p121
      %s124 = sadd.s32 %s123, 1
      %p127 = scmp.eq.s32.totalorder %s21, 1
      %p128 = scmp.ne.s32.totalorder %s123, %s125
      %p129 = scmp.eq.s32.totalorder %s21, 0
      %p130 = por %p128, %p129
      %p131 = scmp.ne.s32.totalorder %s123, %s125
      %p132 = scmp.eq.s32.totalorder %s26, 1
      %p133 = por %p131, %p132
      %p134 = scmp.ne.s32.totalorder %s125, %s126
      %p135 = scmp.eq.s32.totalorder %s26, 0
      %p136 = por %p134, %p135
      %p137 = scmp.ne.s32.totalorder %s125, %s126
      %p138 = scmp.eq.s32.totalorder %s27, 1
      %p139 = por %p137, %p138
      %p141 = scmp.ne.s32.totalorder %s126, %s140
      %p142 = scmp.eq.s32.totalorder %s27, 0
      %p143 = por %p141, %p142
      %s145 = sadd.s32 %s144, 1
      %p148 = scmp.eq.s32.totalorder %s21, 1
      %p149 = scmp.ne.s32.totalorder %s144, %s146
      %p150 = scmp.eq.s32.totalorder %s21, 0
      %p151 = por %p149, %p150
      %p152 = scmp.ne.s32.totalorder %s144, %s146
      %p153 = scmp.eq.s32.totalorder %s26, 1
      %p154 = por %p152, %p153
      %p155 = scmp.ne.s32.totalorder %s146, %s147
      %p156 = scmp.eq.s32.totalorder %s26, 0
      %p157 = por %p155, %p156
      %p158 = scmp.ne.s32.totalorder %s146, %s147
      %p159 = scmp.eq.s32.totalorder %s27, 1
      %p160 = por %p158, %p159
      %p162 = scmp.ne.s32.totalorder %s147, %s161
      %p163 = scmp.eq.s32.totalorder %s27, 0
      %p164 = por %p162, %p163
      %s166 = sadd.s32 %s165, 1
      %p169 = scmp.eq.s32.totalorder %s21, 1
      %p170 = scmp.ne.s32.totalorder %s165, %s167
      %p171 = scmp.eq.s32.totalorder %s21, 0
      %p172 = por %p170, %p171
      %p173 = scmp.ne.s32.totalorder %s165, %s167
      %p174 = scmp.eq.s32.totalorder %s26, 1
      %p175 = por %p173, %p174
      %p176 = scmp.ne.s32.totalorder %s167, %s168
      %p177 = scmp.eq.s32.totalorder %s26, 0
      %p178 = por %p176, %p177
      %p179 = scmp.ne.s32.totalorder %s167, %s168
      %p180 = scmp.eq.s32.totalorder %s27, 1
      %p181 = por %p179, %p180
      %p183 = scmp.ne.s32.totalorder %s168, %s182
      %p184 = scmp.eq.s32.totalorder %s27, 0
      %p185 = por %p183, %p184
      %s187 = sadd.s32 %s186, 1
      %p190 = scmp.eq.s32.totalorder %s21, 1
      %p191 = scmp.ne.s32.totalorder %s186, %s188
      %p192 = scmp.eq.s32.totalorder %s21, 0
      %p193 = por %p191, %p192
      %p194 = scmp.ne.s32.totalorder %s186, %s188
      %p195 = scmp.eq.s32.totalorder %s26, 1
      %p196 = por %p194, %p195
      %p197 = scmp.ne.s32.totalorder %s188, %s189
      %p198 = scmp.eq.s32.totalorder %s26, 0
      %p199 = por %p197, %p198
      %p200 = scmp.ne.s32.totalorder %s188, %s189
      %p201 = scmp.eq.s32.totalorder %s27, 1
      %p202 = por %p200, %p201
      %p204 = scmp.ne.s32.totalorder %s189, %s203
      %p205 = scmp.eq.s32.totalorder %s27, 0
      %p206 = por %p204, %p205
      %s208 = sadd.s32 %s207, 1
      %p211 = scmp.eq.s32.totalorder %s21, 1
      %p212 = scmp.ne.s32.totalorder %s207, %s209
      %p213 = scmp.eq.s32.totalorder %s21, 0
      %p214 = por %p212, %p213
      %p215 = scmp.ne.s32.totalorder %s207, %s209
      %p216 = scmp.eq.s32.totalorder %s26, 1
      %p217 = por %p215, %p216
      %p218 = scmp.ne.s32.totalorder %s209, %s210
      %p219 = scmp.eq.s32.totalorder %s26, 0
      %p220 = por %p218, %p219
      %p221 = scmp.ne.s32.totalorder %s209, %s210
      %p222 = scmp.eq.s32.totalorder %s27, 1
      %p223 = por %p221, %p222
      %p225 = scmp.ne.s32.totalorder %s210, %s224
      %p226 = scmp.eq.s32.totalorder %s27, 0
      %p227 = por %p225, %p226
      %s229 = sadd.s32 %s228, 1
      %p232 = scmp.eq.s32.totalorder %s21, 1
      %p233 = scmp.ne.s32.totalorder %s228, %s230
      %p234 = scmp.eq.s32.totalorder %s21, 0
      %p235 = por %p233, %p234
      %p236 = scmp.ne.s32.totalorder %s228, %s230
      %p237 = scmp.eq.s32.totalorder %s26, 1
      %p238 = por %p236, %p237
      %p239 = scmp.ne.s32.totalorder %s230, %s231
      %p240 = scmp.eq.s32.totalorder %s26, 0
      %p241 = por %p239, %p240
      %p242 = scmp.ne.s32.totalorder %s230, %s231
      %p243 = scmp.eq.s32.totalorder %s27, 1
      %p244 = por %p242, %p243
      %p246 = scmp.ne.s32.totalorder %s231, %s245
      %p247 = scmp.eq.s32.totalorder %s27, 0
      %p248 = por %p246, %p247
      %s250 = sadd.s32 %s249, 1
      %p253 = scmp.eq.s32.totalorder %s21, 1
      %p254 = scmp.ne.s32.totalorder %s249, %s251
      %p255 = scmp.eq.s32.totalorder %s21, 0
      %p256 = por %p254, %p255
      %p257 = scmp.ne.s32.totalorder %s249, %s251
      %p258 = scmp.eq.s32.totalorder %s26, 1
      %p259 = por %p257, %p258
      %p260 = scmp.ne.s32.totalorder %s251, %s252
      %p261 = scmp.eq.s32.totalorder %s26, 0
      %p262 = por %p260, %p261
      %p263 = scmp.ne.s32.totalorder %s251, %s252
      %p264 = scmp.eq.s32.totalorder %s27, 1
      %p265 = por %p263, %p264
      %p267 = scmp.ne.s32.totalorder %s252, %s266
      %p268 = scmp.eq.s32.totalorder %s27, 0
      %p269 = por %p267, %p268
      %s271 = sadd.s32 %s270, 1
      %p274 = scmp.eq.s32.totalorder %s21, 1
      %p275 = scmp.ne.s32.totalorder %s270, %s272
      %p276 = scmp.eq.s32.totalorder %s21, 0
      %p277 = por %p275, %p276
      %p278 = scmp.ne.s32.totalorder %s270, %s272
      %p279 = scmp.eq.s32.totalorder %s26, 1
      %p280 = por %p278, %p279
      %p281 = scmp.ne.s32.totalorder %s272, %s273
      %p282 = scmp.eq.s32.totalorder %s26, 0
      %p283 = por %p281, %p282
      %p284 = scmp.ne.s32.totalorder %s272, %s273
      %p285 = scmp.eq.s32.totalorder %s27, 1
      %p286 = por %p284, %p285
      %p288 = scmp.ne.s32.totalorder %s273, %s287
      %p289 = scmp.eq.s32.totalorder %s27, 0
      %p290 = por %p288, %p289
      %s291 = ssub.s32 %s21, %s28
      %p292 = scmp.eq.s32.totalorder %s291, 0
      %s294 = sadd.s32 %s293, 1
      %s295 = scalar_select %p292, %s293, %s294
      %p298 = pneg %p292
      %p299 = scmp.eq.s32.totalorder %s21, 1
      %p300 = por %p298, %p299
      %p301 = scmp.ne.s32.totalorder %s293, %s296
      %p302 = scmp.eq.s32.totalorder %s21, 0
      %p303 = por %p301, %p302
      %p304 = scmp.ne.s32.totalorder %s293, %s296
      %p305 = scmp.eq.s32.totalorder %s26, 1
      %p306 = por %p304, %p305
      %p307 = scmp.ne.s32.totalorder %s296, %s297
      %p308 = scmp.eq.s32.totalorder %s26, 0
      %p309 = por %p307, %p308
      %p310 = scmp.ne.s32.totalorder %s296, %s297
      %p311 = scmp.eq.s32.totalorder %s27, 1
      %p312 = por %p310, %p311
      %p314 = scmp.ne.s32.totalorder %s297, %s313
      %p315 = scmp.eq.s32.totalorder %s27, 0
      %p316 = por %p314, %p315
      %p317 = scmp.le.s32.totalorder 1, %s21
      %p318 = scmp.lt.s32.totalorder %s21, 3
      %p319 = pnand %p317, %p318
      %p320 = pneg %p319
      // Predicated region
      $region9: #{tpu_custom_call.1} parent=5 // pred_check
        _
      $region10: #{tpu_custom_call.1} parent=5 // pred_check_branch
        %322 = sbr.rel (%p319) target = $region12
      $region11: #{tpu_custom_call.1} parent=5 // pred_region
        %s323 = ssub.s32 %s21, 1
        // Predicated region
        $region13: #{tpu_custom_call.1} parent=11 // pred_check
          %p324 = pneg %p94
        $region14: #{tpu_custom_call.1} parent=11 // pred_check_branch
          %326 = sbr.rel (%p324) target = $region16
        $region15: #{tpu_custom_call.1} parent=11 // pred_region
          _
        $region16: #{tpu_custom_call.1} parent=11 // pred_fallthru
          _
        // Predicated region
        $region17: #{tpu_custom_call.1} parent=11 // pred_check
          %p327 = pneg %p115
        $region18: #{tpu_custom_call.1} parent=11 // pred_check_branch
          %329 = sbr.rel (%p327) target = $region20
        $region19: #{tpu_custom_call.1} parent=11 // pred_region
          _
        $region20: #{tpu_custom_call.1} parent=11 // pred_fallthru
          _
        // Predicated region
        $region21: #{tpu_custom_call.1} parent=11 // pred_check
          %p330 = pneg %p136
        $region22: #{tpu_custom_call.1} parent=11 // pred_check_branch
          %332 = sbr.rel (%p330) target = $region24
        $region23: #{tpu_custom_call.1} parent=11 // pred_region
          _
        $region24: #{tpu_custom_call.1} parent=11 // pred_fallthru
          _
        // Predicated region
        $region25: #{tpu_custom_call.1} parent=11 // pred_check
          %p333 = pneg %p157
        $region26: #{tpu_custom_call.1} parent=11 // pred_check_branch
          %335 = sbr.rel (%p333) target = $region28
        $region27: #{tpu_custom_call.1} parent=11 // pred_region
          _
        $region28: #{tpu_custom_call.1} parent=11 // pred_fallthru
          _
        // Predicated region
        $region29: #{tpu_custom_call.1} parent=11 // pred_check
          %p336 = pneg %p178
        $region30: #{tpu_custom_call.1} parent=11 // pred_check_branch
          %338 = sbr.rel (%p336) target = $region32
        $region31: #{tpu_custom_call.1} parent=11 // pred_region
          _
        $region32: #{tpu_custom_call.1} parent=11 // pred_fallthru
          _
        // Predicated region
        $region33: #{tpu_custom_call.1} parent=11 // pred_check
          %p339 = pneg %p199
        $region34: #{tpu_custom_call.1} parent=11 // pred_check_branch
          %341 = sbr.rel (%p339) target = $region36
        $region35: #{tpu_custom_call.1} parent=11 // pred_region
          _
        $region36: #{tpu_custom_call.1} parent=11 // pred_fallthru
          _
        // Predicated region
        $region37: #{tpu_custom_call.1} parent=11 // pred_check
          %p342 = pneg %p220
        $region38: #{tpu_custom_call.1} parent=11 // pred_check_branch
          %344 = sbr.rel (%p342) target = $region40
        $region39: #{tpu_custom_call.1} parent=11 // pred_region
          _
        $region40: #{tpu_custom_call.1} parent=11 // pred_fallthru
          _
        // Predicated region
        $region41: #{tpu_custom_call.1} parent=11 // pred_check
          %p345 = pneg %p241
        $region42: #{tpu_custom_call.1} parent=11 // pred_check_branch
          %347 = sbr.rel (%p345) target = $region44
        $region43: #{tpu_custom_call.1} parent=11 // pred_region
          _
        $region44: #{tpu_custom_call.1} parent=11 // pred_fallthru
          _
        // Predicated region
        $region45: #{tpu_custom_call.1} parent=11 // pred_check
          %p348 = pneg %p262
        $region46: #{tpu_custom_call.1} parent=11 // pred_check_branch
          %350 = sbr.rel (%p348) target = $region48
        $region47: #{tpu_custom_call.1} parent=11 // pred_region
          _
        $region48: #{tpu_custom_call.1} parent=11 // pred_fallthru
          _
        // Predicated region
        $region49: #{tpu_custom_call.1} parent=11 // pred_check
          %p351 = pneg %p283
        $region50: #{tpu_custom_call.1} parent=11 // pred_check_branch
          %353 = sbr.rel (%p351) target = $region52
        $region51: #{tpu_custom_call.1} parent=11 // pred_region
          _
        $region52: #{tpu_custom_call.1} parent=11 // pred_fallthru
          _
      $region12: #{tpu_custom_call.1} parent=5 // pred_fallthru
        _
      %p354 = scmp.lt.s32.totalorder %s21, 2
      // Predicated region
      $region53: #{tpu_custom_call.1} parent=5 // pred_check
        %p355 = pneg %p354
      $region54: #{tpu_custom_call.1} parent=5 // pred_check_branch
        %357 = sbr.rel (%p355) target = $region56
      $region55: #{tpu_custom_call.1} parent=5 // pred_region
        // Predicated region
        $region57: #{tpu_custom_call.1} parent=55 // pred_check
          %p358 = pneg %p41
        $region58: #{tpu_custom_call.1} parent=55 // pred_check_branch
          %360 = sbr.rel (%p358) target = $region60
        $region59: #{tpu_custom_call.1} parent=55 // pred_region
          %p361 = scmp.lt.s32.totalorder %s21, 1
          %s362 = scalar_select %p361, %s21, 1
          %s363 = smul.addr %s362, 36
          %s364 = smul.addr %s363, 8
          %s365 = scalar_lea.vmem %s0, %s364
        $region60: #{tpu_custom_call.1} parent=55 // pred_fallthru
          _
        // Predicated region
        $region61: #{tpu_custom_call.1} parent=55 // pred_check
          %p366 = pneg %p67
        $region62: #{tpu_custom_call.1} parent=55 // pred_check_branch
          %368 = sbr.rel (%p366) target = $region64
        $region63: #{tpu_custom_call.1} parent=55 // pred_region
          %p369 = scmp.lt.s32.totalorder %s21, 1
          %s370 = scalar_select %p369, %s21, 1
          %s371 = smul.addr %s370, 18
          %s372 = smul.addr %s371, 8
          %s373 = scalar_lea.vmem %s1, %s372
        $region64: #{tpu_custom_call.1} parent=55 // pred_fallthru
          _
      $region56: #{tpu_custom_call.1} parent=5 // pred_fallthru
        _
      %p374 = scmp.le.s32.totalorder 1, %s21
      %p375 = scmp.lt.s32.totalorder %s21, 3
      %p376 = pnand %p374, %p375
      %p377 = pneg %p376
      // Predicated region
      $region65: #{tpu_custom_call.1} parent=5 // pred_check
        _
      $region66: #{tpu_custom_call.1} parent=5 // pred_check_branch
        %379 = sbr.rel (%p376) target = $region68
      $region67: #{tpu_custom_call.1} parent=5 // pred_region
        %s380 = ssub.s32 %s21, 1
        %p381 = scmp.lt.s32.totalorder %s26, 1
        %s382 = scalar_select %p381, %s26, 1
        %s383 = smul.addr %s382, 36
        %s384 = smul.addr %s383, 8
        %s385 = scalar_lea.vmem %s0, %s384
        %p386 = pneg %p47
        %p387 = pneg %p44
        %p388 = scmp.lt.s32.totalorder %s26, 1
        %s389 = scalar_select %p388, %s26, 1
        %s390 = smul.addr %s389, 18
        %s391 = smul.addr %s390, 8
        %s392 = scalar_lea.vmem %s1, %s391
        %p393 = pneg %p73
        %p394 = pneg %p70
        %p395 = pneg %p94
        %p396 = pneg %p91
        %p397 = pneg %p115
        %p398 = pneg %p112
        %p399 = pneg %p136
        %p400 = pneg %p133
        %p401 = pneg %p157
        %p402 = pneg %p154
        %p403 = pneg %p178
        %p404 = pneg %p175
        %p405 = pneg %p199
        %p406 = pneg %p196
        %p407 = pneg %p220
        %p408 = pneg %p217
        %p409 = pneg %p241
        %p410 = pneg %p238
        %p411 = pneg %p262
        %p412 = pneg %p259
        %p413 = pneg %p283
        %p414 = pneg %p280
        %p415 = pneg %p309
        %p416 = pneg %p306
        %s417 = sand.u32 %s296, 1
        %s418 = scalar_lea.sflag [#allocation3], %s417
        %s419 = sand.u32 %s296, 1
        %s420 = smul.addr %s419, 144
        %s421 = scalar_lea.vmem [#allocation2], %s420
        %p422 = scmp.lt.s32.totalorder %s26, 1
        %s423 = scalar_select %p422, %s26, 1
        %s424 = smul.addr %s423, 36
        %s425 = smul.addr %s424, 8
        %s426 = scalar_lea.vmem %s0, %s425
        %p427 = scmp.lt.s32.totalorder %s26, 1
        %s428 = scalar_select %p427, %s26, 1
        %s429 = smul.addr %s428, 18
        %s430 = smul.addr %s429, 8
        %s431 = scalar_lea.vmem %s1, %s430
        %v432 = vld [vmem:[%s426] sm:$0xff]
        %v433 = vld [vmem:[%s426 + $0x8] sm:$0xff]
        %v434 = vld [vmem:[%s426 + $0x10] sm:$0xff]
        %v435 = vld [vmem:[%s426 + $0x18] sm:$0xff]
        %v436 = vld [vmem:[%s426 + $0x20] sm:$0xff]
        %v437 = vld [vmem:[%s426 + $0x28] sm:$0xff]
        %v438 = vld [vmem:[%s426 + $0x30] sm:$0xff]
        %v439 = vld [vmem:[%s426 + $0x38] sm:$0xff]
        %v440 = vld [vmem:[%s426 + $0x40] sm:$0xff]
        %v441 = vld [vmem:[%s426 + $0x48] sm:$0xff]
        %v442 = vld [vmem:[%s426 + $0x50] sm:$0xff]
        %v443 = vld [vmem:[%s426 + $0x58] sm:$0xff]
        %v444 = vld [vmem:[%s426 + $0x60] sm:$0xff]
        %v445 = vld [vmem:[%s426 + $0x68] sm:$0xff]
        %v446 = vld [vmem:[%s426 + $0x70] sm:$0xff]
        %v447 = vld [vmem:[%s426 + $0x78] sm:$0xff]
        %v448 = vld [vmem:[%s426 + $0x80] sm:$0xff]
        %v449 = vld [vmem:[%s426 + $0x88] sm:$0xff]
        %v450 = vld [vmem:[%s426 + $0x90] sm:$0xff]
        %v451 = vld [vmem:[%s426 + $0x98] sm:$0xff]
        %v452 = vld [vmem:[%s426 + $0xa0] sm:$0xff]
        %v453 = vld [vmem:[%s426 + $0xa8] sm:$0xff]
        %v454 = vld [vmem:[%s426 + $0xb0] sm:$0xff]
        %v455 = vld [vmem:[%s426 + $0xb8] sm:$0xff]
        %v456 = vld [vmem:[%s426 + $0xc0] sm:$0xff]
        %v457 = vld [vmem:[%s426 + $0xc8] sm:$0xff]
        %v458 = vld [vmem:[%s426 + $0xd0] sm:$0xff]
        %v459 = vld [vmem:[%s426 + $0xd8] sm:$0xff]
        %v460 = vld [vmem:[%s426 + $0xe0] sm:$0xff]
        %v461 = vld [vmem:[%s426 + $0xe8] sm:$0xff]
        %v462 = vld [vmem:[%s426 + $0xf0] sm:$0xff]
        %v463 = vld [vmem:[%s426 + $0xf8] sm:$0xff]
        %v464 = vld [vmem:[%s426 + $0x100] sm:$0xff]
        %v465 = vld [vmem:[%s426 + $0x108] sm:$0xff]
        %v466 = vld [vmem:[%s426 + $0x110] sm:$0xff]
        %v467 = vld [vmem:[%s426 + $0x118] sm:$0xff]
        %v468 = vld [vmem:[%s431] sm:$0xff]
        %v469 = vld [vmem:[%s431 + $0x8] sm:$0xff]
        %v470 = vld [vmem:[%s431 + $0x10] sm:$0xff]
        %v471 = vld [vmem:[%s431 + $0x18] sm:$0xff]
        %v472 = vld [vmem:[%s431 + $0x20] sm:$0xff]
        %v473 = vld [vmem:[%s431 + $0x28] sm:$0xff]
        %v474 = vld [vmem:[%s431 + $0x30] sm:$0xff]
        %v475 = vld [vmem:[%s431 + $0x38] sm:$0xff]
        %v476 = vld [vmem:[%s431 + $0x40] sm:$0xff]
        %v477 = vld [vmem:[%s431 + $0x48] sm:$0xff]
        %v478 = vld [vmem:[%s431 + $0x50] sm:$0xff]
        %v479 = vld [vmem:[%s431 + $0x58] sm:$0xff]
        %v480 = vld [vmem:[%s431 + $0x60] sm:$0xff]
        %v481 = vld [vmem:[%s431 + $0x68] sm:$0xff]
        %v482 = vld [vmem:[%s431 + $0x70] sm:$0xff]
        %v483 = vld [vmem:[%s431 + $0x78] sm:$0xff]
        %v484 = vld [vmem:[%s431 + $0x80] sm:$0xff]
        %v485 = vld [vmem:[%s431 + $0x88] sm:$0xff]
        %v486 = vld [vmem:[%s4] sm:$0xff]
        %vm487 = vcmask 130048
        %v489 = vsel %vm487, %v486, 0
        %491 = vmatprep.subr.mxu0 %v433
        %492 = vmatpush1.msra.mxu0 %v432
        %493 = vmatprep.subr.mxu0 %v451
        %494 = vmatpush1.msra.mxu0 %v450
        %495 = vmatprep.subr.mxu0 0.0
        %496 = vmatpush1.msra.mxu0 0.0
        %497 = vmatprep.subr.mxu0 0.0
        %498 = vmatpush1.msra.mxu0 0.0
        %499 = vmatprep.subr.mxu0 0.0
        %500 = vmatpush1.msra.mxu0 0.0
        %501 = vmatprep.subr.mxu0 0.0
        %502 = vmatpush1.msra.mxu0 0.0
        %503 = vmatprep.subr.mxu0 0.0
        %504 = vmatpush1.msra.mxu0 0.0
        %505 = vmatprep.subr.mxu0 0.0
        %506 = vmatpush1.msra.mxu0 0.0
        %507 = vmatprep.subr.mxu0 0.0
        %508 = vmatpush1.msra.mxu0 0.0
        %509 = vmatprep.subr.mxu0 0.0
        %510 = vmatpush1.msra.mxu0 0.0
        %511 = vmatprep.subr.mxu0 0.0
        %512 = vmatpush1.msra.mxu0 0.0
        %513 = vmatprep.subr.mxu0 0.0
        %514 = vmatpush1.msra.mxu0 0.0
        %515 = vmatprep.subr.mxu0 0.0
        %516 = vmatpush1.msra.mxu0 0.0
        %517 = vmatprep.subr.mxu0 0.0
        %518 = vmatpush1.msra.mxu0 0.0
        %519 = vmatprep.subr.mxu0 0.0
        %520 = vmatpush1.msra.mxu0 0.0
        %521 = vmatprep.subr.mxu0 0.0
        %522 = vmatpush1.msra.mxu0 0.0
        %523 = vmatprep.subr.mxu0 0.0
        %524 = vmatpush1.msra.mxu0 0.0
        %525 = vmatprep.subr.mxu0 0.0
        %526 = vmatpush1.msra.mxu0 0.0
        %527 = vmatprep.subr.mxu0 0.0
        %528 = vmatpush1.msra.mxu0 0.0
        %529 = vmatprep.subr.mxu0 0.0
        %530 = vmatpush1.msra.mxu0 0.0
        %531 = vmatprep.subr.mxu0 0.0
        %532 = vmatpush1.msra.mxu0 0.0
        %533 = vmatprep.subr.mxu0 0.0
        %534 = vmatpush1.msra.mxu0 0.0
        %535 = vmatprep.subr.mxu0 0.0
        %536 = vmatpush1.msra.mxu0 0.0
        %537 = vmatprep.subr.mxu0 0.0
        %538 = vmatpush1.msra.mxu0 0.0
        %539 = vmatprep.subr.mxu0 0.0
        %540 = vmatpush1.msra.mxu0 0.0
        %541 = vmatprep.subr.mxu0 0.0
        %542 = vmatpush1.msra.mxu0 0.0
        %543 = vmatprep.subr.mxu0 0.0
        %544 = vmatpush1.msra.mxu0 0.0
        %545 = vmatprep.subr.mxu0 0.0
        %546 = vmatpush1.msra.mxu0 0.0
        %547 = vmatprep.subr.mxu0 0.0
        %548 = vmatpush1.msra.mxu0 0.0
        %549 = vmatprep.subr.mxu0 0.0
        %550 = vmatpush1.msra.mxu0 0.0
        %551 = vmatprep.subr.mxu0 0.0
        %552 = vmatpush1.msra.mxu0 0.0
        %553 = vmatprep.subr.mxu0 0.0
        %554 = vmatpush1.msra.mxu0 0.0
        %555 = vmatprep.mubr.f32.mxu0 0.0
        %556 = vmatmul.mubr.f32.gmra.mrb[0].mxu0 %v489
        %v557 = vpop.f32.mrb[0].mxu0
        %v558 = vadd.f32 0.0, %v557
        %v559 = vpop.f32.mrb[0].mxu0
        %v560 = vadd.f32 0.0, %v559
        %561 = vdwg.mxu0
        %562 = vmatprep.subr.mxu0 %v435
        %563 = vmatpush1.msra.mxu0 %v434
        %564 = vmatprep.subr.mxu0 %v453
        %565 = vmatpush1.msra.mxu0 %v452
        %566 = vmatprep.subr.mxu0 0.0
        %567 = vmatpush1.msra.mxu0 0.0
        %568 = vmatprep.subr.mxu0 0.0
        %569 = vmatpush1.msra.mxu0 0.0
        %570 = vmatprep.subr.mxu0 0.0
        %571 = vmatpush1.msra.mxu0 0.0
        %572 = vmatprep.subr.mxu0 0.0
        %573 = vmatpush1.msra.mxu0 0.0
        %574 = vmatprep.subr.mxu0 0.0
        %575 = vmatpush1.msra.mxu0 0.0
        %576 = vmatprep.subr.mxu0 0.0
        %577 = vmatpush1.msra.mxu0 0.0
        %578 = vmatprep.subr.mxu0 0.0
        %579 = vmatpush1.msra.mxu0 0.0
        %580 = vmatprep.subr.mxu0 0.0
        %581 = vmatpush1.msra.mxu0 0.0
        %582 = vmatprep.subr.mxu0 0.0
        %583 = vmatpush1.msra.mxu0 0.0
        %584 = vmatprep.subr.mxu0 0.0
        %585 = vmatpush1.msra.mxu0 0.0
        %586 = vmatprep.subr.mxu0 0.0
        %587 = vmatpush1.msra.mxu0 0.0
        %588 = vmatprep.subr.mxu0 0.0
        %589 = vmatpush1.msra.mxu0 0.0
        %590 = vmatprep.subr.mxu0 0.0
        %591 = vmatpush1.msra.mxu0 0.0
        %592 = vmatprep.subr.mxu0 0.0
        %593 = vmatpush1.msra.mxu0 0.0
        %594 = vmatprep.subr.mxu0 0.0
        %595 = vmatpush1.msra.mxu0 0.0
        %596 = vmatprep.subr.mxu0 0.0
        %597 = vmatpush1.msra.mxu0 0.0
        %598 = vmatprep.subr.mxu0 0.0
        %599 = vmatpush1.msra.mxu0 0.0
        %600 = vmatprep.subr.mxu0 0.0
        %601 = vmatpush1.msra.mxu0 0.0
        %602 = vmatprep.subr.mxu0 0.0
        %603 = vmatpush1.msra.mxu0 0.0
        %604 = vmatprep.subr.mxu0 0.0
        %605 = vmatpush1.msra.mxu0 0.0
        %606 = vmatprep.subr.mxu0 0.0
        %607 = vmatpush1.msra.mxu0 0.0
        %608 = vmatprep.subr.mxu0 0.0
        %609 = vmatpush1.msra.mxu0 0.0
        %610 = vmatprep.subr.mxu0 0.0
        %611 = vmatpush1.msra.mxu0 0.0
        %612 = vmatprep.subr.mxu0 0.0
        %613 = vmatpush1.msra.mxu0 0.0
        %614 = vmatprep.subr.mxu0 0.0
        %615 = vmatpush1.msra.mxu0 0.0
        %616 = vmatprep.subr.mxu0 0.0
        %617 = vmatpush1.msra.mxu0 0.0
        %618 = vmatprep.subr.mxu0 0.0
        %619 = vmatpush1.msra.mxu0 0.0
        %620 = vmatprep.subr.mxu0 0.0
        %621 = vmatpush1.msra.mxu0 0.0
        %622 = vmatprep.subr.mxu0 0.0
        %623 = vmatpush1.msra.mxu0 0.0
        %624 = vmatprep.subr.mxu0 0.0
        %625 = vmatpush1.msra.mxu0 0.0
        %626 = vmatprep.mubr.f32.mxu0 0.0
        %627 = vmatmul.mubr.f32.gmra.mrb[0].mxu0 %v489
        %v628 = vpop.f32.mrb[0].mxu0
        %v629 = vadd.f32 0.0, %v628
        %v630 = vpop.f32.mrb[0].mxu0
        %v631 = vadd.f32 0.0, %v630
        %632 = vdwg.mxu0
        %633 = vmatprep.subr.mxu0 %v437
        %634 = vmatpush1.msra.mxu0 %v436
        %635 = vmatprep.subr.mxu0 %v455
        %636 = vmatpush1.msra.mxu0 %v454
        %637 = vmatprep.subr.mxu0 0.0
        %638 = vmatpush1.msra.mxu0 0.0
        %639 = vmatprep.subr.mxu0 0.0
        %640 = vmatpush1.msra.mxu0 0.0
        %641 = vmatprep.subr.mxu0 0.0
        %642 = vmatpush1.msra.mxu0 0.0
        %643 = vmatprep.subr.mxu0 0.0
        %644 = vmatpush1.msra.mxu0 0.0
        %645 = vmatprep.subr.mxu0 0.0
        %646 = vmatpush1.msra.mxu0 0.0
        %647 = vmatprep.subr.mxu0 0.0
        %648 = vmatpush1.msra.mxu0 0.0
        %649 = vmatprep.subr.mxu0 0.0
        %650 = vmatpush1.msra.mxu0 0.0
        %651 = vmatprep.subr.mxu0 0.0
        %652 = vmatpush1.msra.mxu0 0.0
        %653 = vmatprep.subr.mxu0 0.0
        %654 = vmatpush1.msra.mxu0 0.0
        %655 = vmatprep.subr.mxu0 0.0
        %656 = vmatpush1.msra.mxu0 0.0
        %657 = vmatprep.subr.mxu0 0.0
        %658 = vmatpush1.msra.mxu0 0.0
        %659 = vmatprep.subr.mxu0 0.0
        %660 = vmatpush1.msra.mxu0 0.0
        %661 = vmatprep.subr.mxu0 0.0
        %662 = vmatpush1.msra.mxu0 0.0
        %663 = vmatprep.subr.mxu0 0.0
        %664 = vmatpush1.msra.mxu0 0.0
        %665 = vmatprep.subr.mxu0 0.0
        %666 = vmatpush1.msra.mxu0 0.0
        %667 = vmatprep.subr.mxu0 0.0
        %668 = vmatpush1.msra.mxu0 0.0
        %669 = vmatprep.subr.mxu0 0.0
        %670 = vmatpush1.msra.mxu0 0.0
        %671 = vmatprep.subr.mxu0 0.0
        %672 = vmatpush1.msra.mxu0 0.0
        %673 = vmatprep.subr.mxu0 0.0
        %674 = vmatpush1.msra.mxu0 0.0
        %675 = vmatprep.subr.mxu0 0.0
        %676 = vmatpush1.msra.mxu0 0.0
        %677 = vmatprep.subr.mxu0 0.0
        %678 = vmatpush1.msra.mxu0 0.0
        %679 = vmatprep.subr.mxu0 0.0
        %680 = vmatpush1.msra.mxu0 0.0
        %681 = vmatprep.subr.mxu0 0.0
        %682 = vmatpush1.msra.mxu0 0.0
        %683 = vmatprep.subr.mxu0 0.0
        %684 = vmatpush1.msra.mxu0 0.0
        %685 = vmatprep.subr.mxu0 0.0
        %686 = vmatpush1.msra.mxu0 0.0
        %687 = vmatprep.subr.mxu0 0.0
        %688 = vmatpush1.msra.mxu0 0.0
        %689 = vmatprep.subr.mxu0 0.0
        %690 = vmatpush1.msra.mxu0 0.0
        %691 = vmatprep.subr.mxu0 0.0
        %692 = vmatpush1.msra.mxu0 0.0
        %693 = vmatprep.subr.mxu0 0.0
        %694 = vmatpush1.msra.mxu0 0.0
        %695 = vmatprep.subr.mxu0 0.0
        %696 = vmatpush1.msra.mxu0 0.0
        %697 = vmatprep.mubr.f32.mxu0 0.0
        %698 = vmatmul.mubr.f32.gmra.mrb[0].mxu0 %v489
        %v699 = vpop.f32.mrb[0].mxu0
        %v700 = vadd.f32 0.0, %v699
        %v701 = vpop.f32.mrb[0].mxu0
        %v702 = vadd.f32 0.0, %v701
        %703 = vdwg.mxu0
        %704 = vmatprep.subr.mxu0 %v439
        %705 = vmatpush1.msra.mxu0 %v438
        %706 = vmatprep.subr.mxu0 %v457
        %707 = vmatpush1.msra.mxu0 %v456
        %708 = vmatprep.subr.mxu0 0.0
        %709 = vmatpush1.msra.mxu0 0.0
        %710 = vmatprep.subr.mxu0 0.0
        %711 = vmatpush1.msra.mxu0 0.0
        %712 = vmatprep.subr.mxu0 0.0
        %713 = vmatpush1.msra.mxu0 0.0
        %714 = vmatprep.subr.mxu0 0.0
        %715 = vmatpush1.msra.mxu0 0.0
        %716 = vmatprep.subr.mxu0 0.0
        %717 = vmatpush1.msra.mxu0 0.0
        %718 = vmatprep.subr.mxu0 0.0
        %719 = vmatpush1.msra.mxu0 0.0
        %720 = vmatprep.subr.mxu0 0.0
        %721 = vmatpush1.msra.mxu0 0.0
        %722 = vmatprep.subr.mxu0 0.0
        %723 = vmatpush1.msra.mxu0 0.0
        %724 = vmatprep.subr.mxu0 0.0
        %725 = vmatpush1.msra.mxu0 0.0
        %726 = vmatprep.subr.mxu0 0.0
        %727 = vmatpush1.msra.mxu0 0.0
        %728 = vmatprep.subr.mxu0 0.0
        %729 = vmatpush1.msra.mxu0 0.0
        %730 = vmatprep.subr.mxu0 0.0
        %731 = vmatpush1.msra.mxu0 0.0
        %732 = vmatprep.subr.mxu0 0.0
        %733 = vmatpush1.msra.mxu0 0.0
        %734 = vmatprep.subr.mxu0 0.0
        %735 = vmatpush1.msra.mxu0 0.0
        %736 = vmatprep.subr.mxu0 0.0
        %737 = vmatpush1.msra.mxu0 0.0
        %738 = vmatprep.subr.mxu0 0.0
        %739 = vmatpush1.msra.mxu0 0.0
        %740 = vmatprep.subr.mxu0 0.0
        %741 = vmatpush1.msra.mxu0 0.0
        %742 = vmatprep.subr.mxu0 0.0
        %743 = vmatpush1.msra.mxu0 0.0
        %744 = vmatprep.subr.mxu0 0.0
        %745 = vmatpush1.msra.mxu0 0.0
        %746 = vmatprep.subr.mxu0 0.0
        %747 = vmatpush1.msra.mxu0 0.0
        %748 = vmatprep.subr.mxu0 0.0
        %749 = vmatpush1.msra.mxu0 0.0
        %750 = vmatprep.subr.mxu0 0.0
        %751 = vmatpush1.msra.mxu0 0.0
        %752 = vmatprep.subr.mxu0 0.0
        %753 = vmatpush1.msra.mxu0 0.0
        %754 = vmatprep.subr.mxu0 0.0
        %755 = vmatpush1.msra.mxu0 0.0
        %756 = vmatprep.subr.mxu0 0.0
        %757 = vmatpush1.msra.mxu0 0.0
        %758 = vmatprep.subr.mxu0 0.0
        %759 = vmatpush1.msra.mxu0 0.0
        %760 = vmatprep.subr.mxu0 0.0
        %761 = vmatpush1.msra.mxu0 0.0
        %762 = vmatprep.subr.mxu0 0.0
        %763 = vmatpush1.msra.mxu0 0.0
        %764 = vmatprep.subr.mxu0 0.0
        %765 = vmatpush1.msra.mxu0 0.0
        %766 = vmatprep.subr.mxu0 0.0
        %767 = vmatpush1.msra.mxu0 0.0
        %768 = vmatprep.mubr.f32.mxu0 0.0
        %769 = vmatmul.mubr.f32.gmra.mrb[0].mxu0 %v489
        %v770 = vpop.f32.mrb[0].mxu0
        %v771 = vadd.f32 0.0, %v770
        %v772 = vpop.f32.mrb[0].mxu0
        %v773 = vadd.f32 0.0, %v772
        %774 = vdwg.mxu0
        %775 = vmatprep.subr.mxu0 %v441
        %776 = vmatpush1.msra.mxu0 %v440
        %777 = vmatprep.subr.mxu0 %v459
        %778 = vmatpush1.msra.mxu0 %v458
        %779 = vmatprep.subr.mxu0 0.0
        %780 = vmatpush1.msra.mxu0 0.0
        %781 = vmatprep.subr.mxu0 0.0
        %782 = vmatpush1.msra.mxu0 0.0
        %783 = vmatprep.subr.mxu0 0.0
        %784 = vmatpush1.msra.mxu0 0.0
        %785 = vmatprep.subr.mxu0 0.0
        %786 = vmatpush1.msra.mxu0 0.0
        %787 = vmatprep.subr.mxu0 0.0
        %788 = vmatpush1.msra.mxu0 0.0
        %789 = vmatprep.subr.mxu0 0.0
        %790 = vmatpush1.msra.mxu0 0.0
        %791 = vmatprep.subr.mxu0 0.0
        %792 = vmatpush1.msra.mxu0 0.0
        %793 = vmatprep.subr.mxu0 0.0
        %794 = vmatpush1.msra.mxu0 0.0
        %795 = vmatprep.subr.mxu0 0.0
        %796 = vmatpush1.msra.mxu0 0.0
        %797 = vmatprep.subr.mxu0 0.0
        %798 = vmatpush1.msra.mxu0 0.0
        %799 = vmatprep.subr.mxu0 0.0
        %800 = vmatpush1.msra.mxu0 0.0
        %801 = vmatprep.subr.mxu0 0.0
        %802 = vmatpush1.msra.mxu0 0.0
        %803 = vmatprep.subr.mxu0 0.0
        %804 = vmatpush1.msra.mxu0 0.0
        %805 = vmatprep.subr.mxu0 0.0
        %806 = vmatpush1.msra.mxu0 0.0
        %807 = vmatprep.subr.mxu0 0.0
        %808 = vmatpush1.msra.mxu0 0.0
        %809 = vmatprep.subr.mxu0 0.0
        %810 = vmatpush1.msra.mxu0 0.0
        %811 = vmatprep.subr.mxu0 0.0
        %812 = vmatpush1.msra.mxu0 0.0
        %813 = vmatprep.subr.mxu0 0.0
        %814 = vmatpush1.msra.mxu0 0.0
        %815 = vmatprep.subr.mxu0 0.0
        %816 = vmatpush1.msra.mxu0 0.0
        %817 = vmatprep.subr.mxu0 0.0
        %818 = vmatpush1.msra.mxu0 0.0
        %819 = vmatprep.subr.mxu0 0.0
        %820 = vmatpush1.msra.mxu0 0.0
        %821 = vmatprep.subr.mxu0 0.0
        %822 = vmatpush1.msra.mxu0 0.0
        %823 = vmatprep.subr.mxu0 0.0
        %824 = vmatpush1.msra.mxu0 0.0
        %825 = vmatprep.subr.mxu0 0.0
        %826 = vmatpush1.msra.mxu0 0.0
        %827 = vmatprep.subr.mxu0 0.0
        %828 = vmatpush1.msra.mxu0 0.0
        %829 = vmatprep.subr.mxu0 0.0
        %830 = vmatpush1.msra.mxu0 0.0
        %831 = vmatprep.subr.mxu0 0.0
        %832 = vmatpush1.msra.mxu0 0.0
        %833 = vmatprep.subr.mxu0 0.0
        %834 = vmatpush1.msra.mxu0 0.0
        %835 = vmatprep.subr.mxu0 0.0
        %836 = vmatpush1.msra.mxu0 0.0
        %837 = vmatprep.subr.mxu0 0.0
        %838 = vmatpush1.msra.mxu0 0.0
        %839 = vmatprep.mubr.f32.mxu0 0.0
        %840 = vmatmul.mubr.f32.gmra.mrb[0].mxu0 %v489
        %v841 = vpop.f32.mrb[0].mxu0
        %v842 = vadd.f32 0.0, %v841
        %v843 = vpop.f32.mrb[0].mxu0
        %v844 = vadd.f32 0.0, %v843
        %845 = vdwg.mxu0
        %846 = vmatprep.subr.mxu0 %v443
        %847 = vmatpush1.msra.mxu0 %v442
        %848 = vmatprep.subr.mxu0 %v461
        %849 = vmatpush1.msra.mxu0 %v460
        %850 = vmatprep.subr.mxu0 0.0
        %851 = vmatpush1.msra.mxu0 0.0
        %852 = vmatprep.subr.mxu0 0.0
        %853 = vmatpush1.msra.mxu0 0.0
        %854 = vmatprep.subr.mxu0 0.0
        %855 = vmatpush1.msra.mxu0 0.0
        %856 = vmatprep.subr.mxu0 0.0
        %857 = vmatpush1.msra.mxu0 0.0
        %858 = vmatprep.subr.mxu0 0.0
        %859 = vmatpush1.msra.mxu0 0.0
        %860 = vmatprep.subr.mxu0 0.0
        %861 = vmatpush1.msra.mxu0 0.0
        %862 = vmatprep.subr.mxu0 0.0
        %863 = vmatpush1.msra.mxu0 0.0
        %864 = vmatprep.subr.mxu0 0.0
        %865 = vmatpush1.msra.mxu0 0.0
        %866 = vmatprep.subr.mxu0 0.0
        %867 = vmatpush1.msra.mxu0 0.0
        %868 = vmatprep.subr.mxu0 0.0
        %869 = vmatpush1.msra.mxu0 0.0
        %870 = vmatprep.subr.mxu0 0.0
        %871 = vmatpush1.msra.mxu0 0.0
        %872 = vmatprep.subr.mxu0 0.0
        %873 = vmatpush1.msra.mxu0 0.0
        %874 = vmatprep.subr.mxu0 0.0
        %875 = vmatpush1.msra.mxu0 0.0
        %876 = vmatprep.subr.mxu0 0.0
        %877 = vmatpush1.msra.mxu0 0.0
        %878 = vmatprep.subr.mxu0 0.0
        %879 = vmatpush1.msra.mxu0 0.0
        %880 = vmatprep.subr.mxu0 0.0
        %881 = vmatpush1.msra.mxu0 0.0
        %882 = vmatprep.subr.mxu0 0.0
        %883 = vmatpush1.msra.mxu0 0.0
        %884 = vmatprep.subr.mxu0 0.0
        %885 = vmatpush1.msra.mxu0 0.0
        %886 = vmatprep.subr.mxu0 0.0
        %887 = vmatpush1.msra.mxu0 0.0
        %888 = vmatprep.subr.mxu0 0.0
        %889 = vmatpush1.msra.mxu0 0.0
        %890 = vmatprep.subr.mxu0 0.0
        %891 = vmatpush1.msra.mxu0 0.0
        %892 = vmatprep.subr.mxu0 0.0
        %893 = vmatpush1.msra.mxu0 0.0
        %894 = vmatprep.subr.mxu0 0.0
        %895 = vmatpush1.msra.mxu0 0.0
        %896 = vmatprep.subr.mxu0 0.0
        %897 = vmatpush1.msra.mxu0 0.0
        %898 = vmatprep.subr.mxu0 0.0
        %899 = vmatpush1.msra.mxu0 0.0
        %900 = vmatprep.subr.mxu0 0.0
        %901 = vmatpush1.msra.mxu0 0.0
        %902 = vmatprep.subr.mxu0 0.0
        %903 = vmatpush1.msra.mxu0 0.0
        %904 = vmatprep.subr.mxu0 0.0
        %905 = vmatpush1.msra.mxu0 0.0
        %906 = vmatprep.subr.mxu0 0.0
        %907 = vmatpush1.msra.mxu0 0.0
        %908 = vmatprep.subr.mxu0 0.0
        %909 = vmatpush1.msra.mxu0 0.0
        %910 = vmatprep.mubr.f32.mxu0 0.0
        %911 = vmatmul.mubr.f32.gmra.mrb[0].mxu0 %v489
        %v912 = vpop.f32.mrb[0].mxu0
        %v913 = vadd.f32 0.0, %v912
        %v914 = vpop.f32.mrb[0].mxu0
        %v915 = vadd.f32 0.0, %v914
        %916 = vdwg.mxu0
        %917 = vmatprep.subr.mxu0 %v445
        %918 = vmatpush1.msra.mxu0 %v444
        %919 = vmatprep.subr.mxu0 %v463
        %920 = vmatpush1.msra.mxu0 %v462
        %921 = vmatprep.subr.mxu0 0.0
        %922 = vmatpush1.msra.mxu0 0.0
        %923 = vmatprep.subr.mxu0 0.0
        %924 = vmatpush1.msra.mxu0 0.0
        %925 = vmatprep.subr.mxu0 0.0
        %926 = vmatpush1.msra.mxu0 0.0
        %927 = vmatprep.subr.mxu0 0.0
        %928 = vmatpush1.msra.mxu0 0.0
        %929 = vmatprep.subr.mxu0 0.0
        %930 = vmatpush1.msra.mxu0 0.0
        %931 = vmatprep.subr.mxu0 0.0
        %932 = vmatpush1.msra.mxu0 0.0
        %933 = vmatprep.subr.mxu0 0.0
        %934 = vmatpush1.msra.mxu0 0.0
        %935 = vmatprep.subr.mxu0 0.0
        %936 = vmatpush1.msra.mxu0 0.0
        %937 = vmatprep.subr.mxu0 0.0
        %938 = vmatpush1.msra.mxu0 0.0
        %939 = vmatprep.subr.mxu0 0.0
        %940 = vmatpush1.msra.mxu0 0.0
        %941 = vmatprep.subr.mxu0 0.0
        %942 = vmatpush1.msra.mxu0 0.0
        %943 = vmatprep.subr.mxu0 0.0
        %944 = vmatpush1.msra.mxu0 0.0
        %945 = vmatprep.subr.mxu0 0.0
        %946 = vmatpush1.msra.mxu0 0.0
        %947 = vmatprep.subr.mxu0 0.0
        %948 = vmatpush1.msra.mxu0 0.0
        %949 = vmatprep.subr.mxu0 0.0
        %950 = vmatpush1.msra.mxu0 0.0
        %951 = vmatprep.subr.mxu0 0.0
        %952 = vmatpush1.msra.mxu0 0.0
        %953 = vmatprep.subr.mxu0 0.0
        %954 = vmatpush1.msra.mxu0 0.0
        %955 = vmatprep.subr.mxu0 0.0
        %956 = vmatpush1.msra.mxu0 0.0
        %957 = vmatprep.subr.mxu0 0.0
        %958 = vmatpush1.msra.mxu0 0.0
        %959 = vmatprep.subr.mxu0 0.0
        %960 = vmatpush1.msra.mxu0 0.0
        %961 = vmatprep.subr.mxu0 0.0
        %962 = vmatpush1.msra.mxu0 0.0
        %963 = vmatprep.subr.mxu0 0.0
        %964 = vmatpush1.msra.mxu0 0.0
        %965 = vmatprep.subr.mxu0 0.0
        %966 = vmatpush1.msra.mxu0 0.0
        %967 = vmatprep.subr.mxu0 0.0
        %968 = vmatpush1.msra.mxu0 0.0
        %969 = vmatprep.subr.mxu0 0.0
        %970 = vmatpush1.msra.mxu0 0.0
        %971 = vmatprep.subr.mxu0 0.0
        %972 = vmatpush1.msra.mxu0 0.0
        %973 = vmatprep.subr.mxu0 0.0
        %974 = vmatpush1.msra.mxu0 0.0
        %975 = vmatprep.subr.mxu0 0.0
        %976 = vmatpush1.msra.mxu0 0.0
        %977 = vmatprep.subr.mxu0 0.0
        %978 = vmatpush1.msra.mxu0 0.0
        %979 = vmatprep.subr.mxu0 0.0
        %980 = vmatpush1.msra.mxu0 0.0
        %981 = vmatprep.mubr.f32.mxu0 0.0
        %982 = vmatmul.mubr.f32.gmra.mrb[0].mxu0 %v489
        %v983 = vpop.f32.mrb[0].mxu0
        %v984 = vadd.f32 0.0, %v983
        %v985 = vpop.f32.mrb[0].mxu0
        %v986 = vadd.f32 0.0, %v985
        %987 = vdwg.mxu0
        %988 = vmatprep.subr.mxu0 %v447
        %989 = vmatpush1.msra.mxu0 %v446
        %990 = vmatprep.subr.mxu0 %v465
        %991 = vmatpush1.msra.mxu0 %v464
        %992 = vmatprep.subr.mxu0 0.0
        %993 = vmatpush1.msra.mxu0 0.0
        %994 = vmatprep.subr.mxu0 0.0
        %995 = vmatpush1.msra.mxu0 0.0
        %996 = vmatprep.subr.mxu0 0.0
        %997 = vmatpush1.msra.mxu0 0.0
        %998 = vmatprep.subr.mxu0 0.0
        %999 = vmatpush1.msra.mxu0 0.0
        %1000 = vmatprep.subr.mxu0 0.0
        %1001 = vmatpush1.msra.mxu0 0.0
        %1002 = vmatprep.subr.mxu0 0.0
        %1003 = vmatpush1.msra.mxu0 0.0
        %1004 = vmatprep.subr.mxu0 0.0
        %1005 = vmatpush1.msra.mxu0 0.0
        %1006 = vmatprep.subr.mxu0 0.0
        %1007 = vmatpush1.msra.mxu0 0.0
        %1008 = vmatprep.subr.mxu0 0.0
        %1009 = vmatpush1.msra.mxu0 0.0
        %1010 = vmatprep.subr.mxu0 0.0
        %1011 = vmatpush1.msra.mxu0 0.0
        %1012 = vmatprep.subr.mxu0 0.0
        %1013 = vmatpush1.msra.mxu0 0.0
        %1014 = vmatprep.subr.mxu0 0.0
        %1015 = vmatpush1.msra.mxu0 0.0
        %1016 = vmatprep.subr.mxu0 0.0
        %1017 = vmatpush1.msra.mxu0 0.0
        %1018 = vmatprep.subr.mxu0 0.0
        %1019 = vmatpush1.msra.mxu0 0.0
        %1020 = vmatprep.subr.mxu0 0.0
        %1021 = vmatpush1.msra.mxu0 0.0
        %1022 = vmatprep.subr.mxu0 0.0
        %1023 = vmatpush1.msra.mxu0 0.0
        %1024 = vmatprep.subr.mxu0 0.0
        %1025 = vmatpush1.msra.mxu0 0.0
        %1026 = vmatprep.subr.mxu0 0.0
        %1027 = vmatpush1.msra.mxu0 0.0
        %1028 = vmatprep.subr.mxu0 0.0
        %1029 = vmatpush1.msra.mxu0 0.0
        %1030 = vmatprep.subr.mxu0 0.0
        %1031 = vmatpush1.msra.mxu0 0.0
        %1032 = vmatprep.subr.mxu0 0.0
        %1033 = vmatpush1.msra.mxu0 0.0
        %1034 = vmatprep.subr.mxu0 0.0
        %1035 = vmatpush1.msra.mxu0 0.0
        %1036 = vmatprep.subr.mxu0 0.0
        %1037 = vmatpush1.msra.mxu0 0.0
        %1038 = vmatprep.subr.mxu0 0.0
        %1039 = vmatpush1.msra.mxu0 0.0
        %1040 = vmatprep.subr.mxu0 0.0
        %1041 = vmatpush1.msra.mxu0 0.0
        %1042 = vmatprep.subr.mxu0 0.0
        %1043 = vmatpush1.msra.mxu0 0.0
        %1044 = vmatprep.subr.mxu0 0.0
        %1045 = vmatpush1.msra.mxu0 0.0
        %1046 = vmatprep.subr.mxu0 0.0
        %1047 = vmatpush1.msra.mxu0 0.0
        %1048 = vmatprep.subr.mxu0 0.0
        %1049 = vmatpush1.msra.mxu0 0.0
        %1050 = vmatprep.subr.mxu0 0.0
        %1051 = vmatpush1.msra.mxu0 0.0
        %1052 = vmatprep.mubr.f32.mxu0 0.0
        %1053 = vmatmul.mubr.f32.gmra.mrb[0].mxu0 %v489
        %v1054 = vpop.f32.mrb[0].mxu0
        %v1055 = vadd.f32 0.0, %v1054
        %v1056 = vpop.f32.mrb[0].mxu0
        %v1057 = vadd.f32 0.0, %v1056
        %1058 = vdwg.mxu0
        %1059 = vmatprep.subr.mxu0 %v449
        %1060 = vmatpush1.msra.mxu0 %v448
        %1061 = vmatprep.subr.mxu0 %v467
        %1062 = vmatpush1.msra.mxu0 %v466
        %1063 = vmatprep.subr.mxu0 0.0
        %1064 = vmatpush1.msra.mxu0 0.0
        %1065 = vmatprep.subr.mxu0 0.0
        %1066 = vmatpush1.msra.mxu0 0.0
        %1067 = vmatprep.subr.mxu0 0.0
        %1068 = vmatpush1.msra.mxu0 0.0
        %1069 = vmatprep.subr.mxu0 0.0
        %1070 = vmatpush1.msra.mxu0 0.0
        %1071 = vmatprep.subr.mxu0 0.0
        %1072 = vmatpush1.msra.mxu0 0.0
        %1073 = vmatprep.subr.mxu0 0.0
        %1074 = vmatpush1.msra.mxu0 0.0
        %1075 = vmatprep.subr.mxu0 0.0
        %1076 = vmatpush1.msra.mxu0 0.0
        %1077 = vmatprep.subr.mxu0 0.0
        %1078 = vmatpush1.msra.mxu0 0.0
        %1079 = vmatprep.subr.mxu0 0.0
        %1080 = vmatpush1.msra.mxu0 0.0
        %1081 = vmatprep.subr.mxu0 0.0
        %1082 = vmatpush1.msra.mxu0 0.0
        %1083 = vmatprep.subr.mxu0 0.0
        %1084 = vmatpush1.msra.mxu0 0.0
        %1085 = vmatprep.subr.mxu0 0.0
        %1086 = vmatpush1.msra.mxu0 0.0
        %1087 = vmatprep.subr.mxu0 0.0
        %1088 = vmatpush1.msra.mxu0 0.0
        %1089 = vmatprep.subr.mxu0 0.0
        %1090 = vmatpush1.msra.mxu0 0.0
        %1091 = vmatprep.subr.mxu0 0.0
        %1092 = vmatpush1.msra.mxu0 0.0
        %1093 = vmatprep.subr.mxu0 0.0
        %1094 = vmatpush1.msra.mxu0 0.0
        %1095 = vmatprep.subr.mxu0 0.0
        %1096 = vmatpush1.msra.mxu0 0.0
        %1097 = vmatprep.subr.mxu0 0.0
        %1098 = vmatpush1.msra.mxu0 0.0
        %1099 = vmatprep.subr.mxu0 0.0
        %1100 = vmatpush1.msra.mxu0 0.0
        %1101 = vmatprep.subr.mxu0 0.0
        %1102 = vmatpush1.msra.mxu0 0.0
        %1103 = vmatprep.subr.mxu0 0.0
        %1104 = vmatpush1.msra.mxu0 0.0
        %1105 = vmatprep.subr.mxu0 0.0
        %1106 = vmatpush1.msra.mxu0 0.0
        %1107 = vmatprep.subr.mxu0 0.0
        %1108 = vmatpush1.msra.mxu0 0.0
        %1109 = vmatprep.subr.mxu0 0.0
        %1110 = vmatpush1.msra.mxu0 0.0
        %1111 = vmatprep.subr.mxu0 0.0
        %1112 = vmatpush1.msra.mxu0 0.0
        %1113 = vmatprep.subr.mxu0 0.0
        %1114 = vmatpush1.msra.mxu0 0.0
        %1115 = vmatprep.subr.mxu0 0.0
        %1116 = vmatpush1.msra.mxu0 0.0
        %1117 = vmatprep.subr.mxu0 0.0
        %1118 = vmatpush1.msra.mxu0 0.0
        %1119 = vmatprep.subr.mxu0 0.0
        %1120 = vmatpush1.msra.mxu0 0.0
        %1121 = vmatprep.subr.mxu0 0.0
        %1122 = vmatpush1.msra.mxu0 0.0
        %1123 = vmatprep.mubr.f32.mxu0 0.0
        %1124 = vmatmul.mubr.f32.gmra.mrb[0].mxu0 %v489
        %v1125 = vpop.f32.mrb[0].mxu0
        %v1126 = vadd.f32 0.0, %v1125
        %v1127 = vpop.f32.mrb[0].mxu0
        %v1128 = vadd.f32 0.0, %v1127
        %1129 = vdwg.mxu0
        %1130 = vrot.lane.b32.xlu0 %v558, 68
        %v1131 = vpop.permute.xlu0 %1130
        %1132 = vrot.lane.b32.xlu0 %v560, 68
        %v1133 = vpop.permute.xlu0 %1132
        %1134 = vrot.lane.b32.xlu0 %v629, 68
        %v1135 = vpop.permute.xlu0 %1134
        %1136 = vrot.lane.b32.xlu0 %v631, 68
        %v1137 = vpop.permute.xlu0 %1136
        %1138 = vrot.lane.b32.xlu0 %v700, 68
        %v1139 = vpop.permute.xlu0 %1138
        %1140 = vrot.lane.b32.xlu0 %v702, 68
        %v1141 = vpop.permute.xlu0 %1140
        %1142 = vrot.lane.b32.xlu0 %v771, 68
        %v1143 = vpop.permute.xlu0 %1142
        %1144 = vrot.lane.b32.xlu0 %v773, 68
        %v1145 = vpop.permute.xlu0 %1144
        %1146 = vrot.lane.b32.xlu0 %v842, 68
        %v1147 = vpop.permute.xlu0 %1146
        %1148 = vrot.lane.b32.xlu0 %v844, 68
        %v1149 = vpop.permute.xlu0 %1148
        %1150 = vrot.lane.b32.xlu0 %v913, 68
        %v1151 = vpop.permute.xlu0 %1150
        %1152 = vrot.lane.b32.xlu0 %v915, 68
        %v1153 = vpop.permute.xlu0 %1152
        %1154 = vrot.lane.b32.xlu0 %v984, 68
        %v1155 = vpop.permute.xlu0 %1154
        %1156 = vrot.lane.b32.xlu0 %v986, 68
        %v1157 = vpop.permute.xlu0 %1156
        %1158 = vrot.lane.b32.xlu0 %v1055, 68
        %v1159 = vpop.permute.xlu0 %1158
        %1160 = vrot.lane.b32.xlu0 %v1057, 68
        %v1161 = vpop.permute.xlu0 %1160
        %1162 = vrot.lane.b32.xlu0 %v1126, 68
        %v1163 = vpop.permute.xlu0 %1162
        %1164 = vrot.lane.b32.xlu0 %v1128, 68
        %v1165 = vpop.permute.xlu0 %1164
        %v1166 = vlaneseq
        %v1167 = vand.u32 %v1166, 127
        %vm1168 = vcmp.lt.s32.totalorder %v1167, 68
        %v1169 = vsel %vm1168, %v1163, %v1165
        %v1170 = vsel %vm1168, %v1161, %v1163
        %v1171 = vsel %vm1168, %v1159, %v1161
        %v1172 = vsel %vm1168, %v1157, %v1159
        %v1173 = vsel %vm1168, %v1155, %v1157
        %v1174 = vsel %vm1168, %v1153, %v1155
        %v1175 = vsel %vm1168, %v1151, %v1153
        %v1176 = vsel %vm1168, %v1149, %v1151
        %v1177 = vsel %vm1168, %v1147, %v1149
        %v1178 = vsel %vm1168, %v1145, %v1147
        %v1179 = vsel %vm1168, %v1143, %v1145
        %v1180 = vsel %vm1168, %v1141, %v1143
        %v1181 = vsel %vm1168, %v1139, %v1141
        %v1182 = vsel %vm1168, %v1137, %v1139
        %v1183 = vsel %vm1168, %v1135, %v1137
        %v1184 = vsel %vm1168, %v1133, %v1135
        %v1185 = vsel %vm1168, %v1131, %v1133
        %v1186 = vsel %vm1168, %v1165, %v1131
        %v1187 = vld [vmem:[%s2] ss:$8 sm:$0xf]
        %v1188 = vld [vmem:[%s2] ss:$8 sm:$0xf0]
        %v1189 = vor.u32 %v1187, %v1188
        %s1190 = scalar_lea.vmem %s2, 64
        %v1191 = vld [vmem:[%s1190] ss:$8 sm:$0xf]
        %v1192 = vld [vmem:[%s1190] ss:$8 sm:$0xf0]
        %v1193 = vor.u32 %v1191, %v1192
        %s1194 = scalar_lea.vmem %s2, 128
        %v1195 = vld [vmem:[%s1194] ss:$8 sm:$0x3]
        %v1199 = vlaneseq
        %v1200 = vshrl.u32 %v1199, 7
        %v1201 = vsub.s32 0, %v1200
        %v1202 = vrot.slane %v1189, %v1201
        %v1203 = vlaneseq
        %v1204 = vshrl.u32 %v1203, 7
        %v1205 = vsub.s32 1, %v1204
        %v1206 = vrot.slane %v1189, %v1205
        %v1207 = vlaneseq
        %v1208 = vshrl.u32 %v1207, 7
        %v1209 = vsub.s32 2, %v1208
        %v1210 = vrot.slane %v1189, %v1209
        %v1211 = vlaneseq
        %v1212 = vshrl.u32 %v1211, 7
        %v1213 = vsub.s32 3, %v1212
        %v1214 = vrot.slane %v1189, %v1213
        %v1215 = vlaneseq
        %v1216 = vshrl.u32 %v1215, 7
        %v1217 = vsub.s32 4, %v1216
        %v1218 = vrot.slane %v1189, %v1217
        %v1219 = vlaneseq
        %v1220 = vshrl.u32 %v1219, 7
        %v1221 = vsub.s32 5, %v1220
        %v1222 = vrot.slane %v1189, %v1221
        %v1223 = vlaneseq
        %v1224 = vshrl.u32 %v1223, 7
        %v1225 = vsub.s32 6, %v1224
        %v1226 = vrot.slane %v1189, %v1225
        %v1227 = vlaneseq
        %v1228 = vshrl.u32 %v1227, 7
        %v1229 = vsub.s32 7, %v1228
        %v1230 = vrot.slane %v1189, %v1229
        %v1231 = vlaneseq
        %v1232 = vshrl.u32 %v1231, 7
        %v1233 = vsub.s32 0, %v1232
        %v1234 = vrot.slane %v1193, %v1233
        %v1235 = vlaneseq
        %v1236 = vshrl.u32 %v1235, 7
        %v1237 = vsub.s32 1, %v1236
        %v1238 = vrot.slane %v1193, %v1237
        %v1239 = vlaneseq
        %v1240 = vshrl.u32 %v1239, 7
        %v1241 = vsub.s32 2, %v1240
        %v1242 = vrot.slane %v1193, %v1241
        %v1243 = vlaneseq
        %v1244 = vshrl.u32 %v1243, 7
        %v1245 = vsub.s32 3, %v1244
        %v1246 = vrot.slane %v1193, %v1245
        %v1247 = vlaneseq
        %v1248 = vshrl.u32 %v1247, 7
        %v1249 = vsub.s32 4, %v1248
        %v1250 = vrot.slane %v1193, %v1249
        %v1251 = vlaneseq
        %v1252 = vshrl.u32 %v1251, 7
        %v1253 = vsub.s32 5, %v1252
        %v1254 = vrot.slane %v1193, %v1253
        %v1255 = vlaneseq
        %v1256 = vshrl.u32 %v1255, 7
        %v1257 = vsub.s32 6, %v1256
        %v1258 = vrot.slane %v1193, %v1257
        %v1259 = vlaneseq
        %v1260 = vshrl.u32 %v1259, 7
        %v1261 = vsub.s32 7, %v1260
        %v1262 = vrot.slane %v1193, %v1261
        %v1263 = vlaneseq
        %v1264 = vshrl.u32 %v1263, 7
        %v1265 = vsub.s32 0, %v1264
        %v1266 = vrot.slane %v1195, %v1265
        %v1267 = vlaneseq
        %v1268 = vshrl.u32 %v1267, 7
        %v1269 = vsub.s32 1, %v1268
        %v1270 = vrot.slane %v1195, %v1269
        %v1289 = vmul.f32 %v1169, %v1202
        %v1290 = vmul.f32 %v1186, %v1206
        %v1291 = vmul.f32 %v1185, %v1210
        %v1292 = vmul.f32 %v1184, %v1214
        %v1293 = vmul.f32 %v1183, %v1218
        %v1294 = vmul.f32 %v1182, %v1222
        %v1295 = vmul.f32 %v1181, %v1226
        %v1296 = vmul.f32 %v1180, %v1230
        %v1297 = vmul.f32 %v1179, %v1234
        %v1298 = vmul.f32 %v1178, %v1238
        %v1299 = vmul.f32 %v1177, %v1242
        %v1300 = vmul.f32 %v1176, %v1246
        %v1301 = vmul.f32 %v1175, %v1250
        %v1302 = vmul.f32 %v1174, %v1254
        %v1303 = vmul.f32 %v1173, %v1258
        %v1304 = vmul.f32 %v1172, %v1262
        %v1305 = vmul.f32 %v1171, %v1266
        %v1306 = vmul.f32 %v1170, %v1270
        %v1307 = vadd.f32 %v1289, 0.0
        %v1308 = vadd.f32 %v1290, 0.0
        %v1309 = vadd.f32 %v1291, 0.0
        %v1310 = vadd.f32 %v1292, 0.0
        %v1311 = vadd.f32 %v1293, 0.0
        %v1312 = vadd.f32 %v1294, 0.0
        %v1313 = vadd.f32 %v1295, 0.0
        %v1314 = vadd.f32 %v1296, 0.0
        %v1315 = vadd.f32 %v1297, 0.0
        %v1316 = vadd.f32 %v1298, 0.0
        %v1317 = vadd.f32 %v1299, 0.0
        %v1318 = vadd.f32 %v1300, 0.0
        %v1319 = vadd.f32 %v1301, 0.0
        %v1320 = vadd.f32 %v1302, 0.0
        %v1321 = vadd.f32 %v1303, 0.0
        %v1322 = vadd.f32 %v1304, 0.0
        %v1323 = vadd.f32 %v1305, 0.0
        %v1324 = vadd.f32 %v1306, 0.0
        %s1325 = scalar_lea.vmem %s4, 8
        %v1326 = vld [vmem:[%s1325] sm:$0xff]
        %v1328 = vsel %vm487, %v1326, 0
        %1330 = vmatprep.subr.mxu0 %v433
        %1331 = vmatpush1.msra.mxu0 %v432
        %1332 = vmatprep.subr.mxu0 %v451
        %1333 = vmatpush1.msra.mxu0 %v450
        %1334 = vmatprep.subr.mxu0 0.0
        %1335 = vmatpush1.msra.mxu0 0.0
        %1336 = vmatprep.subr.mxu0 0.0
        %1337 = vmatpush1.msra.mxu0 0.0
        %1338 = vmatprep.subr.mxu0 0.0
        %1339 = vmatpush1.msra.mxu0 0.0
        %1340 = vmatprep.subr.mxu0 0.0
        %1341 = vmatpush1.msra.mxu0 0.0
        %1342 = vmatprep.subr.mxu0 0.0
        %1343 = vmatpush1.msra.mxu0 0.0
        %1344 = vmatprep.subr.mxu0 0.0
        %1345 = vmatpush1.msra.mxu0 0.0
        %1346 = vmatprep.subr.mxu0 0.0
        %1347 = vmatpush1.msra.mxu0 0.0
        %1348 = vmatprep.subr.mxu0 0.0
        %1349 = vmatpush1.msra.mxu0 0.0
        %1350 = vmatprep.subr.mxu0 0.0
        %1351 = vmatpush1.msra.mxu0 0.0
        %1352 = vmatprep.subr.mxu0 0.0
        %1353 = vmatpush1.msra.mxu0 0.0
        %1354 = vmatprep.subr.mxu0 0.0
        %1355 = vmatpush1.msra.mxu0 0.0
        %1356 = vmatprep.subr.mxu0 0.0
        %1357 = vmatpush1.msra.mxu0 0.0
        %1358 = vmatprep.subr.mxu0 0.0
        %1359 = vmatpush1.msra.mxu0 0.0
        %1360 = vmatprep.subr.mxu0 0.0
        %1361 = vmatpush1.msra.mxu0 0.0
        %1362 = vmatprep.subr.mxu0 0.0
        %1363 = vmatpush1.msra.mxu0 0.0
        %1364 = vmatprep.subr.mxu0 0.0
        %1365 = vmatpush1.msra.mxu0 0.0
        %1366 = vmatprep.subr.mxu0 0.0
        %1367 = vmatpush1.msra.mxu0 0.0
        %1368 = vmatprep.subr.mxu0 0.0
        %1369 = vmatpush1.msra.mxu0 0.0
        %1370 = vmatprep.subr.mxu0 0.0
        %1371 = vmatpush1.msra.mxu0 0.0
        %1372 = vmatprep.subr.mxu0 0.0
        %1373 = vmatpush1.msra.mxu0 0.0
        %1374 = vmatprep.subr.mxu0 0.0
        %1375 = vmatpush1.msra.mxu0 0.0
        %1376 = vmatprep.subr.mxu0 0.0
        %1377 = vmatpush1.msra.mxu0 0.0
        %1378 = vmatprep.subr.mxu0 0.0
        %1379 = vmatpush1.msra.mxu0 0.0
        %1380 = vmatprep.subr.mxu0 0.0
        %1381 = vmatpush1.msra.mxu0 0.0
        %1382 = vmatprep.subr.mxu0 0.0
        %1383 = vmatpush1.msra.mxu0 0.0
        %1384 = vmatprep.subr.mxu0 0.0
        %1385 = vmatpush1.msra.mxu0 0.0
        %1386 = vmatprep.subr.mxu0 0.0
        %1387 = vmatpush1.msra.mxu0 0.0
        %1388 = vmatprep.subr.mxu0 0.0
        %1389 = vmatpush1.msra.mxu0 0.0
        %1390 = vmatprep.subr.mxu0 0.0
        %1391 = vmatpush1.msra.mxu0 0.0
        %1392 = vmatprep.subr.mxu0 0.0
        %1393 = vmatpush1.msra.mxu0 0.0
        %1394 = vmatprep.mubr.f32.mxu0 0.0
        %1395 = vmatmul.mubr.f32.gmra.mrb[0].mxu0 %v1328
        %v1396 = vpop.f32.mrb[0].mxu0
        %v1397 = vadd.f32 0.0, %v1396
        %v1398 = vpop.f32.mrb[0].mxu0
        %v1399 = vadd.f32 0.0, %v1398
        %1400 = vdwg.mxu0
        %1401 = vmatprep.subr.mxu0 %v435
        %1402 = vmatpush1.msra.mxu0 %v434
        %1403 = vmatprep.subr.mxu0 %v453
        %1404 = vmatpush1.msra.mxu0 %v452
        %1405 = vmatprep.subr.mxu0 0.0
        %1406 = vmatpush1.msra.mxu0 0.0
        %1407 = vmatprep.subr.mxu0 0.0
        %1408 = vmatpush1.msra.mxu0 0.0
        %1409 = vmatprep.subr.mxu0 0.0
        %1410 = vmatpush1.msra.mxu0 0.0
        %1411 = vmatprep.subr.mxu0 0.0
        %1412 = vmatpush1.msra.mxu0 0.0
        %1413 = vmatprep.subr.mxu0 0.0
        %1414 = vmatpush1.msra.mxu0 0.0
        %1415 = vmatprep.subr.mxu0 0.0
        %1416 = vmatpush1.msra.mxu0 0.0
        %1417 = vmatprep.subr.mxu0 0.0
        %1418 = vmatpush1.msra.mxu0 0.0
        %1419 = vmatprep.subr.mxu0 0.0
        %1420 = vmatpush1.msra.mxu0 0.0
        %1421 = vmatprep.subr.mxu0 0.0
        %1422 = vmatpush1.msra.mxu0 0.0
        %1423 = vmatprep.subr.mxu0 0.0
        %1424 = vmatpush1.msra.mxu0 0.0
        %1425 = vmatprep.subr.mxu0 0.0
        %1426 = vmatpush1.msra.mxu0 0.0
        %1427 = vmatprep.subr.mxu0 0.0
        %1428 = vmatpush1.msra.mxu0 0.0
        %1429 = vmatprep.subr.mxu0 0.0
        %1430 = vmatpush1.msra.mxu0 0.0
        %1431 = vmatprep.subr.mxu0 0.0
        %1432 = vmatpush1.msra.mxu0 0.0
        %1433 = vmatprep.subr.mxu0 0.0
        %1434 = vmatpush1.msra.mxu0 0.0
        %1435 = vmatprep.subr.mxu0 0.0
        %1436 = vmatpush1.msra.mxu0 0.0
        %1437 = vmatprep.subr.mxu0 0.0
        %1438 = vmatpush1.msra.mxu0 0.0
        %1439 = vmatprep.subr.mxu0 0.0
        %1440 = vmatpush1.msra.mxu0 0.0
        %1441 = vmatprep.subr.mxu0 0.0
        %1442 = vmatpush1.msra.mxu0 0.0
        %1443 = vmatprep.subr.mxu0 0.0
        %1444 = vmatpush1.msra.mxu0 0.0
        %1445 = vmatprep.subr.mxu0 0.0
        %1446 = vmatpush1.msra.mxu0 0.0
        %1447 = vmatprep.subr.mxu0 0.0
        %1448 = vmatpush1.msra.mxu0 0.0
        %1449 = vmatprep.subr.mxu0 0.0
        %1450 = vmatpush1.msra.mxu0 0.0
        %1451 = vmatprep.subr.mxu0 0.0
        %1452 = vmatpush1.msra.mxu0 0.0
        %1453 = vmatprep.subr.mxu0 0.0
        %1454 = vmatpush1.msra.mxu0 0.0
        %1455 = vmatprep.subr.mxu0 0.0
        %1456 = vmatpush1.msra.mxu0 0.0
        %1457 = vmatprep.subr.mxu0 0.0
        %1458 = vmatpush1.msra.mxu0 0.0
        %1459 = vmatprep.subr.mxu0 0.0
        %1460 = vmatpush1.msra.mxu0 0.0
        %1461 = vmatprep.subr.mxu0 0.0
        %1462 = vmatpush1.msra.mxu0 0.0
        %1463 = vmatprep.subr.mxu0 0.0
        %1464 = vmatpush1.msra.mxu0 0.0
        %1465 = vmatprep.mubr.f32.mxu0 0.0
        %1466 = vmatmul.mubr.f32.gmra.mrb[0].mxu0 %v1328
        %v1467 = vpop.f32.mrb[0].mxu0
        %v1468 = vadd.f32 0.0, %v1467
        %v1469 = vpop.f32.mrb[0].mxu0
        %v1470 = vadd.f32 0.0, %v1469
        %1471 = vdwg.mxu0
        %1472 = vmatprep.subr.mxu0 %v437
        %1473 = vmatpush1.msra.mxu0 %v436
        %1474 = vmatprep.subr.mxu0 %v455
        %1475 = vmatpush1.msra.mxu0 %v454
        %1476 = vmatprep.subr.mxu0 0.0
        %1477 = vmatpush1.msra.mxu0 0.0
        %1478 = vmatprep.subr.mxu0 0.0
        %1479 = vmatpush1.msra.mxu0 0.0
        %1480 = vmatprep.subr.mxu0 0.0
        %1481 = vmatpush1.msra.mxu0 0.0
        %1482 = vmatprep.subr.mxu0 0.0
        %1483 = vmatpush1.msra.mxu0 0.0
        %1484 = vmatprep.subr.mxu0 0.0
        %1485 = vmatpush1.msra.mxu0 0.0
        %1486 = vmatprep.subr.mxu0 0.0
        %1487 = vmatpush1.msra.mxu0 0.0
        %1488 = vmatprep.subr.mxu0 0.0
        %1489 = vmatpush1.msra.mxu0 0.0
        %1490 = vmatprep.subr.mxu0 0.0
        %1491 = vmatpush1.msra.mxu0 0.0
        %1492 = vmatprep.subr.mxu0 0.0
        %1493 = vmatpush1.msra.mxu0 0.0
        %1494 = vmatprep.subr.mxu0 0.0
        %1495 = vmatpush1.msra.mxu0 0.0
        %1496 = vmatprep.subr.mxu0 0.0
        %1497 = vmatpush1.msra.mxu0 0.0
        %1498 = vmatprep.subr.mxu0 0.0
        %1499 = vmatpush1.msra.mxu0 0.0
        %1500 = vmatprep.subr.mxu0 0.0
        %1501 = vmatpush1.msra.mxu0 0.0
        %1502 = vmatprep.subr.mxu0 0.0
        %1503 = vmatpush1.msra.mxu0 0.0
        %1504 = vmatprep.subr.mxu0 0.0
        %1505 = vmatpush1.msra.mxu0 0.0
        %1506 = vmatprep.subr.mxu0 0.0
        %1507 = vmatpush1.msra.mxu0 0.0
        %1508 = vmatprep.subr.mxu0 0.0
        %1509 = vmatpush1.msra.mxu0 0.0
        %1510 = vmatprep.subr.mxu0 0.0
        %1511 = vmatpush1.msra.mxu0 0.0
        %1512 = vmatprep.subr.mxu0 0.0
        %1513 = vmatpush1.msra.mxu0 0.0
        %1514 = vmatprep.subr.mxu0 0.0
        %1515 = vmatpush1.msra.mxu0 0.0
        %1516 = vmatprep.subr.mxu0 0.0
        %1517 = vmatpush1.msra.mxu0 0.0
        %1518 = vmatprep.subr.mxu0 0.0
        %1519 = vmatpush1.msra.mxu0 0.0
        %1520 = vmatprep.subr.mxu0 0.0
        %1521 = vmatpush1.msra.mxu0 0.0
        %1522 = vmatprep.subr.mxu0 0.0
        %1523 = vmatpush1.msra.mxu0 0.0
        %1524 = vmatprep.subr.mxu0 0.0
        %1525 = vmatpush1.msra.mxu0 0.0
        %1526 = vmatprep.subr.mxu0 0.0
        %1527 = vmatpush1.msra.mxu0 0.0
        %1528 = vmatprep.subr.mxu0 0.0
        %1529 = vmatpush1.msra.mxu0 0.0
        %1530 = vmatprep.subr.mxu0 0.0
        %1531 = vmatpush1.msra.mxu0 0.0
        %1532 = vmatprep.subr.mxu0 0.0
        %1533 = vmatpush1.msra.mxu0 0.0
        %1534 = vmatprep.subr.mxu0 0.0
        %1535 = vmatpush1.msra.mxu0 0.0
        %1536 = vmatprep.mubr.f32.mxu0 0.0
        %1537 = vmatmul.mubr.f32.gmra.mrb[0].mxu0 %v1328
        %v1538 = vpop.f32.mrb[0].mxu0
        %v1539 = vadd.f32 0.0, %v1538
        %v1540 = vpop.f32.mrb[0].mxu0
        %v1541 = vadd.f32 0.0, %v1540
        %1542 = vdwg.mxu0
        %1543 = vmatprep.subr.mxu0 %v439
        %1544 = vmatpush1.msra.mxu0 %v438
        %1545 = vmatprep.subr.mxu0 %v457
        %1546 = vmatpush1.msra.mxu0 %v456
        %1547 = vmatprep.subr.mxu0 0.0
        %1548 = vmatpush1.msra.mxu0 0.0
        %1549 = vmatprep.subr.mxu0 0.0
        %1550 = vmatpush1.msra.mxu0 0.0
        %1551 = vmatprep.subr.mxu0 0.0
        %1552 = vmatpush1.msra.mxu0 0.0
        %1553 = vmatprep.subr.mxu0 0.0
        %1554 = vmatpush1.msra.mxu0 0.0
        %1555 = vmatprep.subr.mxu0 0.0
        %1556 = vmatpush1.msra.mxu0 0.0
        %1557 = vmatprep.subr.mxu0 0.0
        %1558 = vmatpush1.msra.mxu0 0.0
        %1559 = vmatprep.subr.mxu0 0.0
        %1560 = vmatpush1.msra.mxu0 0.0
        %1561 = vmatprep.subr.mxu0 0.0
        %1562 = vmatpush1.msra.mxu0 0.0
        %1563 = vmatprep.subr.mxu0 0.0
        %1564 = vmatpush1.msra.mxu0 0.0
        %1565 = vmatprep.subr.mxu0 0.0
        %1566 = vmatpush1.msra.mxu0 0.0
        %1567 = vmatprep.subr.mxu0 0.0
        %1568 = vmatpush1.msra.mxu0 0.0
        %1569 = vmatprep.subr.mxu0 0.0
        %1570 = vmatpush1.msra.mxu0 0.0
        %1571 = vmatprep.subr.mxu0 0.0
        %1572 = vmatpush1.msra.mxu0 0.0
        %1573 = vmatprep.subr.mxu0 0.0
        %1574 = vmatpush1.msra.mxu0 0.0
        %1575 = vmatprep.subr.mxu0 0.0
        %1576 = vmatpush1.msra.mxu0 0.0
        %1577 = vmatprep.subr.mxu0 0.0
        %1578 = vmatpush1.msra.mxu0 0.0
        %1579 = vmatprep.subr.mxu0 0.0
        %1580 = vmatpush1.msra.mxu0 0.0
        %1581 = vmatprep.subr.mxu0 0.0
        %1582 = vmatpush1.msra.mxu0 0.0
        %1583 = vmatprep.subr.mxu0 0.0
        %1584 = vmatpush1.msra.mxu0 0.0
        %1585 = vmatprep.subr.mxu0 0.0
        %1586 = vmatpush1.msra.mxu0 0.0
        %1587 = vmatprep.subr.mxu0 0.0
        %1588 = vmatpush1.msra.mxu0 0.0
        %1589 = vmatprep.subr.mxu0 0.0
        %1590 = vmatpush1.msra.mxu0 0.0
        %1591 = vmatprep.subr.mxu0 0.0
        %1592 = vmatpush1.msra.mxu0 0.0
        %1593 = vmatprep.subr.mxu0 0.0
        %1594 = vmatpush1.msra.mxu0 0.0
        %1595 = vmatprep.subr.mxu0 0.0
        %1596 = vmatpush1.msra.mxu0 0.0
        %1597 = vmatprep.subr.mxu0 0.0
        %1598 = vmatpush1.msra.mxu0 0.0
        %1599 = vmatprep.subr.mxu0 0.0
        %1600 = vmatpush1.msra.mxu0 0.0
        %1601 = vmatprep.subr.mxu0 0.0
        %1602 = vmatpush1.msra.mxu0 0.0
        %1603 = vmatprep.subr.mxu0 0.0
        %1604 = vmatpush1.msra.mxu0 0.0
        %1605 = vmatprep.subr.mxu0 0.0
        %1606 = vmatpush1.msra.mxu0 0.0
        %1607 = vmatprep.mubr.f32.mxu0 0.0
        %1608 = vmatmul.mubr.f32.gmra.mrb[0].mxu0 %v1328
        %v1609 = vpop.f32.mrb[0].mxu0
        %v1610 = vadd.f32 0.0, %v1609
        %v1611 = vpop.f32.mrb[0].mxu0
        %v1612 = vadd.f32 0.0, %v1611
        %1613 = vdwg.mxu0
        %1614 = vmatprep.subr.mxu0 %v441
        %1615 = vmatpush1.msra.mxu0 %v440
        %1616 = vmatprep.subr.mxu0 %v459
        %1617 = vmatpush1.msra.mxu0 %v458
        %1618 = vmatprep.subr.mxu0 0.0
        %1619 = vmatpush1.msra.mxu0 0.0
        %1620 = vmatprep.subr.mxu0 0.0
        %1621 = vmatpush1.msra.mxu0 0.0
        %1622 = vmatprep.subr.mxu0 0.0
        %1623 = vmatpush1.msra.mxu0 0.0
        %1624 = vmatprep.subr.mxu0 0.0
        %1625 = vmatpush1.msra.mxu0 0.0
        %1626 = vmatprep.subr.mxu0 0.0
        %1627 = vmatpush1.msra.mxu0 0.0
        %1628 = vmatprep.subr.mxu0 0.0
        %1629 = vmatpush1.msra.mxu0 0.0
        %1630 = vmatprep.subr.mxu0 0.0
        %1631 = vmatpush1.msra.mxu0 0.0
        %1632 = vmatprep.subr.mxu0 0.0
        %1633 = vmatpush1.msra.mxu0 0.0
        %1634 = vmatprep.subr.mxu0 0.0
        %1635 = vmatpush1.msra.mxu0 0.0
        %1636 = vmatprep.subr.mxu0 0.0
        %1637 = vmatpush1.msra.mxu0 0.0
        %1638 = vmatprep.subr.mxu0 0.0
        %1639 = vmatpush1.msra.mxu0 0.0
        %1640 = vmatprep.subr.mxu0 0.0
        %1641 = vmatpush1.msra.mxu0 0.0
        %1642 = vmatprep.subr.mxu0 0.0
        %1643 = vmatpush1.msra.mxu0 0.0
        %1644 = vmatprep.subr.mxu0 0.0
        %1645 = vmatpush1.msra.mxu0 0.0
        %1646 = vmatprep.subr.mxu0 0.0
        %1647 = vmatpush1.msra.mxu0 0.0
        %1648 = vmatprep.subr.mxu0 0.0
        %1649 = vmatpush1.msra.mxu0 0.0
        %1650 = vmatprep.subr.mxu0 0.0
        %1651 = vmatpush1.msra.mxu0 0.0
        %1652 = vmatprep.subr.mxu0 0.0
        %1653 = vmatpush1.msra.mxu0 0.0
        %1654 = vmatprep.subr.mxu0 0.0
        %1655 = vmatpush1.msra.mxu0 0.0
        %1656 = vmatprep.subr.mxu0 0.0
        %1657 = vmatpush1.msra.mxu0 0.0
        %1658 = vmatprep.subr.mxu0 0.0
        %1659 = vmatpush1.msra.mxu0 0.0
        %1660 = vmatprep.subr.mxu0 0.0
        %1661 = vmatpush1.msra.mxu0 0.0
        %1662 = vmatprep.subr.mxu0 0.0
        %1663 = vmatpush1.msra.mxu0 0.0
        %1664 = vmatprep.subr.mxu0 0.0
        %1665 = vmatpush1.msra.mxu0 0.0
        %1666 = vmatprep.subr.mxu0 0.0
        %1667 = vmatpush1.msra.mxu0 0.0
        %1668 = vmatprep.subr.mxu0 0.0
        %1669 = vmatpush1.msra.mxu0 0.0
        %1670 = vmatprep.subr.mxu0 0.0
        %1671 = vmatpush1.msra.mxu0 0.0
        %1672 = vmatprep.subr.mxu0 0.0
        %1673 = vmatpush1.msra.mxu0 0.0
        %1674 = vmatprep.subr.mxu0 0.0
        %1675 = vmatpush1.msra.mxu0 0.0
        %1676 = vmatprep.subr.mxu0 0.0
        %1677 = vmatpush1.msra.mxu0 0.0
        %1678 = vmatprep.mubr.f32.mxu0 0.0
        %1679 = vmatmul.mubr.f32.gmra.mrb[0].mxu0 %v1328
        %v1680 = vpop.f32.mrb[0].mxu0
        %v1681 = vadd.f32 0.0, %v1680
        %v1682 = vpop.f32.mrb[0].mxu0
        %v1683 = vadd.f32 0.0, %v1682
        %1684 = vdwg.mxu0
        %1685 = vmatprep.subr.mxu0 %v443
        %1686 = vmatpush1.msra.mxu0 %v442
        %1687 = vmatprep.subr.mxu0 %v461
        %1688 = vmatpush1.msra.mxu0 %v460
        %1689 = vmatprep.subr.mxu0 0.0
        %1690 = vmatpush1.msra.mxu0 0.0
        %1691 = vmatprep.subr.mxu0 0.0
        %1692 = vmatpush1.msra.mxu0 0.0
        %1693 = vmatprep.subr.mxu0 0.0
        %1694 = vmatpush1.msra.mxu0 0.0
        %1695 = vmatprep.subr.mxu0 0.0
        %1696 = vmatpush1.msra.mxu0 0.0
        %1697 = vmatprep.subr.mxu0 0.0
        %1698 = vmatpush1.msra.mxu0 0.0
        %1699 = vmatprep.subr.mxu0 0.0
        %1700 = vmatpush1.msra.mxu0 0.0
        %1701 = vmatprep.subr.mxu0 0.0
        %1702 = vmatpush1.msra.mxu0 0.0
        %1703 = vmatprep.subr.mxu0 0.0
        %1704 = vmatpush1.msra.mxu0 0.0
        %1705 = vmatprep.subr.mxu0 0.0
        %1706 = vmatpush1.msra.mxu0 0.0
        %1707 = vmatprep.subr.mxu0 0.0
        %1708 = vmatpush1.msra.mxu0 0.0
        %1709 = vmatprep.subr.mxu0 0.0
        %1710 = vmatpush1.msra.mxu0 0.0
        %1711 = vmatprep.subr.mxu0 0.0
        %1712 = vmatpush1.msra.mxu0 0.0
        %1713 = vmatprep.subr.mxu0 0.0
        %1714 = vmatpush1.msra.mxu0 0.0
        %1715 = vmatprep.subr.mxu0 0.0
        %1716 = vmatpush1.msra.mxu0 0.0
        %1717 = vmatprep.subr.mxu0 0.0
        %1718 = vmatpush1.msra.mxu0 0.0
        %1719 = vmatprep.subr.mxu0 0.0
        %1720 = vmatpush1.msra.mxu0 0.0
        %1721 = vmatprep.subr.mxu0 0.0
        %1722 = vmatpush1.msra.mxu0 0.0
        %1723 = vmatprep.subr.mxu0 0.0
        %1724 = vmatpush1.msra.mxu0 0.0
        %1725 = vmatprep.subr.mxu0 0.0
        %1726 = vmatpush1.msra.mxu0 0.0
        %1727 = vmatprep.subr.mxu0 0.0
        %1728 = vmatpush1.msra.mxu0 0.0
        %1729 = vmatprep.subr.mxu0 0.0
        %1730 = vmatpush1.msra.mxu0 0.0
        %1731 = vmatprep.subr.mxu0 0.0
        %1732 = vmatpush1.msra.mxu0 0.0
        %1733 = vmatprep.subr.mxu0 0.0
        %1734 = vmatpush1.msra.mxu0 0.0
        %1735 = vmatprep.subr.mxu0 0.0
        %1736 = vmatpush1.msra.mxu0 0.0
        %1737 = vmatprep.subr.mxu0 0.0
        %1738 = vmatpush1.msra.mxu0 0.0
        %1739 = vmatprep.subr.mxu0 0.0
        %1740 = vmatpush1.msra.mxu0 0.0
        %1741 = vmatprep.subr.mxu0 0.0
        %1742 = vmatpush1.msra.mxu0 0.0
        %1743 = vmatprep.subr.mxu0 0.0
        %1744 = vmatpush1.msra.mxu0 0.0
        %1745 = vmatprep.subr.mxu0 0.0
        %1746 = vmatpush1.msra.mxu0 0.0
        %1747 = vmatprep.subr.mxu0 0.0
        %1748 = vmatpush1.msra.mxu0 0.0
        %1749 = vmatprep.mubr.f32.mxu0 0.0
        %1750 = vmatmul.mubr.f32.gmra.mrb[0].mxu0 %v1328
        %v1751 = vpop.f32.mrb[0].mxu0
        %v1752 = vadd.f32 0.0, %v1751
        %v1753 = vpop.f32.mrb[0].mxu0
        %v1754 = vadd.f32 0.0, %v1753
        %1755 = vdwg.mxu0
        %1756 = vmatprep.subr.mxu0 %v445
        %1757 = vmatpush1.msra.mxu0 %v444
        %1758 = vmatprep.subr.mxu0 %v463
        %1759 = vmatpush1.msra.mxu0 %v462
        %1760 = vmatprep.subr.mxu0 0.0
        %1761 = vmatpush1.msra.mxu0 0.0
        %1762 = vmatprep.subr.mxu0 0.0
        %1763 = vmatpush1.msra.mxu0 0.0
        %1764 = vmatprep.subr.mxu0 0.0
        %1765 = vmatpush1.msra.mxu0 0.0
        %1766 = vmatprep.subr.mxu0 0.0
        %1767 = vmatpush1.msra.mxu0 0.0
        %1768 = vmatprep.subr.mxu0 0.0
        %1769 = vmatpush1.msra.mxu0 0.0
        %1770 = vmatprep.subr.mxu0 0.0
        %1771 = vmatpush1.msra.mxu0 0.0
        %1772 = vmatprep.subr.mxu0 0.0
        %1773 = vmatpush1.msra.mxu0 0.0
        %1774 = vmatprep.subr.mxu0 0.0
        %1775 = vmatpush1.msra.mxu0 0.0
        %1776 = vmatprep.subr.mxu0 0.0
        %1777 = vmatpush1.msra.mxu0 0.0
        %1778 = vmatprep.subr.mxu0 0.0
        %1779 = vmatpush1.msra.mxu0 0.0
        %1780 = vmatprep.subr.mxu0 0.0
        %1781 = vmatpush1.msra.mxu0 0.0
        %1782 = vmatprep.subr.mxu0 0.0
        %1783 = vmatpush1.msra.mxu0 0.0
        %1784 = vmatprep.subr.mxu0 0.0
        %1785 = vmatpush1.msra.mxu0 0.0
        %1786 = vmatprep.subr.mxu0 0.0
        %1787 = vmatpush1.msra.mxu0 0.0
        %1788 = vmatprep.subr.mxu0 0.0
        %1789 = vmatpush1.msra.mxu0 0.0
        %1790 = vmatprep.subr.mxu0 0.0
        %1791 = vmatpush1.msra.mxu0 0.0
        %1792 = vmatprep.subr.mxu0 0.0
        %1793 = vmatpush1.msra.mxu0 0.0
        %1794 = vmatprep.subr.mxu0 0.0
        %1795 = vmatpush1.msra.mxu0 0.0
        %1796 = vmatprep.subr.mxu0 0.0
        %1797 = vmatpush1.msra.mxu0 0.0
        %1798 = vmatprep.subr.mxu0 0.0
        %1799 = vmatpush1.msra.mxu0 0.0
        %1800 = vmatprep.subr.mxu0 0.0
        %1801 = vmatpush1.msra.mxu0 0.0
        %1802 = vmatprep.subr.mxu0 0.0
        %1803 = vmatpush1.msra.mxu0 0.0
        %1804 = vmatprep.subr.mxu0 0.0
        %1805 = vmatpush1.msra.mxu0 0.0
        %1806 = vmatprep.subr.mxu0 0.0
        %1807 = vmatpush1.msra.mxu0 0.0
        %1808 = vmatprep.subr.mxu0 0.0
        %1809 = vmatpush1.msra.mxu0 0.0
        %1810 = vmatprep.subr.mxu0 0.0
        %1811 = vmatpush1.msra.mxu0 0.0
        %1812 = vmatprep.subr.mxu0 0.0
        %1813 = vmatpush1.msra.mxu0 0.0
        %1814 = vmatprep.subr.mxu0 0.0
        %1815 = vmatpush1.msra.mxu0 0.0
        %1816 = vmatprep.subr.mxu0 0.0
        %1817 = vmatpush1.msra.mxu0 0.0
        %1818 = vmatprep.subr.mxu0 0.0
        %1819 = vmatpush1.msra.mxu0 0.0
        %1820 = vmatprep.mubr.f32.mxu0 0.0
        %1821 = vmatmul.mubr.f32.gmra.mrb[0].mxu0 %v1328
        %v1822 = vpop.f32.mrb[0].mxu0
        %v1823 = vadd.f32 0.0, %v1822
        %v1824 = vpop.f32.mrb[0].mxu0
        %v1825 = vadd.f32 0.0, %v1824
        %1826 = vdwg.mxu0
        %1827 = vmatprep.subr.mxu0 %v447
        %1828 = vmatpush1.msra.mxu0 %v446
        %1829 = vmatprep.subr.mxu0 %v465
        %1830 = vmatpush1.msra.mxu0 %v464
        %1831 = vmatprep.subr.mxu0 0.0
        %1832 = vmatpush1.msra.mxu0 0.0
        %1833 = vmatprep.subr.mxu0 0.0
        %1834 = vmatpush1.msra.mxu0 0.0
        %1835 = vmatprep.subr.mxu0 0.0
        %1836 = vmatpush1.msra.mxu0 0.0
        %1837 = vmatprep.subr.mxu0 0.0
        %1838 = vmatpush1.msra.mxu0 0.0
        %1839 = vmatprep.subr.mxu0 0.0
        %1840 = vmatpush1.msra.mxu0 0.0
        %1841 = vmatprep.subr.mxu0 0.0
        %1842 = vmatpush1.msra.mxu0 0.0
        %1843 = vmatprep.subr.mxu0 0.0
        %1844 = vmatpush1.msra.mxu0 0.0
        %1845 = vmatprep.subr.mxu0 0.0
        %1846 = vmatpush1.msra.mxu0 0.0
        %1847 = vmatprep.subr.mxu0 0.0
        %1848 = vmatpush1.msra.mxu0 0.0
        %1849 = vmatprep.subr.mxu0 0.0
        %1850 = vmatpush1.msra.mxu0 0.0
        %1851 = vmatprep.subr.mxu0 0.0
        %1852 = vmatpush1.msra.mxu0 0.0
        %1853 = vmatprep.subr.mxu0 0.0
        %1854 = vmatpush1.msra.mxu0 0.0
        %1855 = vmatprep.subr.mxu0 0.0
        %1856 = vmatpush1.msra.mxu0 0.0
        %1857 = vmatprep.subr.mxu0 0.0
        %1858 = vmatpush1.msra.mxu0 0.0
        %1859 = vmatprep.subr.mxu0 0.0
        %1860 = vmatpush1.msra.mxu0 0.0
        %1861 = vmatprep.subr.mxu0 0.0
        %1862 = vmatpush1.msra.mxu0 0.0
        %1863 = vmatprep.subr.mxu0 0.0
        %1864 = vmatpush1.msra.mxu0 0.0
        %1865 = vmatprep.subr.mxu0 0.0
        %1866 = vmatpush1.msra.mxu0 0.0
        %1867 = vmatprep.subr.mxu0 0.0
        %1868 = vmatpush1.msra.mxu0 0.0
        %1869 = vmatprep.subr.mxu0 0.0
        %1870 = vmatpush1.msra.mxu0 0.0
        %1871 = vmatprep.subr.mxu0 0.0
        %1872 = vmatpush1.msra.mxu0 0.0
        %1873 = vmatprep.subr.mxu0 0.0
        %1874 = vmatpush1.msra.mxu0 0.0
        %1875 = vmatprep.subr.mxu0 0.0
        %1876 = vmatpush1.msra.mxu0 0.0
        %1877 = vmatprep.subr.mxu0 0.0
        %1878 = vmatpush1.msra.mxu0 0.0
        %1879 = vmatprep.subr.mxu0 0.0
        %1880 = vmatpush1.msra.mxu0 0.0
        %1881 = vmatprep.subr.mxu0 0.0
        %1882 = vmatpush1.msra.mxu0 0.0
        %1883 = vmatprep.subr.mxu0 0.0
        %1884 = vmatpush1.msra.mxu0 0.0
        %1885 = vmatprep.subr.mxu0 0.0
        %1886 = vmatpush1.msra.mxu0 0.0
        %1887 = vmatprep.subr.mxu0 0.0
        %1888 = vmatpush1.msra.mxu0 0.0
        %1889 = vmatprep.subr.mxu0 0.0
        %1890 = vmatpush1.msra.mxu0 0.0
        %1891 = vmatprep.mubr.f32.mxu0 0.0
        %1892 = vmatmul.mubr.f32.gmra.mrb[0].mxu0 %v1328
        %v1893 = vpop.f32.mrb[0].mxu0
        %v1894 = vadd.f32 0.0, %v1893
        %v1895 = vpop.f32.mrb[0].mxu0
        %v1896 = vadd.f32 0.0, %v1895
        %1897 = vdwg.mxu0
        %1898 = vmatprep.subr.mxu0 %v449
        %1899 = vmatpush1.msra.mxu0 %v448
        %1900 = vmatprep.subr.mxu0 %v467
        %1901 = vmatpush1.msra.mxu0 %v466
        %1902 = vmatprep.subr.mxu0 0.0
        %1903 = vmatpush1.msra.mxu0 0.0
        %1904 = vmatprep.subr.mxu0 0.0
        %1905 = vmatpush1.msra.mxu0 0.0
        %1906 = vmatprep.subr.mxu0 0.0
        %1907 = vmatpush1.msra.mxu0 0.0
        %1908 = vmatprep.subr.mxu0 0.0
        %1909 = vmatpush1.msra.mxu0 0.0
        %1910 = vmatprep.subr.mxu0 0.0
        %1911 = vmatpush1.msra.mxu0 0.0
        %1912 = vmatprep.subr.mxu0 0.0
        %1913 = vmatpush1.msra.mxu0 0.0
        %1914 = vmatprep.subr.mxu0 0.0
        %1915 = vmatpush1.msra.mxu0 0.0
        %1916 = vmatprep.subr.mxu0 0.0
        %1917 = vmatpush1.msra.mxu0 0.0
        %1918 = vmatprep.subr.mxu0 0.0
        %1919 = vmatpush1.msra.mxu0 0.0
        %1920 = vmatprep.subr.mxu0 0.0
        %1921 = vmatpush1.msra.mxu0 0.0
        %1922 = vmatprep.subr.mxu0 0.0
        %1923 = vmatpush1.msra.mxu0 0.0
        %1924 = vmatprep.subr.mxu0 0.0
        %1925 = vmatpush1.msra.mxu0 0.0
        %1926 = vmatprep.subr.mxu0 0.0
        %1927 = vmatpush1.msra.mxu0 0.0
        %1928 = vmatprep.subr.mxu0 0.0
        %1929 = vmatpush1.msra.mxu0 0.0
        %1930 = vmatprep.subr.mxu0 0.0
        %1931 = vmatpush1.msra.mxu0 0.0
        %1932 = vmatprep.subr.mxu0 0.0
        %1933 = vmatpush1.msra.mxu0 0.0
        %1934 = vmatprep.subr.mxu0 0.0
        %1935 = vmatpush1.msra.mxu0 0.0
        %1936 = vmatprep.subr.mxu0 0.0
        %1937 = vmatpush1.msra.mxu0 0.0
        %1938 = vmatprep.subr.mxu0 0.0
        %1939 = vmatpush1.msra.mxu0 0.0
        %1940 = vmatprep.subr.mxu0 0.0
        %1941 = vmatpush1.msra.mxu0 0.0
        %1942 = vmatprep.subr.mxu0 0.0
        %1943 = vmatpush1.msra.mxu0 0.0
        %1944 = vmatprep.subr.mxu0 0.0
        %1945 = vmatpush1.msra.mxu0 0.0
        %1946 = vmatprep.subr.mxu0 0.0
        %1947 = vmatpush1.msra.mxu0 0.0
        %1948 = vmatprep.subr.mxu0 0.0
        %1949 = vmatpush1.msra.mxu0 0.0
        %1950 = vmatprep.subr.mxu0 0.0
        %1951 = vmatpush1.msra.mxu0 0.0
        %1952 = vmatprep.subr.mxu0 0.0
        %1953 = vmatpush1.msra.mxu0 0.0
        %1954 = vmatprep.subr.mxu0 0.0
        %1955 = vmatpush1.msra.mxu0 0.0
        %1956 = vmatprep.subr.mxu0 0.0
        %1957 = vmatpush1.msra.mxu0 0.0
        %1958 = vmatprep.subr.mxu0 0.0
        %1959 = vmatpush1.msra.mxu0 0.0
        %1960 = vmatprep.subr.mxu0 0.0
        %1961 = vmatpush1.msra.mxu0 0.0
        %1962 = vmatprep.mubr.f32.mxu0 0.0
        %1963 = vmatmul.mubr.f32.gmra.mrb[0].mxu0 %v1328
        %v1964 = vpop.f32.mrb[0].mxu0
        %v1965 = vadd.f32 0.0, %v1964
        %v1966 = vpop.f32.mrb[0].mxu0
        %v1967 = vadd.f32 0.0, %v1966
        %1968 = vdwg.mxu0
        %1969 = vrot.lane.b32.xlu0 %v1397, 64
        %v1970 = vpop.permute.xlu0 %1969
        %1971 = vrot.lane.b32.xlu0 %v1399, 64
        %v1972 = vpop.permute.xlu0 %1971
        %1973 = vrot.lane.b32.xlu0 %v1468, 64
        %v1974 = vpop.permute.xlu0 %1973
        %1975 = vrot.lane.b32.xlu0 %v1470, 64
        %v1976 = vpop.permute.xlu0 %1975
        %1977 = vrot.lane.b32.xlu0 %v1539, 64
        %v1978 = vpop.permute.xlu0 %1977
        %1979 = vrot.lane.b32.xlu0 %v1541, 64
        %v1980 = vpop.permute.xlu0 %1979
        %1981 = vrot.lane.b32.xlu0 %v1610, 64
        %v1982 = vpop.permute.xlu0 %1981
        %1983 = vrot.lane.b32.xlu0 %v1612, 64
        %v1984 = vpop.permute.xlu0 %1983
        %1985 = vrot.lane.b32.xlu0 %v1681, 64
        %v1986 = vpop.permute.xlu0 %1985
        %1987 = vrot.lane.b32.xlu0 %v1683, 64
        %v1988 = vpop.permute.xlu0 %1987
        %1989 = vrot.lane.b32.xlu0 %v1752, 64
        %v1990 = vpop.permute.xlu0 %1989
        %1991 = vrot.lane.b32.xlu0 %v1754, 64
        %v1992 = vpop.permute.xlu0 %1991
        %1993 = vrot.lane.b32.xlu0 %v1823, 64
        %v1994 = vpop.permute.xlu0 %1993
        %1995 = vrot.lane.b32.xlu0 %v1825, 64
        %v1996 = vpop.permute.xlu0 %1995
        %1997 = vrot.lane.b32.xlu0 %v1894, 64
        %v1998 = vpop.permute.xlu0 %1997
        %1999 = vrot.lane.b32.xlu0 %v1896, 64
        %v2000 = vpop.permute.xlu0 %1999
        %2001 = vrot.lane.b32.xlu0 %v1965, 64
        %v2002 = vpop.permute.xlu0 %2001
        %2003 = vrot.lane.b32.xlu0 %v1967, 64
        %v2004 = vpop.permute.xlu0 %2003
        %vm2005 = vcmp.lt.s32.totalorder %v1167, 64
        %v2006 = vsel %vm2005, %v2002, %v2004
        %v2007 = vsel %vm2005, %v2000, %v2002
        %v2008 = vsel %vm2005, %v1998, %v2000
        %v2009 = vsel %vm2005, %v1996, %v1998
        %v2010 = vsel %vm2005, %v1994, %v1996
        %v2011 = vsel %vm2005, %v1992, %v1994
        %v2012 = vsel %vm2005, %v1990, %v1992
        %v2013 = vsel %vm2005, %v1988, %v1990
        %v2014 = vsel %vm2005, %v1986, %v1988
        %v2015 = vsel %vm2005, %v1984, %v1986
        %v2016 = vsel %vm2005, %v1982, %v1984
        %v2017 = vsel %vm2005, %v1980, %v1982
        %v2018 = vsel %vm2005, %v1978, %v1980
        %v2019 = vsel %vm2005, %v1976, %v1978
        %v2020 = vsel %vm2005, %v1974, %v1976
        %v2021 = vsel %vm2005, %v1972, %v1974
        %v2022 = vsel %vm2005, %v1970, %v1972
        %v2023 = vsel %vm2005, %v2004, %v1970
        %s2024 = scalar_lea.vmem %s2, 1
        %v2025 = vld [vmem:[%s2024] ss:$8 sm:$0xf]
        %v2026 = vld [vmem:[%s2024] ss:$8 sm:$0xf0]
        %v2027 = vor.u32 %v2025, %v2026
        %s2028 = scalar_lea.vmem %s2, 65
        %v2029 = vld [vmem:[%s2028] ss:$8 sm:$0xf]
        %v2030 = vld [vmem:[%s2028] ss:$8 sm:$0xf0]
        %v2031 = vor.u32 %v2029, %v2030
        %s2032 = scalar_lea.vmem %s2, 129
        %v2033 = vld [vmem:[%s2032] ss:$8 sm:$0x3]
        %v2037 = vlaneseq
        %v2038 = vshrl.u32 %v2037, 7
        %v2039 = vsub.s32 0, %v2038
        %v2040 = vrot.slane %v2027, %v2039
        %v2041 = vlaneseq
        %v2042 = vshrl.u32 %v2041, 7
        %v2043 = vsub.s32 1, %v2042
        %v2044 = vrot.slane %v2027, %v2043
        %v2045 = vlaneseq
        %v2046 = vshrl.u32 %v2045, 7
        %v2047 = vsub.s32 2, %v2046
        %v2048 = vrot.slane %v2027, %v2047
        %v2049 = vlaneseq
        %v2050 = vshrl.u32 %v2049, 7
        %v2051 = vsub.s32 3, %v2050
        %v2052 = vrot.slane %v2027, %v2051
        %v2053 = vlaneseq
        %v2054 = vshrl.u32 %v2053, 7
        %v2055 = vsub.s32 4, %v2054
        %v2056 = vrot.slane %v2027, %v2055
        %v2057 = vlaneseq
        %v2058 = vshrl.u32 %v2057, 7
        %v2059 = vsub.s32 5, %v2058
        %v2060 = vrot.slane %v2027, %v2059
        %v2061 = vlaneseq
        %v2062 = vshrl.u32 %v2061, 7
        %v2063 = vsub.s32 6, %v2062
        %v2064 = vrot.slane %v2027, %v2063
        %v2065 = vlaneseq
        %v2066 = vshrl.u32 %v2065, 7
        %v2067 = vsub.s32 7, %v2066
        %v2068 = vrot.slane %v2027, %v2067
        %v2069 = vlaneseq
        %v2070 = vshrl.u32 %v2069, 7
        %v2071 = vsub.s32 0, %v2070
        %v2072 = vrot.slane %v2031, %v2071
        %v2073 = vlaneseq
        %v2074 = vshrl.u32 %v2073, 7
        %v2075 = vsub.s32 1, %v2074
        %v2076 = vrot.slane %v2031, %v2075
        %v2077 = vlaneseq
        %v2078 = vshrl.u32 %v2077, 7
        %v2079 = vsub.s32 2, %v2078
        %v2080 = vrot.slane %v2031, %v2079
        %v2081 = vlaneseq
        %v2082 = vshrl.u32 %v2081, 7
        %v2083 = vsub.s32 3, %v2082
        %v2084 = vrot.slane %v2031, %v2083
        %v2085 = vlaneseq
        %v2086 = vshrl.u32 %v2085, 7
        %v2087 = vsub.s32 4, %v2086
        %v2088 = vrot.slane %v2031, %v2087
        %v2089 = vlaneseq
        %v2090 = vshrl.u32 %v2089, 7
        %v2091 = vsub.s32 5, %v2090
        %v2092 = vrot.slane %v2031, %v2091
        %v2093 = vlaneseq
        %v2094 = vshrl.u32 %v2093, 7
        %v2095 = vsub.s32 6, %v2094
        %v2096 = vrot.slane %v2031, %v2095
        %v2097 = vlaneseq
        %v2098 = vshrl.u32 %v2097, 7
        %v2099 = vsub.s32 7, %v2098
        %v2100 = vrot.slane %v2031, %v2099
        %v2101 = vlaneseq
        %v2102 = vshrl.u32 %v2101, 7
        %v2103 = vsub.s32 0, %v2102
        %v2104 = vrot.slane %v2033, %v2103
        %v2105 = vlaneseq
        %v2106 = vshrl.u32 %v2105, 7
        %v2107 = vsub.s32 1, %v2106
        %v2108 = vrot.slane %v2033, %v2107
        %v2127 = vmul.f32 %v2006, %v2040
        %v2128 = vmul.f32 %v2023, %v2044
        %v2129 = vmul.f32 %v2022, %v2048
        %v2130 = vmul.f32 %v2021, %v2052
        %v2131 = vmul.f32 %v2020, %v2056
        %v2132 = vmul.f32 %v2019, %v2060
        %v2133 = vmul.f32 %v2018, %v2064
        %v2134 = vmul.f32 %v2017, %v2068
        %v2135 = vmul.f32 %v2016, %v2072
        %v2136 = vmul.f32 %v2015, %v2076
        %v2137 = vmul.f32 %v2014, %v2080
        %v2138 = vmul.f32 %v2013, %v2084
        %v2139 = vmul.f32 %v2012, %v2088
        %v2140 = vmul.f32 %v2011, %v2092
        %v2141 = vmul.f32 %v2010, %v2096
        %v2142 = vmul.f32 %v2009, %v2100
        %v2143 = vmul.f32 %v2008, %v2104
        %v2144 = vmul.f32 %v2007, %v2108
        %v2145 = vadd.f32 %v1307, %v2127
        %v2146 = vadd.f32 %v1308, %v2128
        %v2147 = vadd.f32 %v1309, %v2129
        %v2148 = vadd.f32 %v1310, %v2130
        %v2149 = vadd.f32 %v1311, %v2131
        %v2150 = vadd.f32 %v1312, %v2132
        %v2151 = vadd.f32 %v1313, %v2133
        %v2152 = vadd.f32 %v1314, %v2134
        %v2153 = vadd.f32 %v1315, %v2135
        %v2154 = vadd.f32 %v1316, %v2136
        %v2155 = vadd.f32 %v1317, %v2137
        %v2156 = vadd.f32 %v1318, %v2138
        %v2157 = vadd.f32 %v1319, %v2139
        %v2158 = vadd.f32 %v1320, %v2140
        %v2159 = vadd.f32 %v1321, %v2141
        %v2160 = vadd.f32 %v1322, %v2142
        %v2161 = vadd.f32 %v1323, %v2143
        %v2162 = vadd.f32 %v1324, %v2144
        %s2163 = scalar_lea.vmem %s4, 16
        %v2164 = vld [vmem:[%s2163] sm:$0xff]
        %v2166 = vsel %vm487, %v2164, 0
        %2168 = vmatprep.subr.mxu0 %v433
        %2169 = vmatpush1.msra.mxu0 %v432
        %2170 = vmatprep.subr.mxu0 %v451
        %2171 = vmatpush1.msra.mxu0 %v450
        %2172 = vmatprep.subr.mxu0 0.0
        %2173 = vmatpush1.msra.mxu0 0.0
        %2174 = vmatprep.subr.mxu0 0.0
        %2175 = vmatpush1.msra.mxu0 0.0
        %2176 = vmatprep.subr.mxu0 0.0
        %2177 = vmatpush1.msra.mxu0 0.0
        %2178 = vmatprep.subr.mxu0 0.0
        %2179 = vmatpush1.msra.mxu0 0.0
        %2180 = vmatprep.subr.mxu0 0.0
        %2181 = vmatpush1.msra.mxu0 0.0
        %2182 = vmatprep.subr.mxu0 0.0
        %2183 = vmatpush1.msra.mxu0 0.0
        %2184 = vmatprep.subr.mxu0 0.0
        %2185 = vmatpush1.msra.mxu0 0.0
        %2186 = vmatprep.subr.mxu0 0.0
        %2187 = vmatpush1.msra.mxu0 0.0
        %2188 = vmatprep.subr.mxu0 0.0
        %2189 = vmatpush1.msra.mxu0 0.0
        %2190 = vmatprep.subr.mxu0 0.0
        %2191 = vmatpush1.msra.mxu0 0.0
        %2192 = vmatprep.subr.mxu0 0.0
        %2193 = vmatpush1.msra.mxu0 0.0
        %2194 = vmatprep.subr.mxu0 0.0
        %2195 = vmatpush1.msra.mxu0 0.0
        %2196 = vmatprep.subr.mxu0 0.0
        %2197 = vmatpush1.msra.mxu0 0.0
        %2198 = vmatprep.subr.mxu0 0.0
        %2199 = vmatpush1.msra.mxu0 0.0
        %2200 = vmatprep.subr.mxu0 0.0
        %2201 = vmatpush1.msra.mxu0 0.0
        %2202 = vmatprep.subr.mxu0 0.0
        %2203 = vmatpush1.msra.mxu0 0.0
        %2204 = vmatprep.subr.mxu0 0.0
        %2205 = vmatpush1.msra.mxu0 0.0
        %2206 = vmatprep.subr.mxu0 0.0
        %2207 = vmatpush1.msra.mxu0 0.0
        %2208 = vmatprep.subr.mxu0 0.0
        %2209 = vmatpush1.msra.mxu0 0.0
        %2210 = vmatprep.subr.mxu0 0.0
        %2211 = vmatpush1.msra.mxu0 0.0
        %2212 = vmatprep.subr.mxu0 0.0
        %2213 = vmatpush1.msra.mxu0 0.0
        %2214 = vmatprep.subr.mxu0 0.0
        %2215 = vmatpush1.msra.mxu0 0.0
        %2216 = vmatprep.subr.mxu0 0.0
        %2217 = vmatpush1.msra.mxu0 0.0
        %2218 = vmatprep.subr.mxu0 0.0
        %2219 = vmatpush1.msra.mxu0 0.0
        %2220 = vmatprep.subr.mxu0 0.0
        %2221 = vmatpush1.msra.mxu0 0.0
        %2222 = vmatprep.subr.mxu0 0.0
        %2223 = vmatpush1.msra.mxu0 0.0
        %2224 = vmatprep.subr.mxu0 0.0
        %2225 = vmatpush1.msra.mxu0 0.0
        %2226 = vmatprep.subr.mxu0 0.0
        %2227 = vmatpush1.msra.mxu0 0.0
        %2228 = vmatprep.subr.mxu0 0.0
        %2229 = vmatpush1.msra.mxu0 0.0
        %2230 = vmatprep.subr.mxu0 0.0
        %2231 = vmatpush1.msra.mxu0 0.0
        %2232 = vmatprep.mubr.f32.mxu0 0.0
        %2233 = vmatmul.mubr.f32.gmra.mrb[0].mxu0 %v2166
        %v2234 = vpop.f32.mrb[0].mxu0
        %v2235 = vadd.f32 0.0, %v2234
        %v2236 = vpop.f32.mrb[0].mxu0
        %v2237 = vadd.f32 0.0, %v2236
        %2238 = vdwg.mxu0
        %2239 = vmatprep.subr.mxu0 %v435
        %2240 = vmatpush1.msra.mxu0 %v434
        %2241 = vmatprep.subr.mxu0 %v453
        %2242 = vmatpush1.msra.mxu0 %v452
        %2243 = vmatprep.subr.mxu0 0.0
        %2244 = vmatpush1.msra.mxu0 0.0
        %2245 = vmatprep.subr.mxu0 0.0
        %2246 = vmatpush1.msra.mxu0 0.0
        %2247 = vmatprep.subr.mxu0 0.0
        %2248 = vmatpush1.msra.mxu0 0.0
        %2249 = vmatprep.subr.mxu0 0.0
        %2250 = vmatpush1.msra.mxu0 0.0
        %2251 = vmatprep.subr.mxu0 0.0
        %2252 = vmatpush1.msra.mxu0 0.0
        %2253 = vmatprep.subr.mxu0 0.0
        %2254 = vmatpush1.msra.mxu0 0.0
        %2255 = vmatprep.subr.mxu0 0.0
        %2256 = vmatpush1.msra.mxu0 0.0
        %2257 = vmatprep.subr.mxu0 0.0
        %2258 = vmatpush1.msra.mxu0 0.0
        %2259 = vmatprep.subr.mxu0 0.0
        %2260 = vmatpush1.msra.mxu0 0.0
        %2261 = vmatprep.subr.mxu0 0.0
        %2262 = vmatpush1.msra.mxu0 0.0
        %2263 = vmatprep.subr.mxu0 0.0
        %2264 = vmatpush1.msra.mxu0 0.0
        %2265 = vmatprep.subr.mxu0 0.0
        %2266 = vmatpush1.msra.mxu0 0.0
        %2267 = vmatprep.subr.mxu0 0.0
        %2268 = vmatpush1.msra.mxu0 0.0
        %2269 = vmatprep.subr.mxu0 0.0
        %2270 = vmatpush1.msra.mxu0 0.0
        %2271 = vmatprep.subr.mxu0 0.0
        %2272 = vmatpush1.msra.mxu0 0.0
        %2273 = vmatprep.subr.mxu0 0.0
        %2274 = vmatpush1.msra.mxu0 0.0
        %2275 = vmatprep.subr.mxu0 0.0
        %2276 = vmatpush1.msra.mxu0 0.0
        %2277 = vmatprep.subr.mxu0 0.0
        %2278 = vmatpush1.msra.mxu0 0.0
        %2279 = vmatprep.subr.mxu0 0.0
        %2280 = vmatpush1.msra.mxu0 0.0
        %2281 = vmatprep.subr.mxu0 0.0
        %2282 = vmatpush1.msra.mxu0 0.0
        %2283 = vmatprep.subr.mxu0 0.0
        %2284 = vmatpush1.msra.mxu0 0.0
        %2285 = vmatprep.subr.mxu0 0.0
        %2286 = vmatpush1.msra.mxu0 0.0
        %2287 = vmatprep.subr.mxu0 0.0
        %2288 = vmatpush1.msra.mxu0 0.0
        %2289 = vmatprep.subr.mxu0 0.0
        %2290 = vmatpush1.msra.mxu0 0.0
        %2291 = vmatprep.subr.mxu0 0.0
        %2292 = vmatpush1.msra.mxu0 0.0
        %2293 = vmatprep.subr.mxu0 0.0
        %2294 = vmatpush1.msra.mxu0 0.0
        %2295 = vmatprep.subr.mxu0 0.0
        %2296 = vmatpush1.msra.mxu0 0.0
        %2297 = vmatprep.subr.mxu0 0.0
        %2298 = vmatpush1.msra.mxu0 0.0
        %2299 = vmatprep.subr.mxu0 0.0
        %2300 = vmatpush1.msra.mxu0 0.0
        %2301 = vmatprep.subr.mxu0 0.0
        %2302 = vmatpush1.msra.mxu0 0.0
        %2303 = vmatprep.mubr.f32.mxu0 0.0
        %2304 = vmatmul.mubr.f32.gmra.mrb[0].mxu0 %v2166
        %v2305 = vpop.f32.mrb[0].mxu0
        %v2306 = vadd.f32 0.0, %v2305
        %v2307 = vpop.f32.mrb[0].mxu0
        %v2308 = vadd.f32 0.0, %v2307
        %2309 = vdwg.mxu0
        %2310 = vmatprep.subr.mxu0 %v437
        %2311 = vmatpush1.msra.mxu0 %v436
        %2312 = vmatprep.subr.mxu0 %v455
        %2313 = vmatpush1.msra.mxu0 %v454
        %2314 = vmatprep.subr.mxu0 0.0
        %2315 = vmatpush1.msra.mxu0 0.0
        %2316 = vmatprep.subr.mxu0 0.0
        %2317 = vmatpush1.msra.mxu0 0.0
        %2318 = vmatprep.subr.mxu0 0.0
        %2319 = vmatpush1.msra.mxu0 0.0
        %2320 = vmatprep.subr.mxu0 0.0
        %2321 = vmatpush1.msra.mxu0 0.0
        %2322 = vmatprep.subr.mxu0 0.0
        %2323 = vmatpush1.msra.mxu0 0.0
        %2324 = vmatprep.subr.mxu0 0.0
        %2325 = vmatpush1.msra.mxu0 0.0
        %2326 = vmatprep.subr.mxu0 0.0
        %2327 = vmatpush1.msra.mxu0 0.0
        %2328 = vmatprep.subr.mxu0 0.0
        %2329 = vmatpush1.msra.mxu0 0.0
        %2330 = vmatprep.subr.mxu0 0.0
        %2331 = vmatpush1.msra.mxu0 0.0
        %2332 = vmatprep.subr.mxu0 0.0
        %2333 = vmatpush1.msra.mxu0 0.0
        %2334 = vmatprep.subr.mxu0 0.0
        %2335 = vmatpush1.msra.mxu0 0.0
        %2336 = vmatprep.subr.mxu0 0.0
        %2337 = vmatpush1.msra.mxu0 0.0
        %2338 = vmatprep.subr.mxu0 0.0
        %2339 = vmatpush1.msra.mxu0 0.0
        %2340 = vmatprep.subr.mxu0 0.0
        %2341 = vmatpush1.msra.mxu0 0.0
        %2342 = vmatprep.subr.mxu0 0.0
        %2343 = vmatpush1.msra.mxu0 0.0
        %2344 = vmatprep.subr.mxu0 0.0
        %2345 = vmatpush1.msra.mxu0 0.0
        %2346 = vmatprep.subr.mxu0 0.0
        %2347 = vmatpush1.msra.mxu0 0.0
        %2348 = vmatprep.subr.mxu0 0.0
        %2349 = vmatpush1.msra.mxu0 0.0
        %2350 = vmatprep.subr.mxu0 0.0
        %2351 = vmatpush1.msra.mxu0 0.0
        %2352 = vmatprep.subr.mxu0 0.0
        %2353 = vmatpush1.msra.mxu0 0.0
        %2354 = vmatprep.subr.mxu0 0.0
        %2355 = vmatpush1.msra.mxu0 0.0
        %2356 = vmatprep.subr.mxu0 0.0
        %2357 = vmatpush1.msra.mxu0 0.0
        %2358 = vmatprep.subr.mxu0 0.0
        %2359 = vmatpush1.msra.mxu0 0.0
        %2360 = vmatprep.subr.mxu0 0.0
        %2361 = vmatpush1.msra.mxu0 0.0
        %2362 = vmatprep.subr.mxu0 0.0
        %2363 = vmatpush1.msra.mxu0 0.0
        %2364 = vmatprep.subr.mxu0 0.0
        %2365 = vmatpush1.msra.mxu0 0.0
        %2366 = vmatprep.subr.mxu0 0.0
        %2367 = vmatpush1.msra.mxu0 0.0
        %2368 = vmatprep.subr.mxu0 0.0
        %2369 = vmatpush1.msra.mxu0 0.0
        %2370 = vmatprep.subr.mxu0 0.0
        %2371 = vmatpush1.msra.mxu0 0.0
        %2372 = vmatprep.subr.mxu0 0.0
        %2373 = vmatpush1.msra.mxu0 0.0
        %2374 = vmatprep.mubr.f32.mxu0 0.0
        %2375 = vmatmul.mubr.f32.gmra.mrb[0].mxu0 %v2166
        %v2376 = vpop.f32.mrb[0].mxu0
        %v2377 = vadd.f32 0.0, %v2376
        %v2378 = vpop.f32.mrb[0].mxu0
        %v2379 = vadd.f32 0.0, %v2378
        %2380 = vdwg.mxu0
        %2381 = vmatprep.subr.mxu0 %v439
        %2382 = vmatpush1.msra.mxu0 %v438
        %2383 = vmatprep.subr.mxu0 %v457
        %2384 = vmatpush1.msra.mxu0 %v456
        %2385 = vmatprep.subr.mxu0 0.0
        %2386 = vmatpush1.msra.mxu0 0.0
        %2387 = vmatprep.subr.mxu0 0.0
        %2388 = vmatpush1.msra.mxu0 0.0
        %2389 = vmatprep.subr.mxu0 0.0
        %2390 = vmatpush1.msra.mxu0 0.0
        %2391 = vmatprep.subr.mxu0 0.0
        %2392 = vmatpush1.msra.mxu0 0.0
        %2393 = vmatprep.subr.mxu0 0.0
        %2394 = vmatpush1.msra.mxu0 0.0
        %2395 = vmatprep.subr.mxu0 0.0
        %2396 = vmatpush1.msra.mxu0 0.0
        %2397 = vmatprep.subr.mxu0 0.0
        %2398 = vmatpush1.msra.mxu0 0.0
        %2399 = vmatprep.subr.mxu0 0.0
        %2400 = vmatpush1.msra.mxu0 0.0
        %2401 = vmatprep.subr.mxu0 0.0
        %2402 = vmatpush1.msra.mxu0 0.0
        %2403 = vmatprep.subr.mxu0 0.0
        %2404 = vmatpush1.msra.mxu0 0.0
        %2405 = vmatprep.subr.mxu0 0.0
        %2406 = vmatpush1.msra.mxu0 0.0
        %2407 = vmatprep.subr.mxu0 0.0
        %2408 = vmatpush1.msra.mxu0 0.0
        %2409 = vmatprep.subr.mxu0 0.0
        %2410 = vmatpush1.msra.mxu0 0.0
        %2411 = vmatprep.subr.mxu0 0.0
        %2412 = vmatpush1.msra.mxu0 0.0
        %2413 = vmatprep.subr.mxu0 0.0
        %2414 = vmatpush1.msra.mxu0 0.0
        %2415 = vmatprep.subr.mxu0 0.0
        %2416 = vmatpush1.msra.mxu0 0.0
        %2417 = vmatprep.subr.mxu0 0.0
        %2418 = vmatpush1.msra.mxu0 0.0
        %2419 = vmatprep.subr.mxu0 0.0
        %2420 = vmatpush1.msra.mxu0 0.0
        %2421 = vmatprep.subr.mxu0 0.0
        %2422 = vmatpush1.msra.mxu0 0.0
        %2423 = vmatprep.subr.mxu0 0.0
        %2424 = vmatpush1.msra.mxu0 0.0
        %2425 = vmatprep.subr.mxu0 0.0
        %2426 = vmatpush1.msra.mxu0 0.0
        %2427 = vmatprep.subr.mxu0 0.0
        %2428 = vmatpush1.msra.mxu0 0.0
        %2429 = vmatprep.subr.mxu0 0.0
        %2430 = vmatpush1.msra.mxu0 0.0
        %2431 = vmatprep.subr.mxu0 0.0
        %2432 = vmatpush1.msra.mxu0 0.0
        %2433 = vmatprep.subr.mxu0 0.0
        %2434 = vmatpush1.msra.mxu0 0.0
        %2435 = vmatprep.subr.mxu0 0.0
        %2436 = vmatpush1.msra.mxu0 0.0
        %2437 = vmatprep.subr.mxu0 0.0
        %2438 = vmatpush1.msra.mxu0 0.0
        %2439 = vmatprep.subr.mxu0 0.0
        %2440 = vmatpush1.msra.mxu0 0.0
        %2441 = vmatprep.subr.mxu0 0.0
        %2442 = vmatpush1.msra.mxu0 0.0
        %2443 = vmatprep.subr.mxu0 0.0
        %2444 = vmatpush1.msra.mxu0 0.0
        %2445 = vmatprep.mubr.f32.mxu0 0.0
        %2446 = vmatmul.mubr.f32.gmra.mrb[0].mxu0 %v2166
        %v2447 = vpop.f32.mrb[0].mxu0
        %v2448 = vadd.f32 0.0, %v2447
        %v2449 = vpop.f32.mrb[0].mxu0
        %v2450 = vadd.f32 0.0, %v2449
        %2451 = vdwg.mxu0
        %2452 = vmatprep.subr.mxu0 %v441
        %2453 = vmatpush1.msra.mxu0 %v440
        %2454 = vmatprep.subr.mxu0 %v459
        %2455 = vmatpush1.msra.mxu0 %v458
        %2456 = vmatprep.subr.mxu0 0.0
        %2457 = vmatpush1.msra.mxu0 0.0
        %2458 = vmatprep.subr.mxu0 0.0
        %2459 = vmatpush1.msra.mxu0 0.0
        %2460 = vmatprep.subr.mxu0 0.0
        %2461 = vmatpush1.msra.mxu0 0.0
        %2462 = vmatprep.subr.mxu0 0.0
        %2463 = vmatpush1.msra.mxu0 0.0
        %2464 = vmatprep.subr.mxu0 0.0
        %2465 = vmatpush1.msra.mxu0 0.0
        %2466 = vmatprep.subr.mxu0 0.0
        %2467 = vmatpush1.msra.mxu0 0.0
        %2468 = vmatprep.subr.mxu0 0.0
        %2469 = vmatpush1.msra.mxu0 0.0
        %2470 = vmatprep.subr.mxu0 0.0
        %2471 = vmatpush1.msra.mxu0 0.0
        %2472 = vmatprep.subr.mxu0 0.0
        %2473 = vmatpush1.msra.mxu0 0.0
        %2474 = vmatprep.subr.mxu0 0.0
        %2475 = vmatpush1.msra.mxu0 0.0
        %2476 = vmatprep.subr.mxu0 0.0
        %2477 = vmatpush1.msra.mxu0 0.0
        %2478 = vmatprep.subr.mxu0 0.0
        %2479 = vmatpush1.msra.mxu0 0.0
        %2480 = vmatprep.subr.mxu0 0.0
        %2481 = vmatpush1.msra.mxu0 0.0
        %2482 = vmatprep.subr.mxu0 0.0
        %2483 = vmatpush1.msra.mxu0 0.0
        %2484 = vmatprep.subr.mxu0 0.0
        %2485 = vmatpush1.msra.mxu0 0.0
        %2486 = vmatprep.subr.mxu0 0.0
        %2487 = vmatpush1.msra.mxu0 0.0
        %2488 = vmatprep.subr.mxu0 0.0
        %2489 = vmatpush1.msra.mxu0 0.0
        %2490 = vmatprep.subr.mxu0 0.0
        %2491 = vmatpush1.msra.mxu0 0.0
        %2492 = vmatprep.subr.mxu0 0.0
        %2493 = vmatpush1.msra.mxu0 0.0
        %2494 = vmatprep.subr.mxu0 0.0
        %2495 = vmatpush1.msra.mxu0 0.0
        %2496 = vmatprep.subr.mxu0 0.0
        %2497 = vmatpush1.msra.mxu0 0.0
        %2498 = vmatprep.subr.mxu0 0.0
        %2499 = vmatpush1.msra.mxu0 0.0
        %2500 = vmatprep.subr.mxu0 0.0
        %2501 = vmatpush1.msra.mxu0 0.0
        %2502 = vmatprep.subr.mxu0 0.0
        %2503 = vmatpush1.msra.mxu0 0.0
        %2504 = vmatprep.subr.mxu0 0.0
        %2505 = vmatpush1.msra.mxu0 0.0
        %2506 = vmatprep.subr.mxu0 0.0
        %2507 = vmatpush1.msra.mxu0 0.0
        %2508 = vmatprep.subr.mxu0 0.0
        %2509 = vmatpush1.msra.mxu0 0.0
        %2510 = vmatprep.subr.mxu0 0.0
        %2511 = vmatpush1.msra.mxu0 0.0
        %2512 = vmatprep.subr.mxu0 0.0
        %2513 = vmatpush1.msra.mxu0 0.0
        %2514 = vmatprep.subr.mxu0 0.0
        %2515 = vmatpush1.msra.mxu0 0.0
        %2516 = vmatprep.mubr.f32.mxu0 0.0
        %2517 = vmatmul.mubr.f32.gmra.mrb[0].mxu0 %v2166
        %v2518 = vpop.f32.mrb[0].mxu0
        %v2519 = vadd.f32 0.0, %v2518
        %v2520 = vpop.f32.mrb[0].mxu0
        %v2521 = vadd.f32 0.0, %v2520
        %2522 = vdwg.mxu0
        %2523 = vmatprep.subr.mxu0 %v443
        %2524 = vmatpush1.msra.mxu0 %v442
        %2525 = vmatprep.subr.mxu0 %v461
        %2526 = vmatpush1.msra.mxu0 %v460
        %2527 = vmatprep.subr.mxu0 0.0
        %2528 = vmatpush1.msra.mxu0 0.0
        %2529 = vmatprep.subr.mxu0 0.0
        %2530 = vmatpush1.msra.mxu0 0.0
        %2531 = vmatprep.subr.mxu0 0.0
        %2532 = vmatpush1.msra.mxu0 0.0
        %2533 = vmatprep.subr.mxu0 0.0
        %2534 = vmatpush1.msra.mxu0 0.0
        %2535 = vmatprep.subr.mxu0 0.0
        %2536 = vmatpush1.msra.mxu0 0.0
        %2537 = vmatprep.subr.mxu0 0.0
        %2538 = vmatpush1.msra.mxu0 0.0
        %2539 = vmatprep.subr.mxu0 0.0
        %2540 = vmatpush1.msra.mxu0 0.0
        %2541 = vmatprep.subr.mxu0 0.0
        %2542 = vmatpush1.msra.mxu0 0.0
        %2543 = vmatprep.subr.mxu0 0.0
        %2544 = vmatpush1.msra.mxu0 0.0
        %2545 = vmatprep.subr.mxu0 0.0
        %2546 = vmatpush1.msra.mxu0 0.0
        %2547 = vmatprep.subr.mxu0 0.0
        %2548 = vmatpush1.msra.mxu0 0.0
        %2549 = vmatprep.subr.mxu0 0.0
        %2550 = vmatpush1.msra.mxu0 0.0
        %2551 = vmatprep.subr.mxu0 0.0
        %2552 = vmatpush1.msra.mxu0 0.0
        %2553 = vmatprep.subr.mxu0 0.0
        %2554 = vmatpush1.msra.mxu0 0.0
        %2555 = vmatprep.subr.mxu0 0.0
        %2556 = vmatpush1.msra.mxu0 0.0
        %2557 = vmatprep.subr.mxu0 0.0
        %2558 = vmatpush1.msra.mxu0 0.0
        %2559 = vmatprep.subr.mxu0 0.0
        %2560 = vmatpush1.msra.mxu0 0.0
        %2561 = vmatprep.subr.mxu0 0.0
        %2562 = vmatpush1.msra.mxu0 0.0
        %2563 = vmatprep.subr.mxu0 0.0
        %2564 = vmatpush1.msra.mxu0 0.0
        %2565 = vmatprep.subr.mxu0 0.0
        %2566 = vmatpush1.msra.mxu0 0.0
        %2567 = vmatprep.subr.mxu0 0.0
        %2568 = vmatpush1.msra.mxu0 0.0
        %2569 = vmatprep.subr.mxu0 0.0
        %2570 = vmatpush1.msra.mxu0 0.0
        %2571 = vmatprep.subr.mxu0 0.0
        %2572 = vmatpush1.msra.mxu0 0.0
        %2573 = vmatprep.subr.mxu0 0.0
        %2574 = vmatpush1.msra.mxu0 0.0
        %2575 = vmatprep.subr.mxu0 0.0
        %2576 = vmatpush1.msra.mxu0 0.0
        %2577 = vmatprep.subr.mxu0 0.0
        %2578 = vmatpush1.msra.mxu0 0.0
        %2579 = vmatprep.subr.mxu0 0.0
        %2580 = vmatpush1.msra.mxu0 0.0
        %2581 = vmatprep.subr.mxu0 0.0
        %2582 = vmatpush1.msra.mxu0 0.0
        %2583 = vmatprep.subr.mxu0 0.0
        %2584 = vmatpush1.msra.mxu0 0.0
        %2585 = vmatprep.subr.mxu0 0.0
        %2586 = vmatpush1.msra.mxu0 0.0
        %2587 = vmatprep.mubr.f32.mxu0 0.0
        %2588 = vmatmul.mubr.f32.gmra.mrb[0].mxu0 %v2166
        %v2589 = vpop.f32.mrb[0].mxu0
        %v2590 = vadd.f32 0.0, %v2589
        %v2591 = vpop.f32.mrb[0].mxu0
        %v2592 = vadd.f32 0.0, %v2591
        %2593 = vdwg.mxu0
        %2594 = vmatprep.subr.mxu0 %v445
        %2595 = vmatpush1.msra.mxu0 %v444
        %2596 = vmatprep.subr.mxu0 %v463
        %2597 = vmatpush1.msra.mxu0 %v462
        %2598 = vmatprep.subr.mxu0 0.0
        %2599 = vmatpush1.msra.mxu0 0.0
        %2600 = vmatprep.subr.mxu0 0.0
        %2601 = vmatpush1.msra.mxu0 0.0
        %2602 = vmatprep.subr.mxu0 0.0
        %2603 = vmatpush1.msra.mxu0 0.0
        %2604 = vmatprep.subr.mxu0 0.0
        %2605 = vmatpush1.msra.mxu0 0.0
        %2606 = vmatprep.subr.mxu0 0.0
        %2607 = vmatpush1.msra.mxu0 0.0
        %2608 = vmatprep.subr.mxu0 0.0
        %2609 = vmatpush1.msra.mxu0 0.0
        %2610 = vmatprep.subr.mxu0 0.0
        %2611 = vmatpush1.msra.mxu0 0.0
        %2612 = vmatprep.subr.mxu0 0.0
        %2613 = vmatpush1.msra.mxu0 0.0
        %2614 = vmatprep.subr.mxu0 0.0
        %2615 = vmatpush1.msra.mxu0 0.0
        %2616 = vmatprep.subr.mxu0 0.0
        %2617 = vmatpush1.msra.mxu0 0.0
        %2618 = vmatprep.subr.mxu0 0.0
        %2619 = vmatpush1.msra.mxu0 0.0
        %2620 = vmatprep.subr.mxu0 0.0
        %2621 = vmatpush1.msra.mxu0 0.0
        %2622 = vmatprep.subr.mxu0 0.0
        %2623 = vmatpush1.msra.mxu0 0.0
        %2624 = vmatprep.subr.mxu0 0.0
        %2625 = vmatpush1.msra.mxu0 0.0
        %2626 = vmatprep.subr.mxu0 0.0
        %2627 = vmatpush1.msra.mxu0 0.0
        %2628 = vmatprep.subr.mxu0 0.0
        %2629 = vmatpush1.msra.mxu0 0.0
        %2630 = vmatprep.subr.mxu0 0.0
        %2631 = vmatpush1.msra.mxu0 0.0
        %2632 = vmatprep.subr.mxu0 0.0
        %2633 = vmatpush1.msra.mxu0 0.0
        %2634 = vmatprep.subr.mxu0 0.0
        %2635 = vmatpush1.msra.mxu0 0.0
        %2636 = vmatprep.subr.mxu0 0.0
        %2637 = vmatpush1.msra.mxu0 0.0
        %2638 = vmatprep.subr.mxu0 0.0
        %2639 = vmatpush1.msra.mxu0 0.0
        %2640 = vmatprep.subr.mxu0 0.0
        %2641 = vmatpush1.msra.mxu0 0.0
        %2642 = vmatprep.subr.mxu0 0.0
        %2643 = vmatpush1.msra.mxu0 0.0
        %2644 = vmatprep.subr.mxu0 0.0
        %2645 = vmatpush1.msra.mxu0 0.0
        %2646 = vmatprep.subr.mxu0 0.0
        %2647 = vmatpush1.msra.mxu0 0.0
        %2648 = vmatprep.subr.mxu0 0.0
        %2649 = vmatpush1.msra.mxu0 0.0
        %2650 = vmatprep.subr.mxu0 0.0
        %2651 = vmatpush1.msra.mxu0 0.0
        %2652 = vmatprep.subr.mxu0 0.0
        %2653 = vmatpush1.msra.mxu0 0.0
        %2654 = vmatprep.subr.mxu0 0.0
        %2655 = vmatpush1.msra.mxu0 0.0
        %2656 = vmatprep.subr.mxu0 0.0
        %2657 = vmatpush1.msra.mxu0 0.0
        %2658 = vmatprep.mubr.f32.mxu0 0.0
        %2659 = vmatmul.mubr.f32.gmra.mrb[0].mxu0 %v2166
        %v2660 = vpop.f32.mrb[0].mxu0
        %v2661 = vadd.f32 0.0, %v2660
        %v2662 = vpop.f32.mrb[0].mxu0
        %v2663 = vadd.f32 0.0, %v2662
        %2664 = vdwg.mxu0
        %2665 = vmatprep.subr.mxu0 %v447
        %2666 = vmatpush1.msra.mxu0 %v446
        %2667 = vmatprep.subr.mxu0 %v465
        %2668 = vmatpush1.msra.mxu0 %v464
        %2669 = vmatprep.subr.mxu0 0.0
        %2670 = vmatpush1.msra.mxu0 0.0
        %2671 = vmatprep.subr.mxu0 0.0
        %2672 = vmatpush1.msra.mxu0 0.0
        %2673 = vmatprep.subr.mxu0 0.0
        %2674 = vmatpush1.msra.mxu0 0.0
        %2675 = vmatprep.subr.mxu0 0.0
        %2676 = vmatpush1.msra.mxu0 0.0
        %2677 = vmatprep.subr.mxu0 0.0
        %2678 = vmatpush1.msra.mxu0 0.0
        %2679 = vmatprep.subr.mxu0 0.0
        %2680 = vmatpush1.msra.mxu0 0.0
        %2681 = vmatprep.subr.mxu0 0.0
        %2682 = vmatpush1.msra.mxu0 0.0
        %2683 = vmatprep.subr.mxu0 0.0
        %2684 = vmatpush1.msra.mxu0 0.0
        %2685 = vmatprep.subr.mxu0 0.0
        %2686 = vmatpush1.msra.mxu0 0.0
        %2687 = vmatprep.subr.mxu0 0.0
        %2688 = vmatpush1.msra.mxu0 0.0
        %2689 = vmatprep.subr.mxu0 0.0
        %2690 = vmatpush1.msra.mxu0 0.0
        %2691 = vmatprep.subr.mxu0 0.0
        %2692 = vmatpush1.msra.mxu0 0.0
        %2693 = vmatprep.subr.mxu0 0.0
        %2694 = vmatpush1.msra.mxu0 0.0
        %2695 = vmatprep.subr.mxu0 0.0
        %2696 = vmatpush1.msra.mxu0 0.0
        %2697 = vmatprep.subr.mxu0 0.0
        %2698 = vmatpush1.msra.mxu0 0.0
        %2699 = vmatprep.subr.mxu0 0.0
        %2700 = vmatpush1.msra.mxu0 0.0
        %2701 = vmatprep.subr.mxu0 0.0
        %2702 = vmatpush1.msra.mxu0 0.0
        %2703 = vmatprep.subr.mxu0 0.0
        %2704 = vmatpush1.msra.mxu0 0.0
        %2705 = vmatprep.subr.mxu0 0.0
        %2706 = vmatpush1.msra.mxu0 0.0
        %2707 = vmatprep.subr.mxu0 0.0
        %2708 = vmatpush1.msra.mxu0 0.0
        %2709 = vmatprep.subr.mxu0 0.0
        %2710 = vmatpush1.msra.mxu0 0.0
        %2711 = vmatprep.subr.mxu0 0.0
        %2712 = vmatpush1.msra.mxu0 0.0
        %2713 = vmatprep.subr.mxu0 0.0
        %2714 = vmatpush1.msra.mxu0 0.0
        %2715 = vmatprep.subr.mxu0 0.0
        %2716 = vmatpush1.msra.mxu0 0.0
        %2717 = vmatprep.subr.mxu0 0.0
        %2718 = vmatpush1.msra.mxu0 0.0
        %2719 = vmatprep.subr.mxu0 0.0
        %2720 = vmatpush1.msra.mxu0 0.0
        %2721 = vmatprep.subr.mxu0 0.0
        %2722 = vmatpush1.msra.mxu0 0.0
        %2723 = vmatprep.subr.mxu0 0.0
        %2724 = vmatpush1.msra.mxu0 0.0
        %2725 = vmatprep.subr.mxu0 0.0
        %2726 = vmatpush1.msra.mxu0 0.0
        %2727 = vmatprep.subr.mxu0 0.0
        %2728 = vmatpush1.msra.mxu0 0.0
        %2729 = vmatprep.mubr.f32.mxu0 0.0
        %2730 = vmatmul.mubr.f32.gmra.mrb[0].mxu0 %v2166
        %v2731 = vpop.f32.mrb[0].mxu0
        %v2732 = vadd.f32 0.0, %v2731
        %v2733 = vpop.f32.mrb[0].mxu0
        %v2734 = vadd.f32 0.0, %v2733
        %2735 = vdwg.mxu0
        %2736 = vmatprep.subr.mxu0 %v449
        %2737 = vmatpush1.msra.mxu0 %v448
        %2738 = vmatprep.subr.mxu0 %v467
        %2739 = vmatpush1.msra.mxu0 %v466
        %2740 = vmatprep.subr.mxu0 0.0
        %2741 = vmatpush1.msra.mxu0 0.0
        %2742 = vmatprep.subr.mxu0 0.0
        %2743 = vmatpush1.msra.mxu0 0.0
        %2744 = vmatprep.subr.mxu0 0.0
        %2745 = vmatpush1.msra.mxu0 0.0
        %2746 = vmatprep.subr.mxu0 0.0
        %2747 = vmatpush1.msra.mxu0 0.0
        %2748 = vmatprep.subr.mxu0 0.0
        %2749 = vmatpush1.msra.mxu0 0.0
        %2750 = vmatprep.subr.mxu0 0.0
        %2751 = vmatpush1.msra.mxu0 0.0
        %2752 = vmatprep.subr.mxu0 0.0
        %2753 = vmatpush1.msra.mxu0 0.0
        %2754 = vmatprep.subr.mxu0 0.0
        %2755 = vmatpush1.msra.mxu0 0.0
        %2756 = vmatprep.subr.mxu0 0.0
        %2757 = vmatpush1.msra.mxu0 0.0
        %2758 = vmatprep.subr.mxu0 0.0
        %2759 = vmatpush1.msra.mxu0 0.0
        %2760 = vmatprep.subr.mxu0 0.0
        %2761 = vmatpush1.msra.mxu0 0.0
        %2762 = vmatprep.subr.mxu0 0.0
        %2763 = vmatpush1.msra.mxu0 0.0
        %2764 = vmatprep.subr.mxu0 0.0
        %2765 = vmatpush1.msra.mxu0 0.0
        %2766 = vmatprep.subr.mxu0 0.0
        %2767 = vmatpush1.msra.mxu0 0.0
        %2768 = vmatprep.subr.mxu0 0.0
        %2769 = vmatpush1.msra.mxu0 0.0
        %2770 = vmatprep.subr.mxu0 0.0
        %2771 = vmatpush1.msra.mxu0 0.0
        %2772 = vmatprep.subr.mxu0 0.0
        %2773 = vmatpush1.msra.mxu0 0.0
        %2774 = vmatprep.subr.mxu0 0.0
        %2775 = vmatpush1.msra.mxu0 0.0
        %2776 = vmatprep.subr.mxu0 0.0
        %2777 = vmatpush1.msra.mxu0 0.0
        %2778 = vmatprep.subr.mxu0 0.0
        %2779 = vmatpush1.msra.mxu0 0.0
        %2780 = vmatprep.subr.mxu0 0.0
        %2781 = vmatpush1.msra.mxu0 0.0
        %2782 = vmatprep.subr.mxu0 0.0
        %2783 = vmatpush1.msra.mxu0 0.0
        %2784 = vmatprep.subr.mxu0 0.0
        %2785 = vmatpush1.msra.mxu0 0.0
        %2786 = vmatprep.subr.mxu0 0.0
        %2787 = vmatpush1.msra.mxu0 0.0
        %2788 = vmatprep.subr.mxu0 0.0
        %2789 = vmatpush1.msra.mxu0 0.0
        %2790 = vmatprep.subr.mxu0 0.0
        %2791 = vmatpush1.msra.mxu0 0.0
        %2792 = vmatprep.subr.mxu0 0.0
        %2793 = vmatpush1.msra.mxu0 0.0
        %2794 = vmatprep.subr.mxu0 0.0
        %2795 = vmatpush1.msra.mxu0 0.0
        %2796 = vmatprep.subr.mxu0 0.0
        %2797 = vmatpush1.msra.mxu0 0.0
        %2798 = vmatprep.subr.mxu0 0.0
        %2799 = vmatpush1.msra.mxu0 0.0
        %2800 = vmatprep.mubr.f32.mxu0 0.0
        %2801 = vmatmul.mubr.f32.gmra.mrb[0].mxu0 %v2166
        %v2802 = vpop.f32.mrb[0].mxu0
        %v2803 = vadd.f32 0.0, %v2802
        %v2804 = vpop.f32.mrb[0].mxu0
        %v2805 = vadd.f32 0.0, %v2804
        %2806 = vdwg.mxu0
        %2807 = vrot.lane.b32.xlu0 %v2235, 60
        %v2808 = vpop.permute.xlu0 %2807
        %2809 = vrot.lane.b32.xlu0 %v2237, 60
        %v2810 = vpop.permute.xlu0 %2809
        %2811 = vrot.lane.b32.xlu0 %v2306, 60
        %v2812 = vpop.permute.xlu0 %2811
        %2813 = vrot.lane.b32.xlu0 %v2308, 60
        %v2814 = vpop.permute.xlu0 %2813
        %2815 = vrot.lane.b32.xlu0 %v2377, 60
        %v2816 = vpop.permute.xlu0 %2815
        %2817 = vrot.lane.b32.xlu0 %v2379, 60
        %v2818 = vpop.permute.xlu0 %2817
        %2819 = vrot.lane.b32.xlu0 %v2448, 60
        %v2820 = vpop.permute.xlu0 %2819
        %2821 = vrot.lane.b32.xlu0 %v2450, 60
        %v2822 = vpop.permute.xlu0 %2821
        %2823 = vrot.lane.b32.xlu0 %v2519, 60
        %v2824 = vpop.permute.xlu0 %2823
        %2825 = vrot.lane.b32.xlu0 %v2521, 60
        %v2826 = vpop.permute.xlu0 %2825
        %2827 = vrot.lane.b32.xlu0 %v2590, 60
        %v2828 = vpop.permute.xlu0 %2827
        %2829 = vrot.lane.b32.xlu0 %v2592, 60
        %v2830 = vpop.permute.xlu0 %2829
        %2831 = vrot.lane.b32.xlu0 %v2661, 60
        %v2832 = vpop.permute.xlu0 %2831
        %2833 = vrot.lane.b32.xlu0 %v2663, 60
        %v2834 = vpop.permute.xlu0 %2833
        %2835 = vrot.lane.b32.xlu0 %v2732, 60
        %v2836 = vpop.permute.xlu0 %2835
        %2837 = vrot.lane.b32.xlu0 %v2734, 60
        %v2838 = vpop.permute.xlu0 %2837
        %2839 = vrot.lane.b32.xlu0 %v2803, 60
        %v2840 = vpop.permute.xlu0 %2839
        %2841 = vrot.lane.b32.xlu0 %v2805, 60
        %v2842 = vpop.permute.xlu0 %2841
        %vm2843 = vcmp.lt.s32.totalorder %v1167, 60
        %v2844 = vsel %vm2843, %v2840, %v2842
        %v2845 = vsel %vm2843, %v2838, %v2840
        %v2846 = vsel %vm2843, %v2836, %v2838
        %v2847 = vsel %vm2843, %v2834, %v2836
        %v2848 = vsel %vm2843, %v2832, %v2834
        %v2849 = vsel %vm2843, %v2830, %v2832
        %v2850 = vsel %vm2843, %v2828, %v2830
        %v2851 = vsel %vm2843, %v2826, %v2828
        %v2852 = vsel %vm2843, %v2824, %v2826
        %v2853 = vsel %vm2843, %v2822, %v2824
        %v2854 = vsel %vm2843, %v2820, %v2822
        %v2855 = vsel %vm2843, %v2818, %v2820
        %v2856 = vsel %vm2843, %v2816, %v2818
        %v2857 = vsel %vm2843, %v2814, %v2816
        %v2858 = vsel %vm2843, %v2812, %v2814
        %v2859 = vsel %vm2843, %v2810, %v2812
        %v2860 = vsel %vm2843, %v2808, %v2810
        %v2861 = vsel %vm2843, %v2842, %v2808
        %s2862 = scalar_lea.vmem %s2, 2
        %v2863 = vld [vmem:[%s2862] ss:$8 sm:$0xf]
        %v2864 = vld [vmem:[%s2862] ss:$8 sm:$0xf0]
        %v2865 = vor.u32 %v2863, %v2864
        %s2866 = scalar_lea.vmem %s2, 66
        %v2867 = vld [vmem:[%s2866] ss:$8 sm:$0xf]
        %v2868 = vld [vmem:[%s2866] ss:$8 sm:$0xf0]
        %v2869 = vor.u32 %v2867, %v2868
        %s2870 = scalar_lea.vmem %s2, 130
        %v2871 = vld [vmem:[%s2870] ss:$8 sm:$0x3]
        %v2875 = vlaneseq
        %v2876 = vshrl.u32 %v2875, 7
        %v2877 = vsub.s32 0, %v2876
        %v2878 = vrot.slane %v2865, %v2877
        %v2879 = vlaneseq
        %v2880 = vshrl.u32 %v2879, 7
        %v2881 = vsub.s32 1, %v2880
        %v2882 = vrot.slane %v2865, %v2881
        %v2883 = vlaneseq
        %v2884 = vshrl.u32 %v2883, 7
        %v2885 = vsub.s32 2, %v2884
        %v2886 = vrot.slane %v2865, %v2885
        %v2887 = vlaneseq
        %v2888 = vshrl.u32 %v2887, 7
        %v2889 = vsub.s32 3, %v2888
        %v2890 = vrot.slane %v2865, %v2889
        %v2891 = vlaneseq
        %v2892 = vshrl.u32 %v2891, 7
        %v2893 = vsub.s32 4, %v2892
        %v2894 = vrot.slane %v2865, %v2893
        %v2895 = vlaneseq
        %v2896 = vshrl.u32 %v2895, 7
        %v2897 = vsub.s32 5, %v2896
        %v2898 = vrot.slane %v2865, %v2897
        %v2899 = vlaneseq
        %v2900 = vshrl.u32 %v2899, 7
        %v2901 = vsub.s32 6, %v2900
        %v2902 = vrot.slane %v2865, %v2901
        %v2903 = vlaneseq
        %v2904 = vshrl.u32 %v2903, 7
        %v2905 = vsub.s32 7, %v2904
        %v2906 = vrot.slane %v2865, %v2905
        %v2907 = vlaneseq
        %v2908 = vshrl.u32 %v2907, 7
        %v2909 = vsub.s32 0, %v2908
        %v2910 = vrot.slane %v2869, %v2909
        %v2911 = vlaneseq
        %v2912 = vshrl.u32 %v2911, 7
        %v2913 = vsub.s32 1, %v2912
        %v2914 = vrot.slane %v2869, %v2913
        %v2915 = vlaneseq
        %v2916 = vshrl.u32 %v2915, 7
        %v2917 = vsub.s32 2, %v2916
        %v2918 = vrot.slane %v2869, %v2917
        %v2919 = vlaneseq
        %v2920 = vshrl.u32 %v2919, 7
        %v2921 = vsub.s32 3, %v2920
        %v2922 = vrot.slane %v2869, %v2921
        %v2923 = vlaneseq
        %v2924 = vshrl.u32 %v2923, 7
        %v2925 = vsub.s32 4, %v2924
        %v2926 = vrot.slane %v2869, %v2925
        %v2927 = vlaneseq
        %v2928 = vshrl.u32 %v2927, 7
        %v2929 = vsub.s32 5, %v2928
        %v2930 = vrot.slane %v2869, %v2929
        %v2931 = vlaneseq
        %v2932 = vshrl.u32 %v2931, 7
        %v2933 = vsub.s32 6, %v2932
        %v2934 = vrot.slane %v2869, %v2933
        %v2935 = vlaneseq
        %v2936 = vshrl.u32 %v2935, 7
        %v2937 = vsub.s32 7, %v2936
        %v2938 = vrot.slane %v2869, %v2937
        %v2939 = vlaneseq
        %v2940 = vshrl.u32 %v2939, 7
        %v2941 = vsub.s32 0, %v2940
        %v2942 = vrot.slane %v2871, %v2941
        %v2943 = vlaneseq
        %v2944 = vshrl.u32 %v2943, 7
        %v2945 = vsub.s32 1, %v2944
        %v2946 = vrot.slane %v2871, %v2945
        %v2965 = vmul.f32 %v2844, %v2878
        %v2966 = vmul.f32 %v2861, %v2882
        %v2967 = vmul.f32 %v2860, %v2886
        %v2968 = vmul.f32 %v2859, %v2890
        %v2969 = vmul.f32 %v2858, %v2894
        %v2970 = vmul.f32 %v2857, %v2898
        %v2971 = vmul.f32 %v2856, %v2902
        %v2972 = vmul.f32 %v2855, %v2906
        %v2973 = vmul.f32 %v2854, %v2910
        %v2974 = vmul.f32 %v2853, %v2914
        %v2975 = vmul.f32 %v2852, %v2918
        %v2976 = vmul.f32 %v2851, %v2922
        %v2977 = vmul.f32 %v2850, %v2926
        %v2978 = vmul.f32 %v2849, %v2930
        %v2979 = vmul.f32 %v2848, %v2934
        %v2980 = vmul.f32 %v2847, %v2938
        %v2981 = vmul.f32 %v2846, %v2942
        %v2982 = vmul.f32 %v2845, %v2946
        %v2983 = vadd.f32 %v2145, %v2965
        %v2984 = vadd.f32 %v2146, %v2966
        %v2985 = vadd.f32 %v2147, %v2967
        %v2986 = vadd.f32 %v2148, %v2968
        %v2987 = vadd.f32 %v2149, %v2969
        %v2988 = vadd.f32 %v2150, %v2970
        %v2989 = vadd.f32 %v2151, %v2971
        %v2990 = vadd.f32 %v2152, %v2972
        %v2991 = vadd.f32 %v2153, %v2973
        %v2992 = vadd.f32 %v2154, %v2974
        %v2993 = vadd.f32 %v2155, %v2975
        %v2994 = vadd.f32 %v2156, %v2976
        %v2995 = vadd.f32 %v2157, %v2977
        %v2996 = vadd.f32 %v2158, %v2978
        %v2997 = vadd.f32 %v2159, %v2979
        %v2998 = vadd.f32 %v2160, %v2980
        %v2999 = vadd.f32 %v2161, %v2981
        %v3000 = vadd.f32 %v2162, %v2982
        %s3001 = scalar_lea.vmem %s4, 24
        %v3002 = vld [vmem:[%s3001] sm:$0xff]
        %v3004 = vsel %vm487, %v3002, 0
        %3006 = vmatprep.subr.mxu0 %v433
        %3007 = vmatpush1.msra.mxu0 %v432
        %3008 = vmatprep.subr.mxu0 %v451
        %3009 = vmatpush1.msra.mxu0 %v450
        %3010 = vmatprep.subr.mxu0 0.0
        %3011 = vmatpush1.msra.mxu0 0.0
        %3012 = vmatprep.subr.mxu0 0.0
        %3013 = vmatpush1.msra.mxu0 0.0
        %3014 = vmatprep.subr.mxu0 0.0
        %3015 = vmatpush1.msra.mxu0 0.0
        %3016 = vmatprep.subr.mxu0 0.0
        %3017 = vmatpush1.msra.mxu0 0.0
        %3018 = vmatprep.subr.mxu0 0.0
        %3019 = vmatpush1.msra.mxu0 0.0
        %3020 = vmatprep.subr.mxu0 0.0
        %3021 = vmatpush1.msra.mxu0 0.0
        %3022 = vmatprep.subr.mxu0 0.0
        %3023 = vmatpush1.msra.mxu0 0.0
        %3024 = vmatprep.subr.mxu0 0.0
        %3025 = vmatpush1.msra.mxu0 0.0
        %3026 = vmatprep.subr.mxu0 0.0
        %3027 = vmatpush1.msra.mxu0 0.0
        %3028 = vmatprep.subr.mxu0 0.0
        %3029 = vmatpush1.msra.mxu0 0.0
        %3030 = vmatprep.subr.mxu0 0.0
        %3031 = vmatpush1.msra.mxu0 0.0
        %3032 = vmatprep.subr.mxu0 0.0
        %3033 = vmatpush1.msra.mxu0 0.0
        %3034 = vmatprep.subr.mxu0 0.0
        %3035 = vmatpush1.msra.mxu0 0.0
        %3036 = vmatprep.subr.mxu0 0.0
        %3037 = vmatpush1.msra.mxu0 0.0
        %3038 = vmatprep.subr.mxu0 0.0
        %3039 = vmatpush1.msra.mxu0 0.0
        %3040 = vmatprep.subr.mxu0 0.0
        %3041 = vmatpush1.msra.mxu0 0.0
        %3042 = vmatprep.subr.mxu0 0.0
        %3043 = vmatpush1.msra.mxu0 0.0
        %3044 = vmatprep.subr.mxu0 0.0
        %3045 = vmatpush1.msra.mxu0 0.0
        %3046 = vmatprep.subr.mxu0 0.0
        %3047 = vmatpush1.msra.mxu0 0.0
        %3048 = vmatprep.subr.mxu0 0.0
        %3049 = vmatpush1.msra.mxu0 0.0
        %3050 = vmatprep.subr.mxu0 0.0
        %3051 = vmatpush1.msra.mxu0 0.0
        %3052 = vmatprep.subr.mxu0 0.0
        %3053 = vmatpush1.msra.mxu0 0.0
        %3054 = vmatprep.subr.mxu0 0.0
        %3055 = vmatpush1.msra.mxu0 0.0
        %3056 = vmatprep.subr.mxu0 0.0
        %3057 = vmatpush1.msra.mxu0 0.0
        %3058 = vmatprep.subr.mxu0 0.0
        %3059 = vmatpush1.msra.mxu0 0.0
        %3060 = vmatprep.subr.mxu0 0.0
        %3061 = vmatpush1.msra.mxu0 0.0
        %3062 = vmatprep.subr.mxu0 0.0
        %3063 = vmatpush1.msra.mxu0 0.0
        %3064 = vmatprep.subr.mxu0 0.0
        %3065 = vmatpush1.msra.mxu0 0.0
        %3066 = vmatprep.subr.mxu0 0.0
        %3067 = vmatpush1.msra.mxu0 0.0
        %3068 = vmatprep.subr.mxu0 0.0
        %3069 = vmatpush1.msra.mxu0 0.0
        %3070 = vmatprep.mubr.f32.mxu0 0.0
        %3071 = vmatmul.mubr.f32.gmra.mrb[0].mxu0 %v3004
        %v3072 = vpop.f32.mrb[0].mxu0
        %v3073 = vadd.f32 0.0, %v3072
        %v3074 = vpop.f32.mrb[0].mxu0
        %v3075 = vadd.f32 0.0, %v3074
        %3076 = vdwg.mxu0
        %3077 = vmatprep.subr.mxu0 %v435
        %3078 = vmatpush1.msra.mxu0 %v434
        %3079 = vmatprep.subr.mxu0 %v453
        %3080 = vmatpush1.msra.mxu0 %v452
        %3081 = vmatprep.subr.mxu0 0.0
        %3082 = vmatpush1.msra.mxu0 0.0
        %3083 = vmatprep.subr.mxu0 0.0
        %3084 = vmatpush1.msra.mxu0 0.0
        %3085 = vmatprep.subr.mxu0 0.0
        %3086 = vmatpush1.msra.mxu0 0.0
        %3087 = vmatprep.subr.mxu0 0.0
        %3088 = vmatpush1.msra.mxu0 0.0
        %3089 = vmatprep.subr.mxu0 0.0
        %3090 = vmatpush1.msra.mxu0 0.0
        %3091 = vmatprep.subr.mxu0 0.0
        %3092 = vmatpush1.msra.mxu0 0.0
        %3093 = vmatprep.subr.mxu0 0.0
        %3094 = vmatpush1.msra.mxu0 0.0
        %3095 = vmatprep.subr.mxu0 0.0
        %3096 = vmatpush1.msra.mxu0 0.0
        %3097 = vmatprep.subr.mxu0 0.0
        %3098 = vmatpush1.msra.mxu0 0.0
        %3099 = vmatprep.subr.mxu0 0.0
        %3100 = vmatpush1.msra.mxu0 0.0
        %3101 = vmatprep.subr.mxu0 0.0
        %3102 = vmatpush1.msra.mxu0 0.0
        %3103 = vmatprep.subr.mxu0 0.0
        %3104 = vmatpush1.msra.mxu0 0.0
        %3105 = vmatprep.subr.mxu0 0.0
        %3106 = vmatpush1.msra.mxu0 0.0
        %3107 = vmatprep.subr.mxu0 0.0
        %3108 = vmatpush1.msra.mxu0 0.0
        %3109 = vmatprep.subr.mxu0 0.0
        %3110 = vmatpush1.msra.mxu0 0.0
        %3111 = vmatprep.subr.mxu0 0.0
        %3112 = vmatpush1.msra.mxu0 0.0
        %3113 = vmatprep.subr.mxu0 0.0
        %3114 = vmatpush1.msra.mxu0 0.0
        %3115 = vmatprep.subr.mxu0 0.0
        %3116 = vmatpush1.msra.mxu0 0.0
        %3117 = vmatprep.subr.mxu0 0.0
        %3118 = vmatpush1.msra.mxu0 0.0
        %3119 = vmatprep.subr.mxu0 0.0
        %3120 = vmatpush1.msra.mxu0 0.0
        %3121 = vmatprep.subr.mxu0 0.0
        %3122 = vmatpush1.msra.mxu0 0.0
        %3123 = vmatprep.subr.mxu0 0.0
        %3124 = vmatpush1.msra.mxu0 0.0
        %3125 = vmatprep.subr.mxu0 0.0
        %3126 = vmatpush1.msra.mxu0 0.0
        %3127 = vmatprep.subr.mxu0 0.0
        %3128 = vmatpush1.msra.mxu0 0.0
        %3129 = vmatprep.subr.mxu0 0.0
        %3130 = vmatpush1.msra.mxu0 0.0
        %3131 = vmatprep.subr.mxu0 0.0
        %3132 = vmatpush1.msra.mxu0 0.0
        %3133 = vmatprep.subr.mxu0 0.0
        %3134 = vmatpush1.msra.mxu0 0.0
        %3135 = vmatprep.subr.mxu0 0.0
        %3136 = vmatpush1.msra.mxu0 0.0
        %3137 = vmatprep.subr.mxu0 0.0
        %3138 = vmatpush1.msra.mxu0 0.0
        %3139 = vmatprep.subr.mxu0 0.0
        %3140 = vmatpush1.msra.mxu0 0.0
        %3141 = vmatprep.mubr.f32.mxu0 0.0
        %3142 = vmatmul.mubr.f32.gmra.mrb[0].mxu0 %v3004
        %v3143 = vpop.f32.mrb[0].mxu0
        %v3144 = vadd.f32 0.0, %v3143
        %v3145 = vpop.f32.mrb[0].mxu0
        %v3146 = vadd.f32 0.0, %v3145
        %3147 = vdwg.mxu0
        %3148 = vmatprep.subr.mxu0 %v437
        %3149 = vmatpush1.msra.mxu0 %v436
        %3150 = vmatprep.subr.mxu0 %v455
        %3151 = vmatpush1.msra.mxu0 %v454
        %3152 = vmatprep.subr.mxu0 0.0
        %3153 = vmatpush1.msra.mxu0 0.0
        %3154 = vmatprep.subr.mxu0 0.0
        %3155 = vmatpush1.msra.mxu0 0.0
        %3156 = vmatprep.subr.mxu0 0.0
        %3157 = vmatpush1.msra.mxu0 0.0
        %3158 = vmatprep.subr.mxu0 0.0
        %3159 = vmatpush1.msra.mxu0 0.0
        %3160 = vmatprep.subr.mxu0 0.0
        %3161 = vmatpush1.msra.mxu0 0.0
        %3162 = vmatprep.subr.mxu0 0.0
        %3163 = vmatpush1.msra.mxu0 0.0
        %3164 = vmatprep.subr.mxu0 0.0
        %3165 = vmatpush1.msra.mxu0 0.0
        %3166 = vmatprep.subr.mxu0 0.0
        %3167 = vmatpush1.msra.mxu0 0.0
        %3168 = vmatprep.subr.mxu0 0.0
        %3169 = vmatpush1.msra.mxu0 0.0
        %3170 = vmatprep.subr.mxu0 0.0
        %3171 = vmatpush1.msra.mxu0 0.0
        %3172 = vmatprep.subr.mxu0 0.0
        %3173 = vmatpush1.msra.mxu0 0.0
        %3174 = vmatprep.subr.mxu0 0.0
        %3175 = vmatpush1.msra.mxu0 0.0
        %3176 = vmatprep.subr.mxu0 0.0
        %3177 = vmatpush1.msra.mxu0 0.0
        %3178 = vmatprep.subr.mxu0 0.0
        %3179 = vmatpush1.msra.mxu0 0.0
        %3180 = vmatprep.subr.mxu0 0.0
        %3181 = vmatpush1.msra.mxu0 0.0
        %3182 = vmatprep.subr.mxu0 0.0
        %3183 = vmatpush1.msra.mxu0 0.0
        %3184 = vmatprep.subr.mxu0 0.0
        %3185 = vmatpush1.msra.mxu0 0.0
        %3186 = vmatprep.subr.mxu0 0.0
        %3187 = vmatpush1.msra.mxu0 0.0
        %3188 = vmatprep.subr.mxu0 0.0
        %3189 = vmatpush1.msra.mxu0 0.0
        %3190 = vmatprep.subr.mxu0 0.0
        %3191 = vmatpush1.msra.mxu0 0.0
        %3192 = vmatprep.subr.mxu0 0.0
        %3193 = vmatpush1.msra.mxu0 0.0
        %3194 = vmatprep.subr.mxu0 0.0
        %3195 = vmatpush1.msra.mxu0 0.0
        %3196 = vmatprep.subr.mxu0 0.0
        %3197 = vmatpush1.msra.mxu0 0.0
        %3198 = vmatprep.subr.mxu0 0.0
        %3199 = vmatpush1.msra.mxu0 0.0
        %3200 = vmatprep.subr.mxu0 0.0
        %3201 = vmatpush1.msra.mxu0 0.0
        %3202 = vmatprep.subr.mxu0 0.0
        %3203 = vmatpush1.msra.mxu0 0.0
        %3204 = vmatprep.subr.mxu0 0.0
        %3205 = vmatpush1.msra.mxu0 0.0
        %3206 = vmatprep.subr.mxu0 0.0
        %3207 = vmatpush1.msra.mxu0 0.0
        %3208 = vmatprep.subr.mxu0 0.0
        %3209 = vmatpush1.msra.mxu0 0.0
        %3210 = vmatprep.subr.mxu0 0.0
        %3211 = vmatpush1.msra.mxu0 0.0
        %3212 = vmatprep.mubr.f32.mxu0 0.0
        %3213 = vmatmul.mubr.f32.gmra.mrb[0].mxu0 %v3004
        %v3214 = vpop.f32.mrb[0].mxu0
        %v3215 = vadd.f32 0.0, %v3214
        %v3216 = vpop.f32.mrb[0].mxu0
        %v3217 = vadd.f32 0.0, %v3216
        %3218 = vdwg.mxu0
        %3219 = vmatprep.subr.mxu0 %v439
        %3220 = vmatpush1.msra.mxu0 %v438
        %3221 = vmatprep.subr.mxu0 %v457
        %3222 = vmatpush1.msra.mxu0 %v456
        %3223 = vmatprep.subr.mxu0 0.0
        %3224 = vmatpush1.msra.mxu0 0.0
        %3225 = vmatprep.subr.mxu0 0.0
        %3226 = vmatpush1.msra.mxu0 0.0
        %3227 = vmatprep.subr.mxu0 0.0
        %3228 = vmatpush1.msra.mxu0 0.0
        %3229 = vmatprep.subr.mxu0 0.0
        %3230 = vmatpush1.msra.mxu0 0.0
        %3231 = vmatprep.subr.mxu0 0.0
        %3232 = vmatpush1.msra.mxu0 0.0
        %3233 = vmatprep.subr.mxu0 0.0
        %3234 = vmatpush1.msra.mxu0 0.0
        %3235 = vmatprep.subr.mxu0 0.0
        %3236 = vmatpush1.msra.mxu0 0.0
        %3237 = vmatprep.subr.mxu0 0.0
        %3238 = vmatpush1.msra.mxu0 0.0
        %3239 = vmatprep.subr.mxu0 0.0
        %3240 = vmatpush1.msra.mxu0 0.0
        %3241 = vmatprep.subr.mxu0 0.0
        %3242 = vmatpush1.msra.mxu0 0.0
        %3243 = vmatprep.subr.mxu0 0.0
        %3244 = vmatpush1.msra.mxu0 0.0
        %3245 = vmatprep.subr.mxu0 0.0
        %3246 = vmatpush1.msra.mxu0 0.0
        %3247 = vmatprep.subr.mxu0 0.0
        %3248 = vmatpush1.msra.mxu0 0.0
        %3249 = vmatprep.subr.mxu0 0.0
        %3250 = vmatpush1.msra.mxu0 0.0
        %3251 = vmatprep.subr.mxu0 0.0
        %3252 = vmatpush1.msra.mxu0 0.0
        %3253 = vmatprep.subr.mxu0 0.0
        %3254 = vmatpush1.msra.mxu0 0.0
        %3255 = vmatprep.subr.mxu0 0.0
        %3256 = vmatpush1.msra.mxu0 0.0
        %3257 = vmatprep.subr.mxu0 0.0
        %3258 = vmatpush1.msra.mxu0 0.0
        %3259 = vmatprep.subr.mxu0 0.0
        %3260 = vmatpush1.msra.mxu0 0.0
        %3261 = vmatprep.subr.mxu0 0.0
        %3262 = vmatpush1.msra.mxu0 0.0
        %3263 = vmatprep.subr.mxu0 0.0
        %3264 = vmatpush1.msra.mxu0 0.0
        %3265 = vmatprep.subr.mxu0 0.0
        %3266 = vmatpush1.msra.mxu0 0.0
        %3267 = vmatprep.subr.mxu0 0.0
        %3268 = vmatpush1.msra.mxu0 0.0
        %3269 = vmatprep.subr.mxu0 0.0
        %3270 = vmatpush1.msra.mxu0 0.0
        %3271 = vmatprep.subr.mxu0 0.0
        %3272 = vmatpush1.msra.mxu0 0.0
        %3273 = vmatprep.subr.mxu0 0.0
        %3274 = vmatpush1.msra.mxu0 0.0
        %3275 = vmatprep.subr.mxu0 0.0
        %3276 = vmatpush1.msra.mxu0 0.0
        %3277 = vmatprep.subr.mxu0 0.0
        %3278 = vmatpush1.msra.mxu0 0.0
        %3279 = vmatprep.subr.mxu0 0.0
        %3280 = vmatpush1.msra.mxu0 0.0
        %3281 = vmatprep.subr.mxu0 0.0
        %3282 = vmatpush1.msra.mxu0 0.0
        %3283 = vmatprep.mubr.f32.mxu0 0.0
        %3284 = vmatmul.mubr.f32.gmra.mrb[0].mxu0 %v3004
        %v3285 = vpop.f32.mrb[0].mxu0
        %v3286 = vadd.f32 0.0, %v3285
        %v3287 = vpop.f32.mrb[0].mxu0
        %v3288 = vadd.f32 0.0, %v3287
        %3289 = vdwg.mxu0
        %3290 = vmatprep.subr.mxu0 %v441
        %3291 = vmatpush1.msra.mxu0 %v440
        %3292 = vmatprep.subr.mxu0 %v459
        %3293 = vmatpush1.msra.mxu0 %v458
        %3294 = vmatprep.subr.mxu0 0.0
        %3295 = vmatpush1.msra.mxu0 0.0
        %3296 = vmatprep.subr.mxu0 0.0
        %3297 = vmatpush1.msra.mxu0 0.0
        %3298 = vmatprep.subr.mxu0 0.0
        %3299 = vmatpush1.msra.mxu0 0.0
        %3300 = vmatprep.subr.mxu0 0.0
        %3301 = vmatpush1.msra.mxu0 0.0
        %3302 = vmatprep.subr.mxu0 0.0
        %3303 = vmatpush1.msra.mxu0 0.0
        %3304 = vmatprep.subr.mxu0 0.0
        %3305 = vmatpush1.msra.mxu0 0.0
        %3306 = vmatprep.subr.mxu0 0.0
        %3307 = vmatpush1.msra.mxu0 0.0
        %3308 = vmatprep.subr.mxu0 0.0
        %3309 = vmatpush1.msra.mxu0 0.0
        %3310 = vmatprep.subr.mxu0 0.0
        %3311 = vmatpush1.msra.mxu0 0.0
        %3312 = vmatprep.subr.mxu0 0.0
        %3313 = vmatpush1.msra.mxu0 0.0
        %3314 = vmatprep.subr.mxu0 0.0
        %3315 = vmatpush1.msra.mxu0 0.0
        %3316 = vmatprep.subr.mxu0 0.0
        %3317 = vmatpush1.msra.mxu0 0.0
        %3318 = vmatprep.subr.mxu0 0.0
        %3319 = vmatpush1.msra.mxu0 0.0
        %3320 = vmatprep.subr.mxu0 0.0
        %3321 = vmatpush1.msra.mxu0 0.0
        %3322 = vmatprep.subr.mxu0 0.0
        %3323 = vmatpush1.msra.mxu0 0.0
        %3324 = vmatprep.subr.mxu0 0.0
        %3325 = vmatpush1.msra.mxu0 0.0
        %3326 = vmatprep.subr.mxu0 0.0
        %3327 = vmatpush1.msra.mxu0 0.0
        %3328 = vmatprep.subr.mxu0 0.0
        %3329 = vmatpush1.msra.mxu0 0.0
        %3330 = vmatprep.subr.mxu0 0.0
        %3331 = vmatpush1.msra.mxu0 0.0
        %3332 = vmatprep.subr.mxu0 0.0
        %3333 = vmatpush1.msra.mxu0 0.0
        %3334 = vmatprep.subr.mxu0 0.0
        %3335 = vmatpush1.msra.mxu0 0.0
        %3336 = vmatprep.subr.mxu0 0.0
        %3337 = vmatpush1.msra.mxu0 0.0
        %3338 = vmatprep.subr.mxu0 0.0
        %3339 = vmatpush1.msra.mxu0 0.0
        %3340 = vmatprep.subr.mxu0 0.0
        %3341 = vmatpush1.msra.mxu0 0.0
        %3342 = vmatprep.subr.mxu0 0.0
        %3343 = vmatpush1.msra.mxu0 0.0
        %3344 = vmatprep.subr.mxu0 0.0
        %3345 = vmatpush1.msra.mxu0 0.0
        %3346 = vmatprep.subr.mxu0 0.0
        %3347 = vmatpush1.msra.mxu0 0.0
        %3348 = vmatprep.subr.mxu0 0.0
        %3349 = vmatpush1.msra.mxu0 0.0
        %3350 = vmatprep.subr.mxu0 0.0
        %3351 = vmatpush1.msra.mxu0 0.0
        %3352 = vmatprep.subr.mxu0 0.0
        %3353 = vmatpush1.msra.mxu0 0.0
        %3354 = vmatprep.mubr.f32.mxu0 0.0
        %3355 = vmatmul.mubr.f32.gmra.mrb[0].mxu0 %v3004
        %v3356 = vpop.f32.mrb[0].mxu0
        %v3357 = vadd.f32 0.0, %v3356
        %v3358 = vpop.f32.mrb[0].mxu0
        %v3359 = vadd.f32 0.0, %v3358
        %3360 = vdwg.mxu0
        %3361 = vmatprep.subr.mxu0 %v443
        %3362 = vmatpush1.msra.mxu0 %v442
        %3363 = vmatprep.subr.mxu0 %v461
        %3364 = vmatpush1.msra.mxu0 %v460
        %3365 = vmatprep.subr.mxu0 0.0
        %3366 = vmatpush1.msra.mxu0 0.0
        %3367 = vmatprep.subr.mxu0 0.0
        %3368 = vmatpush1.msra.mxu0 0.0
        %3369 = vmatprep.subr.mxu0 0.0
        %3370 = vmatpush1.msra.mxu0 0.0
        %3371 = vmatprep.subr.mxu0 0.0
        %3372 = vmatpush1.msra.mxu0 0.0
        %3373 = vmatprep.subr.mxu0 0.0
        %3374 = vmatpush1.msra.mxu0 0.0
        %3375 = vmatprep.subr.mxu0 0.0
        %3376 = vmatpush1.msra.mxu0 0.0
        %3377 = vmatprep.subr.mxu0 0.0
        %3378 = vmatpush1.msra.mxu0 0.0
        %3379 = vmatprep.subr.mxu0 0.0
        %3380 = vmatpush1.msra.mxu0 0.0
        %3381 = vmatprep.subr.mxu0 0.0
        %3382 = vmatpush1.msra.mxu0 0.0
        %3383 = vmatprep.subr.mxu0 0.0
        %3384 = vmatpush1.msra.mxu0 0.0
        %3385 = vmatprep.subr.mxu0 0.0
        %3386 = vmatpush1.msra.mxu0 0.0
        %3387 = vmatprep.subr.mxu0 0.0
        %3388 = vmatpush1.msra.mxu0 0.0
        %3389 = vmatprep.subr.mxu0 0.0
        %3390 = vmatpush1.msra.mxu0 0.0
        %3391 = vmatprep.subr.mxu0 0.0
        %3392 = vmatpush1.msra.mxu0 0.0
        %3393 = vmatprep.subr.mxu0 0.0
        %3394 = vmatpush1.msra.mxu0 0.0
        %3395 = vmatprep.subr.mxu0 0.0
        %3396 = vmatpush1.msra.mxu0 0.0
        %3397 = vmatprep.subr.mxu0 0.0
        %3398 = vmatpush1.msra.mxu0 0.0
        %3399 = vmatprep.subr.mxu0 0.0
        %3400 = vmatpush1.msra.mxu0 0.0
        %3401 = vmatprep.subr.mxu0 0.0
        %3402 = vmatpush1.msra.mxu0 0.0
        %3403 = vmatprep.subr.mxu0 0.0
        %3404 = vmatpush1.msra.mxu0 0.0
        %3405 = vmatprep.subr.mxu0 0.0
        %3406 = vmatpush1.msra.mxu0 0.0
        %3407 = vmatprep.subr.mxu0 0.0
        %3408 = vmatpush1.msra.mxu0 0.0
        %3409 = vmatprep.subr.mxu0 0.0
        %3410 = vmatpush1.msra.mxu0 0.0
        %3411 = vmatprep.subr.mxu0 0.0
        %3412 = vmatpush1.msra.mxu0 0.0
        %3413 = vmatprep.subr.mxu0 0.0
        %3414 = vmatpush1.msra.mxu0 0.0
        %3415 = vmatprep.subr.mxu0 0.0
        %3416 = vmatpush1.msra.mxu0 0.0
        %3417 = vmatprep.subr.mxu0 0.0
        %3418 = vmatpush1.msra.mxu0 0.0
        %3419 = vmatprep.subr.mxu0 0.0
        %3420 = vmatpush1.msra.mxu0 0.0
        %3421 = vmatprep.subr.mxu0 0.0
        %3422 = vmatpush1.msra.mxu0 0.0
        %3423 = vmatprep.subr.mxu0 0.0
        %3424 = vmatpush1.msra.mxu0 0.0
        %3425 = vmatprep.mubr.f32.mxu0 0.0
        %3426 = vmatmul.mubr.f32.gmra.mrb[0].mxu0 %v3004
        %v3427 = vpop.f32.mrb[0].mxu0
        %v3428 = vadd.f32 0.0, %v3427
        %v3429 = vpop.f32.mrb[0].mxu0
        %v3430 = vadd.f32 0.0, %v3429
        %3431 = vdwg.mxu0
        %3432 = vmatprep.subr.mxu0 %v445
        %3433 = vmatpush1.msra.mxu0 %v444
        %3434 = vmatprep.subr.mxu0 %v463
        %3435 = vmatpush1.msra.mxu0 %v462
        %3436 = vmatprep.subr.mxu0 0.0
        %3437 = vmatpush1.msra.mxu0 0.0
        %3438 = vmatprep.subr.mxu0 0.0
        %3439 = vmatpush1.msra.mxu0 0.0
        %3440 = vmatprep.subr.mxu0 0.0
        %3441 = vmatpush1.msra.mxu0 0.0
        %3442 = vmatprep.subr.mxu0 0.0
        %3443 = vmatpush1.msra.mxu0 0.0
        %3444 = vmatprep.subr.mxu0 0.0
        %3445 = vmatpush1.msra.mxu0 0.0
        %3446 = vmatprep.subr.mxu0 0.0
        %3447 = vmatpush1.msra.mxu0 0.0
        %3448 = vmatprep.subr.mxu0 0.0
        %3449 = vmatpush1.msra.mxu0 0.0
        %3450 = vmatprep.subr.mxu0 0.0
        %3451 = vmatpush1.msra.mxu0 0.0
        %3452 = vmatprep.subr.mxu0 0.0
        %3453 = vmatpush1.msra.mxu0 0.0
        %3454 = vmatprep.subr.mxu0 0.0
        %3455 = vmatpush1.msra.mxu0 0.0
        %3456 = vmatprep.subr.mxu0 0.0
        %3457 = vmatpush1.msra.mxu0 0.0
        %3458 = vmatprep.subr.mxu0 0.0
        %3459 = vmatpush1.msra.mxu0 0.0
        %3460 = vmatprep.subr.mxu0 0.0
        %3461 = vmatpush1.msra.mxu0 0.0
        %3462 = vmatprep.subr.mxu0 0.0
        %3463 = vmatpush1.msra.mxu0 0.0
        %3464 = vmatprep.subr.mxu0 0.0
        %3465 = vmatpush1.msra.mxu0 0.0
        %3466 = vmatprep.subr.mxu0 0.0
        %3467 = vmatpush1.msra.mxu0 0.0
        %3468 = vmatprep.subr.mxu0 0.0
        %3469 = vmatpush1.msra.mxu0 0.0
        %3470 = vmatprep.subr.mxu0 0.0
        %3471 = vmatpush1.msra.mxu0 0.0
        %3472 = vmatprep.subr.mxu0 0.0
        %3473 = vmatpush1.msra.mxu0 0.0
        %3474 = vmatprep.subr.mxu0 0.0
        %3475 = vmatpush1.msra.mxu0 0.0
        %3476 = vmatprep.subr.mxu0 0.0
        %3477 = vmatpush1.msra.mxu0 0.0
        %3478 = vmatprep.subr.mxu0 0.0
        %3479 = vmatpush1.msra.mxu0 0.0
        %3480 = vmatprep.subr.mxu0 0.0
        %3481 = vmatpush1.msra.mxu0 0.0
        %3482 = vmatprep.subr.mxu0 0.0
        %3483 = vmatpush1.msra.mxu0 0.0
        %3484 = vmatprep.subr.mxu0 0.0
        %3485 = vmatpush1.msra.mxu0 0.0
        %3486 = vmatprep.subr.mxu0 0.0
        %3487 = vmatpush1.msra.mxu0 0.0
        %3488 = vmatprep.subr.mxu0 0.0
        %3489 = vmatpush1.msra.mxu0 0.0
        %3490 = vmatprep.subr.mxu0 0.0
        %3491 = vmatpush1.msra.mxu0 0.0
        %3492 = vmatprep.subr.mxu0 0.0
        %3493 = vmatpush1.msra.mxu0 0.0
        %3494 = vmatprep.subr.mxu0 0.0
        %3495 = vmatpush1.msra.mxu0 0.0
        %3496 = vmatprep.mubr.f32.mxu0 0.0
        %3497 = vmatmul.mubr.f32.gmra.mrb[0].mxu0 %v3004
        %v3498 = vpop.f32.mrb[0].mxu0
        %v3499 = vadd.f32 0.0, %v3498
        %v3500 = vpop.f32.mrb[0].mxu0
        %v3501 = vadd.f32 0.0, %v3500
        %3502 = vdwg.mxu0
        %3503 = vmatprep.subr.mxu0 %v447
        %3504 = vmatpush1.msra.mxu0 %v446
        %3505 = vmatprep.subr.mxu0 %v465
        %3506 = vmatpush1.msra.mxu0 %v464
        %3507 = vmatprep.subr.mxu0 0.0
        %3508 = vmatpush1.msra.mxu0 0.0
        %3509 = vmatprep.subr.mxu0 0.0
        %3510 = vmatpush1.msra.mxu0 0.0
        %3511 = vmatprep.subr.mxu0 0.0
        %3512 = vmatpush1.msra.mxu0 0.0
        %3513 = vmatprep.subr.mxu0 0.0
        %3514 = vmatpush1.msra.mxu0 0.0
        %3515 = vmatprep.subr.mxu0 0.0
        %3516 = vmatpush1.msra.mxu0 0.0
        %3517 = vmatprep.subr.mxu0 0.0
        %3518 = vmatpush1.msra.mxu0 0.0
        %3519 = vmatprep.subr.mxu0 0.0
        %3520 = vmatpush1.msra.mxu0 0.0
        %3521 = vmatprep.subr.mxu0 0.0
        %3522 = vmatpush1.msra.mxu0 0.0
        %3523 = vmatprep.subr.mxu0 0.0
        %3524 = vmatpush1.msra.mxu0 0.0
        %3525 = vmatprep.subr.mxu0 0.0
        %3526 = vmatpush1.msra.mxu0 0.0
        %3527 = vmatprep.subr.mxu0 0.0
        %3528 = vmatpush1.msra.mxu0 0.0
        %3529 = vmatprep.subr.mxu0 0.0
        %3530 = vmatpush1.msra.mxu0 0.0
        %3531 = vmatprep.subr.mxu0 0.0
        %3532 = vmatpush1.msra.mxu0 0.0
        %3533 = vmatprep.subr.mxu0 0.0
        %3534 = vmatpush1.msra.mxu0 0.0
        %3535 = vmatprep.subr.mxu0 0.0
        %3536 = vmatpush1.msra.mxu0 0.0
        %3537 = vmatprep.subr.mxu0 0.0
        %3538 = vmatpush1.msra.mxu0 0.0
        %3539 = vmatprep.subr.mxu0 0.0
        %3540 = vmatpush1.msra.mxu0 0.0
        %3541 = vmatprep.subr.mxu0 0.0
        %3542 = vmatpush1.msra.mxu0 0.0
        %3543 = vmatprep.subr.mxu0 0.0
        %3544 = vmatpush1.msra.mxu0 0.0
        %3545 = vmatprep.subr.mxu0 0.0
        %3546 = vmatpush1.msra.mxu0 0.0
        %3547 = vmatprep.subr.mxu0 0.0
        %3548 = vmatpush1.msra.mxu0 0.0
        %3549 = vmatprep.subr.mxu0 0.0
        %3550 = vmatpush1.msra.mxu0 0.0
        %3551 = vmatprep.subr.mxu0 0.0
        %3552 = vmatpush1.msra.mxu0 0.0
        %3553 = vmatprep.subr.mxu0 0.0
        %3554 = vmatpush1.msra.mxu0 0.0
        %3555 = vmatprep.subr.mxu0 0.0
        %3556 = vmatpush1.msra.mxu0 0.0
        %3557 = vmatprep.subr.mxu0 0.0
        %3558 = vmatpush1.msra.mxu0 0.0
        %3559 = vmatprep.subr.mxu0 0.0
        %3560 = vmatpush1.msra.mxu0 0.0
        %3561 = vmatprep.subr.mxu0 0.0
        %3562 = vmatpush1.msra.mxu0 0.0
        %3563 = vmatprep.subr.mxu0 0.0
        %3564 = vmatpush1.msra.mxu0 0.0
        %3565 = vmatprep.subr.mxu0 0.0
        %3566 = vmatpush1.msra.mxu0 0.0
        %3567 = vmatprep.mubr.f32.mxu0 0.0
        %3568 = vmatmul.mubr.f32.gmra.mrb[0].mxu0 %v3004
        %v3569 = vpop.f32.mrb[0].mxu0
        %v3570 = vadd.f32 0.0, %v3569
        %v3571 = vpop.f32.mrb[0].mxu0
        %v3572 = vadd.f32 0.0, %v3571
        %3573 = vdwg.mxu0
        %3574 = vmatprep.subr.mxu0 %v449
        %3575 = vmatpush1.msra.mxu0 %v448
        %3576 = vmatprep.subr.mxu0 %v467
        %3577 = vmatpush1.msra.mxu0 %v466
        %3578 = vmatprep.subr.mxu0 0.0
        %3579 = vmatpush1.msra.mxu0 0.0
        %3580 = vmatprep.subr.mxu0 0.0
        %3581 = vmatpush1.msra.mxu0 0.0
        %3582 = vmatprep.subr.mxu0 0.0
        %3583 = vmatpush1.msra.mxu0 0.0
        %3584 = vmatprep.subr.mxu0 0.0
        %3585 = vmatpush1.msra.mxu0 0.0
        %3586 = vmatprep.subr.mxu0 0.0
        %3587 = vmatpush1.msra.mxu0 0.0
        %3588 = vmatprep.subr.mxu0 0.0
        %3589 = vmatpush1.msra.mxu0 0.0
        %3590 = vmatprep.subr.mxu0 0.0
        %3591 = vmatpush1.msra.mxu0 0.0
        %3592 = vmatprep.subr.mxu0 0.0
        %3593 = vmatpush1.msra.mxu0 0.0
        %3594 = vmatprep.subr.mxu0 0.0
        %3595 = vmatpush1.msra.mxu0 0.0
        %3596 = vmatprep.subr.mxu0 0.0
        %3597 = vmatpush1.msra.mxu0 0.0
        %3598 = vmatprep.subr.mxu0 0.0
        %3599 = vmatpush1.msra.mxu0 0.0
        %3600 = vmatprep.subr.mxu0 0.0
        %3601 = vmatpush1.msra.mxu0 0.0
        %3602 = vmatprep.subr.mxu0 0.0
        %3603 = vmatpush1.msra.mxu0 0.0
        %3604 = vmatprep.subr.mxu0 0.0
        %3605 = vmatpush1.msra.mxu0 0.0
        %3606 = vmatprep.subr.mxu0 0.0
        %3607 = vmatpush1.msra.mxu0 0.0
        %3608 = vmatprep.subr.mxu0 0.0
        %3609 = vmatpush1.msra.mxu0 0.0
        %3610 = vmatprep.subr.mxu0 0.0
        %3611 = vmatpush1.msra.mxu0 0.0
        %3612 = vmatprep.subr.mxu0 0.0
        %3613 = vmatpush1.msra.mxu0 0.0
        %3614 = vmatprep.subr.mxu0 0.0
        %3615 = vmatpush1.msra.mxu0 0.0
        %3616 = vmatprep.subr.mxu0 0.0
        %3617 = vmatpush1.msra.mxu0 0.0
        %3618 = vmatprep.subr.mxu0 0.0
        %3619 = vmatpush1.msra.mxu0 0.0
        %3620 = vmatprep.subr.mxu0 0.0
        %3621 = vmatpush1.msra.mxu0 0.0
        %3622 = vmatprep.subr.mxu0 0.0
        %3623 = vmatpush1.msra.mxu0 0.0
        %3624 = vmatprep.subr.mxu0 0.0
        %3625 = vmatpush1.msra.mxu0 0.0
        %3626 = vmatprep.subr.mxu0 0.0
        %3627 = vmatpush1.msra.mxu0 0.0
        %3628 = vmatprep.subr.mxu0 0.0
        %3629 = vmatpush1.msra.mxu0 0.0
        %3630 = vmatprep.subr.mxu0 0.0
        %3631 = vmatpush1.msra.mxu0 0.0
        %3632 = vmatprep.subr.mxu0 0.0
        %3633 = vmatpush1.msra.mxu0 0.0
        %3634 = vmatprep.subr.mxu0 0.0
        %3635 = vmatpush1.msra.mxu0 0.0
        %3636 = vmatprep.subr.mxu0 0.0
        %3637 = vmatpush1.msra.mxu0 0.0
        %3638 = vmatprep.mubr.f32.mxu0 0.0
        %3639 = vmatmul.mubr.f32.gmra.mrb[0].mxu0 %v3004
        %v3640 = vpop.f32.mrb[0].mxu0
        %v3641 = vadd.f32 0.0, %v3640
        %v3642 = vpop.f32.mrb[0].mxu0
        %v3643 = vadd.f32 0.0, %v3642
        %3644 = vdwg.mxu0
        %3645 = vrot.lane.b32.xlu0 %v3073, 4
        %v3646 = vpop.permute.xlu0 %3645
        %3647 = vrot.lane.b32.xlu0 %v3075, 4
        %v3648 = vpop.permute.xlu0 %3647
        %3649 = vrot.lane.b32.xlu0 %v3144, 4
        %v3650 = vpop.permute.xlu0 %3649
        %3651 = vrot.lane.b32.xlu0 %v3146, 4
        %v3652 = vpop.permute.xlu0 %3651
        %3653 = vrot.lane.b32.xlu0 %v3215, 4
        %v3654 = vpop.permute.xlu0 %3653
        %3655 = vrot.lane.b32.xlu0 %v3217, 4
        %v3656 = vpop.permute.xlu0 %3655
        %3657 = vrot.lane.b32.xlu0 %v3286, 4
        %v3658 = vpop.permute.xlu0 %3657
        %3659 = vrot.lane.b32.xlu0 %v3288, 4
        %v3660 = vpop.permute.xlu0 %3659
        %3661 = vrot.lane.b32.xlu0 %v3357, 4
        %v3662 = vpop.permute.xlu0 %3661
        %3663 = vrot.lane.b32.xlu0 %v3359, 4
        %v3664 = vpop.permute.xlu0 %3663
        %3665 = vrot.lane.b32.xlu0 %v3428, 4
        %v3666 = vpop.permute.xlu0 %3665
        %3667 = vrot.lane.b32.xlu0 %v3430, 4
        %v3668 = vpop.permute.xlu0 %3667
        %3669 = vrot.lane.b32.xlu0 %v3499, 4
        %v3670 = vpop.permute.xlu0 %3669
        %3671 = vrot.lane.b32.xlu0 %v3501, 4
        %v3672 = vpop.permute.xlu0 %3671
        %3673 = vrot.lane.b32.xlu0 %v3570, 4
        %v3674 = vpop.permute.xlu0 %3673
        %3675 = vrot.lane.b32.xlu0 %v3572, 4
        %v3676 = vpop.permute.xlu0 %3675
        %3677 = vrot.lane.b32.xlu0 %v3641, 4
        %v3678 = vpop.permute.xlu0 %3677
        %3679 = vrot.lane.b32.xlu0 %v3643, 4
        %v3680 = vpop.permute.xlu0 %3679
        %vm3681 = vcmp.lt.s32.totalorder %v1167, 4
        %v3682 = vsel %vm3681, %v3678, %v3680
        %v3683 = vsel %vm3681, %v3676, %v3678
        %v3684 = vsel %vm3681, %v3674, %v3676
        %v3685 = vsel %vm3681, %v3672, %v3674
        %v3686 = vsel %vm3681, %v3670, %v3672
        %v3687 = vsel %vm3681, %v3668, %v3670
        %v3688 = vsel %vm3681, %v3666, %v3668
        %v3689 = vsel %vm3681, %v3664, %v3666
        %v3690 = vsel %vm3681, %v3662, %v3664
        %v3691 = vsel %vm3681, %v3660, %v3662
        %v3692 = vsel %vm3681, %v3658, %v3660
        %v3693 = vsel %vm3681, %v3656, %v3658
        %v3694 = vsel %vm3681, %v3654, %v3656
        %v3695 = vsel %vm3681, %v3652, %v3654
        %v3696 = vsel %vm3681, %v3650, %v3652
        %v3697 = vsel %vm3681, %v3648, %v3650
        %v3698 = vsel %vm3681, %v3646, %v3648
        %v3699 = vsel %vm3681, %v3680, %v3646
        %s3700 = scalar_lea.vmem %s2, 3
        %v3701 = vld [vmem:[%s3700] ss:$8 sm:$0xf]
        %v3702 = vld [vmem:[%s3700] ss:$8 sm:$0xf0]
        %v3703 = vor.u32 %v3701, %v3702
        %s3704 = scalar_lea.vmem %s2, 67
        %v3705 = vld [vmem:[%s3704] ss:$8 sm:$0xf]
        %v3706 = vld [vmem:[%s3704] ss:$8 sm:$0xf0]
        %v3707 = vor.u32 %v3705, %v3706
        %s3708 = scalar_lea.vmem %s2, 131
        %v3709 = vld [vmem:[%s3708] ss:$8 sm:$0x3]
        %v3713 = vlaneseq
        %v3714 = vshrl.u32 %v3713, 7
        %v3715 = vsub.s32 0, %v3714
        %v3716 = vrot.slane %v3703, %v3715
        %v3717 = vlaneseq
        %v3718 = vshrl.u32 %v3717, 7
        %v3719 = vsub.s32 1, %v3718
        %v3720 = vrot.slane %v3703, %v3719
        %v3721 = vlaneseq
        %v3722 = vshrl.u32 %v3721, 7
        %v3723 = vsub.s32 2, %v3722
        %v3724 = vrot.slane %v3703, %v3723
        %v3725 = vlaneseq
        %v3726 = vshrl.u32 %v3725, 7
        %v3727 = vsub.s32 3, %v3726
        %v3728 = vrot.slane %v3703, %v3727
        %v3729 = vlaneseq
        %v3730 = vshrl.u32 %v3729, 7
        %v3731 = vsub.s32 4, %v3730
        %v3732 = vrot.slane %v3703, %v3731
        %v3733 = vlaneseq
        %v3734 = vshrl.u32 %v3733, 7
        %v3735 = vsub.s32 5, %v3734
        %v3736 = vrot.slane %v3703, %v3735
        %v3737 = vlaneseq
        %v3738 = vshrl.u32 %v3737, 7
        %v3739 = vsub.s32 6, %v3738
        %v3740 = vrot.slane %v3703, %v3739
        %v3741 = vlaneseq
        %v3742 = vshrl.u32 %v3741, 7
        %v3743 = vsub.s32 7, %v3742
        %v3744 = vrot.slane %v3703, %v3743
        %v3745 = vlaneseq
        %v3746 = vshrl.u32 %v3745, 7
        %v3747 = vsub.s32 0, %v3746
        %v3748 = vrot.slane %v3707, %v3747
        %v3749 = vlaneseq
        %v3750 = vshrl.u32 %v3749, 7
        %v3751 = vsub.s32 1, %v3750
        %v3752 = vrot.slane %v3707, %v3751
        %v3753 = vlaneseq
        %v3754 = vshrl.u32 %v3753, 7
        %v3755 = vsub.s32 2, %v3754
        %v3756 = vrot.slane %v3707, %v3755
        %v3757 = vlaneseq
        %v3758 = vshrl.u32 %v3757, 7
        %v3759 = vsub.s32 3, %v3758
        %v3760 = vrot.slane %v3707, %v3759
        %v3761 = vlaneseq
        %v3762 = vshrl.u32 %v3761, 7
        %v3763 = vsub.s32 4, %v3762
        %v3764 = vrot.slane %v3707, %v3763
        %v3765 = vlaneseq
        %v3766 = vshrl.u32 %v3765, 7
        %v3767 = vsub.s32 5, %v3766
        %v3768 = vrot.slane %v3707, %v3767
        %v3769 = vlaneseq
        %v3770 = vshrl.u32 %v3769, 7
        %v3771 = vsub.s32 6, %v3770
        %v3772 = vrot.slane %v3707, %v3771
        %v3773 = vlaneseq
        %v3774 = vshrl.u32 %v3773, 7
        %v3775 = vsub.s32 7, %v3774
        %v3776 = vrot.slane %v3707, %v3775
        %v3777 = vlaneseq
        %v3778 = vshrl.u32 %v3777, 7
        %v3779 = vsub.s32 0, %v3778
        %v3780 = vrot.slane %v3709, %v3779
        %v3781 = vlaneseq
        %v3782 = vshrl.u32 %v3781, 7
        %v3783 = vsub.s32 1, %v3782
        %v3784 = vrot.slane %v3709, %v3783
        %v3803 = vmul.f32 %v3699, %v3716
        %v3804 = vmul.f32 %v3698, %v3720
        %v3805 = vmul.f32 %v3697, %v3724
        %v3806 = vmul.f32 %v3696, %v3728
        %v3807 = vmul.f32 %v3695, %v3732
        %v3808 = vmul.f32 %v3694, %v3736
        %v3809 = vmul.f32 %v3693, %v3740
        %v3810 = vmul.f32 %v3692, %v3744
        %v3811 = vmul.f32 %v3691, %v3748
        %v3812 = vmul.f32 %v3690, %v3752
        %v3813 = vmul.f32 %v3689, %v3756
        %v3814 = vmul.f32 %v3688, %v3760
        %v3815 = vmul.f32 %v3687, %v3764
        %v3816 = vmul.f32 %v3686, %v3768
        %v3817 = vmul.f32 %v3685, %v3772
        %v3818 = vmul.f32 %v3684, %v3776
        %v3819 = vmul.f32 %v3683, %v3780
        %v3820 = vmul.f32 %v3682, %v3784
        %v3821 = vadd.f32 %v2983, %v3803
        %v3822 = vadd.f32 %v2984, %v3804
        %v3823 = vadd.f32 %v2985, %v3805
        %v3824 = vadd.f32 %v2986, %v3806
        %v3825 = vadd.f32 %v2987, %v3807
        %v3826 = vadd.f32 %v2988, %v3808
        %v3827 = vadd.f32 %v2989, %v3809
        %v3828 = vadd.f32 %v2990, %v3810
        %v3829 = vadd.f32 %v2991, %v3811
        %v3830 = vadd.f32 %v2992, %v3812
        %v3831 = vadd.f32 %v2993, %v3813
        %v3832 = vadd.f32 %v2994, %v3814
        %v3833 = vadd.f32 %v2995, %v3815
        %v3834 = vadd.f32 %v2996, %v3816
        %v3835 = vadd.f32 %v2997, %v3817
        %v3836 = vadd.f32 %v2998, %v3818
        %v3837 = vadd.f32 %v2999, %v3819
        %v3838 = vadd.f32 %v3000, %v3820
        %s3839 = scalar_lea.vmem %s4, 32
        %v3840 = vld [vmem:[%s3839] sm:$0xff]
        %v3842 = vsel %vm487, %v3840, 0
        %3844 = vmatprep.subr.mxu0 %v433
        %3845 = vmatpush1.msra.mxu0 %v432
        %3846 = vmatprep.subr.mxu0 %v451
        %3847 = vmatpush1.msra.mxu0 %v450
        %3848 = vmatprep.subr.mxu0 0.0
        %3849 = vmatpush1.msra.mxu0 0.0
        %3850 = vmatprep.subr.mxu0 0.0
        %3851 = vmatpush1.msra.mxu0 0.0
        %3852 = vmatprep.subr.mxu0 0.0
        %3853 = vmatpush1.msra.mxu0 0.0
        %3854 = vmatprep.subr.mxu0 0.0
        %3855 = vmatpush1.msra.mxu0 0.0
        %3856 = vmatprep.subr.mxu0 0.0
        %3857 = vmatpush1.msra.mxu0 0.0
        %3858 = vmatprep.subr.mxu0 0.0
        %3859 = vmatpush1.msra.mxu0 0.0
        %3860 = vmatprep.subr.mxu0 0.0
        %3861 = vmatpush1.msra.mxu0 0.0
        %3862 = vmatprep.subr.mxu0 0.0
        %3863 = vmatpush1.msra.mxu0 0.0
        %3864 = vmatprep.subr.mxu0 0.0
        %3865 = vmatpush1.msra.mxu0 0.0
        %3866 = vmatprep.subr.mxu0 0.0
        %3867 = vmatpush1.msra.mxu0 0.0
        %3868 = vmatprep.subr.mxu0 0.0
        %3869 = vmatpush1.msra.mxu0 0.0
        %3870 = vmatprep.subr.mxu0 0.0
        %3871 = vmatpush1.msra.mxu0 0.0
        %3872 = vmatprep.subr.mxu0 0.0
        %3873 = vmatpush1.msra.mxu0 0.0
        %3874 = vmatprep.subr.mxu0 0.0
        %3875 = vmatpush1.msra.mxu0 0.0
        %3876 = vmatprep.subr.mxu0 0.0
        %3877 = vmatpush1.msra.mxu0 0.0
        %3878 = vmatprep.subr.mxu0 0.0
        %3879 = vmatpush1.msra.mxu0 0.0
        %3880 = vmatprep.subr.mxu0 0.0
        %3881 = vmatpush1.msra.mxu0 0.0
        %3882 = vmatprep.subr.mxu0 0.0
        %3883 = vmatpush1.msra.mxu0 0.0
        %3884 = vmatprep.subr.mxu0 0.0
        %3885 = vmatpush1.msra.mxu0 0.0
        %3886 = vmatprep.subr.mxu0 0.0
        %3887 = vmatpush1.msra.mxu0 0.0
        %3888 = vmatprep.subr.mxu0 0.0
        %3889 = vmatpush1.msra.mxu0 0.0
        %3890 = vmatprep.subr.mxu0 0.0
        %3891 = vmatpush1.msra.mxu0 0.0
        %3892 = vmatprep.subr.mxu0 0.0
        %3893 = vmatpush1.msra.mxu0 0.0
        %3894 = vmatprep.subr.mxu0 0.0
        %3895 = vmatpush1.msra.mxu0 0.0
        %3896 = vmatprep.subr.mxu0 0.0
        %3897 = vmatpush1.msra.mxu0 0.0
        %3898 = vmatprep.subr.mxu0 0.0
        %3899 = vmatpush1.msra.mxu0 0.0
        %3900 = vmatprep.subr.mxu0 0.0
        %3901 = vmatpush1.msra.mxu0 0.0
        %3902 = vmatprep.subr.mxu0 0.0
        %3903 = vmatpush1.msra.mxu0 0.0
        %3904 = vmatprep.subr.mxu0 0.0
        %3905 = vmatpush1.msra.mxu0 0.0
        %3906 = vmatprep.subr.mxu0 0.0
        %3907 = vmatpush1.msra.mxu0 0.0
        %3908 = vmatprep.mubr.f32.mxu0 0.0
        %3909 = vmatmul.mubr.f32.gmra.mrb[0].mxu0 %v3842
        %v3910 = vpop.f32.mrb[0].mxu0
        %v3911 = vadd.f32 0.0, %v3910
        %v3912 = vpop.f32.mrb[0].mxu0
        %v3913 = vadd.f32 0.0, %v3912
        %3914 = vdwg.mxu0
        %3915 = vmatprep.subr.mxu0 %v435
        %3916 = vmatpush1.msra.mxu0 %v434
        %3917 = vmatprep.subr.mxu0 %v453
        %3918 = vmatpush1.msra.mxu0 %v452
        %3919 = vmatprep.subr.mxu0 0.0
        %3920 = vmatpush1.msra.mxu0 0.0
        %3921 = vmatprep.subr.mxu0 0.0
        %3922 = vmatpush1.msra.mxu0 0.0
        %3923 = vmatprep.subr.mxu0 0.0
        %3924 = vmatpush1.msra.mxu0 0.0
        %3925 = vmatprep.subr.mxu0 0.0
        %3926 = vmatpush1.msra.mxu0 0.0
        %3927 = vmatprep.subr.mxu0 0.0
        %3928 = vmatpush1.msra.mxu0 0.0
        %3929 = vmatprep.subr.mxu0 0.0
        %3930 = vmatpush1.msra.mxu0 0.0
        %3931 = vmatprep.subr.mxu0 0.0
        %3932 = vmatpush1.msra.mxu0 0.0
        %3933 = vmatprep.subr.mxu0 0.0
        %3934 = vmatpush1.msra.mxu0 0.0
        %3935 = vmatprep.subr.mxu0 0.0
        %3936 = vmatpush1.msra.mxu0 0.0
        %3937 = vmatprep.subr.mxu0 0.0
        %3938 = vmatpush1.msra.mxu0 0.0
        %3939 = vmatprep.subr.mxu0 0.0
        %3940 = vmatpush1.msra.mxu0 0.0
        %3941 = vmatprep.subr.mxu0 0.0
        %3942 = vmatpush1.msra.mxu0 0.0
        %3943 = vmatprep.subr.mxu0 0.0
        %3944 = vmatpush1.msra.mxu0 0.0
        %3945 = vmatprep.subr.mxu0 0.0
        %3946 = vmatpush1.msra.mxu0 0.0
        %3947 = vmatprep.subr.mxu0 0.0
        %3948 = vmatpush1.msra.mxu0 0.0
        %3949 = vmatprep.subr.mxu0 0.0
        %3950 = vmatpush1.msra.mxu0 0.0
        %3951 = vmatprep.subr.mxu0 0.0
        %3952 = vmatpush1.msra.mxu0 0.0
        %3953 = vmatprep.subr.mxu0 0.0
        %3954 = vmatpush1.msra.mxu0 0.0
        %3955 = vmatprep.subr.mxu0 0.0
        %3956 = vmatpush1.msra.mxu0 0.0
        %3957 = vmatprep.subr.mxu0 0.0
        %3958 = vmatpush1.msra.mxu0 0.0
        %3959 = vmatprep.subr.mxu0 0.0
        %3960 = vmatpush1.msra.mxu0 0.0
        %3961 = vmatprep.subr.mxu0 0.0
        %3962 = vmatpush1.msra.mxu0 0.0
        %3963 = vmatprep.subr.mxu0 0.0
        %3964 = vmatpush1.msra.mxu0 0.0
        %3965 = vmatprep.subr.mxu0 0.0
        %3966 = vmatpush1.msra.mxu0 0.0
        %3967 = vmatprep.subr.mxu0 0.0
        %3968 = vmatpush1.msra.mxu0 0.0
        %3969 = vmatprep.subr.mxu0 0.0
        %3970 = vmatpush1.msra.mxu0 0.0
        %3971 = vmatprep.subr.mxu0 0.0
        %3972 = vmatpush1.msra.mxu0 0.0
        %3973 = vmatprep.subr.mxu0 0.0
        %3974 = vmatpush1.msra.mxu0 0.0
        %3975 = vmatprep.subr.mxu0 0.0
        %3976 = vmatpush1.msra.mxu0 0.0
        %3977 = vmatprep.subr.mxu0 0.0
        %3978 = vmatpush1.msra.mxu0 0.0
        %3979 = vmatprep.mubr.f32.mxu0 0.0
        %3980 = vmatmul.mubr.f32.gmra.mrb[0].mxu0 %v3842
        %v3981 = vpop.f32.mrb[0].mxu0
        %v3982 = vadd.f32 0.0, %v3981
        %v3983 = vpop.f32.mrb[0].mxu0
        %v3984 = vadd.f32 0.0, %v3983
        %3985 = vdwg.mxu0
        %3986 = vmatprep.subr.mxu0 %v437
        %3987 = vmatpush1.msra.mxu0 %v436
        %3988 = vmatprep.subr.mxu0 %v455
        %3989 = vmatpush1.msra.mxu0 %v454
        %3990 = vmatprep.subr.mxu0 0.0
        %3991 = vmatpush1.msra.mxu0 0.0
        %3992 = vmatprep.subr.mxu0 0.0
        %3993 = vmatpush1.msra.mxu0 0.0
        %3994 = vmatprep.subr.mxu0 0.0
        %3995 = vmatpush1.msra.mxu0 0.0
        %3996 = vmatprep.subr.mxu0 0.0
        %3997 = vmatpush1.msra.mxu0 0.0
        %3998 = vmatprep.subr.mxu0 0.0
        %3999 = vmatpush1.msra.mxu0 0.0
        %4000 = vmatprep.subr.mxu0 0.0
        %4001 = vmatpush1.msra.mxu0 0.0
        %4002 = vmatprep.subr.mxu0 0.0
        %4003 = vmatpush1.msra.mxu0 0.0
        %4004 = vmatprep.subr.mxu0 0.0
        %4005 = vmatpush1.msra.mxu0 0.0
        %4006 = vmatprep.subr.mxu0 0.0
        %4007 = vmatpush1.msra.mxu0 0.0
        %4008 = vmatprep.subr.mxu0 0.0
        %4009 = vmatpush1.msra.mxu0 0.0
        %4010 = vmatprep.subr.mxu0 0.0
        %4011 = vmatpush1.msra.mxu0 0.0
        %4012 = vmatprep.subr.mxu0 0.0
        %4013 = vmatpush1.msra.mxu0 0.0
        %4014 = vmatprep.subr.mxu0 0.0
        %4015 = vmatpush1.msra.mxu0 0.0
        %4016 = vmatprep.subr.mxu0 0.0
        %4017 = vmatpush1.msra.mxu0 0.0
        %4018 = vmatprep.subr.mxu0 0.0
        %4019 = vmatpush1.msra.mxu0 0.0
        %4020 = vmatprep.subr.mxu0 0.0
        %4021 = vmatpush1.msra.mxu0 0.0
        %4022 = vmatprep.subr.mxu0 0.0
        %4023 = vmatpush1.msra.mxu0 0.0
        %4024 = vmatprep.subr.mxu0 0.0
        %4025 = vmatpush1.msra.mxu0 0.0
        %4026 = vmatprep.subr.mxu0 0.0
        %4027 = vmatpush1.msra.mxu0 0.0
        %4028 = vmatprep.subr.mxu0 0.0
        %4029 = vmatpush1.msra.mxu0 0.0
        %4030 = vmatprep.subr.mxu0 0.0
        %4031 = vmatpush1.msra.mxu0 0.0
        %4032 = vmatprep.subr.mxu0 0.0
        %4033 = vmatpush1.msra.mxu0 0.0
        %4034 = vmatprep.subr.mxu0 0.0
        %4035 = vmatpush1.msra.mxu0 0.0
        %4036 = vmatprep.subr.mxu0 0.0
        %4037 = vmatpush1.msra.mxu0 0.0
        %4038 = vmatprep.subr.mxu0 0.0
        %4039 = vmatpush1.msra.mxu0 0.0
        %4040 = vmatprep.subr.mxu0 0.0
        %4041 = vmatpush1.msra.mxu0 0.0
        %4042 = vmatprep.subr.mxu0 0.0
        %4043 = vmatpush1.msra.mxu0 0.0
        %4044 = vmatprep.subr.mxu0 0.0
        %4045 = vmatpush1.msra.mxu0 0.0
        %4046 = vmatprep.subr.mxu0 0.0
        %4047 = vmatpush1.msra.mxu0 0.0
        %4048 = vmatprep.subr.mxu0 0.0
        %4049 = vmatpush1.msra.mxu0 0.0
        %4050 = vmatprep.mubr.f32.mxu0 0.0
        %4051 = vmatmul.mubr.f32.gmra.mrb[0].mxu0 %v3842
        %v4052 = vpop.f32.mrb[0].mxu0
        %v4053 = vadd.f32 0.0, %v4052
        %v4054 = vpop.f32.mrb[0].mxu0
        %v4055 = vadd.f32 0.0, %v4054
        %4056 = vdwg.mxu0
        %4057 = vmatprep.subr.mxu0 %v439
        %4058 = vmatpush1.msra.mxu0 %v438
        %4059 = vmatprep.subr.mxu0 %v457
        %4060 = vmatpush1.msra.mxu0 %v456
        %4061 = vmatprep.subr.mxu0 0.0
        %4062 = vmatpush1.msra.mxu0 0.0
        %4063 = vmatprep.subr.mxu0 0.0
        %4064 = vmatpush1.msra.mxu0 0.0
        %4065 = vmatprep.subr.mxu0 0.0
        %4066 = vmatpush1.msra.mxu0 0.0
        %4067 = vmatprep.subr.mxu0 0.0
        %4068 = vmatpush1.msra.mxu0 0.0
        %4069 = vmatprep.subr.mxu0 0.0
        %4070 = vmatpush1.msra.mxu0 0.0
        %4071 = vmatprep.subr.mxu0 0.0
        %4072 = vmatpush1.msra.mxu0 0.0
        %4073 = vmatprep.subr.mxu0 0.0
        %4074 = vmatpush1.msra.mxu0 0.0
        %4075 = vmatprep.subr.mxu0 0.0
        %4076 = vmatpush1.msra.mxu0 0.0
        %4077 = vmatprep.subr.mxu0 0.0
        %4078 = vmatpush1.msra.mxu0 0.0
        %4079 = vmatprep.subr.mxu0 0.0
        %4080 = vmatpush1.msra.mxu0 0.0
        %4081 = vmatprep.subr.mxu0 0.0
        %4082 = vmatpush1.msra.mxu0 0.0
        %4083 = vmatprep.subr.mxu0 0.0
        %4084 = vmatpush1.msra.mxu0 0.0
        %4085 = vmatprep.subr.mxu0 0.0
        %4086 = vmatpush1.msra.mxu0 0.0
        %4087 = vmatprep.subr.mxu0 0.0
        %4088 = vmatpush1.msra.mxu0 0.0
        %4089 = vmatprep.subr.mxu0 0.0
        %4090 = vmatpush1.msra.mxu0 0.0
        %4091 = vmatprep.subr.mxu0 0.0
        %4092 = vmatpush1.msra.mxu0 0.0
        %4093 = vmatprep.subr.mxu0 0.0
        %4094 = vmatpush1.msra.mxu0 0.0
        %4095 = vmatprep.subr.mxu0 0.0
        %4096 = vmatpush1.msra.mxu0 0.0
        %4097 = vmatprep.subr.mxu0 0.0
        %4098 = vmatpush1.msra.mxu0 0.0
        %4099 = vmatprep.subr.mxu0 0.0
        %4100 = vmatpush1.msra.mxu0 0.0
        %4101 = vmatprep.subr.mxu0 0.0
        %4102 = vmatpush1.msra.mxu0 0.0
        %4103 = vmatprep.subr.mxu0 0.0
        %4104 = vmatpush1.msra.mxu0 0.0
        %4105 = vmatprep.subr.mxu0 0.0
        %4106 = vmatpush1.msra.mxu0 0.0
        %4107 = vmatprep.subr.mxu0 0.0
        %4108 = vmatpush1.msra.mxu0 0.0
        %4109 = vmatprep.subr.mxu0 0.0
        %4110 = vmatpush1.msra.mxu0 0.0
        %4111 = vmatprep.subr.mxu0 0.0
        %4112 = vmatpush1.msra.mxu0 0.0
        %4113 = vmatprep.subr.mxu0 0.0
        %4114 = vmatpush1.msra.mxu0 0.0
        %4115 = vmatprep.subr.mxu0 0.0
        %4116 = vmatpush1.msra.mxu0 0.0
        %4117 = vmatprep.subr.mxu0 0.0
        %4118 = vmatpush1.msra.mxu0 0.0
        %4119 = vmatprep.subr.mxu0 0.0
        %4120 = vmatpush1.msra.mxu0 0.0
        %4121 = vmatprep.mubr.f32.mxu0 0.0
        %4122 = vmatmul.mubr.f32.gmra.mrb[0].mxu0 %v3842
        %v4123 = vpop.f32.mrb[0].mxu0
        %v4124 = vadd.f32 0.0, %v4123
        %v4125 = vpop.f32.mrb[0].mxu0
        %v4126 = vadd.f32 0.0, %v4125
        %4127 = vdwg.mxu0
        %4128 = vmatprep.subr.mxu0 %v441
        %4129 = vmatpush1.msra.mxu0 %v440
        %4130 = vmatprep.subr.mxu0 %v459
        %4131 = vmatpush1.msra.mxu0 %v458
        %4132 = vmatprep.subr.mxu0 0.0
        %4133 = vmatpush1.msra.mxu0 0.0
        %4134 = vmatprep.subr.mxu0 0.0
        %4135 = vmatpush1.msra.mxu0 0.0
        %4136 = vmatprep.subr.mxu0 0.0
        %4137 = vmatpush1.msra.mxu0 0.0
        %4138 = vmatprep.subr.mxu0 0.0
        %4139 = vmatpush1.msra.mxu0 0.0
        %4140 = vmatprep.subr.mxu0 0.0
        %4141 = vmatpush1.msra.mxu0 0.0
        %4142 = vmatprep.subr.mxu0 0.0
        %4143 = vmatpush1.msra.mxu0 0.0
        %4144 = vmatprep.subr.mxu0 0.0
        %4145 = vmatpush1.msra.mxu0 0.0
        %4146 = vmatprep.subr.mxu0 0.0
        %4147 = vmatpush1.msra.mxu0 0.0
        %4148 = vmatprep.subr.mxu0 0.0
        %4149 = vmatpush1.msra.mxu0 0.0
        %4150 = vmatprep.subr.mxu0 0.0
        %4151 = vmatpush1.msra.mxu0 0.0
        %4152 = vmatprep.subr.mxu0 0.0
        %4153 = vmatpush1.msra.mxu0 0.0
        %4154 = vmatprep.subr.mxu0 0.0
        %4155 = vmatpush1.msra.mxu0 0.0
        %4156 = vmatprep.subr.mxu0 0.0
        %4157 = vmatpush1.msra.mxu0 0.0
        %4158 = vmatprep.subr.mxu0 0.0
        %4159 = vmatpush1.msra.mxu0 0.0
        %4160 = vmatprep.subr.mxu0 0.0
        %4161 = vmatpush1.msra.mxu0 0.0
        %4162 = vmatprep.subr.mxu0 0.0
        %4163 = vmatpush1.msra.mxu0 0.0
        %4164 = vmatprep.subr.mxu0 0.0
        %4165 = vmatpush1.msra.mxu0 0.0
        %4166 = vmatprep.subr.mxu0 0.0
        %4167 = vmatpush1.msra.mxu0 0.0
        %4168 = vmatprep.subr.mxu0 0.0
        %4169 = vmatpush1.msra.mxu0 0.0
        %4170 = vmatprep.subr.mxu0 0.0
        %4171 = vmatpush1.msra.mxu0 0.0
        %4172 = vmatprep.subr.mxu0 0.0
        %4173 = vmatpush1.msra.mxu0 0.0
        %4174 = vmatprep.subr.mxu0 0.0
        %4175 = vmatpush1.msra.mxu0 0.0
        %4176 = vmatprep.subr.mxu0 0.0
        %4177 = vmatpush1.msra.mxu0 0.0
        %4178 = vmatprep.subr.mxu0 0.0
        %4179 = vmatpush1.msra.mxu0 0.0
        %4180 = vmatprep.subr.mxu0 0.0
        %4181 = vmatpush1.msra.mxu0 0.0
        %4182 = vmatprep.subr.mxu0 0.0
        %4183 = vmatpush1.msra.mxu0 0.0
        %4184 = vmatprep.subr.mxu0 0.0
        %4185 = vmatpush1.msra.mxu0 0.0
        %4186 = vmatprep.subr.mxu0 0.0
        %4187 = vmatpush1.msra.mxu0 0.0
        %4188 = vmatprep.subr.mxu0 0.0
        %4189 = vmatpush1.msra.mxu0 0.0
        %4190 = vmatprep.subr.mxu0 0.0
        %4191 = vmatpush1.msra.mxu0 0.0
        %4192 = vmatprep.mubr.f32.mxu0 0.0
        %4193 = vmatmul.mubr.f32.gmra.mrb[0].mxu0 %v3842
        %v4194 = vpop.f32.mrb[0].mxu0
        %v4195 = vadd.f32 0.0, %v4194
        %v4196 = vpop.f32.mrb[0].mxu0
        %v4197 = vadd.f32 0.0, %v4196
        %4198 = vdwg.mxu0
        %4199 = vmatprep.subr.mxu0 %v443
        %4200 = vmatpush1.msra.mxu0 %v442
        %4201 = vmatprep.subr.mxu0 %v461
        %4202 = vmatpush1.msra.mxu0 %v460
        %4203 = vmatprep.subr.mxu0 0.0
        %4204 = vmatpush1.msra.mxu0 0.0
        %4205 = vmatprep.subr.mxu0 0.0
        %4206 = vmatpush1.msra.mxu0 0.0
        %4207 = vmatprep.subr.mxu0 0.0
        %4208 = vmatpush1.msra.mxu0 0.0
        %4209 = vmatprep.subr.mxu0 0.0
        %4210 = vmatpush1.msra.mxu0 0.0
        %4211 = vmatprep.subr.mxu0 0.0
        %4212 = vmatpush1.msra.mxu0 0.0
        %4213 = vmatprep.subr.mxu0 0.0
        %4214 = vmatpush1.msra.mxu0 0.0
        %4215 = vmatprep.subr.mxu0 0.0
        %4216 = vmatpush1.msra.mxu0 0.0
        %4217 = vmatprep.subr.mxu0 0.0
        %4218 = vmatpush1.msra.mxu0 0.0
        %4219 = vmatprep.subr.mxu0 0.0
        %4220 = vmatpush1.msra.mxu0 0.0
        %4221 = vmatprep.subr.mxu0 0.0
        %4222 = vmatpush1.msra.mxu0 0.0
        %4223 = vmatprep.subr.mxu0 0.0
        %4224 = vmatpush1.msra.mxu0 0.0
        %4225 = vmatprep.subr.mxu0 0.0
        %4226 = vmatpush1.msra.mxu0 0.0
        %4227 = vmatprep.subr.mxu0 0.0
        %4228 = vmatpush1.msra.mxu0 0.0
        %4229 = vmatprep.subr.mxu0 0.0
        %4230 = vmatpush1.msra.mxu0 0.0
        %4231 = vmatprep.subr.mxu0 0.0
        %4232 = vmatpush1.msra.mxu0 0.0
        %4233 = vmatprep.subr.mxu0 0.0
        %4234 = vmatpush1.msra.mxu0 0.0
        %4235 = vmatprep.subr.mxu0 0.0
        %4236 = vmatpush1.msra.mxu0 0.0
        %4237 = vmatprep.subr.mxu0 0.0
        %4238 = vmatpush1.msra.mxu0 0.0
        %4239 = vmatprep.subr.mxu0 0.0
        %4240 = vmatpush1.msra.mxu0 0.0
        %4241 = vmatprep.subr.mxu0 0.0
        %4242 = vmatpush1.msra.mxu0 0.0
        %4243 = vmatprep.subr.mxu0 0.0
        %4244 = vmatpush1.msra.mxu0 0.0
        %4245 = vmatprep.subr.mxu0 0.0
        %4246 = vmatpush1.msra.mxu0 0.0
        %4247 = vmatprep.subr.mxu0 0.0
        %4248 = vmatpush1.msra.mxu0 0.0
        %4249 = vmatprep.subr.mxu0 0.0
        %4250 = vmatpush1.msra.mxu0 0.0
        %4251 = vmatprep.subr.mxu0 0.0
        %4252 = vmatpush1.msra.mxu0 0.0
        %4253 = vmatprep.subr.mxu0 0.0
        %4254 = vmatpush1.msra.mxu0 0.0
        %4255 = vmatprep.subr.mxu0 0.0
        %4256 = vmatpush1.msra.mxu0 0.0
        %4257 = vmatprep.subr.mxu0 0.0
        %4258 = vmatpush1.msra.mxu0 0.0
        %4259 = vmatprep.subr.mxu0 0.0
        %4260 = vmatpush1.msra.mxu0 0.0
        %4261 = vmatprep.subr.mxu0 0.0
        %4262 = vmatpush1.msra.mxu0 0.0
        %4263 = vmatprep.mubr.f32.mxu0 0.0
        %4264 = vmatmul.mubr.f32.gmra.mrb[0].mxu0 %v3842
        %v4265 = vpop.f32.mrb[0].mxu0
        %v4266 = vadd.f32 0.0, %v4265
        %v4267 = vpop.f32.mrb[0].mxu0
        %v4268 = vadd.f32 0.0, %v4267
        %4269 = vdwg.mxu0
        %4270 = vmatprep.subr.mxu0 %v445
        %4271 = vmatpush1.msra.mxu0 %v444
        %4272 = vmatprep.subr.mxu0 %v463
        %4273 = vmatpush1.msra.mxu0 %v462
        %4274 = vmatprep.subr.mxu0 0.0
        %4275 = vmatpush1.msra.mxu0 0.0
        %4276 = vmatprep.subr.mxu0 0.0
        %4277 = vmatpush1.msra.mxu0 0.0
        %4278 = vmatprep.subr.mxu0 0.0
        %4279 = vmatpush1.msra.mxu0 0.0
        %4280 = vmatprep.subr.mxu0 0.0
        %4281 = vmatpush1.msra.mxu0 0.0
        %4282 = vmatprep.subr.mxu0 0.0
        %4283 = vmatpush1.msra.mxu0 0.0
        %4284 = vmatprep.subr.mxu0 0.0
        %4285 = vmatpush1.msra.mxu0 0.0
        %4286 = vmatprep.subr.mxu0 0.0
        %4287 = vmatpush1.msra.mxu0 0.0
        %4288 = vmatprep.subr.mxu0 0.0
        %4289 = vmatpush1.msra.mxu0 0.0
        %4290 = vmatprep.subr.mxu0 0.0
        %4291 = vmatpush1.msra.mxu0 0.0
        %4292 = vmatprep.subr.mxu0 0.0
        %4293 = vmatpush1.msra.mxu0 0.0
        %4294 = vmatprep.subr.mxu0 0.0
        %4295 = vmatpush1.msra.mxu0 0.0
        %4296 = vmatprep.subr.mxu0 0.0
        %4297 = vmatpush1.msra.mxu0 0.0
        %4298 = vmatprep.subr.mxu0 0.0
        %4299 = vmatpush1.msra.mxu0 0.0
        %4300 = vmatprep.subr.mxu0 0.0
        %4301 = vmatpush1.msra.mxu0 0.0
        %4302 = vmatprep.subr.mxu0 0.0
        %4303 = vmatpush1.msra.mxu0 0.0
        %4304 = vmatprep.subr.mxu0 0.0
        %4305 = vmatpush1.msra.mxu0 0.0
        %4306 = vmatprep.subr.mxu0 0.0
        %4307 = vmatpush1.msra.mxu0 0.0
        %4308 = vmatprep.subr.mxu0 0.0
        %4309 = vmatpush1.msra.mxu0 0.0
        %4310 = vmatprep.subr.mxu0 0.0
        %4311 = vmatpush1.msra.mxu0 0.0
        %4312 = vmatprep.subr.mxu0 0.0
        %4313 = vmatpush1.msra.mxu0 0.0
        %4314 = vmatprep.subr.mxu0 0.0
        %4315 = vmatpush1.msra.mxu0 0.0
        %4316 = vmatprep.subr.mxu0 0.0
        %4317 = vmatpush1.msra.mxu0 0.0
        %4318 = vmatprep.subr.mxu0 0.0
        %4319 = vmatpush1.msra.mxu0 0.0
        %4320 = vmatprep.subr.mxu0 0.0
        %4321 = vmatpush1.msra.mxu0 0.0
        %4322 = vmatprep.subr.mxu0 0.0
        %4323 = vmatpush1.msra.mxu0 0.0
        %4324 = vmatprep.subr.mxu0 0.0
        %4325 = vmatpush1.msra.mxu0 0.0
        %4326 = vmatprep.subr.mxu0 0.0
        %4327 = vmatpush1.msra.mxu0 0.0
        %4328 = vmatprep.subr.mxu0 0.0
        %4329 = vmatpush1.msra.mxu0 0.0
        %4330 = vmatprep.subr.mxu0 0.0
        %4331 = vmatpush1.msra.mxu0 0.0
        %4332 = vmatprep.subr.mxu0 0.0
        %4333 = vmatpush1.msra.mxu0 0.0
        %4334 = vmatprep.mubr.f32.mxu0 0.0
        %4335 = vmatmul.mubr.f32.gmra.mrb[0].mxu0 %v3842
        %v4336 = vpop.f32.mrb[0].mxu0
        %v4337 = vadd.f32 0.0, %v4336
        %v4338 = vpop.f32.mrb[0].mxu0
        %v4339 = vadd.f32 0.0, %v4338
        %4340 = vdwg.mxu0
        %4341 = vmatprep.subr.mxu0 %v447
        %4342 = vmatpush1.msra.mxu0 %v446
        %4343 = vmatprep.subr.mxu0 %v465
        %4344 = vmatpush1.msra.mxu0 %v464
        %4345 = vmatprep.subr.mxu0 0.0
        %4346 = vmatpush1.msra.mxu0 0.0
        %4347 = vmatprep.subr.mxu0 0.0
        %4348 = vmatpush1.msra.mxu0 0.0
        %4349 = vmatprep.subr.mxu0 0.0
        %4350 = vmatpush1.msra.mxu0 0.0
        %4351 = vmatprep.subr.mxu0 0.0
        %4352 = vmatpush1.msra.mxu0 0.0
        %4353 = vmatprep.subr.mxu0 0.0
        %4354 = vmatpush1.msra.mxu0 0.0
        %4355 = vmatprep.subr.mxu0 0.0
        %4356 = vmatpush1.msra.mxu0 0.0
        %4357 = vmatprep.subr.mxu0 0.0
        %4358 = vmatpush1.msra.mxu0 0.0
        %4359 = vmatprep.subr.mxu0 0.0
        %4360 = vmatpush1.msra.mxu0 0.0
        %4361 = vmatprep.subr.mxu0 0.0
        %4362 = vmatpush1.msra.mxu0 0.0
        %4363 = vmatprep.subr.mxu0 0.0
        %4364 = vmatpush1.msra.mxu0 0.0
        %4365 = vmatprep.subr.mxu0 0.0
        %4366 = vmatpush1.msra.mxu0 0.0
        %4367 = vmatprep.subr.mxu0 0.0
        %4368 = vmatpush1.msra.mxu0 0.0
        %4369 = vmatprep.subr.mxu0 0.0
        %4370 = vmatpush1.msra.mxu0 0.0
        %4371 = vmatprep.subr.mxu0 0.0
        %4372 = vmatpush1.msra.mxu0 0.0
        %4373 = vmatprep.subr.mxu0 0.0
        %4374 = vmatpush1.msra.mxu0 0.0
        %4375 = vmatprep.subr.mxu0 0.0
        %4376 = vmatpush1.msra.mxu0 0.0
        %4377 = vmatprep.subr.mxu0 0.0
        %4378 = vmatpush1.msra.mxu0 0.0
        %4379 = vmatprep.subr.mxu0 0.0
        %4380 = vmatpush1.msra.mxu0 0.0
        %4381 = vmatprep.subr.mxu0 0.0
        %4382 = vmatpush1.msra.mxu0 0.0
        %4383 = vmatprep.subr.mxu0 0.0
        %4384 = vmatpush1.msra.mxu0 0.0
        %4385 = vmatprep.subr.mxu0 0.0
        %4386 = vmatpush1.msra.mxu0 0.0
        %4387 = vmatprep.subr.mxu0 0.0
        %4388 = vmatpush1.msra.mxu0 0.0
        %4389 = vmatprep.subr.mxu0 0.0
        %4390 = vmatpush1.msra.mxu0 0.0
        %4391 = vmatprep.subr.mxu0 0.0
        %4392 = vmatpush1.msra.mxu0 0.0
        %4393 = vmatprep.subr.mxu0 0.0
        %4394 = vmatpush1.msra.mxu0 0.0
        %4395 = vmatprep.subr.mxu0 0.0
        %4396 = vmatpush1.msra.mxu0 0.0
        %4397 = vmatprep.subr.mxu0 0.0
        %4398 = vmatpush1.msra.mxu0 0.0
        %4399 = vmatprep.subr.mxu0 0.0
        %4400 = vmatpush1.msra.mxu0 0.0
        %4401 = vmatprep.subr.mxu0 0.0
        %4402 = vmatpush1.msra.mxu0 0.0
        %4403 = vmatprep.subr.mxu0 0.0
        %4404 = vmatpush1.msra.mxu0 0.0
        %4405 = vmatprep.mubr.f32.mxu0 0.0
        %4406 = vmatmul.mubr.f32.gmra.mrb[0].mxu0 %v3842
        %v4407 = vpop.f32.mrb[0].mxu0
        %v4408 = vadd.f32 0.0, %v4407
        %v4409 = vpop.f32.mrb[0].mxu0
        %v4410 = vadd.f32 0.0, %v4409
        %4411 = vdwg.mxu0
        %4412 = vmatprep.subr.mxu0 %v449
        %4413 = vmatpush1.msra.mxu0 %v448
        %4414 = vmatprep.subr.mxu0 %v467
        %4415 = vmatpush1.msra.mxu0 %v466
        %4416 = vmatprep.subr.mxu0 0.0
        %4417 = vmatpush1.msra.mxu0 0.0
        %4418 = vmatprep.subr.mxu0 0.0
        %4419 = vmatpush1.msra.mxu0 0.0
        %4420 = vmatprep.subr.mxu0 0.0
        %4421 = vmatpush1.msra.mxu0 0.0
        %4422 = vmatprep.subr.mxu0 0.0
        %4423 = vmatpush1.msra.mxu0 0.0
        %4424 = vmatprep.subr.mxu0 0.0
        %4425 = vmatpush1.msra.mxu0 0.0
        %4426 = vmatprep.subr.mxu0 0.0
        %4427 = vmatpush1.msra.mxu0 0.0
        %4428 = vmatprep.subr.mxu0 0.0
        %4429 = vmatpush1.msra.mxu0 0.0
        %4430 = vmatprep.subr.mxu0 0.0
        %4431 = vmatpush1.msra.mxu0 0.0
        %4432 = vmatprep.subr.mxu0 0.0
        %4433 = vmatpush1.msra.mxu0 0.0
        %4434 = vmatprep.subr.mxu0 0.0
        %4435 = vmatpush1.msra.mxu0 0.0
        %4436 = vmatprep.subr.mxu0 0.0
        %4437 = vmatpush1.msra.mxu0 0.0
        %4438 = vmatprep.subr.mxu0 0.0
        %4439 = vmatpush1.msra.mxu0 0.0
        %4440 = vmatprep.subr.mxu0 0.0
        %4441 = vmatpush1.msra.mxu0 0.0
        %4442 = vmatprep.subr.mxu0 0.0
        %4443 = vmatpush1.msra.mxu0 0.0
        %4444 = vmatprep.subr.mxu0 0.0
        %4445 = vmatpush1.msra.mxu0 0.0
        %4446 = vmatprep.subr.mxu0 0.0
        %4447 = vmatpush1.msra.mxu0 0.0
        %4448 = vmatprep.subr.mxu0 0.0
        %4449 = vmatpush1.msra.mxu0 0.0
        %4450 = vmatprep.subr.mxu0 0.0
        %4451 = vmatpush1.msra.mxu0 0.0
        %4452 = vmatprep.subr.mxu0 0.0
        %4453 = vmatpush1.msra.mxu0 0.0
        %4454 = vmatprep.subr.mxu0 0.0
        %4455 = vmatpush1.msra.mxu0 0.0
        %4456 = vmatprep.subr.mxu0 0.0
        %4457 = vmatpush1.msra.mxu0 0.0
        %4458 = vmatprep.subr.mxu0 0.0
        %4459 = vmatpush1.msra.mxu0 0.0
        %4460 = vmatprep.subr.mxu0 0.0
        %4461 = vmatpush1.msra.mxu0 0.0
        %4462 = vmatprep.subr.mxu0 0.0
        %4463 = vmatpush1.msra.mxu0 0.0
        %4464 = vmatprep.subr.mxu0 0.0
        %4465 = vmatpush1.msra.mxu0 0.0
        %4466 = vmatprep.subr.mxu0 0.0
        %4467 = vmatpush1.msra.mxu0 0.0
        %4468 = vmatprep.subr.mxu0 0.0
        %4469 = vmatpush1.msra.mxu0 0.0
        %4470 = vmatprep.subr.mxu0 0.0
        %4471 = vmatpush1.msra.mxu0 0.0
        %4472 = vmatprep.subr.mxu0 0.0
        %4473 = vmatpush1.msra.mxu0 0.0
        %4474 = vmatprep.subr.mxu0 0.0
        %4475 = vmatpush1.msra.mxu0 0.0
        %4476 = vmatprep.mubr.f32.mxu0 0.0
        %4477 = vmatmul.mubr.f32.gmra.mrb[0].mxu0 %v3842
        %v4478 = vpop.f32.mrb[0].mxu0
        %v4479 = vadd.f32 0.0, %v4478
        %v4480 = vpop.f32.mrb[0].mxu0
        %v4481 = vadd.f32 0.0, %v4480
        %4482 = vdwg.mxu0
        %v4483 = vadd.f32 %v3821, %v3911
        %v4484 = vadd.f32 %v3822, %v3913
        %v4485 = vadd.f32 %v3823, %v3982
        %v4486 = vadd.f32 %v3824, %v3984
        %v4487 = vadd.f32 %v3825, %v4053
        %v4488 = vadd.f32 %v3826, %v4055
        %v4489 = vadd.f32 %v3827, %v4124
        %v4490 = vadd.f32 %v3828, %v4126
        %v4491 = vadd.f32 %v3829, %v4195
        %v4492 = vadd.f32 %v3830, %v4197
        %v4493 = vadd.f32 %v3831, %v4266
        %v4494 = vadd.f32 %v3832, %v4268
        %v4495 = vadd.f32 %v3833, %v4337
        %v4496 = vadd.f32 %v3834, %v4339
        %v4497 = vadd.f32 %v3835, %v4408
        %v4498 = vadd.f32 %v3836, %v4410
        %v4499 = vadd.f32 %v3837, %v4479
        %v4500 = vadd.f32 %v3838, %v4481
        %s4501 = scalar_lea.vmem %s4, 40
        %v4502 = vld [vmem:[%s4501] sm:$0xff]
        %v4504 = vsel %vm487, %v4502, 0
        %4506 = vmatprep.subr.mxu0 %v433
        %4507 = vmatpush1.msra.mxu0 %v432
        %4508 = vmatprep.subr.mxu0 %v451
        %4509 = vmatpush1.msra.mxu0 %v450
        %4510 = vmatprep.subr.mxu0 0.0
        %4511 = vmatpush1.msra.mxu0 0.0
        %4512 = vmatprep.subr.mxu0 0.0
        %4513 = vmatpush1.msra.mxu0 0.0
        %4514 = vmatprep.subr.mxu0 0.0
        %4515 = vmatpush1.msra.mxu0 0.0
        %4516 = vmatprep.subr.mxu0 0.0
        %4517 = vmatpush1.msra.mxu0 0.0
        %4518 = vmatprep.subr.mxu0 0.0
        %4519 = vmatpush1.msra.mxu0 0.0
        %4520 = vmatprep.subr.mxu0 0.0
        %4521 = vmatpush1.msra.mxu0 0.0
        %4522 = vmatprep.subr.mxu0 0.0
        %4523 = vmatpush1.msra.mxu0 0.0
        %4524 = vmatprep.subr.mxu0 0.0
        %4525 = vmatpush1.msra.mxu0 0.0
        %4526 = vmatprep.subr.mxu0 0.0
        %4527 = vmatpush1.msra.mxu0 0.0
        %4528 = vmatprep.subr.mxu0 0.0
        %4529 = vmatpush1.msra.mxu0 0.0
        %4530 = vmatprep.subr.mxu0 0.0
        %4531 = vmatpush1.msra.mxu0 0.0
        %4532 = vmatprep.subr.mxu0 0.0
        %4533 = vmatpush1.msra.mxu0 0.0
        %4534 = vmatprep.subr.mxu0 0.0
        %4535 = vmatpush1.msra.mxu0 0.0
        %4536 = vmatprep.subr.mxu0 0.0
        %4537 = vmatpush1.msra.mxu0 0.0
        %4538 = vmatprep.subr.mxu0 0.0
        %4539 = vmatpush1.msra.mxu0 0.0
        %4540 = vmatprep.subr.mxu0 0.0
        %4541 = vmatpush1.msra.mxu0 0.0
        %4542 = vmatprep.subr.mxu0 0.0
        %4543 = vmatpush1.msra.mxu0 0.0
        %4544 = vmatprep.subr.mxu0 0.0
        %4545 = vmatpush1.msra.mxu0 0.0
        %4546 = vmatprep.subr.mxu0 0.0
        %4547 = vmatpush1.msra.mxu0 0.0
        %4548 = vmatprep.subr.mxu0 0.0
        %4549 = vmatpush1.msra.mxu0 0.0
        %4550 = vmatprep.subr.mxu0 0.0
        %4551 = vmatpush1.msra.mxu0 0.0
        %4552 = vmatprep.subr.mxu0 0.0
        %4553 = vmatpush1.msra.mxu0 0.0
        %4554 = vmatprep.subr.mxu0 0.0
        %4555 = vmatpush1.msra.mxu0 0.0
        %4556 = vmatprep.subr.mxu0 0.0
        %4557 = vmatpush1.msra.mxu0 0.0
        %4558 = vmatprep.subr.mxu0 0.0
        %4559 = vmatpush1.msra.mxu0 0.0
        %4560 = vmatprep.subr.mxu0 0.0
        %4561 = vmatpush1.msra.mxu0 0.0
        %4562 = vmatprep.subr.mxu0 0.0
        %4563 = vmatpush1.msra.mxu0 0.0
        %4564 = vmatprep.subr.mxu0 0.0
        %4565 = vmatpush1.msra.mxu0 0.0
        %4566 = vmatprep.subr.mxu0 0.0
        %4567 = vmatpush1.msra.mxu0 0.0
        %4568 = vmatprep.subr.mxu0 0.0
        %4569 = vmatpush1.msra.mxu0 0.0
        %4570 = vmatprep.mubr.f32.mxu0 0.0
        %4571 = vmatmul.mubr.f32.gmra.mrb[0].mxu0 %v4504
        %v4572 = vpop.f32.mrb[0].mxu0
        %v4573 = vadd.f32 0.0, %v4572
        %v4574 = vpop.f32.mrb[0].mxu0
        %v4575 = vadd.f32 0.0, %v4574
        %4576 = vdwg.mxu0
        %4577 = vmatprep.subr.mxu0 %v435
        %4578 = vmatpush1.msra.mxu0 %v434
        %4579 = vmatprep.subr.mxu0 %v453
        %4580 = vmatpush1.msra.mxu0 %v452
        %4581 = vmatprep.subr.mxu0 0.0
        %4582 = vmatpush1.msra.mxu0 0.0
        %4583 = vmatprep.subr.mxu0 0.0
        %4584 = vmatpush1.msra.mxu0 0.0
        %4585 = vmatprep.subr.mxu0 0.0
        %4586 = vmatpush1.msra.mxu0 0.0
        %4587 = vmatprep.subr.mxu0 0.0
        %4588 = vmatpush1.msra.mxu0 0.0
        %4589 = vmatprep.subr.mxu0 0.0
        %4590 = vmatpush1.msra.mxu0 0.0
        %4591 = vmatprep.subr.mxu0 0.0
        %4592 = vmatpush1.msra.mxu0 0.0
        %4593 = vmatprep.subr.mxu0 0.0
        %4594 = vmatpush1.msra.mxu0 0.0
        %4595 = vmatprep.subr.mxu0 0.0
        %4596 = vmatpush1.msra.mxu0 0.0
        %4597 = vmatprep.subr.mxu0 0.0
        %4598 = vmatpush1.msra.mxu0 0.0
        %4599 = vmatprep.subr.mxu0 0.0
        %4600 = vmatpush1.msra.mxu0 0.0
        %4601 = vmatprep.subr.mxu0 0.0
        %4602 = vmatpush1.msra.mxu0 0.0
        %4603 = vmatprep.subr.mxu0 0.0
        %4604 = vmatpush1.msra.mxu0 0.0
        %4605 = vmatprep.subr.mxu0 0.0
        %4606 = vmatpush1.msra.mxu0 0.0
        %4607 = vmatprep.subr.mxu0 0.0
        %4608 = vmatpush1.msra.mxu0 0.0
        %4609 = vmatprep.subr.mxu0 0.0
        %4610 = vmatpush1.msra.mxu0 0.0
        %4611 = vmatprep.subr.mxu0 0.0
        %4612 = vmatpush1.msra.mxu0 0.0
        %4613 = vmatprep.subr.mxu0 0.0
        %4614 = vmatpush1.msra.mxu0 0.0
        %4615 = vmatprep.subr.mxu0 0.0
        %4616 = vmatpush1.msra.mxu0 0.0
        %4617 = vmatprep.subr.mxu0 0.0
        %4618 = vmatpush1.msra.mxu0 0.0
        %4619 = vmatprep.subr.mxu0 0.0
        %4620 = vmatpush1.msra.mxu0 0.0
        %4621 = vmatprep.subr.mxu0 0.0
        %4622 = vmatpush1.msra.mxu0 0.0
        %4623 = vmatprep.subr.mxu0 0.0
        %4624 = vmatpush1.msra.mxu0 0.0
        %4625 = vmatprep.subr.mxu0 0.0
        %4626 = vmatpush1.msra.mxu0 0.0
        %4627 = vmatprep.subr.mxu0 0.0
        %4628 = vmatpush1.msra.mxu0 0.0
        %4629 = vmatprep.subr.mxu0 0.0
        %4630 = vmatpush1.msra.mxu0 0.0
        %4631 = vmatprep.subr.mxu0 0.0
        %4632 = vmatpush1.msra.mxu0 0.0
        %4633 = vmatprep.subr.mxu0 0.0
        %4634 = vmatpush1.msra.mxu0 0.0
        %4635 = vmatprep.subr.mxu0 0.0
        %4636 = vmatpush1.msra.mxu0 0.0
        %4637 = vmatprep.subr.mxu0 0.0
        %4638 = vmatpush1.msra.mxu0 0.0
        %4639 = vmatprep.subr.mxu0 0.0
        %4640 = vmatpush1.msra.mxu0 0.0
        %4641 = vmatprep.mubr.f32.mxu0 0.0
        %4642 = vmatmul.mubr.f32.gmra.mrb[0].mxu0 %v4504
        %v4643 = vpop.f32.mrb[0].mxu0
        %v4644 = vadd.f32 0.0, %v4643
        %v4645 = vpop.f32.mrb[0].mxu0
        %v4646 = vadd.f32 0.0, %v4645
        %4647 = vdwg.mxu0
        %4648 = vmatprep.subr.mxu0 %v437
        %4649 = vmatpush1.msra.mxu0 %v436
        %4650 = vmatprep.subr.mxu0 %v455
        %4651 = vmatpush1.msra.mxu0 %v454
        %4652 = vmatprep.subr.mxu0 0.0
        %4653 = vmatpush1.msra.mxu0 0.0
        %4654 = vmatprep.subr.mxu0 0.0
        %4655 = vmatpush1.msra.mxu0 0.0
        %4656 = vmatprep.subr.mxu0 0.0
        %4657 = vmatpush1.msra.mxu0 0.0
        %4658 = vmatprep.subr.mxu0 0.0
        %4659 = vmatpush1.msra.mxu0 0.0
        %4660 = vmatprep.subr.mxu0 0.0
        %4661 = vmatpush1.msra.mxu0 0.0
        %4662 = vmatprep.subr.mxu0 0.0
        %4663 = vmatpush1.msra.mxu0 0.0
        %4664 = vmatprep.subr.mxu0 0.0
        %4665 = vmatpush1.msra.mxu0 0.0
        %4666 = vmatprep.subr.mxu0 0.0
        %4667 = vmatpush1.msra.mxu0 0.0
        %4668 = vmatprep.subr.mxu0 0.0
        %4669 = vmatpush1.msra.mxu0 0.0
        %4670 = vmatprep.subr.mxu0 0.0
        %4671 = vmatpush1.msra.mxu0 0.0
        %4672 = vmatprep.subr.mxu0 0.0
        %4673 = vmatpush1.msra.mxu0 0.0
        %4674 = vmatprep.subr.mxu0 0.0
        %4675 = vmatpush1.msra.mxu0 0.0
        %4676 = vmatprep.subr.mxu0 0.0
        %4677 = vmatpush1.msra.mxu0 0.0
        %4678 = vmatprep.subr.mxu0 0.0
        %4679 = vmatpush1.msra.mxu0 0.0
        %4680 = vmatprep.subr.mxu0 0.0
        %4681 = vmatpush1.msra.mxu0 0.0
        %4682 = vmatprep.subr.mxu0 0.0
        %4683 = vmatpush1.msra.mxu0 0.0
        %4684 = vmatprep.subr.mxu0 0.0
        %4685 = vmatpush1.msra.mxu0 0.0
        %4686 = vmatprep.subr.mxu0 0.0
        %4687 = vmatpush1.msra.mxu0 0.0
        %4688 = vmatprep.subr.mxu0 0.0
        %4689 = vmatpush1.msra.mxu0 0.0
        %4690 = vmatprep.subr.mxu0 0.0
        %4691 = vmatpush1.msra.mxu0 0.0
        %4692 = vmatprep.subr.mxu0 0.0
        %4693 = vmatpush1.msra.mxu0 0.0
        %4694 = vmatprep.subr.mxu0 0.0
        %4695 = vmatpush1.msra.mxu0 0.0
        %4696 = vmatprep.subr.mxu0 0.0
        %4697 = vmatpush1.msra.mxu0 0.0
        %4698 = vmatprep.subr.mxu0 0.0
        %4699 = vmatpush1.msra.mxu0 0.0
        %4700 = vmatprep.subr.mxu0 0.0
        %4701 = vmatpush1.msra.mxu0 0.0
        %4702 = vmatprep.subr.mxu0 0.0
        %4703 = vmatpush1.msra.mxu0 0.0
        %4704 = vmatprep.subr.mxu0 0.0
        %4705 = vmatpush1.msra.mxu0 0.0
        %4706 = vmatprep.subr.mxu0 0.0
        %4707 = vmatpush1.msra.mxu0 0.0
        %4708 = vmatprep.subr.mxu0 0.0
        %4709 = vmatpush1.msra.mxu0 0.0
        %4710 = vmatprep.subr.mxu0 0.0
        %4711 = vmatpush1.msra.mxu0 0.0
        %4712 = vmatprep.mubr.f32.mxu0 0.0
        %4713 = vmatmul.mubr.f32.gmra.mrb[0].mxu0 %v4504
        %v4714 = vpop.f32.mrb[0].mxu0
        %v4715 = vadd.f32 0.0, %v4714
        %v4716 = vpop.f32.mrb[0].mxu0
        %v4717 = vadd.f32 0.0, %v4716
        %4718 = vdwg.mxu0
        %4719 = vmatprep.subr.mxu0 %v439
        %4720 = vmatpush1.msra.mxu0 %v438
        %4721 = vmatprep.subr.mxu0 %v457
        %4722 = vmatpush1.msra.mxu0 %v456
        %4723 = vmatprep.subr.mxu0 0.0
        %4724 = vmatpush1.msra.mxu0 0.0
        %4725 = vmatprep.subr.mxu0 0.0
        %4726 = vmatpush1.msra.mxu0 0.0
        %4727 = vmatprep.subr.mxu0 0.0
        %4728 = vmatpush1.msra.mxu0 0.0
        %4729 = vmatprep.subr.mxu0 0.0
        %4730 = vmatpush1.msra.mxu0 0.0
        %4731 = vmatprep.subr.mxu0 0.0
        %4732 = vmatpush1.msra.mxu0 0.0
        %4733 = vmatprep.subr.mxu0 0.0
        %4734 = vmatpush1.msra.mxu0 0.0
        %4735 = vmatprep.subr.mxu0 0.0
        %4736 = vmatpush1.msra.mxu0 0.0
        %4737 = vmatprep.subr.mxu0 0.0
        %4738 = vmatpush1.msra.mxu0 0.0
        %4739 = vmatprep.subr.mxu0 0.0
        %4740 = vmatpush1.msra.mxu0 0.0
        %4741 = vmatprep.subr.mxu0 0.0
        %4742 = vmatpush1.msra.mxu0 0.0
        %4743 = vmatprep.subr.mxu0 0.0
        %4744 = vmatpush1.msra.mxu0 0.0
        %4745 = vmatprep.subr.mxu0 0.0
        %4746 = vmatpush1.msra.mxu0 0.0
        %4747 = vmatprep.subr.mxu0 0.0
        %4748 = vmatpush1.msra.mxu0 0.0
        %4749 = vmatprep.subr.mxu0 0.0
        %4750 = vmatpush1.msra.mxu0 0.0
        %4751 = vmatprep.subr.mxu0 0.0
        %4752 = vmatpush1.msra.mxu0 0.0
        %4753 = vmatprep.subr.mxu0 0.0
        %4754 = vmatpush1.msra.mxu0 0.0
        %4755 = vmatprep.subr.mxu0 0.0
        %4756 = vmatpush1.msra.mxu0 0.0
        %4757 = vmatprep.subr.mxu0 0.0
        %4758 = vmatpush1.msra.mxu0 0.0
        %4759 = vmatprep.subr.mxu0 0.0
        %4760 = vmatpush1.msra.mxu0 0.0
        %4761 = vmatprep.subr.mxu0 0.0
        %4762 = vmatpush1.msra.mxu0 0.0
        %4763 = vmatprep.subr.mxu0 0.0
        %4764 = vmatpush1.msra.mxu0 0.0
        %4765 = vmatprep.subr.mxu0 0.0
        %4766 = vmatpush1.msra.mxu0 0.0
        %4767 = vmatprep.subr.mxu0 0.0
        %4768 = vmatpush1.msra.mxu0 0.0
        %4769 = vmatprep.subr.mxu0 0.0
        %4770 = vmatpush1.msra.mxu0 0.0
        %4771 = vmatprep.subr.mxu0 0.0
        %4772 = vmatpush1.msra.mxu0 0.0
        %4773 = vmatprep.subr.mxu0 0.0
        %4774 = vmatpush1.msra.mxu0 0.0
        %4775 = vmatprep.subr.mxu0 0.0
        %4776 = vmatpush1.msra.mxu0 0.0
        %4777 = vmatprep.subr.mxu0 0.0
        %4778 = vmatpush1.msra.mxu0 0.0
        %4779 = vmatprep.subr.mxu0 0.0
        %4780 = vmatpush1.msra.mxu0 0.0
        %4781 = vmatprep.subr.mxu0 0.0
        %4782 = vmatpush1.msra.mxu0 0.0
        %4783 = vmatprep.mubr.f32.mxu0 0.0
        %4784 = vmatmul.mubr.f32.gmra.mrb[0].mxu0 %v4504
        %v4785 = vpop.f32.mrb[0].mxu0
        %v4786 = vadd.f32 0.0, %v4785
        %v4787 = vpop.f32.mrb[0].mxu0
        %v4788 = vadd.f32 0.0, %v4787
        %4789 = vdwg.mxu0
        %4790 = vmatprep.subr.mxu0 %v441
        %4791 = vmatpush1.msra.mxu0 %v440
        %4792 = vmatprep.subr.mxu0 %v459
        %4793 = vmatpush1.msra.mxu0 %v458
        %4794 = vmatprep.subr.mxu0 0.0
        %4795 = vmatpush1.msra.mxu0 0.0
        %4796 = vmatprep.subr.mxu0 0.0
        %4797 = vmatpush1.msra.mxu0 0.0
        %4798 = vmatprep.subr.mxu0 0.0
        %4799 = vmatpush1.msra.mxu0 0.0
        %4800 = vmatprep.subr.mxu0 0.0
        %4801 = vmatpush1.msra.mxu0 0.0
        %4802 = vmatprep.subr.mxu0 0.0
        %4803 = vmatpush1.msra.mxu0 0.0
        %4804 = vmatprep.subr.mxu0 0.0
        %4805 = vmatpush1.msra.mxu0 0.0
        %4806 = vmatprep.subr.mxu0 0.0
        %4807 = vmatpush1.msra.mxu0 0.0
        %4808 = vmatprep.subr.mxu0 0.0
        %4809 = vmatpush1.msra.mxu0 0.0
        %4810 = vmatprep.subr.mxu0 0.0
        %4811 = vmatpush1.msra.mxu0 0.0
        %4812 = vmatprep.subr.mxu0 0.0
        %4813 = vmatpush1.msra.mxu0 0.0
        %4814 = vmatprep.subr.mxu0 0.0
        %4815 = vmatpush1.msra.mxu0 0.0
        %4816 = vmatprep.subr.mxu0 0.0
        %4817 = vmatpush1.msra.mxu0 0.0
        %4818 = vmatprep.subr.mxu0 0.0
        %4819 = vmatpush1.msra.mxu0 0.0
        %4820 = vmatprep.subr.mxu0 0.0
        %4821 = vmatpush1.msra.mxu0 0.0
        %4822 = vmatprep.subr.mxu0 0.0
        %4823 = vmatpush1.msra.mxu0 0.0
        %4824 = vmatprep.subr.mxu0 0.0
        %4825 = vmatpush1.msra.mxu0 0.0
        %4826 = vmatprep.subr.mxu0 0.0
        %4827 = vmatpush1.msra.mxu0 0.0
        %4828 = vmatprep.subr.mxu0 0.0
        %4829 = vmatpush1.msra.mxu0 0.0
        %4830 = vmatprep.subr.mxu0 0.0
        %4831 = vmatpush1.msra.mxu0 0.0
        %4832 = vmatprep.subr.mxu0 0.0
        %4833 = vmatpush1.msra.mxu0 0.0
        %4834 = vmatprep.subr.mxu0 0.0
        %4835 = vmatpush1.msra.mxu0 0.0
        %4836 = vmatprep.subr.mxu0 0.0
        %4837 = vmatpush1.msra.mxu0 0.0
        %4838 = vmatprep.subr.mxu0 0.0
        %4839 = vmatpush1.msra.mxu0 0.0
        %4840 = vmatprep.subr.mxu0 0.0
        %4841 = vmatpush1.msra.mxu0 0.0
        %4842 = vmatprep.subr.mxu0 0.0
        %4843 = vmatpush1.msra.mxu0 0.0
        %4844 = vmatprep.subr.mxu0 0.0
        %4845 = vmatpush1.msra.mxu0 0.0
        %4846 = vmatprep.subr.mxu0 0.0
        %4847 = vmatpush1.msra.mxu0 0.0
        %4848 = vmatprep.subr.mxu0 0.0
        %4849 = vmatpush1.msra.mxu0 0.0
        %4850 = vmatprep.subr.mxu0 0.0
        %4851 = vmatpush1.msra.mxu0 0.0
        %4852 = vmatprep.subr.mxu0 0.0
        %4853 = vmatpush1.msra.mxu0 0.0
        %4854 = vmatprep.mubr.f32.mxu0 0.0
        %4855 = vmatmul.mubr.f32.gmra.mrb[0].mxu0 %v4504
        %v4856 = vpop.f32.mrb[0].mxu0
        %v4857 = vadd.f32 0.0, %v4856
        %v4858 = vpop.f32.mrb[0].mxu0
        %v4859 = vadd.f32 0.0, %v4858
        %4860 = vdwg.mxu0
        %4861 = vmatprep.subr.mxu0 %v443
        %4862 = vmatpush1.msra.mxu0 %v442
        %4863 = vmatprep.subr.mxu0 %v461
        %4864 = vmatpush1.msra.mxu0 %v460
        %4865 = vmatprep.subr.mxu0 0.0
        %4866 = vmatpush1.msra.mxu0 0.0
        %4867 = vmatprep.subr.mxu0 0.0
        %4868 = vmatpush1.msra.mxu0 0.0
        %4869 = vmatprep.subr.mxu0 0.0
        %4870 = vmatpush1.msra.mxu0 0.0
        %4871 = vmatprep.subr.mxu0 0.0
        %4872 = vmatpush1.msra.mxu0 0.0
        %4873 = vmatprep.subr.mxu0 0.0
        %4874 = vmatpush1.msra.mxu0 0.0
        %4875 = vmatprep.subr.mxu0 0.0
        %4876 = vmatpush1.msra.mxu0 0.0
        %4877 = vmatprep.subr.mxu0 0.0
        %4878 = vmatpush1.msra.mxu0 0.0
        %4879 = vmatprep.subr.mxu0 0.0
        %4880 = vmatpush1.msra.mxu0 0.0
        %4881 = vmatprep.subr.mxu0 0.0
        %4882 = vmatpush1.msra.mxu0 0.0
        %4883 = vmatprep.subr.mxu0 0.0
        %4884 = vmatpush1.msra.mxu0 0.0
        %4885 = vmatprep.subr.mxu0 0.0
        %4886 = vmatpush1.msra.mxu0 0.0
        %4887 = vmatprep.subr.mxu0 0.0
        %4888 = vmatpush1.msra.mxu0 0.0
        %4889 = vmatprep.subr.mxu0 0.0
        %4890 = vmatpush1.msra.mxu0 0.0
        %4891 = vmatprep.subr.mxu0 0.0
        %4892 = vmatpush1.msra.mxu0 0.0
        %4893 = vmatprep.subr.mxu0 0.0
        %4894 = vmatpush1.msra.mxu0 0.0
        %4895 = vmatprep.subr.mxu0 0.0
        %4896 = vmatpush1.msra.mxu0 0.0
        %4897 = vmatprep.subr.mxu0 0.0
        %4898 = vmatpush1.msra.mxu0 0.0
        %4899 = vmatprep.subr.mxu0 0.0
        %4900 = vmatpush1.msra.mxu0 0.0
        %4901 = vmatprep.subr.mxu0 0.0
        %4902 = vmatpush1.msra.mxu0 0.0
        %4903 = vmatprep.subr.mxu0 0.0
        %4904 = vmatpush1.msra.mxu0 0.0
        %4905 = vmatprep.subr.mxu0 0.0
        %4906 = vmatpush1.msra.mxu0 0.0
        %4907 = vmatprep.subr.mxu0 0.0
        %4908 = vmatpush1.msra.mxu0 0.0
        %4909 = vmatprep.subr.mxu0 0.0
        %4910 = vmatpush1.msra.mxu0 0.0
        %4911 = vmatprep.subr.mxu0 0.0
        %4912 = vmatpush1.msra.mxu0 0.0
        %4913 = vmatprep.subr.mxu0 0.0
        %4914 = vmatpush1.msra.mxu0 0.0
        %4915 = vmatprep.subr.mxu0 0.0
        %4916 = vmatpush1.msra.mxu0 0.0
        %4917 = vmatprep.subr.mxu0 0.0
        %4918 = vmatpush1.msra.mxu0 0.0
        %4919 = vmatprep.subr.mxu0 0.0
        %4920 = vmatpush1.msra.mxu0 0.0
        %4921 = vmatprep.subr.mxu0 0.0
        %4922 = vmatpush1.msra.mxu0 0.0
        %4923 = vmatprep.subr.mxu0 0.0
        %4924 = vmatpush1.msra.mxu0 0.0
        %4925 = vmatprep.mubr.f32.mxu0 0.0
        %4926 = vmatmul.mubr.f32.gmra.mrb[0].mxu0 %v4504
        %v4927 = vpop.f32.mrb[0].mxu0
        %v4928 = vadd.f32 0.0, %v4927
        %v4929 = vpop.f32.mrb[0].mxu0
        %v4930 = vadd.f32 0.0, %v4929
        %4931 = vdwg.mxu0
        %4932 = vmatprep.subr.mxu0 %v445
        %4933 = vmatpush1.msra.mxu0 %v444
        %4934 = vmatprep.subr.mxu0 %v463
        %4935 = vmatpush1.msra.mxu0 %v462
        %4936 = vmatprep.subr.mxu0 0.0
        %4937 = vmatpush1.msra.mxu0 0.0
        %4938 = vmatprep.subr.mxu0 0.0
        %4939 = vmatpush1.msra.mxu0 0.0
        %4940 = vmatprep.subr.mxu0 0.0
        %4941 = vmatpush1.msra.mxu0 0.0
        %4942 = vmatprep.subr.mxu0 0.0
        %4943 = vmatpush1.msra.mxu0 0.0
        %4944 = vmatprep.subr.mxu0 0.0
        %4945 = vmatpush1.msra.mxu0 0.0
        %4946 = vmatprep.subr.mxu0 0.0
        %4947 = vmatpush1.msra.mxu0 0.0
        %4948 = vmatprep.subr.mxu0 0.0
        %4949 = vmatpush1.msra.mxu0 0.0
        %4950 = vmatprep.subr.mxu0 0.0
        %4951 = vmatpush1.msra.mxu0 0.0
        %4952 = vmatprep.subr.mxu0 0.0
        %4953 = vmatpush1.msra.mxu0 0.0
        %4954 = vmatprep.subr.mxu0 0.0
        %4955 = vmatpush1.msra.mxu0 0.0
        %4956 = vmatprep.subr.mxu0 0.0
        %4957 = vmatpush1.msra.mxu0 0.0
        %4958 = vmatprep.subr.mxu0 0.0
        %4959 = vmatpush1.msra.mxu0 0.0
        %4960 = vmatprep.subr.mxu0 0.0
        %4961 = vmatpush1.msra.mxu0 0.0
        %4962 = vmatprep.subr.mxu0 0.0
        %4963 = vmatpush1.msra.mxu0 0.0
        %4964 = vmatprep.subr.mxu0 0.0
        %4965 = vmatpush1.msra.mxu0 0.0
        %4966 = vmatprep.subr.mxu0 0.0
        %4967 = vmatpush1.msra.mxu0 0.0
        %4968 = vmatprep.subr.mxu0 0.0
        %4969 = vmatpush1.msra.mxu0 0.0
        %4970 = vmatprep.subr.mxu0 0.0
        %4971 = vmatpush1.msra.mxu0 0.0
        %4972 = vmatprep.subr.mxu0 0.0
        %4973 = vmatpush1.msra.mxu0 0.0
        %4974 = vmatprep.subr.mxu0 0.0
        %4975 = vmatpush1.msra.mxu0 0.0
        %4976 = vmatprep.subr.mxu0 0.0
        %4977 = vmatpush1.msra.mxu0 0.0
        %4978 = vmatprep.subr.mxu0 0.0
        %4979 = vmatpush1.msra.mxu0 0.0
        %4980 = vmatprep.subr.mxu0 0.0
        %4981 = vmatpush1.msra.mxu0 0.0
        %4982 = vmatprep.subr.mxu0 0.0
        %4983 = vmatpush1.msra.mxu0 0.0
        %4984 = vmatprep.subr.mxu0 0.0
        %4985 = vmatpush1.msra.mxu0 0.0
        %4986 = vmatprep.subr.mxu0 0.0
        %4987 = vmatpush1.msra.mxu0 0.0
        %4988 = vmatprep.subr.mxu0 0.0
        %4989 = vmatpush1.msra.mxu0 0.0
        %4990 = vmatprep.subr.mxu0 0.0
        %4991 = vmatpush1.msra.mxu0 0.0
        %4992 = vmatprep.subr.mxu0 0.0
        %4993 = vmatpush1.msra.mxu0 0.0
        %4994 = vmatprep.subr.mxu0 0.0
        %4995 = vmatpush1.msra.mxu0 0.0
        %4996 = vmatprep.mubr.f32.mxu0 0.0
        %4997 = vmatmul.mubr.f32.gmra.mrb[0].mxu0 %v4504
        %v4998 = vpop.f32.mrb[0].mxu0
        %v4999 = vadd.f32 0.0, %v4998
        %v5000 = vpop.f32.mrb[0].mxu0
        %v5001 = vadd.f32 0.0, %v5000
        %5002 = vdwg.mxu0
        %5003 = vmatprep.subr.mxu0 %v447
        %5004 = vmatpush1.msra.mxu0 %v446
        %5005 = vmatprep.subr.mxu0 %v465
        %5006 = vmatpush1.msra.mxu0 %v464
        %5007 = vmatprep.subr.mxu0 0.0
        %5008 = vmatpush1.msra.mxu0 0.0
        %5009 = vmatprep.subr.mxu0 0.0
        %5010 = vmatpush1.msra.mxu0 0.0
        %5011 = vmatprep.subr.mxu0 0.0
        %5012 = vmatpush1.msra.mxu0 0.0
        %5013 = vmatprep.subr.mxu0 0.0
        %5014 = vmatpush1.msra.mxu0 0.0
        %5015 = vmatprep.subr.mxu0 0.0
        %5016 = vmatpush1.msra.mxu0 0.0
        %5017 = vmatprep.subr.mxu0 0.0
        %5018 = vmatpush1.msra.mxu0 0.0
        %5019 = vmatprep.subr.mxu0 0.0
        %5020 = vmatpush1.msra.mxu0 0.0
        %5021 = vmatprep.subr.mxu0 0.0
        %5022 = vmatpush1.msra.mxu0 0.0
        %5023 = vmatprep.subr.mxu0 0.0
        %5024 = vmatpush1.msra.mxu0 0.0
        %5025 = vmatprep.subr.mxu0 0.0
        %5026 = vmatpush1.msra.mxu0 0.0
        %5027 = vmatprep.subr.mxu0 0.0
        %5028 = vmatpush1.msra.mxu0 0.0
        %5029 = vmatprep.subr.mxu0 0.0
        %5030 = vmatpush1.msra.mxu0 0.0
        %5031 = vmatprep.subr.mxu0 0.0
        %5032 = vmatpush1.msra.mxu0 0.0
        %5033 = vmatprep.subr.mxu0 0.0
        %5034 = vmatpush1.msra.mxu0 0.0
        %5035 = vmatprep.subr.mxu0 0.0
        %5036 = vmatpush1.msra.mxu0 0.0
        %5037 = vmatprep.subr.mxu0 0.0
        %5038 = vmatpush1.msra.mxu0 0.0
        %5039 = vmatprep.subr.mxu0 0.0
        %5040 = vmatpush1.msra.mxu0 0.0
        %5041 = vmatprep.subr.mxu0 0.0
        %5042 = vmatpush1.msra.mxu0 0.0
        %5043 = vmatprep.subr.mxu0 0.0
        %5044 = vmatpush1.msra.mxu0 0.0
        %5045 = vmatprep.subr.mxu0 0.0
        %5046 = vmatpush1.msra.mxu0 0.0
        %5047 = vmatprep.subr.mxu0 0.0
        %5048 = vmatpush1.msra.mxu0 0.0
        %5049 = vmatprep.subr.mxu0 0.0
        %5050 = vmatpush1.msra.mxu0 0.0
        %5051 = vmatprep.subr.mxu0 0.0
        %5052 = vmatpush1.msra.mxu0 0.0
        %5053 = vmatprep.subr.mxu0 0.0
        %5054 = vmatpush1.msra.mxu0 0.0
        %5055 = vmatprep.subr.mxu0 0.0
        %5056 = vmatpush1.msra.mxu0 0.0
        %5057 = vmatprep.subr.mxu0 0.0
        %5058 = vmatpush1.msra.mxu0 0.0
        %5059 = vmatprep.subr.mxu0 0.0
        %5060 = vmatpush1.msra.mxu0 0.0
        %5061 = vmatprep.subr.mxu0 0.0
        %5062 = vmatpush1.msra.mxu0 0.0
        %5063 = vmatprep.subr.mxu0 0.0
        %5064 = vmatpush1.msra.mxu0 0.0
        %5065 = vmatprep.subr.mxu0 0.0
        %5066 = vmatpush1.msra.mxu0 0.0
        %5067 = vmatprep.mubr.f32.mxu0 0.0
        %5068 = vmatmul.mubr.f32.gmra.mrb[0].mxu0 %v4504
        %v5069 = vpop.f32.mrb[0].mxu0
        %v5070 = vadd.f32 0.0, %v5069
        %v5071 = vpop.f32.mrb[0].mxu0
        %v5072 = vadd.f32 0.0, %v5071
        %5073 = vdwg.mxu0
        %5074 = vmatprep.subr.mxu0 %v449
        %5075 = vmatpush1.msra.mxu0 %v448
        %5076 = vmatprep.subr.mxu0 %v467
        %5077 = vmatpush1.msra.mxu0 %v466
        %5078 = vmatprep.subr.mxu0 0.0
        %5079 = vmatpush1.msra.mxu0 0.0
        %5080 = vmatprep.subr.mxu0 0.0
        %5081 = vmatpush1.msra.mxu0 0.0
        %5082 = vmatprep.subr.mxu0 0.0
        %5083 = vmatpush1.msra.mxu0 0.0
        %5084 = vmatprep.subr.mxu0 0.0
        %5085 = vmatpush1.msra.mxu0 0.0
        %5086 = vmatprep.subr.mxu0 0.0
        %5087 = vmatpush1.msra.mxu0 0.0
        %5088 = vmatprep.subr.mxu0 0.0
        %5089 = vmatpush1.msra.mxu0 0.0
        %5090 = vmatprep.subr.mxu0 0.0
        %5091 = vmatpush1.msra.mxu0 0.0
        %5092 = vmatprep.subr.mxu0 0.0
        %5093 = vmatpush1.msra.mxu0 0.0
        %5094 = vmatprep.subr.mxu0 0.0
        %5095 = vmatpush1.msra.mxu0 0.0
        %5096 = vmatprep.subr.mxu0 0.0
        %5097 = vmatpush1.msra.mxu0 0.0
        %5098 = vmatprep.subr.mxu0 0.0
        %5099 = vmatpush1.msra.mxu0 0.0
        %5100 = vmatprep.subr.mxu0 0.0
        %5101 = vmatpush1.msra.mxu0 0.0
        %5102 = vmatprep.subr.mxu0 0.0
        %5103 = vmatpush1.msra.mxu0 0.0
        %5104 = vmatprep.subr.mxu0 0.0
        %5105 = vmatpush1.msra.mxu0 0.0
        %5106 = vmatprep.subr.mxu0 0.0
        %5107 = vmatpush1.msra.mxu0 0.0
        %5108 = vmatprep.subr.mxu0 0.0
        %5109 = vmatpush1.msra.mxu0 0.0
        %5110 = vmatprep.subr.mxu0 0.0
        %5111 = vmatpush1.msra.mxu0 0.0
        %5112 = vmatprep.subr.mxu0 0.0
        %5113 = vmatpush1.msra.mxu0 0.0
        %5114 = vmatprep.subr.mxu0 0.0
        %5115 = vmatpush1.msra.mxu0 0.0
        %5116 = vmatprep.subr.mxu0 0.0
        %5117 = vmatpush1.msra.mxu0 0.0
        %5118 = vmatprep.subr.mxu0 0.0
        %5119 = vmatpush1.msra.mxu0 0.0
        %5120 = vmatprep.subr.mxu0 0.0
        %5121 = vmatpush1.msra.mxu0 0.0
        %5122 = vmatprep.subr.mxu0 0.0
        %5123 = vmatpush1.msra.mxu0 0.0
        %5124 = vmatprep.subr.mxu0 0.0
        %5125 = vmatpush1.msra.mxu0 0.0
        %5126 = vmatprep.subr.mxu0 0.0
        %5127 = vmatpush1.msra.mxu0 0.0
        %5128 = vmatprep.subr.mxu0 0.0
        %5129 = vmatpush1.msra.mxu0 0.0
        %5130 = vmatprep.subr.mxu0 0.0
        %5131 = vmatpush1.msra.mxu0 0.0
        %5132 = vmatprep.subr.mxu0 0.0
        %5133 = vmatpush1.msra.mxu0 0.0
        %5134 = vmatprep.subr.mxu0 0.0
        %5135 = vmatpush1.msra.mxu0 0.0
        %5136 = vmatprep.subr.mxu0 0.0
        %5137 = vmatpush1.msra.mxu0 0.0
        %5138 = vmatprep.mubr.f32.mxu0 0.0
        %5139 = vmatmul.mubr.f32.gmra.mrb[0].mxu0 %v4504
        %v5140 = vpop.f32.mrb[0].mxu0
        %v5141 = vadd.f32 0.0, %v5140
        %v5142 = vpop.f32.mrb[0].mxu0
        %v5143 = vadd.f32 0.0, %v5142
        %5144 = vdwg.mxu0
        %5145 = vrot.lane.b32.xlu0 %v4573, 124
        %v5146 = vpop.permute.xlu0 %5145
        %5147 = vrot.lane.b32.xlu0 %v4575, 124
        %v5148 = vpop.permute.xlu0 %5147
        %5149 = vrot.lane.b32.xlu0 %v4644, 124
        %v5150 = vpop.permute.xlu0 %5149
        %5151 = vrot.lane.b32.xlu0 %v4646, 124
        %v5152 = vpop.permute.xlu0 %5151
        %5153 = vrot.lane.b32.xlu0 %v4715, 124
        %v5154 = vpop.permute.xlu0 %5153
        %5155 = vrot.lane.b32.xlu0 %v4717, 124
        %v5156 = vpop.permute.xlu0 %5155
        %5157 = vrot.lane.b32.xlu0 %v4786, 124
        %v5158 = vpop.permute.xlu0 %5157
        %5159 = vrot.lane.b32.xlu0 %v4788, 124
        %v5160 = vpop.permute.xlu0 %5159
        %5161 = vrot.lane.b32.xlu0 %v4857, 124
        %v5162 = vpop.permute.xlu0 %5161
        %5163 = vrot.lane.b32.xlu0 %v4859, 124
        %v5164 = vpop.permute.xlu0 %5163
        %5165 = vrot.lane.b32.xlu0 %v4928, 124
        %v5166 = vpop.permute.xlu0 %5165
        %5167 = vrot.lane.b32.xlu0 %v4930, 124
        %v5168 = vpop.permute.xlu0 %5167
        %5169 = vrot.lane.b32.xlu0 %v4999, 124
        %v5170 = vpop.permute.xlu0 %5169
        %5171 = vrot.lane.b32.xlu0 %v5001, 124
        %v5172 = vpop.permute.xlu0 %5171
        %5173 = vrot.lane.b32.xlu0 %v5070, 124
        %v5174 = vpop.permute.xlu0 %5173
        %5175 = vrot.lane.b32.xlu0 %v5072, 124
        %v5176 = vpop.permute.xlu0 %5175
        %5177 = vrot.lane.b32.xlu0 %v5141, 124
        %v5178 = vpop.permute.xlu0 %5177
        %5179 = vrot.lane.b32.xlu0 %v5143, 124
        %v5180 = vpop.permute.xlu0 %5179
        %vm5181 = vcmp.lt.s32.totalorder %v1167, 124
        %v5182 = vsel %vm5181, %v5178, %v5180
        %v5183 = vsel %vm5181, %v5176, %v5178
        %v5184 = vsel %vm5181, %v5174, %v5176
        %v5185 = vsel %vm5181, %v5172, %v5174
        %v5186 = vsel %vm5181, %v5170, %v5172
        %v5187 = vsel %vm5181, %v5168, %v5170
        %v5188 = vsel %vm5181, %v5166, %v5168
        %v5189 = vsel %vm5181, %v5164, %v5166
        %v5190 = vsel %vm5181, %v5162, %v5164
        %v5191 = vsel %vm5181, %v5160, %v5162
        %v5192 = vsel %vm5181, %v5158, %v5160
        %v5193 = vsel %vm5181, %v5156, %v5158
        %v5194 = vsel %vm5181, %v5154, %v5156
        %v5195 = vsel %vm5181, %v5152, %v5154
        %v5196 = vsel %vm5181, %v5150, %v5152
        %v5197 = vsel %vm5181, %v5148, %v5150
        %v5198 = vsel %vm5181, %v5146, %v5148
        %v5199 = vsel %vm5181, %v5180, %v5146
        %s5200 = scalar_lea.vmem %s2, 5
        %v5201 = vld [vmem:[%s5200] ss:$8 sm:$0xf]
        %v5202 = vld [vmem:[%s5200] ss:$8 sm:$0xf0]
        %v5203 = vor.u32 %v5201, %v5202
        %s5204 = scalar_lea.vmem %s2, 69
        %v5205 = vld [vmem:[%s5204] ss:$8 sm:$0xf]
        %v5206 = vld [vmem:[%s5204] ss:$8 sm:$0xf0]
        %v5207 = vor.u32 %v5205, %v5206
        %s5208 = scalar_lea.vmem %s2, 133
        %v5209 = vld [vmem:[%s5208] ss:$8 sm:$0x3]
        %v5213 = vlaneseq
        %v5214 = vshrl.u32 %v5213, 7
        %v5215 = vsub.s32 0, %v5214
        %v5216 = vrot.slane %v5203, %v5215
        %v5217 = vlaneseq
        %v5218 = vshrl.u32 %v5217, 7
        %v5219 = vsub.s32 1, %v5218
        %v5220 = vrot.slane %v5203, %v5219
        %v5221 = vlaneseq
        %v5222 = vshrl.u32 %v5221, 7
        %v5223 = vsub.s32 2, %v5222
        %v5224 = vrot.slane %v5203, %v5223
        %v5225 = vlaneseq
        %v5226 = vshrl.u32 %v5225, 7
        %v5227 = vsub.s32 3, %v5226
        %v5228 = vrot.slane %v5203, %v5227
        %v5229 = vlaneseq
        %v5230 = vshrl.u32 %v5229, 7
        %v5231 = vsub.s32 4, %v5230
        %v5232 = vrot.slane %v5203, %v5231
        %v5233 = vlaneseq
        %v5234 = vshrl.u32 %v5233, 7
        %v5235 = vsub.s32 5, %v5234
        %v5236 = vrot.slane %v5203, %v5235
        %v5237 = vlaneseq
        %v5238 = vshrl.u32 %v5237, 7
        %v5239 = vsub.s32 6, %v5238
        %v5240 = vrot.slane %v5203, %v5239
        %v5241 = vlaneseq
        %v5242 = vshrl.u32 %v5241, 7
        %v5243 = vsub.s32 7, %v5242
        %v5244 = vrot.slane %v5203, %v5243
        %v5245 = vlaneseq
        %v5246 = vshrl.u32 %v5245, 7
        %v5247 = vsub.s32 0, %v5246
        %v5248 = vrot.slane %v5207, %v5247
        %v5249 = vlaneseq
        %v5250 = vshrl.u32 %v5249, 7
        %v5251 = vsub.s32 1, %v5250
        %v5252 = vrot.slane %v5207, %v5251
        %v5253 = vlaneseq
        %v5254 = vshrl.u32 %v5253, 7
        %v5255 = vsub.s32 2, %v5254
        %v5256 = vrot.slane %v5207, %v5255
        %v5257 = vlaneseq
        %v5258 = vshrl.u32 %v5257, 7
        %v5259 = vsub.s32 3, %v5258
        %v5260 = vrot.slane %v5207, %v5259
        %v5261 = vlaneseq
        %v5262 = vshrl.u32 %v5261, 7
        %v5263 = vsub.s32 4, %v5262
        %v5264 = vrot.slane %v5207, %v5263
        %v5265 = vlaneseq
        %v5266 = vshrl.u32 %v5265, 7
        %v5267 = vsub.s32 5, %v5266
        %v5268 = vrot.slane %v5207, %v5267
        %v5269 = vlaneseq
        %v5270 = vshrl.u32 %v5269, 7
        %v5271 = vsub.s32 6, %v5270
        %v5272 = vrot.slane %v5207, %v5271
        %v5273 = vlaneseq
        %v5274 = vshrl.u32 %v5273, 7
        %v5275 = vsub.s32 7, %v5274
        %v5276 = vrot.slane %v5207, %v5275
        %v5277 = vlaneseq
        %v5278 = vshrl.u32 %v5277, 7
        %v5279 = vsub.s32 0, %v5278
        %v5280 = vrot.slane %v5209, %v5279
        %v5281 = vlaneseq
        %v5282 = vshrl.u32 %v5281, 7
        %v5283 = vsub.s32 1, %v5282
        %v5284 = vrot.slane %v5209, %v5283
        %v5303 = vmul.f32 %v5198, %v5216
        %v5304 = vmul.f32 %v5197, %v5220
        %v5305 = vmul.f32 %v5196, %v5224
        %v5306 = vmul.f32 %v5195, %v5228
        %v5307 = vmul.f32 %v5194, %v5232
        %v5308 = vmul.f32 %v5193, %v5236
        %v5309 = vmul.f32 %v5192, %v5240
        %v5310 = vmul.f32 %v5191, %v5244
        %v5311 = vmul.f32 %v5190, %v5248
        %v5312 = vmul.f32 %v5189, %v5252
        %v5313 = vmul.f32 %v5188, %v5256
        %v5314 = vmul.f32 %v5187, %v5260
        %v5315 = vmul.f32 %v5186, %v5264
        %v5316 = vmul.f32 %v5185, %v5268
        %v5317 = vmul.f32 %v5184, %v5272
        %v5318 = vmul.f32 %v5183, %v5276
        %v5319 = vmul.f32 %v5182, %v5280
        %v5320 = vmul.f32 %v5199, %v5284
        %v5321 = vadd.f32 %v4483, %v5303
        %v5322 = vadd.f32 %v4484, %v5304
        %v5323 = vadd.f32 %v4485, %v5305
        %v5324 = vadd.f32 %v4486, %v5306
        %v5325 = vadd.f32 %v4487, %v5307
        %v5326 = vadd.f32 %v4488, %v5308
        %v5327 = vadd.f32 %v4489, %v5309
        %v5328 = vadd.f32 %v4490, %v5310
        %v5329 = vadd.f32 %v4491, %v5311
        %v5330 = vadd.f32 %v4492, %v5312
        %v5331 = vadd.f32 %v4493, %v5313
        %v5332 = vadd.f32 %v4494, %v5314
        %v5333 = vadd.f32 %v4495, %v5315
        %v5334 = vadd.f32 %v4496, %v5316
        %v5335 = vadd.f32 %v4497, %v5317
        %v5336 = vadd.f32 %v4498, %v5318
        %v5337 = vadd.f32 %v4499, %v5319
        %v5338 = vadd.f32 %v4500, %v5320
        %s5339 = scalar_lea.vmem %s4, 48
        %v5340 = vld [vmem:[%s5339] sm:$0xff]
        %v5342 = vsel %vm487, %v5340, 0
        %5344 = vmatprep.subr.mxu0 %v433
        %5345 = vmatpush1.msra.mxu0 %v432
        %5346 = vmatprep.subr.mxu0 %v451
        %5347 = vmatpush1.msra.mxu0 %v450
        %5348 = vmatprep.subr.mxu0 0.0
        %5349 = vmatpush1.msra.mxu0 0.0
        %5350 = vmatprep.subr.mxu0 0.0
        %5351 = vmatpush1.msra.mxu0 0.0
        %5352 = vmatprep.subr.mxu0 0.0
        %5353 = vmatpush1.msra.mxu0 0.0
        %5354 = vmatprep.subr.mxu0 0.0
        %5355 = vmatpush1.msra.mxu0 0.0
        %5356 = vmatprep.subr.mxu0 0.0
        %5357 = vmatpush1.msra.mxu0 0.0
        %5358 = vmatprep.subr.mxu0 0.0
        %5359 = vmatpush1.msra.mxu0 0.0
        %5360 = vmatprep.subr.mxu0 0.0
        %5361 = vmatpush1.msra.mxu0 0.0
        %5362 = vmatprep.subr.mxu0 0.0
        %5363 = vmatpush1.msra.mxu0 0.0
        %5364 = vmatprep.subr.mxu0 0.0
        %5365 = vmatpush1.msra.mxu0 0.0
        %5366 = vmatprep.subr.mxu0 0.0
        %5367 = vmatpush1.msra.mxu0 0.0
        %5368 = vmatprep.subr.mxu0 0.0
        %5369 = vmatpush1.msra.mxu0 0.0
        %5370 = vmatprep.subr.mxu0 0.0
        %5371 = vmatpush1.msra.mxu0 0.0
        %5372 = vmatprep.subr.mxu0 0.0
        %5373 = vmatpush1.msra.mxu0 0.0
        %5374 = vmatprep.subr.mxu0 0.0
        %5375 = vmatpush1.msra.mxu0 0.0
        %5376 = vmatprep.subr.mxu0 0.0
        %5377 = vmatpush1.msra.mxu0 0.0
        %5378 = vmatprep.subr.mxu0 0.0
        %5379 = vmatpush1.msra.mxu0 0.0
        %5380 = vmatprep.subr.mxu0 0.0
        %5381 = vmatpush1.msra.mxu0 0.0
        %5382 = vmatprep.subr.mxu0 0.0
        %5383 = vmatpush1.msra.mxu0 0.0
        %5384 = vmatprep.subr.mxu0 0.0
        %5385 = vmatpush1.msra.mxu0 0.0
        %5386 = vmatprep.subr.mxu0 0.0
        %5387 = vmatpush1.msra.mxu0 0.0
        %5388 = vmatprep.subr.mxu0 0.0
        %5389 = vmatpush1.msra.mxu0 0.0
        %5390 = vmatprep.subr.mxu0 0.0
        %5391 = vmatpush1.msra.mxu0 0.0
        %5392 = vmatprep.subr.mxu0 0.0
        %5393 = vmatpush1.msra.mxu0 0.0
        %5394 = vmatprep.subr.mxu0 0.0
        %5395 = vmatpush1.msra.mxu0 0.0
        %5396 = vmatprep.subr.mxu0 0.0
        %5397 = vmatpush1.msra.mxu0 0.0
        %5398 = vmatprep.subr.mxu0 0.0
        %5399 = vmatpush1.msra.mxu0 0.0
        %5400 = vmatprep.subr.mxu0 0.0
        %5401 = vmatpush1.msra.mxu0 0.0
        %5402 = vmatprep.subr.mxu0 0.0
        %5403 = vmatpush1.msra.mxu0 0.0
        %5404 = vmatprep.subr.mxu0 0.0
        %5405 = vmatpush1.msra.mxu0 0.0
        %5406 = vmatprep.subr.mxu0 0.0
        %5407 = vmatpush1.msra.mxu0 0.0
        %5408 = vmatprep.mubr.f32.mxu0 0.0
        %5409 = vmatmul.mubr.f32.gmra.mrb[0].mxu0 %v5342
        %v5410 = vpop.f32.mrb[0].mxu0
        %v5411 = vadd.f32 0.0, %v5410
        %v5412 = vpop.f32.mrb[0].mxu0
        %v5413 = vadd.f32 0.0, %v5412
        %5414 = vdwg.mxu0
        %5415 = vmatprep.subr.mxu0 %v435
        %5416 = vmatpush1.msra.mxu0 %v434
        %5417 = vmatprep.subr.mxu0 %v453
        %5418 = vmatpush1.msra.mxu0 %v452
        %5419 = vmatprep.subr.mxu0 0.0
        %5420 = vmatpush1.msra.mxu0 0.0
        %5421 = vmatprep.subr.mxu0 0.0
        %5422 = vmatpush1.msra.mxu0 0.0
        %5423 = vmatprep.subr.mxu0 0.0
        %5424 = vmatpush1.msra.mxu0 0.0
        %5425 = vmatprep.subr.mxu0 0.0
        %5426 = vmatpush1.msra.mxu0 0.0
        %5427 = vmatprep.subr.mxu0 0.0
        %5428 = vmatpush1.msra.mxu0 0.0
        %5429 = vmatprep.subr.mxu0 0.0
        %5430 = vmatpush1.msra.mxu0 0.0
        %5431 = vmatprep.subr.mxu0 0.0
        %5432 = vmatpush1.msra.mxu0 0.0
        %5433 = vmatprep.subr.mxu0 0.0
        %5434 = vmatpush1.msra.mxu0 0.0
        %5435 = vmatprep.subr.mxu0 0.0
        %5436 = vmatpush1.msra.mxu0 0.0
        %5437 = vmatprep.subr.mxu0 0.0
        %5438 = vmatpush1.msra.mxu0 0.0
        %5439 = vmatprep.subr.mxu0 0.0
        %5440 = vmatpush1.msra.mxu0 0.0
        %5441 = vmatprep.subr.mxu0 0.0
        %5442 = vmatpush1.msra.mxu0 0.0
        %5443 = vmatprep.subr.mxu0 0.0
        %5444 = vmatpush1.msra.mxu0 0.0
        %5445 = vmatprep.subr.mxu0 0.0
        %5446 = vmatpush1.msra.mxu0 0.0
        %5447 = vmatprep.subr.mxu0 0.0
        %5448 = vmatpush1.msra.mxu0 0.0
        %5449 = vmatprep.subr.mxu0 0.0
        %5450 = vmatpush1.msra.mxu0 0.0
        %5451 = vmatprep.subr.mxu0 0.0
        %5452 = vmatpush1.msra.mxu0 0.0
        %5453 = vmatprep.subr.mxu0 0.0
        %5454 = vmatpush1.msra.mxu0 0.0
        %5455 = vmatprep.subr.mxu0 0.0
        %5456 = vmatpush1.msra.mxu0 0.0
        %5457 = vmatprep.subr.mxu0 0.0
        %5458 = vmatpush1.msra.mxu0 0.0
        %5459 = vmatprep.subr.mxu0 0.0
        %5460 = vmatpush1.msra.mxu0 0.0
        %5461 = vmatprep.subr.mxu0 0.0
        %5462 = vmatpush1.msra.mxu0 0.0
        %5463 = vmatprep.subr.mxu0 0.0
        %5464 = vmatpush1.msra.mxu0 0.0
        %5465 = vmatprep.subr.mxu0 0.0
        %5466 = vmatpush1.msra.mxu0 0.0
        %5467 = vmatprep.subr.mxu0 0.0
        %5468 = vmatpush1.msra.mxu0 0.0
        %5469 = vmatprep.subr.mxu0 0.0
        %5470 = vmatpush1.msra.mxu0 0.0
        %5471 = vmatprep.subr.mxu0 0.0
        %5472 = vmatpush1.msra.mxu0 0.0
        %5473 = vmatprep.subr.mxu0 0.0
        %5474 = vmatpush1.msra.mxu0 0.0
        %5475 = vmatprep.subr.mxu0 0.0
        %5476 = vmatpush1.msra.mxu0 0.0
        %5477 = vmatprep.subr.mxu0 0.0
        %5478 = vmatpush1.msra.mxu0 0.0
        %5479 = vmatprep.mubr.f32.mxu0 0.0
        %5480 = vmatmul.mubr.f32.gmra.mrb[0].mxu0 %v5342
        %v5481 = vpop.f32.mrb[0].mxu0
        %v5482 = vadd.f32 0.0, %v5481
        %v5483 = vpop.f32.mrb[0].mxu0
        %v5484 = vadd.f32 0.0, %v5483
        %5485 = vdwg.mxu0
        %5486 = vmatprep.subr.mxu0 %v437
        %5487 = vmatpush1.msra.mxu0 %v436
        %5488 = vmatprep.subr.mxu0 %v455
        %5489 = vmatpush1.msra.mxu0 %v454
        %5490 = vmatprep.subr.mxu0 0.0
        %5491 = vmatpush1.msra.mxu0 0.0
        %5492 = vmatprep.subr.mxu0 0.0
        %5493 = vmatpush1.msra.mxu0 0.0
        %5494 = vmatprep.subr.mxu0 0.0
        %5495 = vmatpush1.msra.mxu0 0.0
        %5496 = vmatprep.subr.mxu0 0.0
        %5497 = vmatpush1.msra.mxu0 0.0
        %5498 = vmatprep.subr.mxu0 0.0
        %5499 = vmatpush1.msra.mxu0 0.0
        %5500 = vmatprep.subr.mxu0 0.0
        %5501 = vmatpush1.msra.mxu0 0.0
        %5502 = vmatprep.subr.mxu0 0.0
        %5503 = vmatpush1.msra.mxu0 0.0
        %5504 = vmatprep.subr.mxu0 0.0
        %5505 = vmatpush1.msra.mxu0 0.0
        %5506 = vmatprep.subr.mxu0 0.0
        %5507 = vmatpush1.msra.mxu0 0.0
        %5508 = vmatprep.subr.mxu0 0.0
        %5509 = vmatpush1.msra.mxu0 0.0
        %5510 = vmatprep.subr.mxu0 0.0
        %5511 = vmatpush1.msra.mxu0 0.0
        %5512 = vmatprep.subr.mxu0 0.0
        %5513 = vmatpush1.msra.mxu0 0.0
        %5514 = vmatprep.subr.mxu0 0.0
        %5515 = vmatpush1.msra.mxu0 0.0
        %5516 = vmatprep.subr.mxu0 0.0
        %5517 = vmatpush1.msra.mxu0 0.0
        %5518 = vmatprep.subr.mxu0 0.0
        %5519 = vmatpush1.msra.mxu0 0.0
        %5520 = vmatprep.subr.mxu0 0.0
        %5521 = vmatpush1.msra.mxu0 0.0
        %5522 = vmatprep.subr.mxu0 0.0
        %5523 = vmatpush1.msra.mxu0 0.0
        %5524 = vmatprep.subr.mxu0 0.0
        %5525 = vmatpush1.msra.mxu0 0.0
        %5526 = vmatprep.subr.mxu0 0.0
        %5527 = vmatpush1.msra.mxu0 0.0
        %5528 = vmatprep.subr.mxu0 0.0
        %5529 = vmatpush1.msra.mxu0 0.0
        %5530 = vmatprep.subr.mxu0 0.0
        %5531 = vmatpush1.msra.mxu0 0.0
        %5532 = vmatprep.subr.mxu0 0.0
        %5533 = vmatpush1.msra.mxu0 0.0
        %5534 = vmatprep.subr.mxu0 0.0
        %5535 = vmatpush1.msra.mxu0 0.0
        %5536 = vmatprep.subr.mxu0 0.0
        %5537 = vmatpush1.msra.mxu0 0.0
        %5538 = vmatprep.subr.mxu0 0.0
        %5539 = vmatpush1.msra.mxu0 0.0
        %5540 = vmatprep.subr.mxu0 0.0
        %5541 = vmatpush1.msra.mxu0 0.0
        %5542 = vmatprep.subr.mxu0 0.0
        %5543 = vmatpush1.msra.mxu0 0.0
        %5544 = vmatprep.subr.mxu0 0.0
        %5545 = vmatpush1.msra.mxu0 0.0
        %5546 = vmatprep.subr.mxu0 0.0
        %5547 = vmatpush1.msra.mxu0 0.0
        %5548 = vmatprep.subr.mxu0 0.0
        %5549 = vmatpush1.msra.mxu0 0.0
        %5550 = vmatprep.mubr.f32.mxu0 0.0
        %5551 = vmatmul.mubr.f32.gmra.mrb[0].mxu0 %v5342
        %v5552 = vpop.f32.mrb[0].mxu0
        %v5553 = vadd.f32 0.0, %v5552
        %v5554 = vpop.f32.mrb[0].mxu0
        %v5555 = vadd.f32 0.0, %v5554
        %5556 = vdwg.mxu0
        %5557 = vmatprep.subr.mxu0 %v439
        %5558 = vmatpush1.msra.mxu0 %v438
        %5559 = vmatprep.subr.mxu0 %v457
        %5560 = vmatpush1.msra.mxu0 %v456
        %5561 = vmatprep.subr.mxu0 0.0
        %5562 = vmatpush1.msra.mxu0 0.0
        %5563 = vmatprep.subr.mxu0 0.0
        %5564 = vmatpush1.msra.mxu0 0.0
        %5565 = vmatprep.subr.mxu0 0.0
        %5566 = vmatpush1.msra.mxu0 0.0
        %5567 = vmatprep.subr.mxu0 0.0
        %5568 = vmatpush1.msra.mxu0 0.0
        %5569 = vmatprep.subr.mxu0 0.0
        %5570 = vmatpush1.msra.mxu0 0.0
        %5571 = vmatprep.subr.mxu0 0.0
        %5572 = vmatpush1.msra.mxu0 0.0
        %5573 = vmatprep.subr.mxu0 0.0
        %5574 = vmatpush1.msra.mxu0 0.0
        %5575 = vmatprep.subr.mxu0 0.0
        %5576 = vmatpush1.msra.mxu0 0.0
        %5577 = vmatprep.subr.mxu0 0.0
        %5578 = vmatpush1.msra.mxu0 0.0
        %5579 = vmatprep.subr.mxu0 0.0
        %5580 = vmatpush1.msra.mxu0 0.0
        %5581 = vmatprep.subr.mxu0 0.0
        %5582 = vmatpush1.msra.mxu0 0.0
        %5583 = vmatprep.subr.mxu0 0.0
        %5584 = vmatpush1.msra.mxu0 0.0
        %5585 = vmatprep.subr.mxu0 0.0
        %5586 = vmatpush1.msra.mxu0 0.0
        %5587 = vmatprep.subr.mxu0 0.0
        %5588 = vmatpush1.msra.mxu0 0.0
        %5589 = vmatprep.subr.mxu0 0.0
        %5590 = vmatpush1.msra.mxu0 0.0
        %5591 = vmatprep.subr.mxu0 0.0
        %5592 = vmatpush1.msra.mxu0 0.0
        %5593 = vmatprep.subr.mxu0 0.0
        %5594 = vmatpush1.msra.mxu0 0.0
        %5595 = vmatprep.subr.mxu0 0.0
        %5596 = vmatpush1.msra.mxu0 0.0
        %5597 = vmatprep.subr.mxu0 0.0
        %5598 = vmatpush1.msra.mxu0 0.0
        %5599 = vmatprep.subr.mxu0 0.0
        %5600 = vmatpush1.msra.mxu0 0.0
        %5601 = vmatprep.subr.mxu0 0.0
        %5602 = vmatpush1.msra.mxu0 0.0
        %5603 = vmatprep.subr.mxu0 0.0
        %5604 = vmatpush1.msra.mxu0 0.0
        %5605 = vmatprep.subr.mxu0 0.0
        %5606 = vmatpush1.msra.mxu0 0.0
        %5607 = vmatprep.subr.mxu0 0.0
        %5608 = vmatpush1.msra.mxu0 0.0
        %5609 = vmatprep.subr.mxu0 0.0
        %5610 = vmatpush1.msra.mxu0 0.0
        %5611 = vmatprep.subr.mxu0 0.0
        %5612 = vmatpush1.msra.mxu0 0.0
        %5613 = vmatprep.subr.mxu0 0.0
        %5614 = vmatpush1.msra.mxu0 0.0
        %5615 = vmatprep.subr.mxu0 0.0
        %5616 = vmatpush1.msra.mxu0 0.0
        %5617 = vmatprep.subr.mxu0 0.0
        %5618 = vmatpush1.msra.mxu0 0.0
        %5619 = vmatprep.subr.mxu0 0.0
        %5620 = vmatpush1.msra.mxu0 0.0
        %5621 = vmatprep.mubr.f32.mxu0 0.0
        %5622 = vmatmul.mubr.f32.gmra.mrb[0].mxu0 %v5342
        %v5623 = vpop.f32.mrb[0].mxu0
        %v5624 = vadd.f32 0.0, %v5623
        %v5625 = vpop.f32.mrb[0].mxu0
        %v5626 = vadd.f32 0.0, %v5625
        %5627 = vdwg.mxu0
        %5628 = vmatprep.subr.mxu0 %v441
        %5629 = vmatpush1.msra.mxu0 %v440
        %5630 = vmatprep.subr.mxu0 %v459
        %5631 = vmatpush1.msra.mxu0 %v458
        %5632 = vmatprep.subr.mxu0 0.0
        %5633 = vmatpush1.msra.mxu0 0.0
        %5634 = vmatprep.subr.mxu0 0.0
        %5635 = vmatpush1.msra.mxu0 0.0
        %5636 = vmatprep.subr.mxu0 0.0
        %5637 = vmatpush1.msra.mxu0 0.0
        %5638 = vmatprep.subr.mxu0 0.0
        %5639 = vmatpush1.msra.mxu0 0.0
        %5640 = vmatprep.subr.mxu0 0.0
        %5641 = vmatpush1.msra.mxu0 0.0
        %5642 = vmatprep.subr.mxu0 0.0
        %5643 = vmatpush1.msra.mxu0 0.0
        %5644 = vmatprep.subr.mxu0 0.0
        %5645 = vmatpush1.msra.mxu0 0.0
        %5646 = vmatprep.subr.mxu0 0.0
        %5647 = vmatpush1.msra.mxu0 0.0
        %5648 = vmatprep.subr.mxu0 0.0
        %5649 = vmatpush1.msra.mxu0 0.0
        %5650 = vmatprep.subr.mxu0 0.0
        %5651 = vmatpush1.msra.mxu0 0.0
        %5652 = vmatprep.subr.mxu0 0.0
        %5653 = vmatpush1.msra.mxu0 0.0
        %5654 = vmatprep.subr.mxu0 0.0
        %5655 = vmatpush1.msra.mxu0 0.0
        %5656 = vmatprep.subr.mxu0 0.0
        %5657 = vmatpush1.msra.mxu0 0.0
        %5658 = vmatprep.subr.mxu0 0.0
        %5659 = vmatpush1.msra.mxu0 0.0
        %5660 = vmatprep.subr.mxu0 0.0
        %5661 = vmatpush1.msra.mxu0 0.0
        %5662 = vmatprep.subr.mxu0 0.0
        %5663 = vmatpush1.msra.mxu0 0.0
        %5664 = vmatprep.subr.mxu0 0.0
        %5665 = vmatpush1.msra.mxu0 0.0
        %5666 = vmatprep.subr.mxu0 0.0
        %5667 = vmatpush1.msra.mxu0 0.0
        %5668 = vmatprep.subr.mxu0 0.0
        %5669 = vmatpush1.msra.mxu0 0.0
        %5670 = vmatprep.subr.mxu0 0.0
        %5671 = vmatpush1.msra.mxu0 0.0
        %5672 = vmatprep.subr.mxu0 0.0
        %5673 = vmatpush1.msra.mxu0 0.0
        %5674 = vmatprep.subr.mxu0 0.0
        %5675 = vmatpush1.msra.mxu0 0.0
        %5676 = vmatprep.subr.mxu0 0.0
        %5677 = vmatpush1.msra.mxu0 0.0
        %5678 = vmatprep.subr.mxu0 0.0
        %5679 = vmatpush1.msra.mxu0 0.0
        %5680 = vmatprep.subr.mxu0 0.0
        %5681 = vmatpush1.msra.mxu0 0.0
        %5682 = vmatprep.subr.mxu0 0.0
        %5683 = vmatpush1.msra.mxu0 0.0
        %5684 = vmatprep.subr.mxu0 0.0
        %5685 = vmatpush1.msra.mxu0 0.0
        %5686 = vmatprep.subr.mxu0 0.0
        %5687 = vmatpush1.msra.mxu0 0.0
        %5688 = vmatprep.subr.mxu0 0.0
        %5689 = vmatpush1.msra.mxu0 0.0
        %5690 = vmatprep.subr.mxu0 0.0
        %5691 = vmatpush1.msra.mxu0 0.0
        %5692 = vmatprep.mubr.f32.mxu0 0.0
        %5693 = vmatmul.mubr.f32.gmra.mrb[0].mxu0 %v5342
        %v5694 = vpop.f32.mrb[0].mxu0
        %v5695 = vadd.f32 0.0, %v5694
        %v5696 = vpop.f32.mrb[0].mxu0
        %v5697 = vadd.f32 0.0, %v5696
        %5698 = vdwg.mxu0
        %5699 = vmatprep.subr.mxu0 %v443
        %5700 = vmatpush1.msra.mxu0 %v442
        %5701 = vmatprep.subr.mxu0 %v461
        %5702 = vmatpush1.msra.mxu0 %v460
        %5703 = vmatprep.subr.mxu0 0.0
        %5704 = vmatpush1.msra.mxu0 0.0
        %5705 = vmatprep.subr.mxu0 0.0
        %5706 = vmatpush1.msra.mxu0 0.0
        %5707 = vmatprep.subr.mxu0 0.0
        %5708 = vmatpush1.msra.mxu0 0.0
        %5709 = vmatprep.subr.mxu0 0.0
        %5710 = vmatpush1.msra.mxu0 0.0
        %5711 = vmatprep.subr.mxu0 0.0
        %5712 = vmatpush1.msra.mxu0 0.0
        %5713 = vmatprep.subr.mxu0 0.0
        %5714 = vmatpush1.msra.mxu0 0.0
        %5715 = vmatprep.subr.mxu0 0.0
        %5716 = vmatpush1.msra.mxu0 0.0
        %5717 = vmatprep.subr.mxu0 0.0
        %5718 = vmatpush1.msra.mxu0 0.0
        %5719 = vmatprep.subr.mxu0 0.0
        %5720 = vmatpush1.msra.mxu0 0.0
        %5721 = vmatprep.subr.mxu0 0.0
        %5722 = vmatpush1.msra.mxu0 0.0
        %5723 = vmatprep.subr.mxu0 0.0
        %5724 = vmatpush1.msra.mxu0 0.0
        %5725 = vmatprep.subr.mxu0 0.0
        %5726 = vmatpush1.msra.mxu0 0.0
        %5727 = vmatprep.subr.mxu0 0.0
        %5728 = vmatpush1.msra.mxu0 0.0
        %5729 = vmatprep.subr.mxu0 0.0
        %5730 = vmatpush1.msra.mxu0 0.0
        %5731 = vmatprep.subr.mxu0 0.0
        %5732 = vmatpush1.msra.mxu0 0.0
        %5733 = vmatprep.subr.mxu0 0.0
        %5734 = vmatpush1.msra.mxu0 0.0
        %5735 = vmatprep.subr.mxu0 0.0
        %5736 = vmatpush1.msra.mxu0 0.0
        %5737 = vmatprep.subr.mxu0 0.0
        %5738 = vmatpush1.msra.mxu0 0.0
        %5739 = vmatprep.subr.mxu0 0.0
        %5740 = vmatpush1.msra.mxu0 0.0
        %5741 = vmatprep.subr.mxu0 0.0
        %5742 = vmatpush1.msra.mxu0 0.0
        %5743 = vmatprep.subr.mxu0 0.0
        %5744 = vmatpush1.msra.mxu0 0.0
        %5745 = vmatprep.subr.mxu0 0.0
        %5746 = vmatpush1.msra.mxu0 0.0
        %5747 = vmatprep.subr.mxu0 0.0
        %5748 = vmatpush1.msra.mxu0 0.0
        %5749 = vmatprep.subr.mxu0 0.0
        %5750 = vmatpush1.msra.mxu0 0.0
        %5751 = vmatprep.subr.mxu0 0.0
        %5752 = vmatpush1.msra.mxu0 0.0
        %5753 = vmatprep.subr.mxu0 0.0
        %5754 = vmatpush1.msra.mxu0 0.0
        %5755 = vmatprep.subr.mxu0 0.0
        %5756 = vmatpush1.msra.mxu0 0.0
        %5757 = vmatprep.subr.mxu0 0.0
        %5758 = vmatpush1.msra.mxu0 0.0
        %5759 = vmatprep.subr.mxu0 0.0
        %5760 = vmatpush1.msra.mxu0 0.0
        %5761 = vmatprep.subr.mxu0 0.0
        %5762 = vmatpush1.msra.mxu0 0.0
        %5763 = vmatprep.mubr.f32.mxu0 0.0
        %5764 = vmatmul.mubr.f32.gmra.mrb[0].mxu0 %v5342
        %v5765 = vpop.f32.mrb[0].mxu0
        %v5766 = vadd.f32 0.0, %v5765
        %v5767 = vpop.f32.mrb[0].mxu0
        %v5768 = vadd.f32 0.0, %v5767
        %5769 = vdwg.mxu0
        %5770 = vmatprep.subr.mxu0 %v445
        %5771 = vmatpush1.msra.mxu0 %v444
        %5772 = vmatprep.subr.mxu0 %v463
        %5773 = vmatpush1.msra.mxu0 %v462
        %5774 = vmatprep.subr.mxu0 0.0
        %5775 = vmatpush1.msra.mxu0 0.0
        %5776 = vmatprep.subr.mxu0 0.0
        %5777 = vmatpush1.msra.mxu0 0.0
        %5778 = vmatprep.subr.mxu0 0.0
        %5779 = vmatpush1.msra.mxu0 0.0
        %5780 = vmatprep.subr.mxu0 0.0
        %5781 = vmatpush1.msra.mxu0 0.0
        %5782 = vmatprep.subr.mxu0 0.0
        %5783 = vmatpush1.msra.mxu0 0.0
        %5784 = vmatprep.subr.mxu0 0.0
        %5785 = vmatpush1.msra.mxu0 0.0
        %5786 = vmatprep.subr.mxu0 0.0
        %5787 = vmatpush1.msra.mxu0 0.0
        %5788 = vmatprep.subr.mxu0 0.0
        %5789 = vmatpush1.msra.mxu0 0.0
        %5790 = vmatprep.subr.mxu0 0.0
        %5791 = vmatpush1.msra.mxu0 0.0
        %5792 = vmatprep.subr.mxu0 0.0
        %5793 = vmatpush1.msra.mxu0 0.0
        %5794 = vmatprep.subr.mxu0 0.0
        %5795 = vmatpush1.msra.mxu0 0.0
        %5796 = vmatprep.subr.mxu0 0.0
        %5797 = vmatpush1.msra.mxu0 0.0
        %5798 = vmatprep.subr.mxu0 0.0
        %5799 = vmatpush1.msra.mxu0 0.0
        %5800 = vmatprep.subr.mxu0 0.0
        %5801 = vmatpush1.msra.mxu0 0.0
        %5802 = vmatprep.subr.mxu0 0.0
        %5803 = vmatpush1.msra.mxu0 0.0
        %5804 = vmatprep.subr.mxu0 0.0
        %5805 = vmatpush1.msra.mxu0 0.0
        %5806 = vmatprep.subr.mxu0 0.0
        %5807 = vmatpush1.msra.mxu0 0.0
        %5808 = vmatprep.subr.mxu0 0.0
        %5809 = vmatpush1.msra.mxu0 0.0
        %5810 = vmatprep.subr.mxu0 0.0
        %5811 = vmatpush1.msra.mxu0 0.0
        %5812 = vmatprep.subr.mxu0 0.0
        %5813 = vmatpush1.msra.mxu0 0.0
        %5814 = vmatprep.subr.mxu0 0.0
        %5815 = vmatpush1.msra.mxu0 0.0
        %5816 = vmatprep.subr.mxu0 0.0
        %5817 = vmatpush1.msra.mxu0 0.0
        %5818 = vmatprep.subr.mxu0 0.0
        %5819 = vmatpush1.msra.mxu0 0.0
        %5820 = vmatprep.subr.mxu0 0.0
        %5821 = vmatpush1.msra.mxu0 0.0
        %5822 = vmatprep.subr.mxu0 0.0
        %5823 = vmatpush1.msra.mxu0 0.0
        %5824 = vmatprep.subr.mxu0 0.0
        %5825 = vmatpush1.msra.mxu0 0.0
        %5826 = vmatprep.subr.mxu0 0.0
        %5827 = vmatpush1.msra.mxu0 0.0
        %5828 = vmatprep.subr.mxu0 0.0
        %5829 = vmatpush1.msra.mxu0 0.0
        %5830 = vmatprep.subr.mxu0 0.0
        %5831 = vmatpush1.msra.mxu0 0.0
        %5832 = vmatprep.subr.mxu0 0.0
        %5833 = vmatpush1.msra.mxu0 0.0
        %5834 = vmatprep.mubr.f32.mxu0 0.0
        %5835 = vmatmul.mubr.f32.gmra.mrb[0].mxu0 %v5342
        %v5836 = vpop.f32.mrb[0].mxu0
        %v5837 = vadd.f32 0.0, %v5836
        %v5838 = vpop.f32.mrb[0].mxu0
        %v5839 = vadd.f32 0.0, %v5838
        %5840 = vdwg.mxu0
        %5841 = vmatprep.subr.mxu0 %v447
        %5842 = vmatpush1.msra.mxu0 %v446
        %5843 = vmatprep.subr.mxu0 %v465
        %5844 = vmatpush1.msra.mxu0 %v464
        %5845 = vmatprep.subr.mxu0 0.0
        %5846 = vmatpush1.msra.mxu0 0.0
        %5847 = vmatprep.subr.mxu0 0.0
        %5848 = vmatpush1.msra.mxu0 0.0
        %5849 = vmatprep.subr.mxu0 0.0
        %5850 = vmatpush1.msra.mxu0 0.0
        %5851 = vmatprep.subr.mxu0 0.0
        %5852 = vmatpush1.msra.mxu0 0.0
        %5853 = vmatprep.subr.mxu0 0.0
        %5854 = vmatpush1.msra.mxu0 0.0
        %5855 = vmatprep.subr.mxu0 0.0
        %5856 = vmatpush1.msra.mxu0 0.0
        %5857 = vmatprep.subr.mxu0 0.0
        %5858 = vmatpush1.msra.mxu0 0.0
        %5859 = vmatprep.subr.mxu0 0.0
        %5860 = vmatpush1.msra.mxu0 0.0
        %5861 = vmatprep.subr.mxu0 0.0
        %5862 = vmatpush1.msra.mxu0 0.0
        %5863 = vmatprep.subr.mxu0 0.0
        %5864 = vmatpush1.msra.mxu0 0.0
        %5865 = vmatprep.subr.mxu0 0.0
        %5866 = vmatpush1.msra.mxu0 0.0
        %5867 = vmatprep.subr.mxu0 0.0
        %5868 = vmatpush1.msra.mxu0 0.0
        %5869 = vmatprep.subr.mxu0 0.0
        %5870 = vmatpush1.msra.mxu0 0.0
        %5871 = vmatprep.subr.mxu0 0.0
        %5872 = vmatpush1.msra.mxu0 0.0
        %5873 = vmatprep.subr.mxu0 0.0
        %5874 = vmatpush1.msra.mxu0 0.0
        %5875 = vmatprep.subr.mxu0 0.0
        %5876 = vmatpush1.msra.mxu0 0.0
        %5877 = vmatprep.subr.mxu0 0.0
        %5878 = vmatpush1.msra.mxu0 0.0
        %5879 = vmatprep.subr.mxu0 0.0
        %5880 = vmatpush1.msra.mxu0 0.0
        %5881 = vmatprep.subr.mxu0 0.0
        %5882 = vmatpush1.msra.mxu0 0.0
        %5883 = vmatprep.subr.mxu0 0.0
        %5884 = vmatpush1.msra.mxu0 0.0
        %5885 = vmatprep.subr.mxu0 0.0
        %5886 = vmatpush1.msra.mxu0 0.0
        %5887 = vmatprep.subr.mxu0 0.0
        %5888 = vmatpush1.msra.mxu0 0.0
        %5889 = vmatprep.subr.mxu0 0.0
        %5890 = vmatpush1.msra.mxu0 0.0
        %5891 = vmatprep.subr.mxu0 0.0
        %5892 = vmatpush1.msra.mxu0 0.0
        %5893 = vmatprep.subr.mxu0 0.0
        %5894 = vmatpush1.msra.mxu0 0.0
        %5895 = vmatprep.subr.mxu0 0.0
        %5896 = vmatpush1.msra.mxu0 0.0
        %5897 = vmatprep.subr.mxu0 0.0
        %5898 = vmatpush1.msra.mxu0 0.0
        %5899 = vmatprep.subr.mxu0 0.0
        %5900 = vmatpush1.msra.mxu0 0.0
        %5901 = vmatprep.subr.mxu0 0.0
        %5902 = vmatpush1.msra.mxu0 0.0
        %5903 = vmatprep.subr.mxu0 0.0
        %5904 = vmatpush1.msra.mxu0 0.0
        %5905 = vmatprep.mubr.f32.mxu0 0.0
        %5906 = vmatmul.mubr.f32.gmra.mrb[0].mxu0 %v5342
        %v5907 = vpop.f32.mrb[0].mxu0
        %v5908 = vadd.f32 0.0, %v5907
        %v5909 = vpop.f32.mrb[0].mxu0
        %v5910 = vadd.f32 0.0, %v5909
        %5911 = vdwg.mxu0
        %5912 = vmatprep.subr.mxu0 %v449
        %5913 = vmatpush1.msra.mxu0 %v448
        %5914 = vmatprep.subr.mxu0 %v467
        %5915 = vmatpush1.msra.mxu0 %v466
        %5916 = vmatprep.subr.mxu0 0.0
        %5917 = vmatpush1.msra.mxu0 0.0
        %5918 = vmatprep.subr.mxu0 0.0
        %5919 = vmatpush1.msra.mxu0 0.0
        %5920 = vmatprep.subr.mxu0 0.0
        %5921 = vmatpush1.msra.mxu0 0.0
        %5922 = vmatprep.subr.mxu0 0.0
        %5923 = vmatpush1.msra.mxu0 0.0
        %5924 = vmatprep.subr.mxu0 0.0
        %5925 = vmatpush1.msra.mxu0 0.0
        %5926 = vmatprep.subr.mxu0 0.0
        %5927 = vmatpush1.msra.mxu0 0.0
        %5928 = vmatprep.subr.mxu0 0.0
        %5929 = vmatpush1.msra.mxu0 0.0
        %5930 = vmatprep.subr.mxu0 0.0
        %5931 = vmatpush1.msra.mxu0 0.0
        %5932 = vmatprep.subr.mxu0 0.0
        %5933 = vmatpush1.msra.mxu0 0.0
        %5934 = vmatprep.subr.mxu0 0.0
        %5935 = vmatpush1.msra.mxu0 0.0
        %5936 = vmatprep.subr.mxu0 0.0
        %5937 = vmatpush1.msra.mxu0 0.0
        %5938 = vmatprep.subr.mxu0 0.0
        %5939 = vmatpush1.msra.mxu0 0.0
        %5940 = vmatprep.subr.mxu0 0.0
        %5941 = vmatpush1.msra.mxu0 0.0
        %5942 = vmatprep.subr.mxu0 0.0
        %5943 = vmatpush1.msra.mxu0 0.0
        %5944 = vmatprep.subr.mxu0 0.0
        %5945 = vmatpush1.msra.mxu0 0.0
        %5946 = vmatprep.subr.mxu0 0.0
        %5947 = vmatpush1.msra.mxu0 0.0
        %5948 = vmatprep.subr.mxu0 0.0
        %5949 = vmatpush1.msra.mxu0 0.0
        %5950 = vmatprep.subr.mxu0 0.0
        %5951 = vmatpush1.msra.mxu0 0.0
        %5952 = vmatprep.subr.mxu0 0.0
        %5953 = vmatpush1.msra.mxu0 0.0
        %5954 = vmatprep.subr.mxu0 0.0
        %5955 = vmatpush1.msra.mxu0 0.0
        %5956 = vmatprep.subr.mxu0 0.0
        %5957 = vmatpush1.msra.mxu0 0.0
        %5958 = vmatprep.subr.mxu0 0.0
        %5959 = vmatpush1.msra.mxu0 0.0
        %5960 = vmatprep.subr.mxu0 0.0
        %5961 = vmatpush1.msra.mxu0 0.0
        %5962 = vmatprep.subr.mxu0 0.0
        %5963 = vmatpush1.msra.mxu0 0.0
        %5964 = vmatprep.subr.mxu0 0.0
        %5965 = vmatpush1.msra.mxu0 0.0
        %5966 = vmatprep.subr.mxu0 0.0
        %5967 = vmatpush1.msra.mxu0 0.0
        %5968 = vmatprep.subr.mxu0 0.0
        %5969 = vmatpush1.msra.mxu0 0.0
        %5970 = vmatprep.subr.mxu0 0.0
        %5971 = vmatpush1.msra.mxu0 0.0
        %5972 = vmatprep.subr.mxu0 0.0
        %5973 = vmatpush1.msra.mxu0 0.0
        %5974 = vmatprep.subr.mxu0 0.0
        %5975 = vmatpush1.msra.mxu0 0.0
        %5976 = vmatprep.mubr.f32.mxu0 0.0
        %5977 = vmatmul.mubr.f32.gmra.mrb[0].mxu0 %v5342
        %v5978 = vpop.f32.mrb[0].mxu0
        %v5979 = vadd.f32 0.0, %v5978
        %v5980 = vpop.f32.mrb[0].mxu0
        %v5981 = vadd.f32 0.0, %v5980
        %5982 = vdwg.mxu0
        %5983 = vrot.lane.b32.xlu0 %v5411, 68
        %v5984 = vpop.permute.xlu0 %5983
        %5985 = vrot.lane.b32.xlu0 %v5413, 68
        %v5986 = vpop.permute.xlu0 %5985
        %5987 = vrot.lane.b32.xlu0 %v5482, 68
        %v5988 = vpop.permute.xlu0 %5987
        %5989 = vrot.lane.b32.xlu0 %v5484, 68
        %v5990 = vpop.permute.xlu0 %5989
        %5991 = vrot.lane.b32.xlu0 %v5553, 68
        %v5992 = vpop.permute.xlu0 %5991
        %5993 = vrot.lane.b32.xlu0 %v5555, 68
        %v5994 = vpop.permute.xlu0 %5993
        %5995 = vrot.lane.b32.xlu0 %v5624, 68
        %v5996 = vpop.permute.xlu0 %5995
        %5997 = vrot.lane.b32.xlu0 %v5626, 68
        %v5998 = vpop.permute.xlu0 %5997
        %5999 = vrot.lane.b32.xlu0 %v5695, 68
        %v6000 = vpop.permute.xlu0 %5999
        %6001 = vrot.lane.b32.xlu0 %v5697, 68
        %v6002 = vpop.permute.xlu0 %6001
        %6003 = vrot.lane.b32.xlu0 %v5766, 68
        %v6004 = vpop.permute.xlu0 %6003
        %6005 = vrot.lane.b32.xlu0 %v5768, 68
        %v6006 = vpop.permute.xlu0 %6005
        %6007 = vrot.lane.b32.xlu0 %v5837, 68
        %v6008 = vpop.permute.xlu0 %6007
        %6009 = vrot.lane.b32.xlu0 %v5839, 68
        %v6010 = vpop.permute.xlu0 %6009
        %6011 = vrot.lane.b32.xlu0 %v5908, 68
        %v6012 = vpop.permute.xlu0 %6011
        %6013 = vrot.lane.b32.xlu0 %v5910, 68
        %v6014 = vpop.permute.xlu0 %6013
        %6015 = vrot.lane.b32.xlu0 %v5979, 68
        %v6016 = vpop.permute.xlu0 %6015
        %6017 = vrot.lane.b32.xlu0 %v5981, 68
        %v6018 = vpop.permute.xlu0 %6017
        %v6019 = vsel %vm1168, %v6016, %v6018
        %v6020 = vsel %vm1168, %v6014, %v6016
        %v6021 = vsel %vm1168, %v6012, %v6014
        %v6022 = vsel %vm1168, %v6010, %v6012
        %v6023 = vsel %vm1168, %v6008, %v6010
        %v6024 = vsel %vm1168, %v6006, %v6008
        %v6025 = vsel %vm1168, %v6004, %v6006
        %v6026 = vsel %vm1168, %v6002, %v6004
        %v6027 = vsel %vm1168, %v6000, %v6002
        %v6028 = vsel %vm1168, %v5998, %v6000
        %v6029 = vsel %vm1168, %v5996, %v5998
        %v6030 = vsel %vm1168, %v5994, %v5996
        %v6031 = vsel %vm1168, %v5992, %v5994
        %v6032 = vsel %vm1168, %v5990, %v5992
        %v6033 = vsel %vm1168, %v5988, %v5990
        %v6034 = vsel %vm1168, %v5986, %v5988
        %v6035 = vsel %vm1168, %v5984, %v5986
        %v6036 = vsel %vm1168, %v6018, %v5984
        %s6037 = scalar_lea.vmem %s2, 6
        %v6038 = vld [vmem:[%s6037] ss:$8 sm:$0xf]
        %v6039 = vld [vmem:[%s6037] ss:$8 sm:$0xf0]
        %v6040 = vor.u32 %v6038, %v6039
        %s6041 = scalar_lea.vmem %s2, 70
        %v6042 = vld [vmem:[%s6041] ss:$8 sm:$0xf]
        %v6043 = vld [vmem:[%s6041] ss:$8 sm:$0xf0]
        %v6044 = vor.u32 %v6042, %v6043
        %s6045 = scalar_lea.vmem %s2, 134
        %v6046 = vld [vmem:[%s6045] ss:$8 sm:$0x3]
        %v6050 = vlaneseq
        %v6051 = vshrl.u32 %v6050, 7
        %v6052 = vsub.s32 0, %v6051
        %v6053 = vrot.slane %v6040, %v6052
        %v6054 = vlaneseq
        %v6055 = vshrl.u32 %v6054, 7
        %v6056 = vsub.s32 1, %v6055
        %v6057 = vrot.slane %v6040, %v6056
        %v6058 = vlaneseq
        %v6059 = vshrl.u32 %v6058, 7
        %v6060 = vsub.s32 2, %v6059
        %v6061 = vrot.slane %v6040, %v6060
        %v6062 = vlaneseq
        %v6063 = vshrl.u32 %v6062, 7
        %v6064 = vsub.s32 3, %v6063
        %v6065 = vrot.slane %v6040, %v6064
        %v6066 = vlaneseq
        %v6067 = vshrl.u32 %v6066, 7
        %v6068 = vsub.s32 4, %v6067
        %v6069 = vrot.slane %v6040, %v6068
        %v6070 = vlaneseq
        %v6071 = vshrl.u32 %v6070, 7
        %v6072 = vsub.s32 5, %v6071
        %v6073 = vrot.slane %v6040, %v6072
        %v6074 = vlaneseq
        %v6075 = vshrl.u32 %v6074, 7
        %v6076 = vsub.s32 6, %v6075
        %v6077 = vrot.slane %v6040, %v6076
        %v6078 = vlaneseq
        %v6079 = vshrl.u32 %v6078, 7
        %v6080 = vsub.s32 7, %v6079
        %v6081 = vrot.slane %v6040, %v6080
        %v6082 = vlaneseq
        %v6083 = vshrl.u32 %v6082, 7
        %v6084 = vsub.s32 0, %v6083
        %v6085 = vrot.slane %v6044, %v6084
        %v6086 = vlaneseq
        %v6087 = vshrl.u32 %v6086, 7
        %v6088 = vsub.s32 1, %v6087
        %v6089 = vrot.slane %v6044, %v6088
        %v6090 = vlaneseq
        %v6091 = vshrl.u32 %v6090, 7
        %v6092 = vsub.s32 2, %v6091
        %v6093 = vrot.slane %v6044, %v6092
        %v6094 = vlaneseq
        %v6095 = vshrl.u32 %v6094, 7
        %v6096 = vsub.s32 3, %v6095
        %v6097 = vrot.slane %v6044, %v6096
        %v6098 = vlaneseq
        %v6099 = vshrl.u32 %v6098, 7
        %v6100 = vsub.s32 4, %v6099
        %v6101 = vrot.slane %v6044, %v6100
        %v6102 = vlaneseq
        %v6103 = vshrl.u32 %v6102, 7
        %v6104 = vsub.s32 5, %v6103
        %v6105 = vrot.slane %v6044, %v6104
        %v6106 = vlaneseq
        %v6107 = vshrl.u32 %v6106, 7
        %v6108 = vsub.s32 6, %v6107
        %v6109 = vrot.slane %v6044, %v6108
        %v6110 = vlaneseq
        %v6111 = vshrl.u32 %v6110, 7
        %v6112 = vsub.s32 7, %v6111
        %v6113 = vrot.slane %v6044, %v6112
        %v6114 = vlaneseq
        %v6115 = vshrl.u32 %v6114, 7
        %v6116 = vsub.s32 0, %v6115
        %v6117 = vrot.slane %v6046, %v6116
        %v6118 = vlaneseq
        %v6119 = vshrl.u32 %v6118, 7
        %v6120 = vsub.s32 1, %v6119
        %v6121 = vrot.slane %v6046, %v6120
        %v6140 = vmul.f32 %v6034, %v6053
        %v6141 = vmul.f32 %v6033, %v6057
        %v6142 = vmul.f32 %v6032, %v6061
        %v6143 = vmul.f32 %v6031, %v6065
        %v6144 = vmul.f32 %v6030, %v6069
        %v6145 = vmul.f32 %v6029, %v6073
        %v6146 = vmul.f32 %v6028, %v6077
        %v6147 = vmul.f32 %v6027, %v6081
        %v6148 = vmul.f32 %v6026, %v6085
        %v6149 = vmul.f32 %v6025, %v6089
        %v6150 = vmul.f32 %v6024, %v6093
        %v6151 = vmul.f32 %v6023, %v6097
        %v6152 = vmul.f32 %v6022, %v6101
        %v6153 = vmul.f32 %v6021, %v6105
        %v6154 = vmul.f32 %v6020, %v6109
        %v6155 = vmul.f32 %v6019, %v6113
        %v6156 = vmul.f32 %v6036, %v6117
        %v6157 = vmul.f32 %v6035, %v6121
        %v6158 = vadd.f32 %v5321, %v6140
        %v6159 = vadd.f32 %v5322, %v6141
        %v6160 = vadd.f32 %v5323, %v6142
        %v6161 = vadd.f32 %v5324, %v6143
        %v6162 = vadd.f32 %v5325, %v6144
        %v6163 = vadd.f32 %v5326, %v6145
        %v6164 = vadd.f32 %v5327, %v6146
        %v6165 = vadd.f32 %v5328, %v6147
        %v6166 = vadd.f32 %v5329, %v6148
        %v6167 = vadd.f32 %v5330, %v6149
        %v6168 = vadd.f32 %v5331, %v6150
        %v6169 = vadd.f32 %v5332, %v6151
        %v6170 = vadd.f32 %v5333, %v6152
        %v6171 = vadd.f32 %v5334, %v6153
        %v6172 = vadd.f32 %v5335, %v6154
        %v6173 = vadd.f32 %v5336, %v6155
        %v6174 = vadd.f32 %v5337, %v6156
        %v6175 = vadd.f32 %v5338, %v6157
        %s6176 = scalar_lea.vmem %s4, 56
        %v6177 = vld [vmem:[%s6176] sm:$0xff]
        %v6179 = vsel %vm487, %v6177, 0
        %6181 = vmatprep.subr.mxu0 %v433
        %6182 = vmatpush1.msra.mxu0 %v432
        %6183 = vmatprep.subr.mxu0 %v451
        %6184 = vmatpush1.msra.mxu0 %v450
        %6185 = vmatprep.subr.mxu0 0.0
        %6186 = vmatpush1.msra.mxu0 0.0
        %6187 = vmatprep.subr.mxu0 0.0
        %6188 = vmatpush1.msra.mxu0 0.0
        %6189 = vmatprep.subr.mxu0 0.0
        %6190 = vmatpush1.msra.mxu0 0.0
        %6191 = vmatprep.subr.mxu0 0.0
        %6192 = vmatpush1.msra.mxu0 0.0
        %6193 = vmatprep.subr.mxu0 0.0
        %6194 = vmatpush1.msra.mxu0 0.0
        %6195 = vmatprep.subr.mxu0 0.0
        %6196 = vmatpush1.msra.mxu0 0.0
        %6197 = vmatprep.subr.mxu0 0.0
        %6198 = vmatpush1.msra.mxu0 0.0
        %6199 = vmatprep.subr.mxu0 0.0
        %6200 = vmatpush1.msra.mxu0 0.0
        %6201 = vmatprep.subr.mxu0 0.0
        %6202 = vmatpush1.msra.mxu0 0.0
        %6203 = vmatprep.subr.mxu0 0.0
        %6204 = vmatpush1.msra.mxu0 0.0
        %6205 = vmatprep.subr.mxu0 0.0
        %6206 = vmatpush1.msra.mxu0 0.0
        %6207 = vmatprep.subr.mxu0 0.0
        %6208 = vmatpush1.msra.mxu0 0.0
        %6209 = vmatprep.subr.mxu0 0.0
        %6210 = vmatpush1.msra.mxu0 0.0
        %6211 = vmatprep.subr.mxu0 0.0
        %6212 = vmatpush1.msra.mxu0 0.0
        %6213 = vmatprep.subr.mxu0 0.0
        %6214 = vmatpush1.msra.mxu0 0.0
        %6215 = vmatprep.subr.mxu0 0.0
        %6216 = vmatpush1.msra.mxu0 0.0
        %6217 = vmatprep.subr.mxu0 0.0
        %6218 = vmatpush1.msra.mxu0 0.0
        %6219 = vmatprep.subr.mxu0 0.0
        %6220 = vmatpush1.msra.mxu0 0.0
        %6221 = vmatprep.subr.mxu0 0.0
        %6222 = vmatpush1.msra.mxu0 0.0
        %6223 = vmatprep.subr.mxu0 0.0
        %6224 = vmatpush1.msra.mxu0 0.0
        %6225 = vmatprep.subr.mxu0 0.0
        %6226 = vmatpush1.msra.mxu0 0.0
        %6227 = vmatprep.subr.mxu0 0.0
        %6228 = vmatpush1.msra.mxu0 0.0
        %6229 = vmatprep.subr.mxu0 0.0
        %6230 = vmatpush1.msra.mxu0 0.0
        %6231 = vmatprep.subr.mxu0 0.0
        %6232 = vmatpush1.msra.mxu0 0.0
        %6233 = vmatprep.subr.mxu0 0.0
        %6234 = vmatpush1.msra.mxu0 0.0
        %6235 = vmatprep.subr.mxu0 0.0
        %6236 = vmatpush1.msra.mxu0 0.0
        %6237 = vmatprep.subr.mxu0 0.0
        %6238 = vmatpush1.msra.mxu0 0.0
        %6239 = vmatprep.subr.mxu0 0.0
        %6240 = vmatpush1.msra.mxu0 0.0
        %6241 = vmatprep.subr.mxu0 0.0
        %6242 = vmatpush1.msra.mxu0 0.0
        %6243 = vmatprep.subr.mxu0 0.0
        %6244 = vmatpush1.msra.mxu0 0.0
        %6245 = vmatprep.mubr.f32.mxu0 0.0
        %6246 = vmatmul.mubr.f32.gmra.mrb[0].mxu0 %v6179
        %v6247 = vpop.f32.mrb[0].mxu0
        %v6248 = vadd.f32 0.0, %v6247
        %v6249 = vpop.f32.mrb[0].mxu0
        %v6250 = vadd.f32 0.0, %v6249
        %6251 = vdwg.mxu0
        %6252 = vmatprep.subr.mxu0 %v435
        %6253 = vmatpush1.msra.mxu0 %v434
        %6254 = vmatprep.subr.mxu0 %v453
        %6255 = vmatpush1.msra.mxu0 %v452
        %6256 = vmatprep.subr.mxu0 0.0
        %6257 = vmatpush1.msra.mxu0 0.0
        %6258 = vmatprep.subr.mxu0 0.0
        %6259 = vmatpush1.msra.mxu0 0.0
        %6260 = vmatprep.subr.mxu0 0.0
        %6261 = vmatpush1.msra.mxu0 0.0
        %6262 = vmatprep.subr.mxu0 0.0
        %6263 = vmatpush1.msra.mxu0 0.0
        %6264 = vmatprep.subr.mxu0 0.0
        %6265 = vmatpush1.msra.mxu0 0.0
        %6266 = vmatprep.subr.mxu0 0.0
        %6267 = vmatpush1.msra.mxu0 0.0
        %6268 = vmatprep.subr.mxu0 0.0
        %6269 = vmatpush1.msra.mxu0 0.0
        %6270 = vmatprep.subr.mxu0 0.0
        %6271 = vmatpush1.msra.mxu0 0.0
        %6272 = vmatprep.subr.mxu0 0.0
        %6273 = vmatpush1.msra.mxu0 0.0
        %6274 = vmatprep.subr.mxu0 0.0
        %6275 = vmatpush1.msra.mxu0 0.0
        %6276 = vmatprep.subr.mxu0 0.0
        %6277 = vmatpush1.msra.mxu0 0.0
        %6278 = vmatprep.subr.mxu0 0.0
        %6279 = vmatpush1.msra.mxu0 0.0
        %6280 = vmatprep.subr.mxu0 0.0
        %6281 = vmatpush1.msra.mxu0 0.0
        %6282 = vmatprep.subr.mxu0 0.0
        %6283 = vmatpush1.msra.mxu0 0.0
        %6284 = vmatprep.subr.mxu0 0.0
        %6285 = vmatpush1.msra.mxu0 0.0
        %6286 = vmatprep.subr.mxu0 0.0
        %6287 = vmatpush1.msra.mxu0 0.0
        %6288 = vmatprep.subr.mxu0 0.0
        %6289 = vmatpush1.msra.mxu0 0.0
        %6290 = vmatprep.subr.mxu0 0.0
        %6291 = vmatpush1.msra.mxu0 0.0
        %6292 = vmatprep.subr.mxu0 0.0
        %6293 = vmatpush1.msra.mxu0 0.0
        %6294 = vmatprep.subr.mxu0 0.0
        %6295 = vmatpush1.msra.mxu0 0.0
        %6296 = vmatprep.subr.mxu0 0.0
        %6297 = vmatpush1.msra.mxu0 0.0
        %6298 = vmatprep.subr.mxu0 0.0
        %6299 = vmatpush1.msra.mxu0 0.0
        %6300 = vmatprep.subr.mxu0 0.0
        %6301 = vmatpush1.msra.mxu0 0.0
        %6302 = vmatprep.subr.mxu0 0.0
        %6303 = vmatpush1.msra.mxu0 0.0
        %6304 = vmatprep.subr.mxu0 0.0
        %6305 = vmatpush1.msra.mxu0 0.0
        %6306 = vmatprep.subr.mxu0 0.0
        %6307 = vmatpush1.msra.mxu0 0.0
        %6308 = vmatprep.subr.mxu0 0.0
        %6309 = vmatpush1.msra.mxu0 0.0
        %6310 = vmatprep.subr.mxu0 0.0
        %6311 = vmatpush1.msra.mxu0 0.0
        %6312 = vmatprep.subr.mxu0 0.0
        %6313 = vmatpush1.msra.mxu0 0.0
        %6314 = vmatprep.subr.mxu0 0.0
        %6315 = vmatpush1.msra.mxu0 0.0
        %6316 = vmatprep.mubr.f32.mxu0 0.0
        %6317 = vmatmul.mubr.f32.gmra.mrb[0].mxu0 %v6179
        %v6318 = vpop.f32.mrb[0].mxu0
        %v6319 = vadd.f32 0.0, %v6318
        %v6320 = vpop.f32.mrb[0].mxu0
        %v6321 = vadd.f32 0.0, %v6320
        %6322 = vdwg.mxu0
        %6323 = vmatprep.subr.mxu0 %v437
        %6324 = vmatpush1.msra.mxu0 %v436
        %6325 = vmatprep.subr.mxu0 %v455
        %6326 = vmatpush1.msra.mxu0 %v454
        %6327 = vmatprep.subr.mxu0 0.0
        %6328 = vmatpush1.msra.mxu0 0.0
        %6329 = vmatprep.subr.mxu0 0.0
        %6330 = vmatpush1.msra.mxu0 0.0
        %6331 = vmatprep.subr.mxu0 0.0
        %6332 = vmatpush1.msra.mxu0 0.0
        %6333 = vmatprep.subr.mxu0 0.0
        %6334 = vmatpush1.msra.mxu0 0.0
        %6335 = vmatprep.subr.mxu0 0.0
        %6336 = vmatpush1.msra.mxu0 0.0
        %6337 = vmatprep.subr.mxu0 0.0
        %6338 = vmatpush1.msra.mxu0 0.0
        %6339 = vmatprep.subr.mxu0 0.0
        %6340 = vmatpush1.msra.mxu0 0.0
        %6341 = vmatprep.subr.mxu0 0.0
        %6342 = vmatpush1.msra.mxu0 0.0
        %6343 = vmatprep.subr.mxu0 0.0
        %6344 = vmatpush1.msra.mxu0 0.0
        %6345 = vmatprep.subr.mxu0 0.0
        %6346 = vmatpush1.msra.mxu0 0.0
        %6347 = vmatprep.subr.mxu0 0.0
        %6348 = vmatpush1.msra.mxu0 0.0
        %6349 = vmatprep.subr.mxu0 0.0
        %6350 = vmatpush1.msra.mxu0 0.0
        %6351 = vmatprep.subr.mxu0 0.0
        %6352 = vmatpush1.msra.mxu0 0.0
        %6353 = vmatprep.subr.mxu0 0.0
        %6354 = vmatpush1.msra.mxu0 0.0
        %6355 = vmatprep.subr.mxu0 0.0
        %6356 = vmatpush1.msra.mxu0 0.0
        %6357 = vmatprep.subr.mxu0 0.0
        %6358 = vmatpush1.msra.mxu0 0.0
        %6359 = vmatprep.subr.mxu0 0.0
        %6360 = vmatpush1.msra.mxu0 0.0
        %6361 = vmatprep.subr.mxu0 0.0
        %6362 = vmatpush1.msra.mxu0 0.0
        %6363 = vmatprep.subr.mxu0 0.0
        %6364 = vmatpush1.msra.mxu0 0.0
        %6365 = vmatprep.subr.mxu0 0.0
        %6366 = vmatpush1.msra.mxu0 0.0
        %6367 = vmatprep.subr.mxu0 0.0
        %6368 = vmatpush1.msra.mxu0 0.0
        %6369 = vmatprep.subr.mxu0 0.0
        %6370 = vmatpush1.msra.mxu0 0.0
        %6371 = vmatprep.subr.mxu0 0.0
        %6372 = vmatpush1.msra.mxu0 0.0
        %6373 = vmatprep.subr.mxu0 0.0
        %6374 = vmatpush1.msra.mxu0 0.0
        %6375 = vmatprep.subr.mxu0 0.0
        %6376 = vmatpush1.msra.mxu0 0.0
        %6377 = vmatprep.subr.mxu0 0.0
        %6378 = vmatpush1.msra.mxu0 0.0
        %6379 = vmatprep.subr.mxu0 0.0
        %6380 = vmatpush1.msra.mxu0 0.0
        %6381 = vmatprep.subr.mxu0 0.0
        %6382 = vmatpush1.msra.mxu0 0.0
        %6383 = vmatprep.subr.mxu0 0.0
        %6384 = vmatpush1.msra.mxu0 0.0
        %6385 = vmatprep.subr.mxu0 0.0
        %6386 = vmatpush1.msra.mxu0 0.0
        %6387 = vmatprep.mubr.f32.mxu0 0.0
        %6388 = vmatmul.mubr.f32.gmra.mrb[0].mxu0 %v6179
        %v6389 = vpop.f32.mrb[0].mxu0
        %v6390 = vadd.f32 0.0, %v6389
        %v6391 = vpop.f32.mrb[0].mxu0
        %v6392 = vadd.f32 0.0, %v6391
        %6393 = vdwg.mxu0
        %6394 = vmatprep.subr.mxu0 %v439
        %6395 = vmatpush1.msra.mxu0 %v438
        %6396 = vmatprep.subr.mxu0 %v457
        %6397 = vmatpush1.msra.mxu0 %v456
        %6398 = vmatprep.subr.mxu0 0.0
        %6399 = vmatpush1.msra.mxu0 0.0
        %6400 = vmatprep.subr.mxu0 0.0
        %6401 = vmatpush1.msra.mxu0 0.0
        %6402 = vmatprep.subr.mxu0 0.0
        %6403 = vmatpush1.msra.mxu0 0.0
        %6404 = vmatprep.subr.mxu0 0.0
        %6405 = vmatpush1.msra.mxu0 0.0
        %6406 = vmatprep.subr.mxu0 0.0
        %6407 = vmatpush1.msra.mxu0 0.0
        %6408 = vmatprep.subr.mxu0 0.0
        %6409 = vmatpush1.msra.mxu0 0.0
        %6410 = vmatprep.subr.mxu0 0.0
        %6411 = vmatpush1.msra.mxu0 0.0
        %6412 = vmatprep.subr.mxu0 0.0
        %6413 = vmatpush1.msra.mxu0 0.0
        %6414 = vmatprep.subr.mxu0 0.0
        %6415 = vmatpush1.msra.mxu0 0.0
        %6416 = vmatprep.subr.mxu0 0.0
        %6417 = vmatpush1.msra.mxu0 0.0
        %6418 = vmatprep.subr.mxu0 0.0
        %6419 = vmatpush1.msra.mxu0 0.0
        %6420 = vmatprep.subr.mxu0 0.0
        %6421 = vmatpush1.msra.mxu0 0.0
        %6422 = vmatprep.subr.mxu0 0.0
        %6423 = vmatpush1.msra.mxu0 0.0
        %6424 = vmatprep.subr.mxu0 0.0
        %6425 = vmatpush1.msra.mxu0 0.0
        %6426 = vmatprep.subr.mxu0 0.0
        %6427 = vmatpush1.msra.mxu0 0.0
        %6428 = vmatprep.subr.mxu0 0.0
        %6429 = vmatpush1.msra.mxu0 0.0
        %6430 = vmatprep.subr.mxu0 0.0
        %6431 = vmatpush1.msra.mxu0 0.0
        %6432 = vmatprep.subr.mxu0 0.0
        %6433 = vmatpush1.msra.mxu0 0.0
        %6434 = vmatprep.subr.mxu0 0.0
        %6435 = vmatpush1.msra.mxu0 0.0
        %6436 = vmatprep.subr.mxu0 0.0
        %6437 = vmatpush1.msra.mxu0 0.0
        %6438 = vmatprep.subr.mxu0 0.0
        %6439 = vmatpush1.msra.mxu0 0.0
        %6440 = vmatprep.subr.mxu0 0.0
        %6441 = vmatpush1.msra.mxu0 0.0
        %6442 = vmatprep.subr.mxu0 0.0
        %6443 = vmatpush1.msra.mxu0 0.0
        %6444 = vmatprep.subr.mxu0 0.0
        %6445 = vmatpush1.msra.mxu0 0.0
        %6446 = vmatprep.subr.mxu0 0.0
        %6447 = vmatpush1.msra.mxu0 0.0
        %6448 = vmatprep.subr.mxu0 0.0
        %6449 = vmatpush1.msra.mxu0 0.0
        %6450 = vmatprep.subr.mxu0 0.0
        %6451 = vmatpush1.msra.mxu0 0.0
        %6452 = vmatprep.subr.mxu0 0.0
        %6453 = vmatpush1.msra.mxu0 0.0
        %6454 = vmatprep.subr.mxu0 0.0
        %6455 = vmatpush1.msra.mxu0 0.0
        %6456 = vmatprep.subr.mxu0 0.0
        %6457 = vmatpush1.msra.mxu0 0.0
        %6458 = vmatprep.mubr.f32.mxu0 0.0
        %6459 = vmatmul.mubr.f32.gmra.mrb[0].mxu0 %v6179
        %v6460 = vpop.f32.mrb[0].mxu0
        %v6461 = vadd.f32 0.0, %v6460
        %v6462 = vpop.f32.mrb[0].mxu0
        %v6463 = vadd.f32 0.0, %v6462
        %6464 = vdwg.mxu0
        %6465 = vmatprep.subr.mxu0 %v441
        %6466 = vmatpush1.msra.mxu0 %v440
        %6467 = vmatprep.subr.mxu0 %v459
        %6468 = vmatpush1.msra.mxu0 %v458
        %6469 = vmatprep.subr.mxu0 0.0
        %6470 = vmatpush1.msra.mxu0 0.0
        %6471 = vmatprep.subr.mxu0 0.0
        %6472 = vmatpush1.msra.mxu0 0.0
        %6473 = vmatprep.subr.mxu0 0.0
        %6474 = vmatpush1.msra.mxu0 0.0
        %6475 = vmatprep.subr.mxu0 0.0
        %6476 = vmatpush1.msra.mxu0 0.0
        %6477 = vmatprep.subr.mxu0 0.0
        %6478 = vmatpush1.msra.mxu0 0.0
        %6479 = vmatprep.subr.mxu0 0.0
        %6480 = vmatpush1.msra.mxu0 0.0
        %6481 = vmatprep.subr.mxu0 0.0
        %6482 = vmatpush1.msra.mxu0 0.0
        %6483 = vmatprep.subr.mxu0 0.0
        %6484 = vmatpush1.msra.mxu0 0.0
        %6485 = vmatprep.subr.mxu0 0.0
        %6486 = vmatpush1.msra.mxu0 0.0
        %6487 = vmatprep.subr.mxu0 0.0
        %6488 = vmatpush1.msra.mxu0 0.0
        %6489 = vmatprep.subr.mxu0 0.0
        %6490 = vmatpush1.msra.mxu0 0.0
        %6491 = vmatprep.subr.mxu0 0.0
        %6492 = vmatpush1.msra.mxu0 0.0
        %6493 = vmatprep.subr.mxu0 0.0
        %6494 = vmatpush1.msra.mxu0 0.0
        %6495 = vmatprep.subr.mxu0 0.0
        %6496 = vmatpush1.msra.mxu0 0.0
        %6497 = vmatprep.subr.mxu0 0.0
        %6498 = vmatpush1.msra.mxu0 0.0
        %6499 = vmatprep.subr.mxu0 0.0
        %6500 = vmatpush1.msra.mxu0 0.0
        %6501 = vmatprep.subr.mxu0 0.0
        %6502 = vmatpush1.msra.mxu0 0.0
        %6503 = vmatprep.subr.mxu0 0.0
        %6504 = vmatpush1.msra.mxu0 0.0
        %6505 = vmatprep.subr.mxu0 0.0
        %6506 = vmatpush1.msra.mxu0 0.0
        %6507 = vmatprep.subr.mxu0 0.0
        %6508 = vmatpush1.msra.mxu0 0.0
        %6509 = vmatprep.subr.mxu0 0.0
        %6510 = vmatpush1.msra.mxu0 0.0
        %6511 = vmatprep.subr.mxu0 0.0
        %6512 = vmatpush1.msra.mxu0 0.0
        %6513 = vmatprep.subr.mxu0 0.0
        %6514 = vmatpush1.msra.mxu0 0.0
        %6515 = vmatprep.subr.mxu0 0.0
        %6516 = vmatpush1.msra.mxu0 0.0
        %6517 = vmatprep.subr.mxu0 0.0
        %6518 = vmatpush1.msra.mxu0 0.0
        %6519 = vmatprep.subr.mxu0 0.0
        %6520 = vmatpush1.msra.mxu0 0.0
        %6521 = vmatprep.subr.mxu0 0.0
        %6522 = vmatpush1.msra.mxu0 0.0
        %6523 = vmatprep.subr.mxu0 0.0
        %6524 = vmatpush1.msra.mxu0 0.0
        %6525 = vmatprep.subr.mxu0 0.0
        %6526 = vmatpush1.msra.mxu0 0.0
        %6527 = vmatprep.subr.mxu0 0.0
        %6528 = vmatpush1.msra.mxu0 0.0
        %6529 = vmatprep.mubr.f32.mxu0 0.0
        %6530 = vmatmul.mubr.f32.gmra.mrb[0].mxu0 %v6179
        %v6531 = vpop.f32.mrb[0].mxu0
        %v6532 = vadd.f32 0.0, %v6531
        %v6533 = vpop.f32.mrb[0].mxu0
        %v6534 = vadd.f32 0.0, %v6533
        %6535 = vdwg.mxu0
        %6536 = vmatprep.subr.mxu0 %v443
        %6537 = vmatpush1.msra.mxu0 %v442
        %6538 = vmatprep.subr.mxu0 %v461
        %6539 = vmatpush1.msra.mxu0 %v460
        %6540 = vmatprep.subr.mxu0 0.0
        %6541 = vmatpush1.msra.mxu0 0.0
        %6542 = vmatprep.subr.mxu0 0.0
        %6543 = vmatpush1.msra.mxu0 0.0
        %6544 = vmatprep.subr.mxu0 0.0
        %6545 = vmatpush1.msra.mxu0 0.0
        %6546 = vmatprep.subr.mxu0 0.0
        %6547 = vmatpush1.msra.mxu0 0.0
        %6548 = vmatprep.subr.mxu0 0.0
        %6549 = vmatpush1.msra.mxu0 0.0
        %6550 = vmatprep.subr.mxu0 0.0
        %6551 = vmatpush1.msra.mxu0 0.0
        %6552 = vmatprep.subr.mxu0 0.0
        %6553 = vmatpush1.msra.mxu0 0.0
        %6554 = vmatprep.subr.mxu0 0.0
        %6555 = vmatpush1.msra.mxu0 0.0
        %6556 = vmatprep.subr.mxu0 0.0
        %6557 = vmatpush1.msra.mxu0 0.0
        %6558 = vmatprep.subr.mxu0 0.0
        %6559 = vmatpush1.msra.mxu0 0.0
        %6560 = vmatprep.subr.mxu0 0.0
        %6561 = vmatpush1.msra.mxu0 0.0
        %6562 = vmatprep.subr.mxu0 0.0
        %6563 = vmatpush1.msra.mxu0 0.0
        %6564 = vmatprep.subr.mxu0 0.0
        %6565 = vmatpush1.msra.mxu0 0.0
        %6566 = vmatprep.subr.mxu0 0.0
        %6567 = vmatpush1.msra.mxu0 0.0
        %6568 = vmatprep.subr.mxu0 0.0
        %6569 = vmatpush1.msra.mxu0 0.0
        %6570 = vmatprep.subr.mxu0 0.0
        %6571 = vmatpush1.msra.mxu0 0.0
        %6572 = vmatprep.subr.mxu0 0.0
        %6573 = vmatpush1.msra.mxu0 0.0
        %6574 = vmatprep.subr.mxu0 0.0
        %6575 = vmatpush1.msra.mxu0 0.0
        %6576 = vmatprep.subr.mxu0 0.0
        %6577 = vmatpush1.msra.mxu0 0.0
        %6578 = vmatprep.subr.mxu0 0.0
        %6579 = vmatpush1.msra.mxu0 0.0
        %6580 = vmatprep.subr.mxu0 0.0
        %6581 = vmatpush1.msra.mxu0 0.0
        %6582 = vmatprep.subr.mxu0 0.0
        %6583 = vmatpush1.msra.mxu0 0.0
        %6584 = vmatprep.subr.mxu0 0.0
        %6585 = vmatpush1.msra.mxu0 0.0
        %6586 = vmatprep.subr.mxu0 0.0
        %6587 = vmatpush1.msra.mxu0 0.0
        %6588 = vmatprep.subr.mxu0 0.0
        %6589 = vmatpush1.msra.mxu0 0.0
        %6590 = vmatprep.subr.mxu0 0.0
        %6591 = vmatpush1.msra.mxu0 0.0
        %6592 = vmatprep.subr.mxu0 0.0
        %6593 = vmatpush1.msra.mxu0 0.0
        %6594 = vmatprep.subr.mxu0 0.0
        %6595 = vmatpush1.msra.mxu0 0.0
        %6596 = vmatprep.subr.mxu0 0.0
        %6597 = vmatpush1.msra.mxu0 0.0
        %6598 = vmatprep.subr.mxu0 0.0
        %6599 = vmatpush1.msra.mxu0 0.0
        %6600 = vmatprep.mubr.f32.mxu0 0.0
        %6601 = vmatmul.mubr.f32.gmra.mrb[0].mxu0 %v6179
        %v6602 = vpop.f32.mrb[0].mxu0
        %v6603 = vadd.f32 0.0, %v6602
        %v6604 = vpop.f32.mrb[0].mxu0
        %v6605 = vadd.f32 0.0, %v6604
        %6606 = vdwg.mxu0
        %6607 = vmatprep.subr.mxu0 %v445
        %6608 = vmatpush1.msra.mxu0 %v444
        %6609 = vmatprep.subr.mxu0 %v463
        %6610 = vmatpush1.msra.mxu0 %v462
        %6611 = vmatprep.subr.mxu0 0.0
        %6612 = vmatpush1.msra.mxu0 0.0
        %6613 = vmatprep.subr.mxu0 0.0
        %6614 = vmatpush1.msra.mxu0 0.0
        %6615 = vmatprep.subr.mxu0 0.0
        %6616 = vmatpush1.msra.mxu0 0.0
        %6617 = vmatprep.subr.mxu0 0.0
        %6618 = vmatpush1.msra.mxu0 0.0
        %6619 = vmatprep.subr.mxu0 0.0
        %6620 = vmatpush1.msra.mxu0 0.0
        %6621 = vmatprep.subr.mxu0 0.0
        %6622 = vmatpush1.msra.mxu0 0.0
        %6623 = vmatprep.subr.mxu0 0.0
        %6624 = vmatpush1.msra.mxu0 0.0
        %6625 = vmatprep.subr.mxu0 0.0
        %6626 = vmatpush1.msra.mxu0 0.0
        %6627 = vmatprep.subr.mxu0 0.0
        %6628 = vmatpush1.msra.mxu0 0.0
        %6629 = vmatprep.subr.mxu0 0.0
        %6630 = vmatpush1.msra.mxu0 0.0
        %6631 = vmatprep.subr.mxu0 0.0
        %6632 = vmatpush1.msra.mxu0 0.0
        %6633 = vmatprep.subr.mxu0 0.0
        %6634 = vmatpush1.msra.mxu0 0.0
        %6635 = vmatprep.subr.mxu0 0.0
        %6636 = vmatpush1.msra.mxu0 0.0
        %6637 = vmatprep.subr.mxu0 0.0
        %6638 = vmatpush1.msra.mxu0 0.0
        %6639 = vmatprep.subr.mxu0 0.0
        %6640 = vmatpush1.msra.mxu0 0.0
        %6641 = vmatprep.subr.mxu0 0.0
        %6642 = vmatpush1.msra.mxu0 0.0
        %6643 = vmatprep.subr.mxu0 0.0
        %6644 = vmatpush1.msra.mxu0 0.0
        %6645 = vmatprep.subr.mxu0 0.0
        %6646 = vmatpush1.msra.mxu0 0.0
        %6647 = vmatprep.subr.mxu0 0.0
        %6648 = vmatpush1.msra.mxu0 0.0
        %6649 = vmatprep.subr.mxu0 0.0
        %6650 = vmatpush1.msra.mxu0 0.0
        %6651 = vmatprep.subr.mxu0 0.0
        %6652 = vmatpush1.msra.mxu0 0.0
        %6653 = vmatprep.subr.mxu0 0.0
        %6654 = vmatpush1.msra.mxu0 0.0
        %6655 = vmatprep.subr.mxu0 0.0
        %6656 = vmatpush1.msra.mxu0 0.0
        %6657 = vmatprep.subr.mxu0 0.0
        %6658 = vmatpush1.msra.mxu0 0.0
        %6659 = vmatprep.subr.mxu0 0.0
        %6660 = vmatpush1.msra.mxu0 0.0
        %6661 = vmatprep.subr.mxu0 0.0
        %6662 = vmatpush1.msra.mxu0 0.0
        %6663 = vmatprep.subr.mxu0 0.0
        %6664 = vmatpush1.msra.mxu0 0.0
        %6665 = vmatprep.subr.mxu0 0.0
        %6666 = vmatpush1.msra.mxu0 0.0
        %6667 = vmatprep.subr.mxu0 0.0
        %6668 = vmatpush1.msra.mxu0 0.0
        %6669 = vmatprep.subr.mxu0 0.0
        %6670 = vmatpush1.msra.mxu0 0.0
        %6671 = vmatprep.mubr.f32.mxu0 0.0
        %6672 = vmatmul.mubr.f32.gmra.mrb[0].mxu0 %v6179
        %v6673 = vpop.f32.mrb[0].mxu0
        %v6674 = vadd.f32 0.0, %v6673
        %v6675 = vpop.f32.mrb[0].mxu0
        %v6676 = vadd.f32 0.0, %v6675
        %6677 = vdwg.mxu0
        %6678 = vmatprep.subr.mxu0 %v447
        %6679 = vmatpush1.msra.mxu0 %v446
        %6680 = vmatprep.subr.mxu0 %v465
        %6681 = vmatpush1.msra.mxu0 %v464
        %6682 = vmatprep.subr.mxu0 0.0
        %6683 = vmatpush1.msra.mxu0 0.0
        %6684 = vmatprep.subr.mxu0 0.0
        %6685 = vmatpush1.msra.mxu0 0.0
        %6686 = vmatprep.subr.mxu0 0.0
        %6687 = vmatpush1.msra.mxu0 0.0
        %6688 = vmatprep.subr.mxu0 0.0
        %6689 = vmatpush1.msra.mxu0 0.0
        %6690 = vmatprep.subr.mxu0 0.0
        %6691 = vmatpush1.msra.mxu0 0.0
        %6692 = vmatprep.subr.mxu0 0.0
        %6693 = vmatpush1.msra.mxu0 0.0
        %6694 = vmatprep.subr.mxu0 0.0
        %6695 = vmatpush1.msra.mxu0 0.0
        %6696 = vmatprep.subr.mxu0 0.0
        %6697 = vmatpush1.msra.mxu0 0.0
        %6698 = vmatprep.subr.mxu0 0.0
        %6699 = vmatpush1.msra.mxu0 0.0
        %6700 = vmatprep.subr.mxu0 0.0
        %6701 = vmatpush1.msra.mxu0 0.0
        %6702 = vmatprep.subr.mxu0 0.0
        %6703 = vmatpush1.msra.mxu0 0.0
        %6704 = vmatprep.subr.mxu0 0.0
        %6705 = vmatpush1.msra.mxu0 0.0
        %6706 = vmatprep.subr.mxu0 0.0
        %6707 = vmatpush1.msra.mxu0 0.0
        %6708 = vmatprep.subr.mxu0 0.0
        %6709 = vmatpush1.msra.mxu0 0.0
        %6710 = vmatprep.subr.mxu0 0.0
        %6711 = vmatpush1.msra.mxu0 0.0
        %6712 = vmatprep.subr.mxu0 0.0
        %6713 = vmatpush1.msra.mxu0 0.0
        %6714 = vmatprep.subr.mxu0 0.0
        %6715 = vmatpush1.msra.mxu0 0.0
        %6716 = vmatprep.subr.mxu0 0.0
        %6717 = vmatpush1.msra.mxu0 0.0
        %6718 = vmatprep.subr.mxu0 0.0
        %6719 = vmatpush1.msra.mxu0 0.0
        %6720 = vmatprep.subr.mxu0 0.0
        %6721 = vmatpush1.msra.mxu0 0.0
        %6722 = vmatprep.subr.mxu0 0.0
        %6723 = vmatpush1.msra.mxu0 0.0
        %6724 = vmatprep.subr.mxu0 0.0
        %6725 = vmatpush1.msra.mxu0 0.0
        %6726 = vmatprep.subr.mxu0 0.0
        %6727 = vmatpush1.msra.mxu0 0.0
        %6728 = vmatprep.subr.mxu0 0.0
        %6729 = vmatpush1.msra.mxu0 0.0
        %6730 = vmatprep.subr.mxu0 0.0
        %6731 = vmatpush1.msra.mxu0 0.0
        %6732 = vmatprep.subr.mxu0 0.0
        %6733 = vmatpush1.msra.mxu0 0.0
        %6734 = vmatprep.subr.mxu0 0.0
        %6735 = vmatpush1.msra.mxu0 0.0
        %6736 = vmatprep.subr.mxu0 0.0
        %6737 = vmatpush1.msra.mxu0 0.0
        %6738 = vmatprep.subr.mxu0 0.0
        %6739 = vmatpush1.msra.mxu0 0.0
        %6740 = vmatprep.subr.mxu0 0.0
        %6741 = vmatpush1.msra.mxu0 0.0
        %6742 = vmatprep.mubr.f32.mxu0 0.0
        %6743 = vmatmul.mubr.f32.gmra.mrb[0].mxu0 %v6179
        %v6744 = vpop.f32.mrb[0].mxu0
        %v6745 = vadd.f32 0.0, %v6744
        %v6746 = vpop.f32.mrb[0].mxu0
        %v6747 = vadd.f32 0.0, %v6746
        %6748 = vdwg.mxu0
        %6749 = vmatprep.subr.mxu0 %v449
        %6750 = vmatpush1.msra.mxu0 %v448
        %6751 = vmatprep.subr.mxu0 %v467
        %6752 = vmatpush1.msra.mxu0 %v466
        %6753 = vmatprep.subr.mxu0 0.0
        %6754 = vmatpush1.msra.mxu0 0.0
        %6755 = vmatprep.subr.mxu0 0.0
        %6756 = vmatpush1.msra.mxu0 0.0
        %6757 = vmatprep.subr.mxu0 0.0
        %6758 = vmatpush1.msra.mxu0 0.0
        %6759 = vmatprep.subr.mxu0 0.0
        %6760 = vmatpush1.msra.mxu0 0.0
        %6761 = vmatprep.subr.mxu0 0.0
        %6762 = vmatpush1.msra.mxu0 0.0
        %6763 = vmatprep.subr.mxu0 0.0
        %6764 = vmatpush1.msra.mxu0 0.0
        %6765 = vmatprep.subr.mxu0 0.0
        %6766 = vmatpush1.msra.mxu0 0.0
        %6767 = vmatprep.subr.mxu0 0.0
        %6768 = vmatpush1.msra.mxu0 0.0
        %6769 = vmatprep.subr.mxu0 0.0
        %6770 = vmatpush1.msra.mxu0 0.0
        %6771 = vmatprep.subr.mxu0 0.0
        %6772 = vmatpush1.msra.mxu0 0.0
        %6773 = vmatprep.subr.mxu0 0.0
        %6774 = vmatpush1.msra.mxu0 0.0
        %6775 = vmatprep.subr.mxu0 0.0
        %6776 = vmatpush1.msra.mxu0 0.0
        %6777 = vmatprep.subr.mxu0 0.0
        %6778 = vmatpush1.msra.mxu0 0.0
        %6779 = vmatprep.subr.mxu0 0.0
        %6780 = vmatpush1.msra.mxu0 0.0
        %6781 = vmatprep.subr.mxu0 0.0
        %6782 = vmatpush1.msra.mxu0 0.0
        %6783 = vmatprep.subr.mxu0 0.0
        %6784 = vmatpush1.msra.mxu0 0.0
        %6785 = vmatprep.subr.mxu0 0.0
        %6786 = vmatpush1.msra.mxu0 0.0
        %6787 = vmatprep.subr.mxu0 0.0
        %6788 = vmatpush1.msra.mxu0 0.0
        %6789 = vmatprep.subr.mxu0 0.0
        %6790 = vmatpush1.msra.mxu0 0.0
        %6791 = vmatprep.subr.mxu0 0.0
        %6792 = vmatpush1.msra.mxu0 0.0
        %6793 = vmatprep.subr.mxu0 0.0
        %6794 = vmatpush1.msra.mxu0 0.0
        %6795 = vmatprep.subr.mxu0 0.0
        %6796 = vmatpush1.msra.mxu0 0.0
        %6797 = vmatprep.subr.mxu0 0.0
        %6798 = vmatpush1.msra.mxu0 0.0
        %6799 = vmatprep.subr.mxu0 0.0
        %6800 = vmatpush1.msra.mxu0 0.0
        %6801 = vmatprep.subr.mxu0 0.0
        %6802 = vmatpush1.msra.mxu0 0.0
        %6803 = vmatprep.subr.mxu0 0.0
        %6804 = vmatpush1.msra.mxu0 0.0
        %6805 = vmatprep.subr.mxu0 0.0
        %6806 = vmatpush1.msra.mxu0 0.0
        %6807 = vmatprep.subr.mxu0 0.0
        %6808 = vmatpush1.msra.mxu0 0.0
        %6809 = vmatprep.subr.mxu0 0.0
        %6810 = vmatpush1.msra.mxu0 0.0
        %6811 = vmatprep.subr.mxu0 0.0
        %6812 = vmatpush1.msra.mxu0 0.0
        %6813 = vmatprep.mubr.f32.mxu0 0.0
        %6814 = vmatmul.mubr.f32.gmra.mrb[0].mxu0 %v6179
        %v6815 = vpop.f32.mrb[0].mxu0
        %v6816 = vadd.f32 0.0, %v6815
        %v6817 = vpop.f32.mrb[0].mxu0
        %v6818 = vadd.f32 0.0, %v6817
        %6819 = vdwg.mxu0
        %6820 = vrot.lane.b32.xlu0 %v6248, 64
        %v6821 = vpop.permute.xlu0 %6820
        %6822 = vrot.lane.b32.xlu0 %v6250, 64
        %v6823 = vpop.permute.xlu0 %6822
        %6824 = vrot.lane.b32.xlu0 %v6319, 64
        %v6825 = vpop.permute.xlu0 %6824
        %6826 = vrot.lane.b32.xlu0 %v6321, 64
        %v6827 = vpop.permute.xlu0 %6826
        %6828 = vrot.lane.b32.xlu0 %v6390, 64
        %v6829 = vpop.permute.xlu0 %6828
        %6830 = vrot.lane.b32.xlu0 %v6392, 64
        %v6831 = vpop.permute.xlu0 %6830
        %6832 = vrot.lane.b32.xlu0 %v6461, 64
        %v6833 = vpop.permute.xlu0 %6832
        %6834 = vrot.lane.b32.xlu0 %v6463, 64
        %v6835 = vpop.permute.xlu0 %6834
        %6836 = vrot.lane.b32.xlu0 %v6532, 64
        %v6837 = vpop.permute.xlu0 %6836
        %6838 = vrot.lane.b32.xlu0 %v6534, 64
        %v6839 = vpop.permute.xlu0 %6838
        %6840 = vrot.lane.b32.xlu0 %v6603, 64
        %v6841 = vpop.permute.xlu0 %6840
        %6842 = vrot.lane.b32.xlu0 %v6605, 64
        %v6843 = vpop.permute.xlu0 %6842
        %6844 = vrot.lane.b32.xlu0 %v6674, 64
        %v6845 = vpop.permute.xlu0 %6844
        %6846 = vrot.lane.b32.xlu0 %v6676, 64
        %v6847 = vpop.permute.xlu0 %6846
        %6848 = vrot.lane.b32.xlu0 %v6745, 64
        %v6849 = vpop.permute.xlu0 %6848
        %6850 = vrot.lane.b32.xlu0 %v6747, 64
        %v6851 = vpop.permute.xlu0 %6850
        %6852 = vrot.lane.b32.xlu0 %v6816, 64
        %v6853 = vpop.permute.xlu0 %6852
        %6854 = vrot.lane.b32.xlu0 %v6818, 64
        %v6855 = vpop.permute.xlu0 %6854
        %v6856 = vsel %vm2005, %v6853, %v6855
        %v6857 = vsel %vm2005, %v6851, %v6853
        %v6858 = vsel %vm2005, %v6849, %v6851
        %v6859 = vsel %vm2005, %v6847, %v6849
        %v6860 = vsel %vm2005, %v6845, %v6847
        %v6861 = vsel %vm2005, %v6843, %v6845
        %v6862 = vsel %vm2005, %v6841, %v6843
        %v6863 = vsel %vm2005, %v6839, %v6841
        %v6864 = vsel %vm2005, %v6837, %v6839
        %v6865 = vsel %vm2005, %v6835, %v6837
        %v6866 = vsel %vm2005, %v6833, %v6835
        %v6867 = vsel %vm2005, %v6831, %v6833
        %v6868 = vsel %vm2005, %v6829, %v6831
        %v6869 = vsel %vm2005, %v6827, %v6829
        %v6870 = vsel %vm2005, %v6825, %v6827
        %v6871 = vsel %vm2005, %v6823, %v6825
        %v6872 = vsel %vm2005, %v6821, %v6823
        %v6873 = vsel %vm2005, %v6855, %v6821
        %s6874 = scalar_lea.vmem %s2, 7
        %v6875 = vld [vmem:[%s6874] ss:$8 sm:$0xf]
        %v6876 = vld [vmem:[%s6874] ss:$8 sm:$0xf0]
        %v6877 = vor.u32 %v6875, %v6876
        %s6878 = scalar_lea.vmem %s2, 71
        %v6879 = vld [vmem:[%s6878] ss:$8 sm:$0xf]
        %v6880 = vld [vmem:[%s6878] ss:$8 sm:$0xf0]
        %v6881 = vor.u32 %v6879, %v6880
        %s6882 = scalar_lea.vmem %s2, 135
        %v6883 = vld [vmem:[%s6882] ss:$8 sm:$0x3]
        %v6887 = vlaneseq
        %v6888 = vshrl.u32 %v6887, 7
        %v6889 = vsub.s32 0, %v6888
        %v6890 = vrot.slane %v6877, %v6889
        %v6891 = vlaneseq
        %v6892 = vshrl.u32 %v6891, 7
        %v6893 = vsub.s32 1, %v6892
        %v6894 = vrot.slane %v6877, %v6893
        %v6895 = vlaneseq
        %v6896 = vshrl.u32 %v6895, 7
        %v6897 = vsub.s32 2, %v6896
        %v6898 = vrot.slane %v6877, %v6897
        %v6899 = vlaneseq
        %v6900 = vshrl.u32 %v6899, 7
        %v6901 = vsub.s32 3, %v6900
        %v6902 = vrot.slane %v6877, %v6901
        %v6903 = vlaneseq
        %v6904 = vshrl.u32 %v6903, 7
        %v6905 = vsub.s32 4, %v6904
        %v6906 = vrot.slane %v6877, %v6905
        %v6907 = vlaneseq
        %v6908 = vshrl.u32 %v6907, 7
        %v6909 = vsub.s32 5, %v6908
        %v6910 = vrot.slane %v6877, %v6909
        %v6911 = vlaneseq
        %v6912 = vshrl.u32 %v6911, 7
        %v6913 = vsub.s32 6, %v6912
        %v6914 = vrot.slane %v6877, %v6913
        %v6915 = vlaneseq
        %v6916 = vshrl.u32 %v6915, 7
        %v6917 = vsub.s32 7, %v6916
        %v6918 = vrot.slane %v6877, %v6917
        %v6919 = vlaneseq
        %v6920 = vshrl.u32 %v6919, 7
        %v6921 = vsub.s32 0, %v6920
        %v6922 = vrot.slane %v6881, %v6921
        %v6923 = vlaneseq
        %v6924 = vshrl.u32 %v6923, 7
        %v6925 = vsub.s32 1, %v6924
        %v6926 = vrot.slane %v6881, %v6925
        %v6927 = vlaneseq
        %v6928 = vshrl.u32 %v6927, 7
        %v6929 = vsub.s32 2, %v6928
        %v6930 = vrot.slane %v6881, %v6929
        %v6931 = vlaneseq
        %v6932 = vshrl.u32 %v6931, 7
        %v6933 = vsub.s32 3, %v6932
        %v6934 = vrot.slane %v6881, %v6933
        %v6935 = vlaneseq
        %v6936 = vshrl.u32 %v6935, 7
        %v6937 = vsub.s32 4, %v6936
        %v6938 = vrot.slane %v6881, %v6937
        %v6939 = vlaneseq
        %v6940 = vshrl.u32 %v6939, 7
        %v6941 = vsub.s32 5, %v6940
        %v6942 = vrot.slane %v6881, %v6941
        %v6943 = vlaneseq
        %v6944 = vshrl.u32 %v6943, 7
        %v6945 = vsub.s32 6, %v6944
        %v6946 = vrot.slane %v6881, %v6945
        %v6947 = vlaneseq
        %v6948 = vshrl.u32 %v6947, 7
        %v6949 = vsub.s32 7, %v6948
        %v6950 = vrot.slane %v6881, %v6949
        %v6951 = vlaneseq
        %v6952 = vshrl.u32 %v6951, 7
        %v6953 = vsub.s32 0, %v6952
        %v6954 = vrot.slane %v6883, %v6953
        %v6955 = vlaneseq
        %v6956 = vshrl.u32 %v6955, 7
        %v6957 = vsub.s32 1, %v6956
        %v6958 = vrot.slane %v6883, %v6957
        %v6977 = vmul.f32 %v6871, %v6890
        %v6978 = vmul.f32 %v6870, %v6894
        %v6979 = vmul.f32 %v6869, %v6898
        %v6980 = vmul.f32 %v6868, %v6902
        %v6981 = vmul.f32 %v6867, %v6906
        %v6982 = vmul.f32 %v6866, %v6910
        %v6983 = vmul.f32 %v6865, %v6914
        %v6984 = vmul.f32 %v6864, %v6918
        %v6985 = vmul.f32 %v6863, %v6922
        %v6986 = vmul.f32 %v6862, %v6926
        %v6987 = vmul.f32 %v6861, %v6930
        %v6988 = vmul.f32 %v6860, %v6934
        %v6989 = vmul.f32 %v6859, %v6938
        %v6990 = vmul.f32 %v6858, %v6942
        %v6991 = vmul.f32 %v6857, %v6946
        %v6992 = vmul.f32 %v6856, %v6950
        %v6993 = vmul.f32 %v6873, %v6954
        %v6994 = vmul.f32 %v6872, %v6958
        %v6995 = vadd.f32 %v6158, %v6977
        %v6996 = vadd.f32 %v6159, %v6978
        %v6997 = vadd.f32 %v6160, %v6979
        %v6998 = vadd.f32 %v6161, %v6980
        %v6999 = vadd.f32 %v6162, %v6981
        %v7000 = vadd.f32 %v6163, %v6982
        %v7001 = vadd.f32 %v6164, %v6983
        %v7002 = vadd.f32 %v6165, %v6984
        %v7003 = vadd.f32 %v6166, %v6985
        %v7004 = vadd.f32 %v6167, %v6986
        %v7005 = vadd.f32 %v6168, %v6987
        %v7006 = vadd.f32 %v6169, %v6988
        %v7007 = vadd.f32 %v6170, %v6989
        %v7008 = vadd.f32 %v6171, %v6990
        %v7009 = vadd.f32 %v6172, %v6991
        %v7010 = vadd.f32 %v6173, %v6992
        %v7011 = vadd.f32 %v6174, %v6993
        %v7012 = vadd.f32 %v6175, %v6994
        %s7013 = scalar_lea.vmem %s4, 64
        %v7014 = vld [vmem:[%s7013] sm:$0xff]
        %v7016 = vsel %vm487, %v7014, 0
        %7018 = vmatprep.subr.mxu0 %v433
        %7019 = vmatpush1.msra.mxu0 %v432
        %7020 = vmatprep.subr.mxu0 %v451
        %7021 = vmatpush1.msra.mxu0 %v450
        %7022 = vmatprep.subr.mxu0 0.0
        %7023 = vmatpush1.msra.mxu0 0.0
        %7024 = vmatprep.subr.mxu0 0.0
        %7025 = vmatpush1.msra.mxu0 0.0
        %7026 = vmatprep.subr.mxu0 0.0
        %7027 = vmatpush1.msra.mxu0 0.0
        %7028 = vmatprep.subr.mxu0 0.0
        %7029 = vmatpush1.msra.mxu0 0.0
        %7030 = vmatprep.subr.mxu0 0.0
        %7031 = vmatpush1.msra.mxu0 0.0
        %7032 = vmatprep.subr.mxu0 0.0
        %7033 = vmatpush1.msra.mxu0 0.0
        %7034 = vmatprep.subr.mxu0 0.0
        %7035 = vmatpush1.msra.mxu0 0.0
        %7036 = vmatprep.subr.mxu0 0.0
        %7037 = vmatpush1.msra.mxu0 0.0
        %7038 = vmatprep.subr.mxu0 0.0
        %7039 = vmatpush1.msra.mxu0 0.0
        %7040 = vmatprep.subr.mxu0 0.0
        %7041 = vmatpush1.msra.mxu0 0.0
        %7042 = vmatprep.subr.mxu0 0.0
        %7043 = vmatpush1.msra.mxu0 0.0
        %7044 = vmatprep.subr.mxu0 0.0
        %7045 = vmatpush1.msra.mxu0 0.0
        %7046 = vmatprep.subr.mxu0 0.0
        %7047 = vmatpush1.msra.mxu0 0.0
        %7048 = vmatprep.subr.mxu0 0.0
        %7049 = vmatpush1.msra.mxu0 0.0
        %7050 = vmatprep.subr.mxu0 0.0
        %7051 = vmatpush1.msra.mxu0 0.0
        %7052 = vmatprep.subr.mxu0 0.0
        %7053 = vmatpush1.msra.mxu0 0.0
        %7054 = vmatprep.subr.mxu0 0.0
        %7055 = vmatpush1.msra.mxu0 0.0
        %7056 = vmatprep.subr.mxu0 0.0
        %7057 = vmatpush1.msra.mxu0 0.0
        %7058 = vmatprep.subr.mxu0 0.0
        %7059 = vmatpush1.msra.mxu0 0.0
        %7060 = vmatprep.subr.mxu0 0.0
        %7061 = vmatpush1.msra.mxu0 0.0
        %7062 = vmatprep.subr.mxu0 0.0
        %7063 = vmatpush1.msra.mxu0 0.0
        %7064 = vmatprep.subr.mxu0 0.0
        %7065 = vmatpush1.msra.mxu0 0.0
        %7066 = vmatprep.subr.mxu0 0.0
        %7067 = vmatpush1.msra.mxu0 0.0
        %7068 = vmatprep.subr.mxu0 0.0
        %7069 = vmatpush1.msra.mxu0 0.0
        %7070 = vmatprep.subr.mxu0 0.0
        %7071 = vmatpush1.msra.mxu0 0.0
        %7072 = vmatprep.subr.mxu0 0.0
        %7073 = vmatpush1.msra.mxu0 0.0
        %7074 = vmatprep.subr.mxu0 0.0
        %7075 = vmatpush1.msra.mxu0 0.0
        %7076 = vmatprep.subr.mxu0 0.0
        %7077 = vmatpush1.msra.mxu0 0.0
        %7078 = vmatprep.subr.mxu0 0.0
        %7079 = vmatpush1.msra.mxu0 0.0
        %7080 = vmatprep.subr.mxu0 0.0
        %7081 = vmatpush1.msra.mxu0 0.0
        %7082 = vmatprep.mubr.f32.mxu0 0.0
        %7083 = vmatmul.mubr.f32.gmra.mrb[0].mxu0 %v7016
        %v7084 = vpop.f32.mrb[0].mxu0
        %v7085 = vadd.f32 0.0, %v7084
        %v7086 = vpop.f32.mrb[0].mxu0
        %v7087 = vadd.f32 0.0, %v7086
        %7088 = vdwg.mxu0
        %7089 = vmatprep.subr.mxu0 %v435
        %7090 = vmatpush1.msra.mxu0 %v434
        %7091 = vmatprep.subr.mxu0 %v453
        %7092 = vmatpush1.msra.mxu0 %v452
        %7093 = vmatprep.subr.mxu0 0.0
        %7094 = vmatpush1.msra.mxu0 0.0
        %7095 = vmatprep.subr.mxu0 0.0
        %7096 = vmatpush1.msra.mxu0 0.0
        %7097 = vmatprep.subr.mxu0 0.0
        %7098 = vmatpush1.msra.mxu0 0.0
        %7099 = vmatprep.subr.mxu0 0.0
        %7100 = vmatpush1.msra.mxu0 0.0
        %7101 = vmatprep.subr.mxu0 0.0
        %7102 = vmatpush1.msra.mxu0 0.0
        %7103 = vmatprep.subr.mxu0 0.0
        %7104 = vmatpush1.msra.mxu0 0.0
        %7105 = vmatprep.subr.mxu0 0.0
        %7106 = vmatpush1.msra.mxu0 0.0
        %7107 = vmatprep.subr.mxu0 0.0
        %7108 = vmatpush1.msra.mxu0 0.0
        %7109 = vmatprep.subr.mxu0 0.0
        %7110 = vmatpush1.msra.mxu0 0.0
        %7111 = vmatprep.subr.mxu0 0.0
        %7112 = vmatpush1.msra.mxu0 0.0
        %7113 = vmatprep.subr.mxu0 0.0
        %7114 = vmatpush1.msra.mxu0 0.0
        %7115 = vmatprep.subr.mxu0 0.0
        %7116 = vmatpush1.msra.mxu0 0.0
        %7117 = vmatprep.subr.mxu0 0.0
        %7118 = vmatpush1.msra.mxu0 0.0
        %7119 = vmatprep.subr.mxu0 0.0
        %7120 = vmatpush1.msra.mxu0 0.0
        %7121 = vmatprep.subr.mxu0 0.0
        %7122 = vmatpush1.msra.mxu0 0.0
        %7123 = vmatprep.subr.mxu0 0.0
        %7124 = vmatpush1.msra.mxu0 0.0
        %7125 = vmatprep.subr.mxu0 0.0
        %7126 = vmatpush1.msra.mxu0 0.0
        %7127 = vmatprep.subr.mxu0 0.0
        %7128 = vmatpush1.msra.mxu0 0.0
        %7129 = vmatprep.subr.mxu0 0.0
        %7130 = vmatpush1.msra.mxu0 0.0
        %7131 = vmatprep.subr.mxu0 0.0
        %7132 = vmatpush1.msra.mxu0 0.0
        %7133 = vmatprep.subr.mxu0 0.0
        %7134 = vmatpush1.msra.mxu0 0.0
        %7135 = vmatprep.subr.mxu0 0.0
        %7136 = vmatpush1.msra.mxu0 0.0
        %7137 = vmatprep.subr.mxu0 0.0
        %7138 = vmatpush1.msra.mxu0 0.0
        %7139 = vmatprep.subr.mxu0 0.0
        %7140 = vmatpush1.msra.mxu0 0.0
        %7141 = vmatprep.subr.mxu0 0.0
        %7142 = vmatpush1.msra.mxu0 0.0
        %7143 = vmatprep.subr.mxu0 0.0
        %7144 = vmatpush1.msra.mxu0 0.0
        %7145 = vmatprep.subr.mxu0 0.0
        %7146 = vmatpush1.msra.mxu0 0.0
        %7147 = vmatprep.subr.mxu0 0.0
        %7148 = vmatpush1.msra.mxu0 0.0
        %7149 = vmatprep.subr.mxu0 0.0
        %7150 = vmatpush1.msra.mxu0 0.0
        %7151 = vmatprep.subr.mxu0 0.0
        %7152 = vmatpush1.msra.mxu0 0.0
        %7153 = vmatprep.mubr.f32.mxu0 0.0
        %7154 = vmatmul.mubr.f32.gmra.mrb[0].mxu0 %v7016
        %v7155 = vpop.f32.mrb[0].mxu0
        %v7156 = vadd.f32 0.0, %v7155
        %v7157 = vpop.f32.mrb[0].mxu0
        %v7158 = vadd.f32 0.0, %v7157
        %7159 = vdwg.mxu0
        %7160 = vmatprep.subr.mxu0 %v437
        %7161 = vmatpush1.msra.mxu0 %v436
        %7162 = vmatprep.subr.mxu0 %v455
        %7163 = vmatpush1.msra.mxu0 %v454
        %7164 = vmatprep.subr.mxu0 0.0
        %7165 = vmatpush1.msra.mxu0 0.0
        %7166 = vmatprep.subr.mxu0 0.0
        %7167 = vmatpush1.msra.mxu0 0.0
        %7168 = vmatprep.subr.mxu0 0.0
        %7169 = vmatpush1.msra.mxu0 0.0
        %7170 = vmatprep.subr.mxu0 0.0
        %7171 = vmatpush1.msra.mxu0 0.0
        %7172 = vmatprep.subr.mxu0 0.0
        %7173 = vmatpush1.msra.mxu0 0.0
        %7174 = vmatprep.subr.mxu0 0.0
        %7175 = vmatpush1.msra.mxu0 0.0
        %7176 = vmatprep.subr.mxu0 0.0
        %7177 = vmatpush1.msra.mxu0 0.0
        %7178 = vmatprep.subr.mxu0 0.0
        %7179 = vmatpush1.msra.mxu0 0.0
        %7180 = vmatprep.subr.mxu0 0.0
        %7181 = vmatpush1.msra.mxu0 0.0
        %7182 = vmatprep.subr.mxu0 0.0
        %7183 = vmatpush1.msra.mxu0 0.0
        %7184 = vmatprep.subr.mxu0 0.0
        %7185 = vmatpush1.msra.mxu0 0.0
        %7186 = vmatprep.subr.mxu0 0.0
        %7187 = vmatpush1.msra.mxu0 0.0
        %7188 = vmatprep.subr.mxu0 0.0
        %7189 = vmatpush1.msra.mxu0 0.0
        %7190 = vmatprep.subr.mxu0 0.0
        %7191 = vmatpush1.msra.mxu0 0.0
        %7192 = vmatprep.subr.mxu0 0.0
        %7193 = vmatpush1.msra.mxu0 0.0
        %7194 = vmatprep.subr.mxu0 0.0
        %7195 = vmatpush1.msra.mxu0 0.0
        %7196 = vmatprep.subr.mxu0 0.0
        %7197 = vmatpush1.msra.mxu0 0.0
        %7198 = vmatprep.subr.mxu0 0.0
        %7199 = vmatpush1.msra.mxu0 0.0
        %7200 = vmatprep.subr.mxu0 0.0
        %7201 = vmatpush1.msra.mxu0 0.0
        %7202 = vmatprep.subr.mxu0 0.0
        %7203 = vmatpush1.msra.mxu0 0.0
        %7204 = vmatprep.subr.mxu0 0.0
        %7205 = vmatpush1.msra.mxu0 0.0
        %7206 = vmatprep.subr.mxu0 0.0
        %7207 = vmatpush1.msra.mxu0 0.0
        %7208 = vmatprep.subr.mxu0 0.0
        %7209 = vmatpush1.msra.mxu0 0.0
        %7210 = vmatprep.subr.mxu0 0.0
        %7211 = vmatpush1.msra.mxu0 0.0
        %7212 = vmatprep.subr.mxu0 0.0
        %7213 = vmatpush1.msra.mxu0 0.0
        %7214 = vmatprep.subr.mxu0 0.0
        %7215 = vmatpush1.msra.mxu0 0.0
        %7216 = vmatprep.subr.mxu0 0.0
        %7217 = vmatpush1.msra.mxu0 0.0
        %7218 = vmatprep.subr.mxu0 0.0
        %7219 = vmatpush1.msra.mxu0 0.0
        %7220 = vmatprep.subr.mxu0 0.0
        %7221 = vmatpush1.msra.mxu0 0.0
        %7222 = vmatprep.subr.mxu0 0.0
        %7223 = vmatpush1.msra.mxu0 0.0
        %7224 = vmatprep.mubr.f32.mxu0 0.0
        %7225 = vmatmul.mubr.f32.gmra.mrb[0].mxu0 %v7016
        %v7226 = vpop.f32.mrb[0].mxu0
        %v7227 = vadd.f32 0.0, %v7226
        %v7228 = vpop.f32.mrb[0].mxu0
        %v7229 = vadd.f32 0.0, %v7228
        %7230 = vdwg.mxu0
        %7231 = vmatprep.subr.mxu0 %v439
        %7232 = vmatpush1.msra.mxu0 %v438
        %7233 = vmatprep.subr.mxu0 %v457
        %7234 = vmatpush1.msra.mxu0 %v456
        %7235 = vmatprep.subr.mxu0 0.0
        %7236 = vmatpush1.msra.mxu0 0.0
        %7237 = vmatprep.subr.mxu0 0.0
        %7238 = vmatpush1.msra.mxu0 0.0
        %7239 = vmatprep.subr.mxu0 0.0
        %7240 = vmatpush1.msra.mxu0 0.0
        %7241 = vmatprep.subr.mxu0 0.0
        %7242 = vmatpush1.msra.mxu0 0.0
        %7243 = vmatprep.subr.mxu0 0.0
        %7244 = vmatpush1.msra.mxu0 0.0
        %7245 = vmatprep.subr.mxu0 0.0
        %7246 = vmatpush1.msra.mxu0 0.0
        %7247 = vmatprep.subr.mxu0 0.0
        %7248 = vmatpush1.msra.mxu0 0.0
        %7249 = vmatprep.subr.mxu0 0.0
        %7250 = vmatpush1.msra.mxu0 0.0
        %7251 = vmatprep.subr.mxu0 0.0
        %7252 = vmatpush1.msra.mxu0 0.0
        %7253 = vmatprep.subr.mxu0 0.0
        %7254 = vmatpush1.msra.mxu0 0.0
        %7255 = vmatprep.subr.mxu0 0.0
        %7256 = vmatpush1.msra.mxu0 0.0
        %7257 = vmatprep.subr.mxu0 0.0
        %7258 = vmatpush1.msra.mxu0 0.0
        %7259 = vmatprep.subr.mxu0 0.0
        %7260 = vmatpush1.msra.mxu0 0.0
        %7261 = vmatprep.subr.mxu0 0.0
        %7262 = vmatpush1.msra.mxu0 0.0
        %7263 = vmatprep.subr.mxu0 0.0
        %7264 = vmatpush1.msra.mxu0 0.0
        %7265 = vmatprep.subr.mxu0 0.0
        %7266 = vmatpush1.msra.mxu0 0.0
        %7267 = vmatprep.subr.mxu0 0.0
        %7268 = vmatpush1.msra.mxu0 0.0
        %7269 = vmatprep.subr.mxu0 0.0
        %7270 = vmatpush1.msra.mxu0 0.0
        %7271 = vmatprep.subr.mxu0 0.0
        %7272 = vmatpush1.msra.mxu0 0.0
        %7273 = vmatprep.subr.mxu0 0.0
        %7274 = vmatpush1.msra.mxu0 0.0
        %7275 = vmatprep.subr.mxu0 0.0
        %7276 = vmatpush1.msra.mxu0 0.0
        %7277 = vmatprep.subr.mxu0 0.0
        %7278 = vmatpush1.msra.mxu0 0.0
        %7279 = vmatprep.subr.mxu0 0.0
        %7280 = vmatpush1.msra.mxu0 0.0
        %7281 = vmatprep.subr.mxu0 0.0
        %7282 = vmatpush1.msra.mxu0 0.0
        %7283 = vmatprep.subr.mxu0 0.0
        %7284 = vmatpush1.msra.mxu0 0.0
        %7285 = vmatprep.subr.mxu0 0.0
        %7286 = vmatpush1.msra.mxu0 0.0
        %7287 = vmatprep.subr.mxu0 0.0
        %7288 = vmatpush1.msra.mxu0 0.0
        %7289 = vmatprep.subr.mxu0 0.0
        %7290 = vmatpush1.msra.mxu0 0.0
        %7291 = vmatprep.subr.mxu0 0.0
        %7292 = vmatpush1.msra.mxu0 0.0
        %7293 = vmatprep.subr.mxu0 0.0
        %7294 = vmatpush1.msra.mxu0 0.0
        %7295 = vmatprep.mubr.f32.mxu0 0.0
        %7296 = vmatmul.mubr.f32.gmra.mrb[0].mxu0 %v7016
        %v7297 = vpop.f32.mrb[0].mxu0
        %v7298 = vadd.f32 0.0, %v7297
        %v7299 = vpop.f32.mrb[0].mxu0
        %v7300 = vadd.f32 0.0, %v7299
        %7301 = vdwg.mxu0
        %7302 = vmatprep.subr.mxu0 %v441
        %7303 = vmatpush1.msra.mxu0 %v440
        %7304 = vmatprep.subr.mxu0 %v459
        %7305 = vmatpush1.msra.mxu0 %v458
        %7306 = vmatprep.subr.mxu0 0.0
        %7307 = vmatpush1.msra.mxu0 0.0
        %7308 = vmatprep.subr.mxu0 0.0
        %7309 = vmatpush1.msra.mxu0 0.0
        %7310 = vmatprep.subr.mxu0 0.0
        %7311 = vmatpush1.msra.mxu0 0.0
        %7312 = vmatprep.subr.mxu0 0.0
        %7313 = vmatpush1.msra.mxu0 0.0
        %7314 = vmatprep.subr.mxu0 0.0
        %7315 = vmatpush1.msra.mxu0 0.0
        %7316 = vmatprep.subr.mxu0 0.0
        %7317 = vmatpush1.msra.mxu0 0.0
        %7318 = vmatprep.subr.mxu0 0.0
        %7319 = vmatpush1.msra.mxu0 0.0
        %7320 = vmatprep.subr.mxu0 0.0
        %7321 = vmatpush1.msra.mxu0 0.0
        %7322 = vmatprep.subr.mxu0 0.0
        %7323 = vmatpush1.msra.mxu0 0.0
        %7324 = vmatprep.subr.mxu0 0.0
        %7325 = vmatpush1.msra.mxu0 0.0
        %7326 = vmatprep.subr.mxu0 0.0
        %7327 = vmatpush1.msra.mxu0 0.0
        %7328 = vmatprep.subr.mxu0 0.0
        %7329 = vmatpush1.msra.mxu0 0.0
        %7330 = vmatprep.subr.mxu0 0.0
        %7331 = vmatpush1.msra.mxu0 0.0
        %7332 = vmatprep.subr.mxu0 0.0
        %7333 = vmatpush1.msra.mxu0 0.0
        %7334 = vmatprep.subr.mxu0 0.0
        %7335 = vmatpush1.msra.mxu0 0.0
        %7336 = vmatprep.subr.mxu0 0.0
        %7337 = vmatpush1.msra.mxu0 0.0
        %7338 = vmatprep.subr.mxu0 0.0
        %7339 = vmatpush1.msra.mxu0 0.0
        %7340 = vmatprep.subr.mxu0 0.0
        %7341 = vmatpush1.msra.mxu0 0.0
        %7342 = vmatprep.subr.mxu0 0.0
        %7343 = vmatpush1.msra.mxu0 0.0
        %7344 = vmatprep.subr.mxu0 0.0
        %7345 = vmatpush1.msra.mxu0 0.0
        %7346 = vmatprep.subr.mxu0 0.0
        %7347 = vmatpush1.msra.mxu0 0.0
        %7348 = vmatprep.subr.mxu0 0.0
        %7349 = vmatpush1.msra.mxu0 0.0
        %7350 = vmatprep.subr.mxu0 0.0
        %7351 = vmatpush1.msra.mxu0 0.0
        %7352 = vmatprep.subr.mxu0 0.0
        %7353 = vmatpush1.msra.mxu0 0.0
        %7354 = vmatprep.subr.mxu0 0.0
        %7355 = vmatpush1.msra.mxu0 0.0
        %7356 = vmatprep.subr.mxu0 0.0
        %7357 = vmatpush1.msra.mxu0 0.0
        %7358 = vmatprep.subr.mxu0 0.0
        %7359 = vmatpush1.msra.mxu0 0.0
        %7360 = vmatprep.subr.mxu0 0.0
        %7361 = vmatpush1.msra.mxu0 0.0
        %7362 = vmatprep.subr.mxu0 0.0
        %7363 = vmatpush1.msra.mxu0 0.0
        %7364 = vmatprep.subr.mxu0 0.0
        %7365 = vmatpush1.msra.mxu0 0.0
        %7366 = vmatprep.mubr.f32.mxu0 0.0
        %7367 = vmatmul.mubr.f32.gmra.mrb[0].mxu0 %v7016
        %v7368 = vpop.f32.mrb[0].mxu0
        %v7369 = vadd.f32 0.0, %v7368
        %v7370 = vpop.f32.mrb[0].mxu0
        %v7371 = vadd.f32 0.0, %v7370
        %7372 = vdwg.mxu0
        %7373 = vmatprep.subr.mxu0 %v443
        %7374 = vmatpush1.msra.mxu0 %v442
        %7375 = vmatprep.subr.mxu0 %v461
        %7376 = vmatpush1.msra.mxu0 %v460
        %7377 = vmatprep.subr.mxu0 0.0
        %7378 = vmatpush1.msra.mxu0 0.0
        %7379 = vmatprep.subr.mxu0 0.0
        %7380 = vmatpush1.msra.mxu0 0.0
        %7381 = vmatprep.subr.mxu0 0.0
        %7382 = vmatpush1.msra.mxu0 0.0
        %7383 = vmatprep.subr.mxu0 0.0
        %7384 = vmatpush1.msra.mxu0 0.0
        %7385 = vmatprep.subr.mxu0 0.0
        %7386 = vmatpush1.msra.mxu0 0.0
        %7387 = vmatprep.subr.mxu0 0.0
        %7388 = vmatpush1.msra.mxu0 0.0
        %7389 = vmatprep.subr.mxu0 0.0
        %7390 = vmatpush1.msra.mxu0 0.0
        %7391 = vmatprep.subr.mxu0 0.0
        %7392 = vmatpush1.msra.mxu0 0.0
        %7393 = vmatprep.subr.mxu0 0.0
        %7394 = vmatpush1.msra.mxu0 0.0
        %7395 = vmatprep.subr.mxu0 0.0
        %7396 = vmatpush1.msra.mxu0 0.0
        %7397 = vmatprep.subr.mxu0 0.0
        %7398 = vmatpush1.msra.mxu0 0.0
        %7399 = vmatprep.subr.mxu0 0.0
        %7400 = vmatpush1.msra.mxu0 0.0
        %7401 = vmatprep.subr.mxu0 0.0
        %7402 = vmatpush1.msra.mxu0 0.0
        %7403 = vmatprep.subr.mxu0 0.0
        %7404 = vmatpush1.msra.mxu0 0.0
        %7405 = vmatprep.subr.mxu0 0.0
        %7406 = vmatpush1.msra.mxu0 0.0
        %7407 = vmatprep.subr.mxu0 0.0
        %7408 = vmatpush1.msra.mxu0 0.0
        %7409 = vmatprep.subr.mxu0 0.0
        %7410 = vmatpush1.msra.mxu0 0.0
        %7411 = vmatprep.subr.mxu0 0.0
        %7412 = vmatpush1.msra.mxu0 0.0
        %7413 = vmatprep.subr.mxu0 0.0
        %7414 = vmatpush1.msra.mxu0 0.0
        %7415 = vmatprep.subr.mxu0 0.0
        %7416 = vmatpush1.msra.mxu0 0.0
        %7417 = vmatprep.subr.mxu0 0.0
        %7418 = vmatpush1.msra.mxu0 0.0
        %7419 = vmatprep.subr.mxu0 0.0
        %7420 = vmatpush1.msra.mxu0 0.0
        %7421 = vmatprep.subr.mxu0 0.0
        %7422 = vmatpush1.msra.mxu0 0.0
        %7423 = vmatprep.subr.mxu0 0.0
        %7424 = vmatpush1.msra.mxu0 0.0
        %7425 = vmatprep.subr.mxu0 0.0
        %7426 = vmatpush1.msra.mxu0 0.0
        %7427 = vmatprep.subr.mxu0 0.0
        %7428 = vmatpush1.msra.mxu0 0.0
        %7429 = vmatprep.subr.mxu0 0.0
        %7430 = vmatpush1.msra.mxu0 0.0
        %7431 = vmatprep.subr.mxu0 0.0
        %7432 = vmatpush1.msra.mxu0 0.0
        %7433 = vmatprep.subr.mxu0 0.0
        %7434 = vmatpush1.msra.mxu0 0.0
        %7435 = vmatprep.subr.mxu0 0.0
        %7436 = vmatpush1.msra.mxu0 0.0
        %7437 = vmatprep.mubr.f32.mxu0 0.0
        %7438 = vmatmul.mubr.f32.gmra.mrb[0].mxu0 %v7016
        %v7439 = vpop.f32.mrb[0].mxu0
        %v7440 = vadd.f32 0.0, %v7439
        %v7441 = vpop.f32.mrb[0].mxu0
        %v7442 = vadd.f32 0.0, %v7441
        %7443 = vdwg.mxu0
        %7444 = vmatprep.subr.mxu0 %v445
        %7445 = vmatpush1.msra.mxu0 %v444
        %7446 = vmatprep.subr.mxu0 %v463
        %7447 = vmatpush1.msra.mxu0 %v462
        %7448 = vmatprep.subr.mxu0 0.0
        %7449 = vmatpush1.msra.mxu0 0.0
        %7450 = vmatprep.subr.mxu0 0.0
        %7451 = vmatpush1.msra.mxu0 0.0
        %7452 = vmatprep.subr.mxu0 0.0
        %7453 = vmatpush1.msra.mxu0 0.0
        %7454 = vmatprep.subr.mxu0 0.0
        %7455 = vmatpush1.msra.mxu0 0.0
        %7456 = vmatprep.subr.mxu0 0.0
        %7457 = vmatpush1.msra.mxu0 0.0
        %7458 = vmatprep.subr.mxu0 0.0
        %7459 = vmatpush1.msra.mxu0 0.0
        %7460 = vmatprep.subr.mxu0 0.0
        %7461 = vmatpush1.msra.mxu0 0.0
        %7462 = vmatprep.subr.mxu0 0.0
        %7463 = vmatpush1.msra.mxu0 0.0
        %7464 = vmatprep.subr.mxu0 0.0
        %7465 = vmatpush1.msra.mxu0 0.0
        %7466 = vmatprep.subr.mxu0 0.0
        %7467 = vmatpush1.msra.mxu0 0.0
        %7468 = vmatprep.subr.mxu0 0.0
        %7469 = vmatpush1.msra.mxu0 0.0
        %7470 = vmatprep.subr.mxu0 0.0
        %7471 = vmatpush1.msra.mxu0 0.0
        %7472 = vmatprep.subr.mxu0 0.0
        %7473 = vmatpush1.msra.mxu0 0.0
        %7474 = vmatprep.subr.mxu0 0.0
        %7475 = vmatpush1.msra.mxu0 0.0
        %7476 = vmatprep.subr.mxu0 0.0
        %7477 = vmatpush1.msra.mxu0 0.0
        %7478 = vmatprep.subr.mxu0 0.0
        %7479 = vmatpush1.msra.mxu0 0.0
        %7480 = vmatprep.subr.mxu0 0.0
        %7481 = vmatpush1.msra.mxu0 0.0
        %7482 = vmatprep.subr.mxu0 0.0
        %7483 = vmatpush1.msra.mxu0 0.0
        %7484 = vmatprep.subr.mxu0 0.0
        %7485 = vmatpush1.msra.mxu0 0.0
        %7486 = vmatprep.subr.mxu0 0.0
        %7487 = vmatpush1.msra.mxu0 0.0
        %7488 = vmatprep.subr.mxu0 0.0
        %7489 = vmatpush1.msra.mxu0 0.0
        %7490 = vmatprep.subr.mxu0 0.0
        %7491 = vmatpush1.msra.mxu0 0.0
        %7492 = vmatprep.subr.mxu0 0.0
        %7493 = vmatpush1.msra.mxu0 0.0
        %7494 = vmatprep.subr.mxu0 0.0
        %7495 = vmatpush1.msra.mxu0 0.0
        %7496 = vmatprep.subr.mxu0 0.0
        %7497 = vmatpush1.msra.mxu0 0.0
        %7498 = vmatprep.subr.mxu0 0.0
        %7499 = vmatpush1.msra.mxu0 0.0
        %7500 = vmatprep.subr.mxu0 0.0
        %7501 = vmatpush1.msra.mxu0 0.0
        %7502 = vmatprep.subr.mxu0 0.0
        %7503 = vmatpush1.msra.mxu0 0.0
        %7504 = vmatprep.subr.mxu0 0.0
        %7505 = vmatpush1.msra.mxu0 0.0
        %7506 = vmatprep.subr.mxu0 0.0
        %7507 = vmatpush1.msra.mxu0 0.0
        %7508 = vmatprep.mubr.f32.mxu0 0.0
        %7509 = vmatmul.mubr.f32.gmra.mrb[0].mxu0 %v7016
        %v7510 = vpop.f32.mrb[0].mxu0
        %v7511 = vadd.f32 0.0, %v7510
        %v7512 = vpop.f32.mrb[0].mxu0
        %v7513 = vadd.f32 0.0, %v7512
        %7514 = vdwg.mxu0
        %7515 = vmatprep.subr.mxu0 %v447
        %7516 = vmatpush1.msra.mxu0 %v446
        %7517 = vmatprep.subr.mxu0 %v465
        %7518 = vmatpush1.msra.mxu0 %v464
        %7519 = vmatprep.subr.mxu0 0.0
        %7520 = vmatpush1.msra.mxu0 0.0
        %7521 = vmatprep.subr.mxu0 0.0
        %7522 = vmatpush1.msra.mxu0 0.0
        %7523 = vmatprep.subr.mxu0 0.0
        %7524 = vmatpush1.msra.mxu0 0.0
        %7525 = vmatprep.subr.mxu0 0.0
        %7526 = vmatpush1.msra.mxu0 0.0
        %7527 = vmatprep.subr.mxu0 0.0
        %7528 = vmatpush1.msra.mxu0 0.0
        %7529 = vmatprep.subr.mxu0 0.0
        %7530 = vmatpush1.msra.mxu0 0.0
        %7531 = vmatprep.subr.mxu0 0.0
        %7532 = vmatpush1.msra.mxu0 0.0
        %7533 = vmatprep.subr.mxu0 0.0
        %7534 = vmatpush1.msra.mxu0 0.0
        %7535 = vmatprep.subr.mxu0 0.0
        %7536 = vmatpush1.msra.mxu0 0.0
        %7537 = vmatprep.subr.mxu0 0.0
        %7538 = vmatpush1.msra.mxu0 0.0
        %7539 = vmatprep.subr.mxu0 0.0
        %7540 = vmatpush1.msra.mxu0 0.0
        %7541 = vmatprep.subr.mxu0 0.0
        %7542 = vmatpush1.msra.mxu0 0.0
        %7543 = vmatprep.subr.mxu0 0.0
        %7544 = vmatpush1.msra.mxu0 0.0
        %7545 = vmatprep.subr.mxu0 0.0
        %7546 = vmatpush1.msra.mxu0 0.0
        %7547 = vmatprep.subr.mxu0 0.0
        %7548 = vmatpush1.msra.mxu0 0.0
        %7549 = vmatprep.subr.mxu0 0.0
        %7550 = vmatpush1.msra.mxu0 0.0
        %7551 = vmatprep.subr.mxu0 0.0
        %7552 = vmatpush1.msra.mxu0 0.0
        %7553 = vmatprep.subr.mxu0 0.0
        %7554 = vmatpush1.msra.mxu0 0.0
        %7555 = vmatprep.subr.mxu0 0.0
        %7556 = vmatpush1.msra.mxu0 0.0
        %7557 = vmatprep.subr.mxu0 0.0
        %7558 = vmatpush1.msra.mxu0 0.0
        %7559 = vmatprep.subr.mxu0 0.0
        %7560 = vmatpush1.msra.mxu0 0.0
        %7561 = vmatprep.subr.mxu0 0.0
        %7562 = vmatpush1.msra.mxu0 0.0
        %7563 = vmatprep.subr.mxu0 0.0
        %7564 = vmatpush1.msra.mxu0 0.0
        %7565 = vmatprep.subr.mxu0 0.0
        %7566 = vmatpush1.msra.mxu0 0.0
        %7567 = vmatprep.subr.mxu0 0.0
        %7568 = vmatpush1.msra.mxu0 0.0
        %7569 = vmatprep.subr.mxu0 0.0
        %7570 = vmatpush1.msra.mxu0 0.0
        %7571 = vmatprep.subr.mxu0 0.0
        %7572 = vmatpush1.msra.mxu0 0.0
        %7573 = vmatprep.subr.mxu0 0.0
        %7574 = vmatpush1.msra.mxu0 0.0
        %7575 = vmatprep.subr.mxu0 0.0
        %7576 = vmatpush1.msra.mxu0 0.0
        %7577 = vmatprep.subr.mxu0 0.0
        %7578 = vmatpush1.msra.mxu0 0.0
        %7579 = vmatprep.mubr.f32.mxu0 0.0
        %7580 = vmatmul.mubr.f32.gmra.mrb[0].mxu0 %v7016
        %v7581 = vpop.f32.mrb[0].mxu0
        %v7582 = vadd.f32 0.0, %v7581
        %v7583 = vpop.f32.mrb[0].mxu0
        %v7584 = vadd.f32 0.0, %v7583
        %7585 = vdwg.mxu0
        %7586 = vmatprep.subr.mxu0 %v449
        %7587 = vmatpush1.msra.mxu0 %v448
        %7588 = vmatprep.subr.mxu0 %v467
        %7589 = vmatpush1.msra.mxu0 %v466
        %7590 = vmatprep.subr.mxu0 0.0
        %7591 = vmatpush1.msra.mxu0 0.0
        %7592 = vmatprep.subr.mxu0 0.0
        %7593 = vmatpush1.msra.mxu0 0.0
        %7594 = vmatprep.subr.mxu0 0.0
        %7595 = vmatpush1.msra.mxu0 0.0
        %7596 = vmatprep.subr.mxu0 0.0
        %7597 = vmatpush1.msra.mxu0 0.0
        %7598 = vmatprep.subr.mxu0 0.0
        %7599 = vmatpush1.msra.mxu0 0.0
        %7600 = vmatprep.subr.mxu0 0.0
        %7601 = vmatpush1.msra.mxu0 0.0
        %7602 = vmatprep.subr.mxu0 0.0
        %7603 = vmatpush1.msra.mxu0 0.0
        %7604 = vmatprep.subr.mxu0 0.0
        %7605 = vmatpush1.msra.mxu0 0.0
        %7606 = vmatprep.subr.mxu0 0.0
        %7607 = vmatpush1.msra.mxu0 0.0
        %7608 = vmatprep.subr.mxu0 0.0
        %7609 = vmatpush1.msra.mxu0 0.0
        %7610 = vmatprep.subr.mxu0 0.0
        %7611 = vmatpush1.msra.mxu0 0.0
        %7612 = vmatprep.subr.mxu0 0.0
        %7613 = vmatpush1.msra.mxu0 0.0
        %7614 = vmatprep.subr.mxu0 0.0
        %7615 = vmatpush1.msra.mxu0 0.0
        %7616 = vmatprep.subr.mxu0 0.0
        %7617 = vmatpush1.msra.mxu0 0.0
        %7618 = vmatprep.subr.mxu0 0.0
        %7619 = vmatpush1.msra.mxu0 0.0
        %7620 = vmatprep.subr.mxu0 0.0
        %7621 = vmatpush1.msra.mxu0 0.0
        %7622 = vmatprep.subr.mxu0 0.0
        %7623 = vmatpush1.msra.mxu0 0.0
        %7624 = vmatprep.subr.mxu0 0.0
        %7625 = vmatpush1.msra.mxu0 0.0
        %7626 = vmatprep.subr.mxu0 0.0
        %7627 = vmatpush1.msra.mxu0 0.0
        %7628 = vmatprep.subr.mxu0 0.0
        %7629 = vmatpush1.msra.mxu0 0.0
        %7630 = vmatprep.subr.mxu0 0.0
        %7631 = vmatpush1.msra.mxu0 0.0
        %7632 = vmatprep.subr.mxu0 0.0
        %7633 = vmatpush1.msra.mxu0 0.0
        %7634 = vmatprep.subr.mxu0 0.0
        %7635 = vmatpush1.msra.mxu0 0.0
        %7636 = vmatprep.subr.mxu0 0.0
        %7637 = vmatpush1.msra.mxu0 0.0
        %7638 = vmatprep.subr.mxu0 0.0
        %7639 = vmatpush1.msra.mxu0 0.0
        %7640 = vmatprep.subr.mxu0 0.0
        %7641 = vmatpush1.msra.mxu0 0.0
        %7642 = vmatprep.subr.mxu0 0.0
        %7643 = vmatpush1.msra.mxu0 0.0
        %7644 = vmatprep.subr.mxu0 0.0
        %7645 = vmatpush1.msra.mxu0 0.0
        %7646 = vmatprep.subr.mxu0 0.0
        %7647 = vmatpush1.msra.mxu0 0.0
        %7648 = vmatprep.subr.mxu0 0.0
        %7649 = vmatpush1.msra.mxu0 0.0
        %7650 = vmatprep.mubr.f32.mxu0 0.0
        %7651 = vmatmul.mubr.f32.gmra.mrb[0].mxu0 %v7016
        %v7652 = vpop.f32.mrb[0].mxu0
        %v7653 = vadd.f32 0.0, %v7652
        %v7654 = vpop.f32.mrb[0].mxu0
        %v7655 = vadd.f32 0.0, %v7654
        %7656 = vdwg.mxu0
        %7657 = vrot.lane.b32.xlu0 %v7085, 60
        %v7658 = vpop.permute.xlu0 %7657
        %7659 = vrot.lane.b32.xlu0 %v7087, 60
        %v7660 = vpop.permute.xlu0 %7659
        %7661 = vrot.lane.b32.xlu0 %v7156, 60
        %v7662 = vpop.permute.xlu0 %7661
        %7663 = vrot.lane.b32.xlu0 %v7158, 60
        %v7664 = vpop.permute.xlu0 %7663
        %7665 = vrot.lane.b32.xlu0 %v7227, 60
        %v7666 = vpop.permute.xlu0 %7665
        %7667 = vrot.lane.b32.xlu0 %v7229, 60
        %v7668 = vpop.permute.xlu0 %7667
        %7669 = vrot.lane.b32.xlu0 %v7298, 60
        %v7670 = vpop.permute.xlu0 %7669
        %7671 = vrot.lane.b32.xlu0 %v7300, 60
        %v7672 = vpop.permute.xlu0 %7671
        %7673 = vrot.lane.b32.xlu0 %v7369, 60
        %v7674 = vpop.permute.xlu0 %7673
        %7675 = vrot.lane.b32.xlu0 %v7371, 60
        %v7676 = vpop.permute.xlu0 %7675
        %7677 = vrot.lane.b32.xlu0 %v7440, 60
        %v7678 = vpop.permute.xlu0 %7677
        %7679 = vrot.lane.b32.xlu0 %v7442, 60
        %v7680 = vpop.permute.xlu0 %7679
        %7681 = vrot.lane.b32.xlu0 %v7511, 60
        %v7682 = vpop.permute.xlu0 %7681
        %7683 = vrot.lane.b32.xlu0 %v7513, 60
        %v7684 = vpop.permute.xlu0 %7683
        %7685 = vrot.lane.b32.xlu0 %v7582, 60
        %v7686 = vpop.permute.xlu0 %7685
        %7687 = vrot.lane.b32.xlu0 %v7584, 60
        %v7688 = vpop.permute.xlu0 %7687
        %7689 = vrot.lane.b32.xlu0 %v7653, 60
        %v7690 = vpop.permute.xlu0 %7689
        %7691 = vrot.lane.b32.xlu0 %v7655, 60
        %v7692 = vpop.permute.xlu0 %7691
        %v7693 = vsel %vm2843, %v7690, %v7692
        %v7694 = vsel %vm2843, %v7688, %v7690
        %v7695 = vsel %vm2843, %v7686, %v7688
        %v7696 = vsel %vm2843, %v7684, %v7686
        %v7697 = vsel %vm2843, %v7682, %v7684
        %v7698 = vsel %vm2843, %v7680, %v7682
        %v7699 = vsel %vm2843, %v7678, %v7680
        %v7700 = vsel %vm2843, %v7676, %v7678
        %v7701 = vsel %vm2843, %v7674, %v7676
        %v7702 = vsel %vm2843, %v7672, %v7674
        %v7703 = vsel %vm2843, %v7670, %v7672
        %v7704 = vsel %vm2843, %v7668, %v7670
        %v7705 = vsel %vm2843, %v7666, %v7668
        %v7706 = vsel %vm2843, %v7664, %v7666
        %v7707 = vsel %vm2843, %v7662, %v7664
        %v7708 = vsel %vm2843, %v7660, %v7662
        %v7709 = vsel %vm2843, %v7658, %v7660
        %v7710 = vsel %vm2843, %v7692, %v7658
        %s7711 = scalar_lea.vmem %s2, 144
        %v7712 = vld [vmem:[%s7711] ss:$8 sm:$0xf]
        %v7713 = vld [vmem:[%s7711] ss:$8 sm:$0xf0]
        %v7714 = vor.u32 %v7712, %v7713
        %s7715 = scalar_lea.vmem %s2, 208
        %v7716 = vld [vmem:[%s7715] ss:$8 sm:$0xf]
        %v7717 = vld [vmem:[%s7715] ss:$8 sm:$0xf0]
        %v7718 = vor.u32 %v7716, %v7717
        %s7719 = scalar_lea.vmem %s2, 272
        %v7720 = vld [vmem:[%s7719] ss:$8 sm:$0x3]
        %v7724 = vlaneseq
        %v7725 = vshrl.u32 %v7724, 7
        %v7726 = vsub.s32 0, %v7725
        %v7727 = vrot.slane %v7714, %v7726
        %v7728 = vlaneseq
        %v7729 = vshrl.u32 %v7728, 7
        %v7730 = vsub.s32 1, %v7729
        %v7731 = vrot.slane %v7714, %v7730
        %v7732 = vlaneseq
        %v7733 = vshrl.u32 %v7732, 7
        %v7734 = vsub.s32 2, %v7733
        %v7735 = vrot.slane %v7714, %v7734
        %v7736 = vlaneseq
        %v7737 = vshrl.u32 %v7736, 7
        %v7738 = vsub.s32 3, %v7737
        %v7739 = vrot.slane %v7714, %v7738
        %v7740 = vlaneseq
        %v7741 = vshrl.u32 %v7740, 7
        %v7742 = vsub.s32 4, %v7741
        %v7743 = vrot.slane %v7714, %v7742
        %v7744 = vlaneseq
        %v7745 = vshrl.u32 %v7744, 7
        %v7746 = vsub.s32 5, %v7745
        %v7747 = vrot.slane %v7714, %v7746
        %v7748 = vlaneseq
        %v7749 = vshrl.u32 %v7748, 7
        %v7750 = vsub.s32 6, %v7749
        %v7751 = vrot.slane %v7714, %v7750
        %v7752 = vlaneseq
        %v7753 = vshrl.u32 %v7752, 7
        %v7754 = vsub.s32 7, %v7753
        %v7755 = vrot.slane %v7714, %v7754
        %v7756 = vlaneseq
        %v7757 = vshrl.u32 %v7756, 7
        %v7758 = vsub.s32 0, %v7757
        %v7759 = vrot.slane %v7718, %v7758
        %v7760 = vlaneseq
        %v7761 = vshrl.u32 %v7760, 7
        %v7762 = vsub.s32 1, %v7761
        %v7763 = vrot.slane %v7718, %v7762
        %v7764 = vlaneseq
        %v7765 = vshrl.u32 %v7764, 7
        %v7766 = vsub.s32 2, %v7765
        %v7767 = vrot.slane %v7718, %v7766
        %v7768 = vlaneseq
        %v7769 = vshrl.u32 %v7768, 7
        %v7770 = vsub.s32 3, %v7769
        %v7771 = vrot.slane %v7718, %v7770
        %v7772 = vlaneseq
        %v7773 = vshrl.u32 %v7772, 7
        %v7774 = vsub.s32 4, %v7773
        %v7775 = vrot.slane %v7718, %v7774
        %v7776 = vlaneseq
        %v7777 = vshrl.u32 %v7776, 7
        %v7778 = vsub.s32 5, %v7777
        %v7779 = vrot.slane %v7718, %v7778
        %v7780 = vlaneseq
        %v7781 = vshrl.u32 %v7780, 7
        %v7782 = vsub.s32 6, %v7781
        %v7783 = vrot.slane %v7718, %v7782
        %v7784 = vlaneseq
        %v7785 = vshrl.u32 %v7784, 7
        %v7786 = vsub.s32 7, %v7785
        %v7787 = vrot.slane %v7718, %v7786
        %v7788 = vlaneseq
        %v7789 = vshrl.u32 %v7788, 7
        %v7790 = vsub.s32 0, %v7789
        %v7791 = vrot.slane %v7720, %v7790
        %v7792 = vlaneseq
        %v7793 = vshrl.u32 %v7792, 7
        %v7794 = vsub.s32 1, %v7793
        %v7795 = vrot.slane %v7720, %v7794
        %v7814 = vmul.f32 %v7708, %v7727
        %v7815 = vmul.f32 %v7707, %v7731
        %v7816 = vmul.f32 %v7706, %v7735
        %v7817 = vmul.f32 %v7705, %v7739
        %v7818 = vmul.f32 %v7704, %v7743
        %v7819 = vmul.f32 %v7703, %v7747
        %v7820 = vmul.f32 %v7702, %v7751
        %v7821 = vmul.f32 %v7701, %v7755
        %v7822 = vmul.f32 %v7700, %v7759
        %v7823 = vmul.f32 %v7699, %v7763
        %v7824 = vmul.f32 %v7698, %v7767
        %v7825 = vmul.f32 %v7697, %v7771
        %v7826 = vmul.f32 %v7696, %v7775
        %v7827 = vmul.f32 %v7695, %v7779
        %v7828 = vmul.f32 %v7694, %v7783
        %v7829 = vmul.f32 %v7693, %v7787
        %v7830 = vmul.f32 %v7710, %v7791
        %v7831 = vmul.f32 %v7709, %v7795
        %v7832 = vadd.f32 %v6995, %v7814
        %v7833 = vadd.f32 %v6996, %v7815
        %v7834 = vadd.f32 %v6997, %v7816
        %v7835 = vadd.f32 %v6998, %v7817
        %v7836 = vadd.f32 %v6999, %v7818
        %v7837 = vadd.f32 %v7000, %v7819
        %v7838 = vadd.f32 %v7001, %v7820
        %v7839 = vadd.f32 %v7002, %v7821
        %v7840 = vadd.f32 %v7003, %v7822
        %v7841 = vadd.f32 %v7004, %v7823
        %v7842 = vadd.f32 %v7005, %v7824
        %v7843 = vadd.f32 %v7006, %v7825
        %v7844 = vadd.f32 %v7007, %v7826
        %v7845 = vadd.f32 %v7008, %v7827
        %v7846 = vadd.f32 %v7009, %v7828
        %v7847 = vadd.f32 %v7010, %v7829
        %v7848 = vadd.f32 %v7011, %v7830
        %v7849 = vadd.f32 %v7012, %v7831
        %v7850 = vld [vmem:[%s5] sm:$0xff]
        %7852 = vset.pattern.permute.xlu0 0
        %7853 = vperm.xlu0 %7852, %v7850
        %v7854 = vpop.permute.xlu0 %7853
        %v7856 = vadd.f32 %v7832, %v7854
        %v7857 = vadd.f32 %v7833, %v7854
        %v7858 = vadd.f32 %v7834, %v7854
        %v7859 = vadd.f32 %v7835, %v7854
        %v7860 = vadd.f32 %v7836, %v7854
        %v7861 = vadd.f32 %v7837, %v7854
        %v7862 = vadd.f32 %v7838, %v7854
        %v7863 = vadd.f32 %v7839, %v7854
        %v7864 = vadd.f32 %v7840, %v7854
        %v7865 = vadd.f32 %v7841, %v7854
        %v7866 = vadd.f32 %v7842, %v7854
        %v7867 = vadd.f32 %v7843, %v7854
        %v7868 = vadd.f32 %v7844, %v7854
        %v7869 = vadd.f32 %v7845, %v7854
        %v7870 = vadd.f32 %v7846, %v7854
        %v7871 = vadd.f32 %v7847, %v7854
        %v7872 = vadd.f32 %v7848, %v7854
        %v7873 = vadd.f32 %v7849, %v7854
        %v7874 = vmax.f32 %v7856, 0.0
        %v7875 = vmax.f32 %v7857, 0.0
        %v7876 = vmax.f32 %v7858, 0.0
        %v7877 = vmax.f32 %v7859, 0.0
        %v7878 = vmax.f32 %v7860, 0.0
        %v7879 = vmax.f32 %v7861, 0.0
        %v7880 = vmax.f32 %v7862, 0.0
        %v7881 = vmax.f32 %v7863, 0.0
        %v7882 = vmax.f32 %v7864, 0.0
        %v7883 = vmax.f32 %v7865, 0.0
        %v7884 = vmax.f32 %v7866, 0.0
        %v7885 = vmax.f32 %v7867, 0.0
        %v7886 = vmax.f32 %v7868, 0.0
        %v7887 = vmax.f32 %v7869, 0.0
        %v7888 = vmax.f32 %v7870, 0.0
        %v7889 = vmax.f32 %v7871, 0.0
        %v7890 = vmax.f32 %v7872, 0.0
        %v7891 = vmax.f32 %v7873, 0.0
        %v7892 = vld [vmem:[%s3] sm:$0xff]
        %v7893 = vld [vmem:[%s3 + $0x8] sm:$0xff]
        %v7894 = vld [vmem:[%s3 + $0x10] sm:$0xff]
        %v7895 = vld [vmem:[%s3 + $0x18] sm:$0xff]
        %v7896 = vld [vmem:[%s3 + $0x20] sm:$0xff]
        %v7897 = vld [vmem:[%s3 + $0x28] sm:$0xff]
        %v7898 = vld [vmem:[%s3 + $0x30] sm:$0xff]
        %v7899 = vld [vmem:[%s3 + $0x38] sm:$0xff]
        %v7900 = vld [vmem:[%s3 + $0x40] sm:$0xff]
        %v7901 = vld [vmem:[%s3 + $0x48] sm:$0xff]
        %v7902 = vld [vmem:[%s3 + $0x50] sm:$0xff]
        %v7903 = vld [vmem:[%s3 + $0x58] sm:$0xff]
        %v7904 = vld [vmem:[%s3 + $0x60] sm:$0xff]
        %v7905 = vld [vmem:[%s3 + $0x68] sm:$0xff]
        %v7906 = vld [vmem:[%s3 + $0x70] sm:$0xff]
        %v7907 = vld [vmem:[%s3 + $0x78] sm:$0xff]
        %v7908 = vld [vmem:[%s3 + $0x80] sm:$0xff]
        %v7909 = vld [vmem:[%s3 + $0x88] sm:$0xff]
        %v7910 = vld [vmem:[%s3 + $0x90] sm:$0xff]
        %v7911 = vld [vmem:[%s3 + $0x98] sm:$0xff]
        %v7912 = vld [vmem:[%s3 + $0xa0] sm:$0xff]
        %v7913 = vld [vmem:[%s3 + $0xa8] sm:$0xff]
        %v7914 = vld [vmem:[%s3 + $0xb0] sm:$0xff]
        %v7915 = vld [vmem:[%s3 + $0xb8] sm:$0xff]
        %v7916 = vld [vmem:[%s3 + $0xc0] sm:$0xff]
        %v7917 = vld [vmem:[%s3 + $0xc8] sm:$0xff]
        %v7918 = vld [vmem:[%s3 + $0xd0] sm:$0xff]
        %v7919 = vld [vmem:[%s3 + $0xd8] sm:$0xff]
        %v7920 = vld [vmem:[%s3 + $0xe0] sm:$0xff]
        %v7921 = vld [vmem:[%s3 + $0xe8] sm:$0xff]
        %v7922 = vld [vmem:[%s3 + $0xf0] sm:$0xff]
        %v7923 = vld [vmem:[%s3 + $0xf8] sm:$0xff]
        %v7924 = vld [vmem:[%s3 + $0x100] sm:$0xff]
        %v7925 = vld [vmem:[%s3 + $0x108] sm:$0xff]
        %v7926 = vld [vmem:[%s3 + $0x110] sm:$0xff]
        %v7927 = vld [vmem:[%s3 + $0x118] sm:$0xff]
        %v7928 = vld [vmem:[%s3 + $0x120] sm:$0xff]
        %v7929 = vld [vmem:[%s3 + $0x128] sm:$0xff]
        %v7930 = vld [vmem:[%s3 + $0x130] sm:$0xff]
        %v7931 = vld [vmem:[%s3 + $0x138] sm:$0xff]
        %v7932 = vld [vmem:[%s3 + $0x140] sm:$0xff]
        %v7933 = vld [vmem:[%s3 + $0x148] sm:$0xff]
        %v7934 = vld [vmem:[%s3 + $0x150] sm:$0xff]
        %v7935 = vld [vmem:[%s3 + $0x158] sm:$0xff]
        %v7936 = vld [vmem:[%s3 + $0x160] sm:$0xff]
        %v7937 = vld [vmem:[%s3 + $0x168] sm:$0xff]
        %v7938 = vld [vmem:[%s3 + $0x170] sm:$0xff]
        %v7939 = vld [vmem:[%s3 + $0x178] sm:$0xff]
        %v7940 = vld [vmem:[%s3 + $0x180] sm:$0xff]
        %v7941 = vld [vmem:[%s3 + $0x188] sm:$0xff]
        %v7942 = vld [vmem:[%s3 + $0x190] sm:$0xff]
        %v7943 = vld [vmem:[%s3 + $0x198] sm:$0xff]
        %v7944 = vld [vmem:[%s3 + $0x1a0] sm:$0xff]
        %v7945 = vld [vmem:[%s3 + $0x1a8] sm:$0xff]
        %v7946 = vld [vmem:[%s3 + $0x1b0] sm:$0xff]
        %v7947 = vld [vmem:[%s3 + $0x1b8] sm:$0xff]
        %v7948 = vld [vmem:[%s3 + $0x1c0] sm:$0xff]
        %v7949 = vld [vmem:[%s3 + $0x1c8] sm:$0xff]
        %v7950 = vld [vmem:[%s3 + $0x1d0] sm:$0xff]
        %v7951 = vld [vmem:[%s3 + $0x1d8] sm:$0xff]
        %v7952 = vld [vmem:[%s3 + $0x1e0] sm:$0xff]
        %v7953 = vld [vmem:[%s3 + $0x1e8] sm:$0xff]
        %v7954 = vld [vmem:[%s3 + $0x1f0] sm:$0xff]
        %v7955 = vld [vmem:[%s3 + $0x1f8] sm:$0xff]
        %v7956 = vld [vmem:[%s3 + $0x200] sm:$0xff]
        %v7957 = vld [vmem:[%s3 + $0x208] sm:$0xff]
        %v7958 = vld [vmem:[%s3 + $0x210] sm:$0xff]
        %v7959 = vld [vmem:[%s3 + $0x218] sm:$0xff]
        %v7960 = vld [vmem:[%s3 + $0x220] sm:$0xff]
        %v7961 = vld [vmem:[%s3 + $0x228] sm:$0xff]
        %v7962 = vld [vmem:[%s3 + $0x230] sm:$0xff]
        %v7963 = vld [vmem:[%s3 + $0x238] sm:$0xff]
        %v7964 = vld [vmem:[%s3 + $0x240] sm:$0xff]
        %v7965 = vld [vmem:[%s3 + $0x248] sm:$0xff]
        %v7966 = vld [vmem:[%s3 + $0x250] sm:$0xff]
        %v7967 = vld [vmem:[%s3 + $0x258] sm:$0xff]
        %v7968 = vld [vmem:[%s3 + $0x260] sm:$0xff]
        %v7969 = vld [vmem:[%s3 + $0x268] sm:$0xff]
        %v7970 = vld [vmem:[%s3 + $0x270] sm:$0xff]
        %v7971 = vld [vmem:[%s3 + $0x278] sm:$0xff]
        %v7972 = vld [vmem:[%s3 + $0x280] sm:$0xff]
        %v7973 = vld [vmem:[%s3 + $0x288] sm:$0xff]
        %v7974 = vld [vmem:[%s3 + $0x290] sm:$0xff]
        %v7975 = vld [vmem:[%s3 + $0x298] sm:$0xff]
        %v7976 = vld [vmem:[%s3 + $0x2a0] sm:$0xff]
        %v7977 = vld [vmem:[%s3 + $0x2a8] sm:$0xff]
        %v7978 = vld [vmem:[%s3 + $0x2b0] sm:$0xff]
        %v7979 = vld [vmem:[%s3 + $0x2b8] sm:$0xff]
        %v7980 = vld [vmem:[%s3 + $0x2c0] sm:$0xff]
        %v7981 = vld [vmem:[%s3 + $0x2c8] sm:$0xff]
        %v7982 = vld [vmem:[%s3 + $0x2d0] sm:$0xff]
        %v7983 = vld [vmem:[%s3 + $0x2d8] sm:$0xff]
        %v7984 = vld [vmem:[%s3 + $0x2e0] sm:$0xff]
        %v7985 = vld [vmem:[%s3 + $0x2e8] sm:$0xff]
        %v7986 = vld [vmem:[%s3 + $0x2f0] sm:$0xff]
        %v7987 = vld [vmem:[%s3 + $0x2f8] sm:$0xff]
        %v7988 = vld [vmem:[%s3 + $0x300] sm:$0xff]
        %v7989 = vld [vmem:[%s3 + $0x308] sm:$0xff]
        %v7990 = vld [vmem:[%s3 + $0x310] sm:$0xff]
        %v7991 = vld [vmem:[%s3 + $0x318] sm:$0xff]
        %v7992 = vld [vmem:[%s3 + $0x320] sm:$0xff]
        %v7993 = vld [vmem:[%s3 + $0x328] sm:$0xff]
        %v7994 = vld [vmem:[%s3 + $0x330] sm:$0xff]
        %v7995 = vld [vmem:[%s3 + $0x338] sm:$0xff]
        %v7996 = vld [vmem:[%s3 + $0x340] sm:$0xff]
        %v7997 = vld [vmem:[%s3 + $0x348] sm:$0xff]
        %v7998 = vld [vmem:[%s3 + $0x350] sm:$0xff]
        %v7999 = vld [vmem:[%s3 + $0x358] sm:$0xff]
        %v8000 = vld [vmem:[%s3 + $0x360] sm:$0xff]
        %v8001 = vld [vmem:[%s3 + $0x368] sm:$0xff]
        %v8002 = vld [vmem:[%s3 + $0x370] sm:$0xff]
        %v8003 = vld [vmem:[%s3 + $0x378] sm:$0xff]
        %v8004 = vld [vmem:[%s3 + $0x380] sm:$0xff]
        %v8005 = vld [vmem:[%s3 + $0x388] sm:$0xff]
        %v8006 = vld [vmem:[%s3 + $0x390] sm:$0xff]
        %v8007 = vld [vmem:[%s3 + $0x398] sm:$0xff]
        %v8008 = vld [vmem:[%s3 + $0x3a0] sm:$0xff]
        %v8009 = vld [vmem:[%s3 + $0x3a8] sm:$0xff]
        %v8010 = vld [vmem:[%s3 + $0x3b0] sm:$0xff]
        %v8011 = vld [vmem:[%s3 + $0x3b8] sm:$0xff]
        %v8012 = vld [vmem:[%s3 + $0x3c0] sm:$0xff]
        %v8013 = vld [vmem:[%s3 + $0x3c8] sm:$0xff]
        %v8014 = vld [vmem:[%s3 + $0x3d0] sm:$0xff]
        %v8015 = vld [vmem:[%s3 + $0x3d8] sm:$0xff]
        %v8016 = vld [vmem:[%s3 + $0x3e0] sm:$0xff]
        %v8017 = vld [vmem:[%s3 + $0x3e8] sm:$0xff]
        %v8018 = vld [vmem:[%s3 + $0x3f0] sm:$0xff]
        %v8019 = vld [vmem:[%s3 + $0x3f8] sm:$0xff]
        %v8020 = vld [vmem:[%s3 + $0x400] sm:$0xff]
        %v8021 = vld [vmem:[%s3 + $0x408] sm:$0xff]
        %v8022 = vld [vmem:[%s3 + $0x410] sm:$0xff]
        %v8023 = vld [vmem:[%s3 + $0x418] sm:$0xff]
        %v8024 = vld [vmem:[%s3 + $0x420] sm:$0xff]
        %v8025 = vld [vmem:[%s3 + $0x428] sm:$0xff]
        %v8026 = vld [vmem:[%s3 + $0x430] sm:$0xff]
        %v8027 = vld [vmem:[%s3 + $0x438] sm:$0xff]
        %v8028 = vld [vmem:[%s3 + $0x440] sm:$0xff]
        %v8029 = vld [vmem:[%s3 + $0x448] sm:$0xff]
        %v8030 = vld [vmem:[%s3 + $0x450] sm:$0xff]
        %v8031 = vld [vmem:[%s3 + $0x458] sm:$0xff]
        %v8032 = vld [vmem:[%s3 + $0x460] sm:$0xff]
        %v8033 = vld [vmem:[%s3 + $0x468] sm:$0xff]
        %v8034 = vld [vmem:[%s3 + $0x470] sm:$0xff]
        %v8035 = vld [vmem:[%s3 + $0x478] sm:$0xff]
        %v8036 = vld [vmem:[%s3 + $0x480] sm:$0xff]
        %v8037 = vld [vmem:[%s3 + $0x488] sm:$0xff]
        %v8038 = vld [vmem:[%s3 + $0x490] sm:$0xff]
        %v8039 = vld [vmem:[%s3 + $0x498] sm:$0xff]
        %v8040 = vld [vmem:[%s3 + $0x4a0] sm:$0xff]
        %v8041 = vld [vmem:[%s3 + $0x4a8] sm:$0xff]
        %v8042 = vld [vmem:[%s3 + $0x4b0] sm:$0xff]
        %v8043 = vld [vmem:[%s3 + $0x4b8] sm:$0xff]
        %v8044 = vld [vmem:[%s3 + $0x4c0] sm:$0xff]
        %v8045 = vld [vmem:[%s3 + $0x4c8] sm:$0xff]
        %v8046 = vld [vmem:[%s3 + $0x4d0] sm:$0xff]
        %v8047 = vld [vmem:[%s3 + $0x4d8] sm:$0xff]
        %v8048 = vld [vmem:[%s3 + $0x4e0] sm:$0xff]
        %v8049 = vld [vmem:[%s3 + $0x4e8] sm:$0xff]
        %v8050 = vld [vmem:[%s3 + $0x4f0] sm:$0xff]
        %v8051 = vld [vmem:[%s3 + $0x4f8] sm:$0xff]
        %v8052 = vld [vmem:[%s3 + $0x500] sm:$0xff]
        %v8053 = vld [vmem:[%s3 + $0x508] sm:$0xff]
        %v8054 = vld [vmem:[%s3 + $0x510] sm:$0xff]
        %v8055 = vld [vmem:[%s3 + $0x518] sm:$0xff]
        %v8056 = vld [vmem:[%s3 + $0x520] sm:$0xff]
        %v8057 = vld [vmem:[%s3 + $0x528] sm:$0xff]
        %v8058 = vld [vmem:[%s3 + $0x530] sm:$0xff]
        %v8059 = vld [vmem:[%s3 + $0x538] sm:$0xff]
        %v8060 = vld [vmem:[%s3 + $0x540] sm:$0xff]
        %v8061 = vld [vmem:[%s3 + $0x548] sm:$0xff]
        %v8062 = vld [vmem:[%s3 + $0x550] sm:$0xff]
        %v8063 = vld [vmem:[%s3 + $0x558] sm:$0xff]
        %v8064 = vld [vmem:[%s3 + $0x560] sm:$0xff]
        %v8065 = vld [vmem:[%s3 + $0x568] sm:$0xff]
        %v8066 = vld [vmem:[%s3 + $0x570] sm:$0xff]
        %v8067 = vld [vmem:[%s3 + $0x578] sm:$0xff]
        %v8068 = vld [vmem:[%s3 + $0x580] sm:$0xff]
        %v8069 = vld [vmem:[%s3 + $0x588] sm:$0xff]
        %v8070 = vld [vmem:[%s3 + $0x590] sm:$0xff]
        %v8071 = vld [vmem:[%s3 + $0x598] sm:$0xff]
        %v8072 = vld [vmem:[%s3 + $0x5a0] sm:$0xff]
        %v8073 = vld [vmem:[%s3 + $0x5a8] sm:$0xff]
        %v8074 = vld [vmem:[%s3 + $0x5b0] sm:$0xff]
        %v8075 = vld [vmem:[%s3 + $0x5b8] sm:$0xff]
        %v8076 = vld [vmem:[%s3 + $0x5c0] sm:$0xff]
        %v8077 = vld [vmem:[%s3 + $0x5c8] sm:$0xff]
        %v8078 = vld [vmem:[%s3 + $0x5d0] sm:$0xff]
        %v8079 = vld [vmem:[%s3 + $0x5d8] sm:$0xff]
        %v8080 = vld [vmem:[%s3 + $0x5e0] sm:$0xff]
        %v8081 = vld [vmem:[%s3 + $0x5e8] sm:$0xff]
        %v8082 = vld [vmem:[%s3 + $0x5f0] sm:$0xff]
        %v8083 = vld [vmem:[%s3 + $0x5f8] sm:$0xff]
        %v8084 = vld [vmem:[%s3 + $0x600] sm:$0xff]
        %v8085 = vld [vmem:[%s3 + $0x608] sm:$0xff]
        %v8086 = vld [vmem:[%s3 + $0x610] sm:$0xff]
        %v8087 = vld [vmem:[%s3 + $0x618] sm:$0xff]
        %v8088 = vld [vmem:[%s3 + $0x620] sm:$0xff]
        %v8089 = vld [vmem:[%s3 + $0x628] sm:$0xff]
        %v8090 = vld [vmem:[%s3 + $0x630] sm:$0xff]
        %v8091 = vld [vmem:[%s3 + $0x638] sm:$0xff]
        %v8092 = vld [vmem:[%s3 + $0x640] sm:$0xff]
        %v8093 = vld [vmem:[%s3 + $0x648] sm:$0xff]
        %v8094 = vld [vmem:[%s3 + $0x650] sm:$0xff]
        %v8095 = vld [vmem:[%s3 + $0x658] sm:$0xff]
        %v8096 = vld [vmem:[%s3 + $0x660] sm:$0xff]
        %v8097 = vld [vmem:[%s3 + $0x668] sm:$0xff]
        %v8098 = vld [vmem:[%s3 + $0x670] sm:$0xff]
        %v8099 = vld [vmem:[%s3 + $0x678] sm:$0xff]
        %v8100 = vld [vmem:[%s3 + $0x680] sm:$0xff]
        %v8101 = vld [vmem:[%s3 + $0x688] sm:$0xff]
        %v8102 = vld [vmem:[%s3 + $0x690] sm:$0xff]
        %v8103 = vld [vmem:[%s3 + $0x698] sm:$0xff]
        %v8104 = vld [vmem:[%s3 + $0x6a0] sm:$0xff]
        %v8105 = vld [vmem:[%s3 + $0x6a8] sm:$0xff]
        %v8106 = vld [vmem:[%s3 + $0x6b0] sm:$0xff]
        %v8107 = vld [vmem:[%s3 + $0x6b8] sm:$0xff]
        %v8108 = vld [vmem:[%s3 + $0x6c0] sm:$0xff]
        %v8109 = vld [vmem:[%s3 + $0x6c8] sm:$0xff]
        %v8110 = vld [vmem:[%s3 + $0x6d0] sm:$0xff]
        %v8111 = vld [vmem:[%s3 + $0x6d8] sm:$0xff]
        %v8112 = vld [vmem:[%s3 + $0x6e0] sm:$0xff]
        %v8113 = vld [vmem:[%s3 + $0x6e8] sm:$0xff]
        %v8114 = vld [vmem:[%s3 + $0x6f0] sm:$0xff]
        %v8115 = vld [vmem:[%s3 + $0x6f8] sm:$0xff]
        %v8116 = vld [vmem:[%s3 + $0x700] sm:$0xff]
        %v8117 = vld [vmem:[%s3 + $0x708] sm:$0xff]
        %v8118 = vld [vmem:[%s3 + $0x710] sm:$0xff]
        %v8119 = vld [vmem:[%s3 + $0x718] sm:$0xff]
        %v8120 = vld [vmem:[%s3 + $0x720] sm:$0xff]
        %v8121 = vld [vmem:[%s3 + $0x728] sm:$0xff]
        %v8122 = vld [vmem:[%s3 + $0x730] sm:$0xff]
        %v8123 = vld [vmem:[%s3 + $0x738] sm:$0xff]
        %v8124 = vld [vmem:[%s3 + $0x740] sm:$0xff]
        %v8125 = vld [vmem:[%s3 + $0x748] sm:$0xff]
        %v8126 = vld [vmem:[%s3 + $0x750] sm:$0xff]
        %v8127 = vld [vmem:[%s3 + $0x758] sm:$0xff]
        %v8128 = vld [vmem:[%s3 + $0x760] sm:$0xff]
        %v8129 = vld [vmem:[%s3 + $0x768] sm:$0xff]
        %v8130 = vld [vmem:[%s3 + $0x770] sm:$0xff]
        %v8131 = vld [vmem:[%s3 + $0x778] sm:$0xff]
        %v8132 = vld [vmem:[%s3 + $0x780] sm:$0xff]
        %v8133 = vld [vmem:[%s3 + $0x788] sm:$0xff]
        %v8134 = vld [vmem:[%s3 + $0x790] sm:$0xff]
        %v8135 = vld [vmem:[%s3 + $0x798] sm:$0xff]
        %v8136 = vld [vmem:[%s3 + $0x7a0] sm:$0xff]
        %v8137 = vld [vmem:[%s3 + $0x7a8] sm:$0xff]
        %v8138 = vld [vmem:[%s3 + $0x7b0] sm:$0xff]
        %v8139 = vld [vmem:[%s3 + $0x7b8] sm:$0xff]
        %v8140 = vld [vmem:[%s3 + $0x7c0] sm:$0xff]
        %v8141 = vld [vmem:[%s3 + $0x7c8] sm:$0xff]
        %v8142 = vld [vmem:[%s3 + $0x7d0] sm:$0xff]
        %v8143 = vld [vmem:[%s3 + $0x7d8] sm:$0xff]
        %v8144 = vld [vmem:[%s3 + $0x7e0] sm:$0xff]
        %v8145 = vld [vmem:[%s3 + $0x7e8] sm:$0xff]
        %v8146 = vld [vmem:[%s3 + $0x7f0] sm:$0xff]
        %v8147 = vld [vmem:[%s3 + $0x7f8] sm:$0xff]
        %v8148 = vld [vmem:[%s3 + $0x800] sm:$0xff]
        %v8149 = vld [vmem:[%s3 + $0x808] sm:$0xff]
        %v8150 = vld [vmem:[%s3 + $0x810] sm:$0xff]
        %v8151 = vld [vmem:[%s3 + $0x818] sm:$0xff]
        %v8152 = vld [vmem:[%s3 + $0x820] sm:$0xff]
        %v8153 = vld [vmem:[%s3 + $0x828] sm:$0xff]
        %v8154 = vld [vmem:[%s3 + $0x830] sm:$0xff]
        %v8155 = vld [vmem:[%s3 + $0x838] sm:$0xff]
        %v8156 = vld [vmem:[%s3 + $0x840] sm:$0xff]
        %v8157 = vld [vmem:[%s3 + $0x848] sm:$0xff]
        %v8158 = vld [vmem:[%s3 + $0x850] sm:$0xff]
        %v8159 = vld [vmem:[%s3 + $0x858] sm:$0xff]
        %v8160 = vld [vmem:[%s3 + $0x860] sm:$0xff]
        %v8161 = vld [vmem:[%s3 + $0x868] sm:$0xff]
        %v8162 = vld [vmem:[%s3 + $0x870] sm:$0xff]
        %v8163 = vld [vmem:[%s3 + $0x878] sm:$0xff]
        %v8164 = vld [vmem:[%s3 + $0x880] sm:$0xff]
        %v8165 = vld [vmem:[%s3 + $0x888] sm:$0xff]
        %v8166 = vld [vmem:[%s3 + $0x890] sm:$0xff]
        %v8167 = vld [vmem:[%s3 + $0x898] sm:$0xff]
        %v8168 = vld [vmem:[%s3 + $0x8a0] sm:$0xff]
        %v8169 = vld [vmem:[%s3 + $0x8a8] sm:$0xff]
        %v8170 = vld [vmem:[%s3 + $0x8b0] sm:$0xff]
        %v8171 = vld [vmem:[%s3 + $0x8b8] sm:$0xff]
        %v8172 = vld [vmem:[%s3 + $0x8c0] sm:$0xff]
        %v8173 = vld [vmem:[%s3 + $0x8c8] sm:$0xff]
        %v8174 = vld [vmem:[%s3 + $0x8d0] sm:$0xff]
        %v8175 = vld [vmem:[%s3 + $0x8d8] sm:$0xff]
        %v8176 = vld [vmem:[%s3 + $0x8e0] sm:$0xff]
        %v8177 = vld [vmem:[%s3 + $0x8e8] sm:$0xff]
        %v8178 = vld [vmem:[%s3 + $0x8f0] sm:$0xff]
        %v8179 = vld [vmem:[%s3 + $0x8f8] sm:$0xff]
        %8180 = vmatprep.subr.mxu0 0.0
        %8181 = vmatpush1.msra.mxu0 %v7892
        %8182 = vmatprep.subr.mxu0 0.0
        %8183 = vmatpush1.msra.mxu0 %v7893
        %8184 = vmatprep.subr.mxu0 0.0
        %8185 = vmatpush1.msra.mxu0 %v7894
        %8186 = vmatprep.subr.mxu0 0.0
        %8187 = vmatpush1.msra.mxu0 %v7895
        %8188 = vmatprep.subr.mxu0 0.0
        %8189 = vmatpush1.msra.mxu0 %v7896
        %8190 = vmatprep.subr.mxu0 0.0
        %8191 = vmatpush1.msra.mxu0 %v7897
        %8192 = vmatprep.subr.mxu0 0.0
        %8193 = vmatpush1.msra.mxu0 %v7898
        %8194 = vmatprep.subr.mxu0 0.0
        %8195 = vmatpush1.msra.mxu0 %v7899
        %8196 = vmatprep.subr.mxu0 0.0
        %8197 = vmatpush1.msra.mxu0 %v7900
        %8198 = vmatprep.subr.mxu0 0.0
        %8199 = vmatpush1.msra.mxu0 %v7901
        %8200 = vmatprep.subr.mxu0 0.0
        %8201 = vmatpush1.msra.mxu0 %v7902
        %8202 = vmatprep.subr.mxu0 0.0
        %8203 = vmatpush1.msra.mxu0 %v7903
        %8204 = vmatprep.subr.mxu0 0.0
        %8205 = vmatpush1.msra.mxu0 %v7904
        %8206 = vmatprep.subr.mxu0 0.0
        %8207 = vmatpush1.msra.mxu0 %v7905
        %8208 = vmatprep.subr.mxu0 0.0
        %8209 = vmatpush1.msra.mxu0 %v7906
        %8210 = vmatprep.subr.mxu0 0.0
        %8211 = vmatpush1.msra.mxu0 %v7907
        %8212 = vmatprep.subr.mxu0 0.0
        %8213 = vmatpush1.msra.mxu0 %v7908
        %8214 = vmatprep.subr.mxu0 0.0
        %8215 = vmatpush1.msra.mxu0 %v7909
        %8216 = vmatprep.subr.mxu0 0.0
        %8217 = vmatpush1.msra.mxu0 %v7910
        %8218 = vmatprep.subr.mxu0 0.0
        %8219 = vmatpush1.msra.mxu0 %v7911
        %8220 = vmatprep.subr.mxu0 0.0
        %8221 = vmatpush1.msra.mxu0 %v7912
        %8222 = vmatprep.subr.mxu0 0.0
        %8223 = vmatpush1.msra.mxu0 %v7913
        %8224 = vmatprep.subr.mxu0 0.0
        %8225 = vmatpush1.msra.mxu0 %v7914
        %8226 = vmatprep.subr.mxu0 0.0
        %8227 = vmatpush1.msra.mxu0 %v7915
        %8228 = vmatprep.subr.mxu0 0.0
        %8229 = vmatpush1.msra.mxu0 %v7916
        %8230 = vmatprep.subr.mxu0 0.0
        %8231 = vmatpush1.msra.mxu0 %v7917
        %8232 = vmatprep.subr.mxu0 0.0
        %8233 = vmatpush1.msra.mxu0 %v7918
        %8234 = vmatprep.subr.mxu0 0.0
        %8235 = vmatpush1.msra.mxu0 %v7919
        %8236 = vmatprep.subr.mxu0 0.0
        %8237 = vmatpush1.msra.mxu0 %v7920
        %8238 = vmatprep.subr.mxu0 0.0
        %8239 = vmatpush1.msra.mxu0 %v7921
        %8240 = vmatprep.subr.mxu0 0.0
        %8241 = vmatpush1.msra.mxu0 %v7922
        %8242 = vmatprep.subr.mxu0 0.0
        %8243 = vmatpush1.msra.mxu0 %v7923
        %8244 = vmatprep.mubr.f32.mxu0 %v7875
        %8245 = vmatmul.mubr.f32.gmra.mrb[0].mxu0 %v7874
        %v8246 = vpop.f32.mrb[0].mxu0
        %v8247 = vadd.f32 0.0, %v8246
        %v8248 = vpop.f32.mrb[0].mxu0
        %8249 = vdwg.mxu0
        %8250 = vmatprep.subr.mxu0 0.0
        %8251 = vmatpush1.msra.mxu0 %v7924
        %8252 = vmatprep.subr.mxu0 0.0
        %8253 = vmatpush1.msra.mxu0 %v7925
        %8254 = vmatprep.subr.mxu0 0.0
        %8255 = vmatpush1.msra.mxu0 %v7926
        %8256 = vmatprep.subr.mxu0 0.0
        %8257 = vmatpush1.msra.mxu0 %v7927
        %8258 = vmatprep.subr.mxu0 0.0
        %8259 = vmatpush1.msra.mxu0 %v7928
        %8260 = vmatprep.subr.mxu0 0.0
        %8261 = vmatpush1.msra.mxu0 %v7929
        %8262 = vmatprep.subr.mxu0 0.0
        %8263 = vmatpush1.msra.mxu0 %v7930
        %8264 = vmatprep.subr.mxu0 0.0
        %8265 = vmatpush1.msra.mxu0 %v7931
        %8266 = vmatprep.subr.mxu0 0.0
        %8267 = vmatpush1.msra.mxu0 %v7932
        %8268 = vmatprep.subr.mxu0 0.0
        %8269 = vmatpush1.msra.mxu0 %v7933
        %8270 = vmatprep.subr.mxu0 0.0
        %8271 = vmatpush1.msra.mxu0 %v7934
        %8272 = vmatprep.subr.mxu0 0.0
        %8273 = vmatpush1.msra.mxu0 %v7935
        %8274 = vmatprep.subr.mxu0 0.0
        %8275 = vmatpush1.msra.mxu0 %v7936
        %8276 = vmatprep.subr.mxu0 0.0
        %8277 = vmatpush1.msra.mxu0 %v7937
        %8278 = vmatprep.subr.mxu0 0.0
        %8279 = vmatpush1.msra.mxu0 %v7938
        %8280 = vmatprep.subr.mxu0 0.0
        %8281 = vmatpush1.msra.mxu0 %v7939
        %8282 = vmatprep.subr.mxu0 0.0
        %8283 = vmatpush1.msra.mxu0 %v7940
        %8284 = vmatprep.subr.mxu0 0.0
        %8285 = vmatpush1.msra.mxu0 %v7941
        %8286 = vmatprep.subr.mxu0 0.0
        %8287 = vmatpush1.msra.mxu0 %v7942
        %8288 = vmatprep.subr.mxu0 0.0
        %8289 = vmatpush1.msra.mxu0 %v7943
        %8290 = vmatprep.subr.mxu0 0.0
        %8291 = vmatpush1.msra.mxu0 %v7944
        %8292 = vmatprep.subr.mxu0 0.0
        %8293 = vmatpush1.msra.mxu0 %v7945
        %8294 = vmatprep.subr.mxu0 0.0
        %8295 = vmatpush1.msra.mxu0 %v7946
        %8296 = vmatprep.subr.mxu0 0.0
        %8297 = vmatpush1.msra.mxu0 %v7947
        %8298 = vmatprep.subr.mxu0 0.0
        %8299 = vmatpush1.msra.mxu0 %v7948
        %8300 = vmatprep.subr.mxu0 0.0
        %8301 = vmatpush1.msra.mxu0 %v7949
        %8302 = vmatprep.subr.mxu0 0.0
        %8303 = vmatpush1.msra.mxu0 %v7950
        %8304 = vmatprep.subr.mxu0 0.0
        %8305 = vmatpush1.msra.mxu0 %v7951
        %8306 = vmatprep.subr.mxu0 0.0
        %8307 = vmatpush1.msra.mxu0 %v7952
        %8308 = vmatprep.subr.mxu0 0.0
        %8309 = vmatpush1.msra.mxu0 %v7953
        %8310 = vmatprep.subr.mxu0 0.0
        %8311 = vmatpush1.msra.mxu0 %v7954
        %8312 = vmatprep.subr.mxu0 0.0
        %8313 = vmatpush1.msra.mxu0 %v7955
        %8314 = vmatprep.mubr.f32.mxu0 %v7877
        %8315 = vmatmul.mubr.f32.gmra.mrb[0].mxu0 %v7876
        %v8316 = vpop.f32.mrb[0].mxu0
        %v8317 = vadd.f32 %v8247, %v8316
        %v8318 = vpop.f32.mrb[0].mxu0
        %8319 = vdwg.mxu0
        %8320 = vmatprep.subr.mxu0 0.0
        %8321 = vmatpush1.msra.mxu0 %v7956
        %8322 = vmatprep.subr.mxu0 0.0
        %8323 = vmatpush1.msra.mxu0 %v7957
        %8324 = vmatprep.subr.mxu0 0.0
        %8325 = vmatpush1.msra.mxu0 %v7958
        %8326 = vmatprep.subr.mxu0 0.0
        %8327 = vmatpush1.msra.mxu0 %v7959
        %8328 = vmatprep.subr.mxu0 0.0
        %8329 = vmatpush1.msra.mxu0 %v7960
        %8330 = vmatprep.subr.mxu0 0.0
        %8331 = vmatpush1.msra.mxu0 %v7961
        %8332 = vmatprep.subr.mxu0 0.0
        %8333 = vmatpush1.msra.mxu0 %v7962
        %8334 = vmatprep.subr.mxu0 0.0
        %8335 = vmatpush1.msra.mxu0 %v7963
        %8336 = vmatprep.subr.mxu0 0.0
        %8337 = vmatpush1.msra.mxu0 %v7964
        %8338 = vmatprep.subr.mxu0 0.0
        %8339 = vmatpush1.msra.mxu0 %v7965
        %8340 = vmatprep.subr.mxu0 0.0
        %8341 = vmatpush1.msra.mxu0 %v7966
        %8342 = vmatprep.subr.mxu0 0.0
        %8343 = vmatpush1.msra.mxu0 %v7967
        %8344 = vmatprep.subr.mxu0 0.0
        %8345 = vmatpush1.msra.mxu0 %v7968
        %8346 = vmatprep.subr.mxu0 0.0
        %8347 = vmatpush1.msra.mxu0 %v7969
        %8348 = vmatprep.subr.mxu0 0.0
        %8349 = vmatpush1.msra.mxu0 %v7970
        %8350 = vmatprep.subr.mxu0 0.0
        %8351 = vmatpush1.msra.mxu0 %v7971
        %8352 = vmatprep.subr.mxu0 0.0
        %8353 = vmatpush1.msra.mxu0 %v7972
        %8354 = vmatprep.subr.mxu0 0.0
        %8355 = vmatpush1.msra.mxu0 %v7973
        %8356 = vmatprep.subr.mxu0 0.0
        %8357 = vmatpush1.msra.mxu0 %v7974
        %8358 = vmatprep.subr.mxu0 0.0
        %8359 = vmatpush1.msra.mxu0 %v7975
        %8360 = vmatprep.subr.mxu0 0.0
        %8361 = vmatpush1.msra.mxu0 %v7976
        %8362 = vmatprep.subr.mxu0 0.0
        %8363 = vmatpush1.msra.mxu0 %v7977
        %8364 = vmatprep.subr.mxu0 0.0
        %8365 = vmatpush1.msra.mxu0 %v7978
        %8366 = vmatprep.subr.mxu0 0.0
        %8367 = vmatpush1.msra.mxu0 %v7979
        %8368 = vmatprep.subr.mxu0 0.0
        %8369 = vmatpush1.msra.mxu0 %v7980
        %8370 = vmatprep.subr.mxu0 0.0
        %8371 = vmatpush1.msra.mxu0 %v7981
        %8372 = vmatprep.subr.mxu0 0.0
        %8373 = vmatpush1.msra.mxu0 %v7982
        %8374 = vmatprep.subr.mxu0 0.0
        %8375 = vmatpush1.msra.mxu0 %v7983
        %8376 = vmatprep.subr.mxu0 0.0
        %8377 = vmatpush1.msra.mxu0 %v7984
        %8378 = vmatprep.subr.mxu0 0.0
        %8379 = vmatpush1.msra.mxu0 %v7985
        %8380 = vmatprep.subr.mxu0 0.0
        %8381 = vmatpush1.msra.mxu0 %v7986
        %8382 = vmatprep.subr.mxu0 0.0
        %8383 = vmatpush1.msra.mxu0 %v7987
        %8384 = vmatprep.mubr.f32.mxu0 %v7879
        %8385 = vmatmul.mubr.f32.gmra.mrb[0].mxu0 %v7878
        %v8386 = vpop.f32.mrb[0].mxu0
        %v8387 = vadd.f32 %v8317, %v8386
        %v8388 = vpop.f32.mrb[0].mxu0
        %8389 = vdwg.mxu0
        %8390 = vmatprep.subr.mxu0 0.0
        %8391 = vmatpush1.msra.mxu0 %v7988
        %8392 = vmatprep.subr.mxu0 0.0
        %8393 = vmatpush1.msra.mxu0 %v7989
        %8394 = vmatprep.subr.mxu0 0.0
        %8395 = vmatpush1.msra.mxu0 %v7990
        %8396 = vmatprep.subr.mxu0 0.0
        %8397 = vmatpush1.msra.mxu0 %v7991
        %8398 = vmatprep.subr.mxu0 0.0
        %8399 = vmatpush1.msra.mxu0 %v7992
        %8400 = vmatprep.subr.mxu0 0.0
        %8401 = vmatpush1.msra.mxu0 %v7993
        %8402 = vmatprep.subr.mxu0 0.0
        %8403 = vmatpush1.msra.mxu0 %v7994
        %8404 = vmatprep.subr.mxu0 0.0
        %8405 = vmatpush1.msra.mxu0 %v7995
        %8406 = vmatprep.subr.mxu0 0.0
        %8407 = vmatpush1.msra.mxu0 %v7996
        %8408 = vmatprep.subr.mxu0 0.0
        %8409 = vmatpush1.msra.mxu0 %v7997
        %8410 = vmatprep.subr.mxu0 0.0
        %8411 = vmatpush1.msra.mxu0 %v7998
        %8412 = vmatprep.subr.mxu0 0.0
        %8413 = vmatpush1.msra.mxu0 %v7999
        %8414 = vmatprep.subr.mxu0 0.0
        %8415 = vmatpush1.msra.mxu0 %v8000
        %8416 = vmatprep.subr.mxu0 0.0
        %8417 = vmatpush1.msra.mxu0 %v8001
        %8418 = vmatprep.subr.mxu0 0.0
        %8419 = vmatpush1.msra.mxu0 %v8002
        %8420 = vmatprep.subr.mxu0 0.0
        %8421 = vmatpush1.msra.mxu0 %v8003
        %8422 = vmatprep.subr.mxu0 0.0
        %8423 = vmatpush1.msra.mxu0 %v8004
        %8424 = vmatprep.subr.mxu0 0.0
        %8425 = vmatpush1.msra.mxu0 %v8005
        %8426 = vmatprep.subr.mxu0 0.0
        %8427 = vmatpush1.msra.mxu0 %v8006
        %8428 = vmatprep.subr.mxu0 0.0
        %8429 = vmatpush1.msra.mxu0 %v8007
        %8430 = vmatprep.subr.mxu0 0.0
        %8431 = vmatpush1.msra.mxu0 %v8008
        %8432 = vmatprep.subr.mxu0 0.0
        %8433 = vmatpush1.msra.mxu0 %v8009
        %8434 = vmatprep.subr.mxu0 0.0
        %8435 = vmatpush1.msra.mxu0 %v8010
        %8436 = vmatprep.subr.mxu0 0.0
        %8437 = vmatpush1.msra.mxu0 %v8011
        %8438 = vmatprep.subr.mxu0 0.0
        %8439 = vmatpush1.msra.mxu0 %v8012
        %8440 = vmatprep.subr.mxu0 0.0
        %8441 = vmatpush1.msra.mxu0 %v8013
        %8442 = vmatprep.subr.mxu0 0.0
        %8443 = vmatpush1.msra.mxu0 %v8014
        %8444 = vmatprep.subr.mxu0 0.0
        %8445 = vmatpush1.msra.mxu0 %v8015
        %8446 = vmatprep.subr.mxu0 0.0
        %8447 = vmatpush1.msra.mxu0 %v8016
        %8448 = vmatprep.subr.mxu0 0.0
        %8449 = vmatpush1.msra.mxu0 %v8017
        %8450 = vmatprep.subr.mxu0 0.0
        %8451 = vmatpush1.msra.mxu0 %v8018
        %8452 = vmatprep.subr.mxu0 0.0
        %8453 = vmatpush1.msra.mxu0 %v8019
        %8454 = vmatprep.mubr.f32.mxu0 %v7881
        %8455 = vmatmul.mubr.f32.gmra.mrb[0].mxu0 %v7880
        %v8456 = vpop.f32.mrb[0].mxu0
        %v8457 = vadd.f32 %v8387, %v8456
        %v8458 = vpop.f32.mrb[0].mxu0
        %8459 = vdwg.mxu0
        %8460 = vmatprep.subr.mxu0 0.0
        %8461 = vmatpush1.msra.mxu0 %v8020
        %8462 = vmatprep.subr.mxu0 0.0
        %8463 = vmatpush1.msra.mxu0 %v8021
        %8464 = vmatprep.subr.mxu0 0.0
        %8465 = vmatpush1.msra.mxu0 %v8022
        %8466 = vmatprep.subr.mxu0 0.0
        %8467 = vmatpush1.msra.mxu0 %v8023
        %8468 = vmatprep.subr.mxu0 0.0
        %8469 = vmatpush1.msra.mxu0 %v8024
        %8470 = vmatprep.subr.mxu0 0.0
        %8471 = vmatpush1.msra.mxu0 %v8025
        %8472 = vmatprep.subr.mxu0 0.0
        %8473 = vmatpush1.msra.mxu0 %v8026
        %8474 = vmatprep.subr.mxu0 0.0
        %8475 = vmatpush1.msra.mxu0 %v8027
        %8476 = vmatprep.subr.mxu0 0.0
        %8477 = vmatpush1.msra.mxu0 %v8028
        %8478 = vmatprep.subr.mxu0 0.0
        %8479 = vmatpush1.msra.mxu0 %v8029
        %8480 = vmatprep.subr.mxu0 0.0
        %8481 = vmatpush1.msra.mxu0 %v8030
        %8482 = vmatprep.subr.mxu0 0.0
        %8483 = vmatpush1.msra.mxu0 %v8031
        %8484 = vmatprep.subr.mxu0 0.0
        %8485 = vmatpush1.msra.mxu0 %v8032
        %8486 = vmatprep.subr.mxu0 0.0
        %8487 = vmatpush1.msra.mxu0 %v8033
        %8488 = vmatprep.subr.mxu0 0.0
        %8489 = vmatpush1.msra.mxu0 %v8034
        %8490 = vmatprep.subr.mxu0 0.0
        %8491 = vmatpush1.msra.mxu0 %v8035
        %8492 = vmatprep.subr.mxu0 0.0
        %8493 = vmatpush1.msra.mxu0 %v8036
        %8494 = vmatprep.subr.mxu0 0.0
        %8495 = vmatpush1.msra.mxu0 %v8037
        %8496 = vmatprep.subr.mxu0 0.0
        %8497 = vmatpush1.msra.mxu0 %v8038
        %8498 = vmatprep.subr.mxu0 0.0
        %8499 = vmatpush1.msra.mxu0 %v8039
        %8500 = vmatprep.subr.mxu0 0.0
        %8501 = vmatpush1.msra.mxu0 %v8040
        %8502 = vmatprep.subr.mxu0 0.0
        %8503 = vmatpush1.msra.mxu0 %v8041
        %8504 = vmatprep.subr.mxu0 0.0
        %8505 = vmatpush1.msra.mxu0 %v8042
        %8506 = vmatprep.subr.mxu0 0.0
        %8507 = vmatpush1.msra.mxu0 %v8043
        %8508 = vmatprep.subr.mxu0 0.0
        %8509 = vmatpush1.msra.mxu0 %v8044
        %8510 = vmatprep.subr.mxu0 0.0
        %8511 = vmatpush1.msra.mxu0 %v8045
        %8512 = vmatprep.subr.mxu0 0.0
        %8513 = vmatpush1.msra.mxu0 %v8046
        %8514 = vmatprep.subr.mxu0 0.0
        %8515 = vmatpush1.msra.mxu0 %v8047
        %8516 = vmatprep.subr.mxu0 0.0
        %8517 = vmatpush1.msra.mxu0 %v8048
        %8518 = vmatprep.subr.mxu0 0.0
        %8519 = vmatpush1.msra.mxu0 %v8049
        %8520 = vmatprep.subr.mxu0 0.0
        %8521 = vmatpush1.msra.mxu0 %v8050
        %8522 = vmatprep.subr.mxu0 0.0
        %8523 = vmatpush1.msra.mxu0 %v8051
        %8524 = vmatprep.mubr.f32.mxu0 %v7883
        %8525 = vmatmul.mubr.f32.gmra.mrb[0].mxu0 %v7882
        %v8526 = vpop.f32.mrb[0].mxu0
        %v8527 = vadd.f32 %v8457, %v8526
        %v8528 = vpop.f32.mrb[0].mxu0
        %8529 = vdwg.mxu0
        %8530 = vmatprep.subr.mxu0 0.0
        %8531 = vmatpush1.msra.mxu0 %v8052
        %8532 = vmatprep.subr.mxu0 0.0
        %8533 = vmatpush1.msra.mxu0 %v8053
        %8534 = vmatprep.subr.mxu0 0.0
        %8535 = vmatpush1.msra.mxu0 %v8054
        %8536 = vmatprep.subr.mxu0 0.0
        %8537 = vmatpush1.msra.mxu0 %v8055
        %8538 = vmatprep.subr.mxu0 0.0
        %8539 = vmatpush1.msra.mxu0 %v8056
        %8540 = vmatprep.subr.mxu0 0.0
        %8541 = vmatpush1.msra.mxu0 %v8057
        %8542 = vmatprep.subr.mxu0 0.0
        %8543 = vmatpush1.msra.mxu0 %v8058
        %8544 = vmatprep.subr.mxu0 0.0
        %8545 = vmatpush1.msra.mxu0 %v8059
        %8546 = vmatprep.subr.mxu0 0.0
        %8547 = vmatpush1.msra.mxu0 %v8060
        %8548 = vmatprep.subr.mxu0 0.0
        %8549 = vmatpush1.msra.mxu0 %v8061
        %8550 = vmatprep.subr.mxu0 0.0
        %8551 = vmatpush1.msra.mxu0 %v8062
        %8552 = vmatprep.subr.mxu0 0.0
        %8553 = vmatpush1.msra.mxu0 %v8063
        %8554 = vmatprep.subr.mxu0 0.0
        %8555 = vmatpush1.msra.mxu0 %v8064
        %8556 = vmatprep.subr.mxu0 0.0
        %8557 = vmatpush1.msra.mxu0 %v8065
        %8558 = vmatprep.subr.mxu0 0.0
        %8559 = vmatpush1.msra.mxu0 %v8066
        %8560 = vmatprep.subr.mxu0 0.0
        %8561 = vmatpush1.msra.mxu0 %v8067
        %8562 = vmatprep.subr.mxu0 0.0
        %8563 = vmatpush1.msra.mxu0 %v8068
        %8564 = vmatprep.subr.mxu0 0.0
        %8565 = vmatpush1.msra.mxu0 %v8069
        %8566 = vmatprep.subr.mxu0 0.0
        %8567 = vmatpush1.msra.mxu0 %v8070
        %8568 = vmatprep.subr.mxu0 0.0
        %8569 = vmatpush1.msra.mxu0 %v8071
        %8570 = vmatprep.subr.mxu0 0.0
        %8571 = vmatpush1.msra.mxu0 %v8072
        %8572 = vmatprep.subr.mxu0 0.0
        %8573 = vmatpush1.msra.mxu0 %v8073
        %8574 = vmatprep.subr.mxu0 0.0
        %8575 = vmatpush1.msra.mxu0 %v8074
        %8576 = vmatprep.subr.mxu0 0.0
        %8577 = vmatpush1.msra.mxu0 %v8075
        %8578 = vmatprep.subr.mxu0 0.0
        %8579 = vmatpush1.msra.mxu0 %v8076
        %8580 = vmatprep.subr.mxu0 0.0
        %8581 = vmatpush1.msra.mxu0 %v8077
        %8582 = vmatprep.subr.mxu0 0.0
        %8583 = vmatpush1.msra.mxu0 %v8078
        %8584 = vmatprep.subr.mxu0 0.0
        %8585 = vmatpush1.msra.mxu0 %v8079
        %8586 = vmatprep.subr.mxu0 0.0
        %8587 = vmatpush1.msra.mxu0 %v8080
        %8588 = vmatprep.subr.mxu0 0.0
        %8589 = vmatpush1.msra.mxu0 %v8081
        %8590 = vmatprep.subr.mxu0 0.0
        %8591 = vmatpush1.msra.mxu0 %v8082
        %8592 = vmatprep.subr.mxu0 0.0
        %8593 = vmatpush1.msra.mxu0 %v8083
        %8594 = vmatprep.mubr.f32.mxu0 %v7885
        %8595 = vmatmul.mubr.f32.gmra.mrb[0].mxu0 %v7884
        %v8596 = vpop.f32.mrb[0].mxu0
        %v8597 = vadd.f32 %v8527, %v8596
        %v8598 = vpop.f32.mrb[0].mxu0
        %8599 = vdwg.mxu0
        %8600 = vmatprep.subr.mxu0 0.0
        %8601 = vmatpush1.msra.mxu0 %v8084
        %8602 = vmatprep.subr.mxu0 0.0
        %8603 = vmatpush1.msra.mxu0 %v8085
        %8604 = vmatprep.subr.mxu0 0.0
        %8605 = vmatpush1.msra.mxu0 %v8086
        %8606 = vmatprep.subr.mxu0 0.0
        %8607 = vmatpush1.msra.mxu0 %v8087
        %8608 = vmatprep.subr.mxu0 0.0
        %8609 = vmatpush1.msra.mxu0 %v8088
        %8610 = vmatprep.subr.mxu0 0.0
        %8611 = vmatpush1.msra.mxu0 %v8089
        %8612 = vmatprep.subr.mxu0 0.0
        %8613 = vmatpush1.msra.mxu0 %v8090
        %8614 = vmatprep.subr.mxu0 0.0
        %8615 = vmatpush1.msra.mxu0 %v8091
        %8616 = vmatprep.subr.mxu0 0.0
        %8617 = vmatpush1.msra.mxu0 %v8092
        %8618 = vmatprep.subr.mxu0 0.0
        %8619 = vmatpush1.msra.mxu0 %v8093
        %8620 = vmatprep.subr.mxu0 0.0
        %8621 = vmatpush1.msra.mxu0 %v8094
        %8622 = vmatprep.subr.mxu0 0.0
        %8623 = vmatpush1.msra.mxu0 %v8095
        %8624 = vmatprep.subr.mxu0 0.0
        %8625 = vmatpush1.msra.mxu0 %v8096
        %8626 = vmatprep.subr.mxu0 0.0
        %8627 = vmatpush1.msra.mxu0 %v8097
        %8628 = vmatprep.subr.mxu0 0.0
        %8629 = vmatpush1.msra.mxu0 %v8098
        %8630 = vmatprep.subr.mxu0 0.0
        %8631 = vmatpush1.msra.mxu0 %v8099
        %8632 = vmatprep.subr.mxu0 0.0
        %8633 = vmatpush1.msra.mxu0 %v8100
        %8634 = vmatprep.subr.mxu0 0.0
        %8635 = vmatpush1.msra.mxu0 %v8101
        %8636 = vmatprep.subr.mxu0 0.0
        %8637 = vmatpush1.msra.mxu0 %v8102
        %8638 = vmatprep.subr.mxu0 0.0
        %8639 = vmatpush1.msra.mxu0 %v8103
        %8640 = vmatprep.subr.mxu0 0.0
        %8641 = vmatpush1.msra.mxu0 %v8104
        %8642 = vmatprep.subr.mxu0 0.0
        %8643 = vmatpush1.msra.mxu0 %v8105
        %8644 = vmatprep.subr.mxu0 0.0
        %8645 = vmatpush1.msra.mxu0 %v8106
        %8646 = vmatprep.subr.mxu0 0.0
        %8647 = vmatpush1.msra.mxu0 %v8107
        %8648 = vmatprep.subr.mxu0 0.0
        %8649 = vmatpush1.msra.mxu0 %v8108
        %8650 = vmatprep.subr.mxu0 0.0
        %8651 = vmatpush1.msra.mxu0 %v8109
        %8652 = vmatprep.subr.mxu0 0.0
        %8653 = vmatpush1.msra.mxu0 %v8110
        %8654 = vmatprep.subr.mxu0 0.0
        %8655 = vmatpush1.msra.mxu0 %v8111
        %8656 = vmatprep.subr.mxu0 0.0
        %8657 = vmatpush1.msra.mxu0 %v8112
        %8658 = vmatprep.subr.mxu0 0.0
        %8659 = vmatpush1.msra.mxu0 %v8113
        %8660 = vmatprep.subr.mxu0 0.0
        %8661 = vmatpush1.msra.mxu0 %v8114
        %8662 = vmatprep.subr.mxu0 0.0
        %8663 = vmatpush1.msra.mxu0 %v8115
        %8664 = vmatprep.mubr.f32.mxu0 %v7887
        %8665 = vmatmul.mubr.f32.gmra.mrb[0].mxu0 %v7886
        %v8666 = vpop.f32.mrb[0].mxu0
        %v8667 = vadd.f32 %v8597, %v8666
        %v8668 = vpop.f32.mrb[0].mxu0
        %8669 = vdwg.mxu0
        %8670 = vmatprep.subr.mxu0 0.0
        %8671 = vmatpush1.msra.mxu0 %v8116
        %8672 = vmatprep.subr.mxu0 0.0
        %8673 = vmatpush1.msra.mxu0 %v8117
        %8674 = vmatprep.subr.mxu0 0.0
        %8675 = vmatpush1.msra.mxu0 %v8118
        %8676 = vmatprep.subr.mxu0 0.0
        %8677 = vmatpush1.msra.mxu0 %v8119
        %8678 = vmatprep.subr.mxu0 0.0
        %8679 = vmatpush1.msra.mxu0 %v8120
        %8680 = vmatprep.subr.mxu0 0.0
        %8681 = vmatpush1.msra.mxu0 %v8121
        %8682 = vmatprep.subr.mxu0 0.0
        %8683 = vmatpush1.msra.mxu0 %v8122
        %8684 = vmatprep.subr.mxu0 0.0
        %8685 = vmatpush1.msra.mxu0 %v8123
        %8686 = vmatprep.subr.mxu0 0.0
        %8687 = vmatpush1.msra.mxu0 %v8124
        %8688 = vmatprep.subr.mxu0 0.0
        %8689 = vmatpush1.msra.mxu0 %v8125
        %8690 = vmatprep.subr.mxu0 0.0
        %8691 = vmatpush1.msra.mxu0 %v8126
        %8692 = vmatprep.subr.mxu0 0.0
        %8693 = vmatpush1.msra.mxu0 %v8127
        %8694 = vmatprep.subr.mxu0 0.0
        %8695 = vmatpush1.msra.mxu0 %v8128
        %8696 = vmatprep.subr.mxu0 0.0
        %8697 = vmatpush1.msra.mxu0 %v8129
        %8698 = vmatprep.subr.mxu0 0.0
        %8699 = vmatpush1.msra.mxu0 %v8130
        %8700 = vmatprep.subr.mxu0 0.0
        %8701 = vmatpush1.msra.mxu0 %v8131
        %8702 = vmatprep.subr.mxu0 0.0
        %8703 = vmatpush1.msra.mxu0 %v8132
        %8704 = vmatprep.subr.mxu0 0.0
        %8705 = vmatpush1.msra.mxu0 %v8133
        %8706 = vmatprep.subr.mxu0 0.0
        %8707 = vmatpush1.msra.mxu0 %v8134
        %8708 = vmatprep.subr.mxu0 0.0
        %8709 = vmatpush1.msra.mxu0 %v8135
        %8710 = vmatprep.subr.mxu0 0.0
        %8711 = vmatpush1.msra.mxu0 %v8136
        %8712 = vmatprep.subr.mxu0 0.0
        %8713 = vmatpush1.msra.mxu0 %v8137
        %8714 = vmatprep.subr.mxu0 0.0
        %8715 = vmatpush1.msra.mxu0 %v8138
        %8716 = vmatprep.subr.mxu0 0.0
        %8717 = vmatpush1.msra.mxu0 %v8139
        %8718 = vmatprep.subr.mxu0 0.0
        %8719 = vmatpush1.msra.mxu0 %v8140
        %8720 = vmatprep.subr.mxu0 0.0
        %8721 = vmatpush1.msra.mxu0 %v8141
        %8722 = vmatprep.subr.mxu0 0.0
        %8723 = vmatpush1.msra.mxu0 %v8142
        %8724 = vmatprep.subr.mxu0 0.0
        %8725 = vmatpush1.msra.mxu0 %v8143
        %8726 = vmatprep.subr.mxu0 0.0
        %8727 = vmatpush1.msra.mxu0 %v8144
        %8728 = vmatprep.subr.mxu0 0.0
        %8729 = vmatpush1.msra.mxu0 %v8145
        %8730 = vmatprep.subr.mxu0 0.0
        %8731 = vmatpush1.msra.mxu0 %v8146
        %8732 = vmatprep.subr.mxu0 0.0
        %8733 = vmatpush1.msra.mxu0 %v8147
        %8734 = vmatprep.mubr.f32.mxu0 %v7889
        %8735 = vmatmul.mubr.f32.gmra.mrb[0].mxu0 %v7888
        %v8736 = vpop.f32.mrb[0].mxu0
        %v8737 = vadd.f32 %v8667, %v8736
        %v8738 = vpop.f32.mrb[0].mxu0
        %8739 = vdwg.mxu0
        %8740 = vmatprep.subr.mxu0 0.0
        %8741 = vmatpush1.msra.mxu0 %v8148
        %8742 = vmatprep.subr.mxu0 0.0
        %8743 = vmatpush1.msra.mxu0 %v8149
        %8744 = vmatprep.subr.mxu0 0.0
        %8745 = vmatpush1.msra.mxu0 %v8150
        %8746 = vmatprep.subr.mxu0 0.0
        %8747 = vmatpush1.msra.mxu0 %v8151
        %8748 = vmatprep.subr.mxu0 0.0
        %8749 = vmatpush1.msra.mxu0 %v8152
        %8750 = vmatprep.subr.mxu0 0.0
        %8751 = vmatpush1.msra.mxu0 %v8153
        %8752 = vmatprep.subr.mxu0 0.0
        %8753 = vmatpush1.msra.mxu0 %v8154
        %8754 = vmatprep.subr.mxu0 0.0
        %8755 = vmatpush1.msra.mxu0 %v8155
        %8756 = vmatprep.subr.mxu0 0.0
        %8757 = vmatpush1.msra.mxu0 %v8156
        %8758 = vmatprep.subr.mxu0 0.0
        %8759 = vmatpush1.msra.mxu0 %v8157
        %8760 = vmatprep.subr.mxu0 0.0
        %8761 = vmatpush1.msra.mxu0 %v8158
        %8762 = vmatprep.subr.mxu0 0.0
        %8763 = vmatpush1.msra.mxu0 %v8159
        %8764 = vmatprep.subr.mxu0 0.0
        %8765 = vmatpush1.msra.mxu0 %v8160
        %8766 = vmatprep.subr.mxu0 0.0
        %8767 = vmatpush1.msra.mxu0 %v8161
        %8768 = vmatprep.subr.mxu0 0.0
        %8769 = vmatpush1.msra.mxu0 %v8162
        %8770 = vmatprep.subr.mxu0 0.0
        %8771 = vmatpush1.msra.mxu0 %v8163
        %8772 = vmatprep.subr.mxu0 0.0
        %8773 = vmatpush1.msra.mxu0 %v8164
        %8774 = vmatprep.subr.mxu0 0.0
        %8775 = vmatpush1.msra.mxu0 %v8165
        %8776 = vmatprep.subr.mxu0 0.0
        %8777 = vmatpush1.msra.mxu0 %v8166
        %8778 = vmatprep.subr.mxu0 0.0
        %8779 = vmatpush1.msra.mxu0 %v8167
        %8780 = vmatprep.subr.mxu0 0.0
        %8781 = vmatpush1.msra.mxu0 %v8168
        %8782 = vmatprep.subr.mxu0 0.0
        %8783 = vmatpush1.msra.mxu0 %v8169
        %8784 = vmatprep.subr.mxu0 0.0
        %8785 = vmatpush1.msra.mxu0 %v8170
        %8786 = vmatprep.subr.mxu0 0.0
        %8787 = vmatpush1.msra.mxu0 %v8171
        %8788 = vmatprep.subr.mxu0 0.0
        %8789 = vmatpush1.msra.mxu0 %v8172
        %8790 = vmatprep.subr.mxu0 0.0
        %8791 = vmatpush1.msra.mxu0 %v8173
        %8792 = vmatprep.subr.mxu0 0.0
        %8793 = vmatpush1.msra.mxu0 %v8174
        %8794 = vmatprep.subr.mxu0 0.0
        %8795 = vmatpush1.msra.mxu0 %v8175
        %8796 = vmatprep.subr.mxu0 0.0
        %8797 = vmatpush1.msra.mxu0 %v8176
        %8798 = vmatprep.subr.mxu0 0.0
        %8799 = vmatpush1.msra.mxu0 %v8177
        %8800 = vmatprep.subr.mxu0 0.0
        %8801 = vmatpush1.msra.mxu0 %v8178
        %8802 = vmatprep.subr.mxu0 0.0
        %8803 = vmatpush1.msra.mxu0 %v8179
        %8804 = vmatprep.mubr.f32.mxu0 %v7891
        %8805 = vmatmul.mubr.f32.gmra.mrb[0].mxu0 %v7890
        %v8806 = vpop.f32.mrb[0].mxu0
        %v8807 = vadd.f32 %v8737, %v8806
        %v8808 = vpop.f32.mrb[0].mxu0
        %8809 = vdwg.mxu0
        %8810 = vmatprep.subr.mxu0 0.0
        %8811 = vmatpush1.msra.mxu0 %v7892
        %8812 = vmatprep.subr.mxu0 0.0
        %8813 = vmatpush1.msra.mxu0 %v7893
        %8814 = vmatprep.subr.mxu0 0.0
        %8815 = vmatpush1.msra.mxu0 %v7894
        %8816 = vmatprep.subr.mxu0 0.0
        %8817 = vmatpush1.msra.mxu0 %v7895
        %8818 = vmatprep.subr.mxu0 0.0
        %8819 = vmatpush1.msra.mxu0 %v7896
        %8820 = vmatprep.subr.mxu0 0.0
        %8821 = vmatpush1.msra.mxu0 %v7897
        %8822 = vmatprep.subr.mxu0 0.0
        %8823 = vmatpush1.msra.mxu0 %v7898
        %8824 = vmatprep.subr.mxu0 0.0
        %8825 = vmatpush1.msra.mxu0 %v7899
        %8826 = vmatprep.subr.mxu0 0.0
        %8827 = vmatpush1.msra.mxu0 %v7900
        %8828 = vmatprep.subr.mxu0 0.0
        %8829 = vmatpush1.msra.mxu0 %v7901
        %8830 = vmatprep.subr.mxu0 0.0
        %8831 = vmatpush1.msra.mxu0 %v7902
        %8832 = vmatprep.subr.mxu0 0.0
        %8833 = vmatpush1.msra.mxu0 %v7903
        %8834 = vmatprep.subr.mxu0 0.0
        %8835 = vmatpush1.msra.mxu0 %v7904
        %8836 = vmatprep.subr.mxu0 0.0
        %8837 = vmatpush1.msra.mxu0 %v7905
        %8838 = vmatprep.subr.mxu0 0.0
        %8839 = vmatpush1.msra.mxu0 %v7906
        %8840 = vmatprep.subr.mxu0 0.0
        %8841 = vmatpush1.msra.mxu0 %v7907
        %8842 = vmatprep.subr.mxu0 0.0
        %8843 = vmatpush1.msra.mxu0 %v7908
        %8844 = vmatprep.subr.mxu0 0.0
        %8845 = vmatpush1.msra.mxu0 %v7909
        %8846 = vmatprep.subr.mxu0 0.0
        %8847 = vmatpush1.msra.mxu0 %v7910
        %8848 = vmatprep.subr.mxu0 0.0
        %8849 = vmatpush1.msra.mxu0 %v7911
        %8850 = vmatprep.subr.mxu0 0.0
        %8851 = vmatpush1.msra.mxu0 %v7912
        %8852 = vmatprep.subr.mxu0 0.0
        %8853 = vmatpush1.msra.mxu0 %v7913
        %8854 = vmatprep.subr.mxu0 0.0
        %8855 = vmatpush1.msra.mxu0 %v7914
        %8856 = vmatprep.subr.mxu0 0.0
        %8857 = vmatpush1.msra.mxu0 %v7915
        %8858 = vmatprep.subr.mxu0 0.0
        %8859 = vmatpush1.msra.mxu0 %v7916
        %8860 = vmatprep.subr.mxu0 0.0
        %8861 = vmatpush1.msra.mxu0 %v7917
        %8862 = vmatprep.subr.mxu0 0.0
        %8863 = vmatpush1.msra.mxu0 %v7918
        %8864 = vmatprep.subr.mxu0 0.0
        %8865 = vmatpush1.msra.mxu0 %v7919
        %8866 = vmatprep.subr.mxu0 0.0
        %8867 = vmatpush1.msra.mxu0 %v7920
        %8868 = vmatprep.subr.mxu0 0.0
        %8869 = vmatpush1.msra.mxu0 %v7921
        %8870 = vmatprep.subr.mxu0 0.0
        %8871 = vmatpush1.msra.mxu0 %v7922
        %8872 = vmatprep.subr.mxu0 0.0
        %8873 = vmatpush1.msra.mxu0 %v7923
        %8874 = vmatprep.mubr.f32.mxu0 %v469
        %8875 = vmatmul.mubr.f32.gmra.mrb[0].mxu0 %v468
        %v8876 = vpop.f32.mrb[0].mxu0
        %v8877 = vadd.f32 0.0, %v8876
        %v8878 = vpop.f32.mrb[0].mxu0
        %8879 = vdwg.mxu0
        %8880 = vmatprep.subr.mxu0 0.0
        %8881 = vmatpush1.msra.mxu0 %v7924
        %8882 = vmatprep.subr.mxu0 0.0
        %8883 = vmatpush1.msra.mxu0 %v7925
        %8884 = vmatprep.subr.mxu0 0.0
        %8885 = vmatpush1.msra.mxu0 %v7926
        %8886 = vmatprep.subr.mxu0 0.0
        %8887 = vmatpush1.msra.mxu0 %v7927
        %8888 = vmatprep.subr.mxu0 0.0
        %8889 = vmatpush1.msra.mxu0 %v7928
        %8890 = vmatprep.subr.mxu0 0.0
        %8891 = vmatpush1.msra.mxu0 %v7929
        %8892 = vmatprep.subr.mxu0 0.0
        %8893 = vmatpush1.msra.mxu0 %v7930
        %8894 = vmatprep.subr.mxu0 0.0
        %8895 = vmatpush1.msra.mxu0 %v7931
        %8896 = vmatprep.subr.mxu0 0.0
        %8897 = vmatpush1.msra.mxu0 %v7932
        %8898 = vmatprep.subr.mxu0 0.0
        %8899 = vmatpush1.msra.mxu0 %v7933
        %8900 = vmatprep.subr.mxu0 0.0
        %8901 = vmatpush1.msra.mxu0 %v7934
        %8902 = vmatprep.subr.mxu0 0.0
        %8903 = vmatpush1.msra.mxu0 %v7935
        %8904 = vmatprep.subr.mxu0 0.0
        %8905 = vmatpush1.msra.mxu0 %v7936
        %8906 = vmatprep.subr.mxu0 0.0
        %8907 = vmatpush1.msra.mxu0 %v7937
        %8908 = vmatprep.subr.mxu0 0.0
        %8909 = vmatpush1.msra.mxu0 %v7938
        %8910 = vmatprep.subr.mxu0 0.0
        %8911 = vmatpush1.msra.mxu0 %v7939
        %8912 = vmatprep.subr.mxu0 0.0
        %8913 = vmatpush1.msra.mxu0 %v7940
        %8914 = vmatprep.subr.mxu0 0.0
        %8915 = vmatpush1.msra.mxu0 %v7941
        %8916 = vmatprep.subr.mxu0 0.0
        %8917 = vmatpush1.msra.mxu0 %v7942
        %8918 = vmatprep.subr.mxu0 0.0
        %8919 = vmatpush1.msra.mxu0 %v7943
        %8920 = vmatprep.subr.mxu0 0.0
        %8921 = vmatpush1.msra.mxu0 %v7944
        %8922 = vmatprep.subr.mxu0 0.0
        %8923 = vmatpush1.msra.mxu0 %v7945
        %8924 = vmatprep.subr.mxu0 0.0
        %8925 = vmatpush1.msra.mxu0 %v7946
        %8926 = vmatprep.subr.mxu0 0.0
        %8927 = vmatpush1.msra.mxu0 %v7947
        %8928 = vmatprep.subr.mxu0 0.0
        %8929 = vmatpush1.msra.mxu0 %v7948
        %8930 = vmatprep.subr.mxu0 0.0
        %8931 = vmatpush1.msra.mxu0 %v7949
        %8932 = vmatprep.subr.mxu0 0.0
        %8933 = vmatpush1.msra.mxu0 %v7950
        %8934 = vmatprep.subr.mxu0 0.0
        %8935 = vmatpush1.msra.mxu0 %v7951
        %8936 = vmatprep.subr.mxu0 0.0
        %8937 = vmatpush1.msra.mxu0 %v7952
        %8938 = vmatprep.subr.mxu0 0.0
        %8939 = vmatpush1.msra.mxu0 %v7953
        %8940 = vmatprep.subr.mxu0 0.0
        %8941 = vmatpush1.msra.mxu0 %v7954
        %8942 = vmatprep.subr.mxu0 0.0
        %8943 = vmatpush1.msra.mxu0 %v7955
        %8944 = vmatprep.mubr.f32.mxu0 %v471
        %8945 = vmatmul.mubr.f32.gmra.mrb[0].mxu0 %v470
        %v8946 = vpop.f32.mrb[0].mxu0
        %v8947 = vadd.f32 %v8877, %v8946
        %v8948 = vpop.f32.mrb[0].mxu0
        %8949 = vdwg.mxu0
        %8950 = vmatprep.subr.mxu0 0.0
        %8951 = vmatpush1.msra.mxu0 %v7956
        %8952 = vmatprep.subr.mxu0 0.0
        %8953 = vmatpush1.msra.mxu0 %v7957
        %8954 = vmatprep.subr.mxu0 0.0
        %8955 = vmatpush1.msra.mxu0 %v7958
        %8956 = vmatprep.subr.mxu0 0.0
        %8957 = vmatpush1.msra.mxu0 %v7959
        %8958 = vmatprep.subr.mxu0 0.0
        %8959 = vmatpush1.msra.mxu0 %v7960
        %8960 = vmatprep.subr.mxu0 0.0
        %8961 = vmatpush1.msra.mxu0 %v7961
        %8962 = vmatprep.subr.mxu0 0.0
        %8963 = vmatpush1.msra.mxu0 %v7962
        %8964 = vmatprep.subr.mxu0 0.0
        %8965 = vmatpush1.msra.mxu0 %v7963
        %8966 = vmatprep.subr.mxu0 0.0
        %8967 = vmatpush1.msra.mxu0 %v7964
        %8968 = vmatprep.subr.mxu0 0.0
        %8969 = vmatpush1.msra.mxu0 %v7965
        %8970 = vmatprep.subr.mxu0 0.0
        %8971 = vmatpush1.msra.mxu0 %v7966
        %8972 = vmatprep.subr.mxu0 0.0
        %8973 = vmatpush1.msra.mxu0 %v7967
        %8974 = vmatprep.subr.mxu0 0.0
        %8975 = vmatpush1.msra.mxu0 %v7968
        %8976 = vmatprep.subr.mxu0 0.0
        %8977 = vmatpush1.msra.mxu0 %v7969
        %8978 = vmatprep.subr.mxu0 0.0
        %8979 = vmatpush1.msra.mxu0 %v7970
        %8980 = vmatprep.subr.mxu0 0.0
        %8981 = vmatpush1.msra.mxu0 %v7971
        %8982 = vmatprep.subr.mxu0 0.0
        %8983 = vmatpush1.msra.mxu0 %v7972
        %8984 = vmatprep.subr.mxu0 0.0
        %8985 = vmatpush1.msra.mxu0 %v7973
        %8986 = vmatprep.subr.mxu0 0.0
        %8987 = vmatpush1.msra.mxu0 %v7974
        %8988 = vmatprep.subr.mxu0 0.0
        %8989 = vmatpush1.msra.mxu0 %v7975
        %8990 = vmatprep.subr.mxu0 0.0
        %8991 = vmatpush1.msra.mxu0 %v7976
        %8992 = vmatprep.subr.mxu0 0.0
        %8993 = vmatpush1.msra.mxu0 %v7977
        %8994 = vmatprep.subr.mxu0 0.0
        %8995 = vmatpush1.msra.mxu0 %v7978
        %8996 = vmatprep.subr.mxu0 0.0
        %8997 = vmatpush1.msra.mxu0 %v7979
        %8998 = vmatprep.subr.mxu0 0.0
        %8999 = vmatpush1.msra.mxu0 %v7980
        %9000 = vmatprep.subr.mxu0 0.0
        %9001 = vmatpush1.msra.mxu0 %v7981
        %9002 = vmatprep.subr.mxu0 0.0
        %9003 = vmatpush1.msra.mxu0 %v7982
        %9004 = vmatprep.subr.mxu0 0.0
        %9005 = vmatpush1.msra.mxu0 %v7983
        %9006 = vmatprep.subr.mxu0 0.0
        %9007 = vmatpush1.msra.mxu0 %v7984
        %9008 = vmatprep.subr.mxu0 0.0
        %9009 = vmatpush1.msra.mxu0 %v7985
        %9010 = vmatprep.subr.mxu0 0.0
        %9011 = vmatpush1.msra.mxu0 %v7986
        %9012 = vmatprep.subr.mxu0 0.0
        %9013 = vmatpush1.msra.mxu0 %v7987
        %9014 = vmatprep.mubr.f32.mxu0 %v473
        %9015 = vmatmul.mubr.f32.gmra.mrb[0].mxu0 %v472
        %v9016 = vpop.f32.mrb[0].mxu0
        %v9017 = vadd.f32 %v8947, %v9016
        %v9018 = vpop.f32.mrb[0].mxu0
        %9019 = vdwg.mxu0
        %9020 = vmatprep.subr.mxu0 0.0
        %9021 = vmatpush1.msra.mxu0 %v7988
        %9022 = vmatprep.subr.mxu0 0.0
        %9023 = vmatpush1.msra.mxu0 %v7989
        %9024 = vmatprep.subr.mxu0 0.0
        %9025 = vmatpush1.msra.mxu0 %v7990
        %9026 = vmatprep.subr.mxu0 0.0
        %9027 = vmatpush1.msra.mxu0 %v7991
        %9028 = vmatprep.subr.mxu0 0.0
        %9029 = vmatpush1.msra.mxu0 %v7992
        %9030 = vmatprep.subr.mxu0 0.0
        %9031 = vmatpush1.msra.mxu0 %v7993
        %9032 = vmatprep.subr.mxu0 0.0
        %9033 = vmatpush1.msra.mxu0 %v7994
        %9034 = vmatprep.subr.mxu0 0.0
        %9035 = vmatpush1.msra.mxu0 %v7995
        %9036 = vmatprep.subr.mxu0 0.0
        %9037 = vmatpush1.msra.mxu0 %v7996
        %9038 = vmatprep.subr.mxu0 0.0
        %9039 = vmatpush1.msra.mxu0 %v7997
        %9040 = vmatprep.subr.mxu0 0.0
        %9041 = vmatpush1.msra.mxu0 %v7998
        %9042 = vmatprep.subr.mxu0 0.0
        %9043 = vmatpush1.msra.mxu0 %v7999
        %9044 = vmatprep.subr.mxu0 0.0
        %9045 = vmatpush1.msra.mxu0 %v8000
        %9046 = vmatprep.subr.mxu0 0.0
        %9047 = vmatpush1.msra.mxu0 %v8001
        %9048 = vmatprep.subr.mxu0 0.0
        %9049 = vmatpush1.msra.mxu0 %v8002
        %9050 = vmatprep.subr.mxu0 0.0
        %9051 = vmatpush1.msra.mxu0 %v8003
        %9052 = vmatprep.subr.mxu0 0.0
        %9053 = vmatpush1.msra.mxu0 %v8004
        %9054 = vmatprep.subr.mxu0 0.0
        %9055 = vmatpush1.msra.mxu0 %v8005
        %9056 = vmatprep.subr.mxu0 0.0
        %9057 = vmatpush1.msra.mxu0 %v8006
        %9058 = vmatprep.subr.mxu0 0.0
        %9059 = vmatpush1.msra.mxu0 %v8007
        %9060 = vmatprep.subr.mxu0 0.0
        %9061 = vmatpush1.msra.mxu0 %v8008
        %9062 = vmatprep.subr.mxu0 0.0
        %9063 = vmatpush1.msra.mxu0 %v8009
        %9064 = vmatprep.subr.mxu0 0.0
        %9065 = vmatpush1.msra.mxu0 %v8010
        %9066 = vmatprep.subr.mxu0 0.0
        %9067 = vmatpush1.msra.mxu0 %v8011
        %9068 = vmatprep.subr.mxu0 0.0
        %9069 = vmatpush1.msra.mxu0 %v8012
        %9070 = vmatprep.subr.mxu0 0.0
        %9071 = vmatpush1.msra.mxu0 %v8013
        %9072 = vmatprep.subr.mxu0 0.0
        %9073 = vmatpush1.msra.mxu0 %v8014
        %9074 = vmatprep.subr.mxu0 0.0
        %9075 = vmatpush1.msra.mxu0 %v8015
        %9076 = vmatprep.subr.mxu0 0.0
        %9077 = vmatpush1.msra.mxu0 %v8016
        %9078 = vmatprep.subr.mxu0 0.0
        %9079 = vmatpush1.msra.mxu0 %v8017
        %9080 = vmatprep.subr.mxu0 0.0
        %9081 = vmatpush1.msra.mxu0 %v8018
        %9082 = vmatprep.subr.mxu0 0.0
        %9083 = vmatpush1.msra.mxu0 %v8019
        %9084 = vmatprep.mubr.f32.mxu0 %v475
        %9085 = vmatmul.mubr.f32.gmra.mrb[0].mxu0 %v474
        %v9086 = vpop.f32.mrb[0].mxu0
        %v9087 = vadd.f32 %v9017, %v9086
        %v9088 = vpop.f32.mrb[0].mxu0
        %9089 = vdwg.mxu0
        %9090 = vmatprep.subr.mxu0 0.0
        %9091 = vmatpush1.msra.mxu0 %v8020
        %9092 = vmatprep.subr.mxu0 0.0
        %9093 = vmatpush1.msra.mxu0 %v8021
        %9094 = vmatprep.subr.mxu0 0.0
        %9095 = vmatpush1.msra.mxu0 %v8022
        %9096 = vmatprep.subr.mxu0 0.0
        %9097 = vmatpush1.msra.mxu0 %v8023
        %9098 = vmatprep.subr.mxu0 0.0
        %9099 = vmatpush1.msra.mxu0 %v8024
        %9100 = vmatprep.subr.mxu0 0.0
        %9101 = vmatpush1.msra.mxu0 %v8025
        %9102 = vmatprep.subr.mxu0 0.0
        %9103 = vmatpush1.msra.mxu0 %v8026
        %9104 = vmatprep.subr.mxu0 0.0
        %9105 = vmatpush1.msra.mxu0 %v8027
        %9106 = vmatprep.subr.mxu0 0.0
        %9107 = vmatpush1.msra.mxu0 %v8028
        %9108 = vmatprep.subr.mxu0 0.0
        %9109 = vmatpush1.msra.mxu0 %v8029
        %9110 = vmatprep.subr.mxu0 0.0
        %9111 = vmatpush1.msra.mxu0 %v8030
        %9112 = vmatprep.subr.mxu0 0.0
        %9113 = vmatpush1.msra.mxu0 %v8031
        %9114 = vmatprep.subr.mxu0 0.0
        %9115 = vmatpush1.msra.mxu0 %v8032
        %9116 = vmatprep.subr.mxu0 0.0
        %9117 = vmatpush1.msra.mxu0 %v8033
        %9118 = vmatprep.subr.mxu0 0.0
        %9119 = vmatpush1.msra.mxu0 %v8034
        %9120 = vmatprep.subr.mxu0 0.0
        %9121 = vmatpush1.msra.mxu0 %v8035
        %9122 = vmatprep.subr.mxu0 0.0
        %9123 = vmatpush1.msra.mxu0 %v8036
        %9124 = vmatprep.subr.mxu0 0.0
        %9125 = vmatpush1.msra.mxu0 %v8037
        %9126 = vmatprep.subr.mxu0 0.0
        %9127 = vmatpush1.msra.mxu0 %v8038
        %9128 = vmatprep.subr.mxu0 0.0
        %9129 = vmatpush1.msra.mxu0 %v8039
        %9130 = vmatprep.subr.mxu0 0.0
        %9131 = vmatpush1.msra.mxu0 %v8040
        %9132 = vmatprep.subr.mxu0 0.0
        %9133 = vmatpush1.msra.mxu0 %v8041
        %9134 = vmatprep.subr.mxu0 0.0
        %9135 = vmatpush1.msra.mxu0 %v8042
        %9136 = vmatprep.subr.mxu0 0.0
        %9137 = vmatpush1.msra.mxu0 %v8043
        %9138 = vmatprep.subr.mxu0 0.0
        %9139 = vmatpush1.msra.mxu0 %v8044
        %9140 = vmatprep.subr.mxu0 0.0
        %9141 = vmatpush1.msra.mxu0 %v8045
        %9142 = vmatprep.subr.mxu0 0.0
        %9143 = vmatpush1.msra.mxu0 %v8046
        %9144 = vmatprep.subr.mxu0 0.0
        %9145 = vmatpush1.msra.mxu0 %v8047
        %9146 = vmatprep.subr.mxu0 0.0
        %9147 = vmatpush1.msra.mxu0 %v8048
        %9148 = vmatprep.subr.mxu0 0.0
        %9149 = vmatpush1.msra.mxu0 %v8049
        %9150 = vmatprep.subr.mxu0 0.0
        %9151 = vmatpush1.msra.mxu0 %v8050
        %9152 = vmatprep.subr.mxu0 0.0
        %9153 = vmatpush1.msra.mxu0 %v8051
        %9154 = vmatprep.mubr.f32.mxu0 %v477
        %9155 = vmatmul.mubr.f32.gmra.mrb[0].mxu0 %v476
        %v9156 = vpop.f32.mrb[0].mxu0
        %v9157 = vadd.f32 %v9087, %v9156
        %v9158 = vpop.f32.mrb[0].mxu0
        %9159 = vdwg.mxu0
        %9160 = vmatprep.subr.mxu0 0.0
        %9161 = vmatpush1.msra.mxu0 %v8052
        %9162 = vmatprep.subr.mxu0 0.0
        %9163 = vmatpush1.msra.mxu0 %v8053
        %9164 = vmatprep.subr.mxu0 0.0
        %9165 = vmatpush1.msra.mxu0 %v8054
        %9166 = vmatprep.subr.mxu0 0.0
        %9167 = vmatpush1.msra.mxu0 %v8055
        %9168 = vmatprep.subr.mxu0 0.0
        %9169 = vmatpush1.msra.mxu0 %v8056
        %9170 = vmatprep.subr.mxu0 0.0
        %9171 = vmatpush1.msra.mxu0 %v8057
        %9172 = vmatprep.subr.mxu0 0.0
        %9173 = vmatpush1.msra.mxu0 %v8058
        %9174 = vmatprep.subr.mxu0 0.0
        %9175 = vmatpush1.msra.mxu0 %v8059
        %9176 = vmatprep.subr.mxu0 0.0
        %9177 = vmatpush1.msra.mxu0 %v8060
        %9178 = vmatprep.subr.mxu0 0.0
        %9179 = vmatpush1.msra.mxu0 %v8061
        %9180 = vmatprep.subr.mxu0 0.0
        %9181 = vmatpush1.msra.mxu0 %v8062
        %9182 = vmatprep.subr.mxu0 0.0
        %9183 = vmatpush1.msra.mxu0 %v8063
        %9184 = vmatprep.subr.mxu0 0.0
        %9185 = vmatpush1.msra.mxu0 %v8064
        %9186 = vmatprep.subr.mxu0 0.0
        %9187 = vmatpush1.msra.mxu0 %v8065
        %9188 = vmatprep.subr.mxu0 0.0
        %9189 = vmatpush1.msra.mxu0 %v8066
        %9190 = vmatprep.subr.mxu0 0.0
        %9191 = vmatpush1.msra.mxu0 %v8067
        %9192 = vmatprep.subr.mxu0 0.0
        %9193 = vmatpush1.msra.mxu0 %v8068
        %9194 = vmatprep.subr.mxu0 0.0
        %9195 = vmatpush1.msra.mxu0 %v8069
        %9196 = vmatprep.subr.mxu0 0.0
        %9197 = vmatpush1.msra.mxu0 %v8070
        %9198 = vmatprep.subr.mxu0 0.0
        %9199 = vmatpush1.msra.mxu0 %v8071
        %9200 = vmatprep.subr.mxu0 0.0
        %9201 = vmatpush1.msra.mxu0 %v8072
        %9202 = vmatprep.subr.mxu0 0.0
        %9203 = vmatpush1.msra.mxu0 %v8073
        %9204 = vmatprep.subr.mxu0 0.0
        %9205 = vmatpush1.msra.mxu0 %v8074
        %9206 = vmatprep.subr.mxu0 0.0
        %9207 = vmatpush1.msra.mxu0 %v8075
        %9208 = vmatprep.subr.mxu0 0.0
        %9209 = vmatpush1.msra.mxu0 %v8076
        %9210 = vmatprep.subr.mxu0 0.0
        %9211 = vmatpush1.msra.mxu0 %v8077
        %9212 = vmatprep.subr.mxu0 0.0
        %9213 = vmatpush1.msra.mxu0 %v8078
        %9214 = vmatprep.subr.mxu0 0.0
        %9215 = vmatpush1.msra.mxu0 %v8079
        %9216 = vmatprep.subr.mxu0 0.0
        %9217 = vmatpush1.msra.mxu0 %v8080
        %9218 = vmatprep.subr.mxu0 0.0
        %9219 = vmatpush1.msra.mxu0 %v8081
        %9220 = vmatprep.subr.mxu0 0.0
        %9221 = vmatpush1.msra.mxu0 %v8082
        %9222 = vmatprep.subr.mxu0 0.0
        %9223 = vmatpush1.msra.mxu0 %v8083
        %9224 = vmatprep.mubr.f32.mxu0 %v479
        %9225 = vmatmul.mubr.f32.gmra.mrb[0].mxu0 %v478
        %v9226 = vpop.f32.mrb[0].mxu0
        %v9227 = vadd.f32 %v9157, %v9226
        %v9228 = vpop.f32.mrb[0].mxu0
        %9229 = vdwg.mxu0
        %9230 = vmatprep.subr.mxu0 0.0
        %9231 = vmatpush1.msra.mxu0 %v8084
        %9232 = vmatprep.subr.mxu0 0.0
        %9233 = vmatpush1.msra.mxu0 %v8085
        %9234 = vmatprep.subr.mxu0 0.0
        %9235 = vmatpush1.msra.mxu0 %v8086
        %9236 = vmatprep.subr.mxu0 0.0
        %9237 = vmatpush1.msra.mxu0 %v8087
        %9238 = vmatprep.subr.mxu0 0.0
        %9239 = vmatpush1.msra.mxu0 %v8088
        %9240 = vmatprep.subr.mxu0 0.0
        %9241 = vmatpush1.msra.mxu0 %v8089
        %9242 = vmatprep.subr.mxu0 0.0
        %9243 = vmatpush1.msra.mxu0 %v8090
        %9244 = vmatprep.subr.mxu0 0.0
        %9245 = vmatpush1.msra.mxu0 %v8091
        %9246 = vmatprep.subr.mxu0 0.0
        %9247 = vmatpush1.msra.mxu0 %v8092
        %9248 = vmatprep.subr.mxu0 0.0
        %9249 = vmatpush1.msra.mxu0 %v8093
        %9250 = vmatprep.subr.mxu0 0.0
        %9251 = vmatpush1.msra.mxu0 %v8094
        %9252 = vmatprep.subr.mxu0 0.0
        %9253 = vmatpush1.msra.mxu0 %v8095
        %9254 = vmatprep.subr.mxu0 0.0
        %9255 = vmatpush1.msra.mxu0 %v8096
        %9256 = vmatprep.subr.mxu0 0.0
        %9257 = vmatpush1.msra.mxu0 %v8097
        %9258 = vmatprep.subr.mxu0 0.0
        %9259 = vmatpush1.msra.mxu0 %v8098
        %9260 = vmatprep.subr.mxu0 0.0
        %9261 = vmatpush1.msra.mxu0 %v8099
        %9262 = vmatprep.subr.mxu0 0.0
        %9263 = vmatpush1.msra.mxu0 %v8100
        %9264 = vmatprep.subr.mxu0 0.0
        %9265 = vmatpush1.msra.mxu0 %v8101
        %9266 = vmatprep.subr.mxu0 0.0
        %9267 = vmatpush1.msra.mxu0 %v8102
        %9268 = vmatprep.subr.mxu0 0.0
        %9269 = vmatpush1.msra.mxu0 %v8103
        %9270 = vmatprep.subr.mxu0 0.0
        %9271 = vmatpush1.msra.mxu0 %v8104
        %9272 = vmatprep.subr.mxu0 0.0
        %9273 = vmatpush1.msra.mxu0 %v8105
        %9274 = vmatprep.subr.mxu0 0.0
        %9275 = vmatpush1.msra.mxu0 %v8106
        %9276 = vmatprep.subr.mxu0 0.0
        %9277 = vmatpush1.msra.mxu0 %v8107
        %9278 = vmatprep.subr.mxu0 0.0
        %9279 = vmatpush1.msra.mxu0 %v8108
        %9280 = vmatprep.subr.mxu0 0.0
        %9281 = vmatpush1.msra.mxu0 %v8109
        %9282 = vmatprep.subr.mxu0 0.0
        %9283 = vmatpush1.msra.mxu0 %v8110
        %9284 = vmatprep.subr.mxu0 0.0
        %9285 = vmatpush1.msra.mxu0 %v8111
        %9286 = vmatprep.subr.mxu0 0.0
        %9287 = vmatpush1.msra.mxu0 %v8112
        %9288 = vmatprep.subr.mxu0 0.0
        %9289 = vmatpush1.msra.mxu0 %v8113
        %9290 = vmatprep.subr.mxu0 0.0
        %9291 = vmatpush1.msra.mxu0 %v8114
        %9292 = vmatprep.subr.mxu0 0.0
        %9293 = vmatpush1.msra.mxu0 %v8115
        %9294 = vmatprep.mubr.f32.mxu0 %v481
        %9295 = vmatmul.mubr.f32.gmra.mrb[0].mxu0 %v480
        %v9296 = vpop.f32.mrb[0].mxu0
        %v9297 = vadd.f32 %v9227, %v9296
        %v9298 = vpop.f32.mrb[0].mxu0
        %9299 = vdwg.mxu0
        %9300 = vmatprep.subr.mxu0 0.0
        %9301 = vmatpush1.msra.mxu0 %v8116
        %9302 = vmatprep.subr.mxu0 0.0
        %9303 = vmatpush1.msra.mxu0 %v8117
        %9304 = vmatprep.subr.mxu0 0.0
        %9305 = vmatpush1.msra.mxu0 %v8118
        %9306 = vmatprep.subr.mxu0 0.0
        %9307 = vmatpush1.msra.mxu0 %v8119
        %9308 = vmatprep.subr.mxu0 0.0
        %9309 = vmatpush1.msra.mxu0 %v8120
        %9310 = vmatprep.subr.mxu0 0.0
        %9311 = vmatpush1.msra.mxu0 %v8121
        %9312 = vmatprep.subr.mxu0 0.0
        %9313 = vmatpush1.msra.mxu0 %v8122
        %9314 = vmatprep.subr.mxu0 0.0
        %9315 = vmatpush1.msra.mxu0 %v8123
        %9316 = vmatprep.subr.mxu0 0.0
        %9317 = vmatpush1.msra.mxu0 %v8124
        %9318 = vmatprep.subr.mxu0 0.0
        %9319 = vmatpush1.msra.mxu0 %v8125
        %9320 = vmatprep.subr.mxu0 0.0
        %9321 = vmatpush1.msra.mxu0 %v8126
        %9322 = vmatprep.subr.mxu0 0.0
        %9323 = vmatpush1.msra.mxu0 %v8127
        %9324 = vmatprep.subr.mxu0 0.0
        %9325 = vmatpush1.msra.mxu0 %v8128
        %9326 = vmatprep.subr.mxu0 0.0
        %9327 = vmatpush1.msra.mxu0 %v8129
        %9328 = vmatprep.subr.mxu0 0.0
        %9329 = vmatpush1.msra.mxu0 %v8130
        %9330 = vmatprep.subr.mxu0 0.0
        %9331 = vmatpush1.msra.mxu0 %v8131
        %9332 = vmatprep.subr.mxu0 0.0
        %9333 = vmatpush1.msra.mxu0 %v8132
        %9334 = vmatprep.subr.mxu0 0.0
        %9335 = vmatpush1.msra.mxu0 %v8133
        %9336 = vmatprep.subr.mxu0 0.0
        %9337 = vmatpush1.msra.mxu0 %v8134
        %9338 = vmatprep.subr.mxu0 0.0
        %9339 = vmatpush1.msra.mxu0 %v8135
        %9340 = vmatprep.subr.mxu0 0.0
        %9341 = vmatpush1.msra.mxu0 %v8136
        %9342 = vmatprep.subr.mxu0 0.0
        %9343 = vmatpush1.msra.mxu0 %v8137
        %9344 = vmatprep.subr.mxu0 0.0
        %9345 = vmatpush1.msra.mxu0 %v8138
        %9346 = vmatprep.subr.mxu0 0.0
        %9347 = vmatpush1.msra.mxu0 %v8139
        %9348 = vmatprep.subr.mxu0 0.0
        %9349 = vmatpush1.msra.mxu0 %v8140
        %9350 = vmatprep.subr.mxu0 0.0
        %9351 = vmatpush1.msra.mxu0 %v8141
        %9352 = vmatprep.subr.mxu0 0.0
        %9353 = vmatpush1.msra.mxu0 %v8142
        %9354 = vmatprep.subr.mxu0 0.0
        %9355 = vmatpush1.msra.mxu0 %v8143
        %9356 = vmatprep.subr.mxu0 0.0
        %9357 = vmatpush1.msra.mxu0 %v8144
        %9358 = vmatprep.subr.mxu0 0.0
        %9359 = vmatpush1.msra.mxu0 %v8145
        %9360 = vmatprep.subr.mxu0 0.0
        %9361 = vmatpush1.msra.mxu0 %v8146
        %9362 = vmatprep.subr.mxu0 0.0
        %9363 = vmatpush1.msra.mxu0 %v8147
        %9364 = vmatprep.mubr.f32.mxu0 %v483
        %9365 = vmatmul.mubr.f32.gmra.mrb[0].mxu0 %v482
        %v9366 = vpop.f32.mrb[0].mxu0
        %v9367 = vadd.f32 %v9297, %v9366
        %v9368 = vpop.f32.mrb[0].mxu0
        %9369 = vdwg.mxu0
        %9370 = vmatprep.subr.mxu0 0.0
        %9371 = vmatpush1.msra.mxu0 %v8148
        %9372 = vmatprep.subr.mxu0 0.0
        %9373 = vmatpush1.msra.mxu0 %v8149
        %9374 = vmatprep.subr.mxu0 0.0
        %9375 = vmatpush1.msra.mxu0 %v8150
        %9376 = vmatprep.subr.mxu0 0.0
        %9377 = vmatpush1.msra.mxu0 %v8151
        %9378 = vmatprep.subr.mxu0 0.0
        %9379 = vmatpush1.msra.mxu0 %v8152
        %9380 = vmatprep.subr.mxu0 0.0
        %9381 = vmatpush1.msra.mxu0 %v8153
        %9382 = vmatprep.subr.mxu0 0.0
        %9383 = vmatpush1.msra.mxu0 %v8154
        %9384 = vmatprep.subr.mxu0 0.0
        %9385 = vmatpush1.msra.mxu0 %v8155
        %9386 = vmatprep.subr.mxu0 0.0
        %9387 = vmatpush1.msra.mxu0 %v8156
        %9388 = vmatprep.subr.mxu0 0.0
        %9389 = vmatpush1.msra.mxu0 %v8157
        %9390 = vmatprep.subr.mxu0 0.0
        %9391 = vmatpush1.msra.mxu0 %v8158
        %9392 = vmatprep.subr.mxu0 0.0
        %9393 = vmatpush1.msra.mxu0 %v8159
        %9394 = vmatprep.subr.mxu0 0.0
        %9395 = vmatpush1.msra.mxu0 %v8160
        %9396 = vmatprep.subr.mxu0 0.0
        %9397 = vmatpush1.msra.mxu0 %v8161
        %9398 = vmatprep.subr.mxu0 0.0
        %9399 = vmatpush1.msra.mxu0 %v8162
        %9400 = vmatprep.subr.mxu0 0.0
        %9401 = vmatpush1.msra.mxu0 %v8163
        %9402 = vmatprep.subr.mxu0 0.0
        %9403 = vmatpush1.msra.mxu0 %v8164
        %9404 = vmatprep.subr.mxu0 0.0
        %9405 = vmatpush1.msra.mxu0 %v8165
        %9406 = vmatprep.subr.mxu0 0.0
        %9407 = vmatpush1.msra.mxu0 %v8166
        %9408 = vmatprep.subr.mxu0 0.0
        %9409 = vmatpush1.msra.mxu0 %v8167
        %9410 = vmatprep.subr.mxu0 0.0
        %9411 = vmatpush1.msra.mxu0 %v8168
        %9412 = vmatprep.subr.mxu0 0.0
        %9413 = vmatpush1.msra.mxu0 %v8169
        %9414 = vmatprep.subr.mxu0 0.0
        %9415 = vmatpush1.msra.mxu0 %v8170
        %9416 = vmatprep.subr.mxu0 0.0
        %9417 = vmatpush1.msra.mxu0 %v8171
        %9418 = vmatprep.subr.mxu0 0.0
        %9419 = vmatpush1.msra.mxu0 %v8172
        %9420 = vmatprep.subr.mxu0 0.0
        %9421 = vmatpush1.msra.mxu0 %v8173
        %9422 = vmatprep.subr.mxu0 0.0
        %9423 = vmatpush1.msra.mxu0 %v8174
        %9424 = vmatprep.subr.mxu0 0.0
        %9425 = vmatpush1.msra.mxu0 %v8175
        %9426 = vmatprep.subr.mxu0 0.0
        %9427 = vmatpush1.msra.mxu0 %v8176
        %9428 = vmatprep.subr.mxu0 0.0
        %9429 = vmatpush1.msra.mxu0 %v8177
        %9430 = vmatprep.subr.mxu0 0.0
        %9431 = vmatpush1.msra.mxu0 %v8178
        %9432 = vmatprep.subr.mxu0 0.0
        %9433 = vmatpush1.msra.mxu0 %v8179
        %9434 = vmatprep.mubr.f32.mxu0 %v485
        %9435 = vmatmul.mubr.f32.gmra.mrb[0].mxu0 %v484
        %v9436 = vpop.f32.mrb[0].mxu0
        %v9437 = vadd.f32 %v9367, %v9436
        %v9438 = vpop.f32.mrb[0].mxu0
        %9439 = vdwg.mxu0
        %v9440 = vld [vmem:[%s6] sm:$0xff]
        %v9441 = vld [vmem:[%s6 + $0x8] sm:$0xff]
        %v9442 = vld [vmem:[%s6 + $0x10] sm:$0xff]
        %v9443 = vld [vmem:[%s6 + $0x18] sm:$0xff]
        %v9444 = vmul.f32 %v9440, %v8807
        %v9445 = vmul.f32 %v9441, %v8807
        %v9446 = vmul.f32 %v9442, %v8807
        %v9447 = vmul.f32 %v9443, %v8807
        %vm9448 = vcmask 72704
        %v9449 = vsel %vm9448, %v9444, 0.0
        %9450 = vadd.xlane.f32.xlu0 %v9449
        %v9451 = vpop.xlane.xlu0 %9450
        %v9452 = vsel %vm9448, %v9445, 0.0
        %9453 = vadd.xlane.f32.xlu0 %v9452
        %v9454 = vpop.xlane.xlu0 %9453
        %v9455 = vsel %vm9448, %v9446, 0.0
        %9456 = vadd.xlane.f32.xlu0 %v9455
        %v9457 = vpop.xlane.xlu0 %9456
        %v9458 = vsel %vm9448, %v9447, 0.0
        %9459 = vadd.xlane.f32.xlu0 %v9458
        %v9460 = vpop.xlane.xlu0 %9459
        %v9461 = vld [vmem:[%s7] sm:$0xff]
        %v9462 = vld [vmem:[%s7 + $0x8] sm:$0xff]
        %v9463 = vld [vmem:[%s7 + $0x10] sm:$0xff]
        %v9464 = vld [vmem:[%s7 + $0x18] sm:$0xff]
        %v9465 = vmul.f32 %v9461, %v9437
        %v9466 = vmul.f32 %v9462, %v9437
        %v9467 = vmul.f32 %v9463, %v9437
        %v9468 = vmul.f32 %v9464, %v9437
        %v9469 = vsel %vm9448, %v9465, 0.0
        %9470 = vadd.xlane.f32.xlu0 %v9469
        %v9471 = vpop.xlane.xlu0 %9470
        %v9472 = vsel %vm9448, %v9466, 0.0
        %9473 = vadd.xlane.f32.xlu0 %v9472
        %v9474 = vpop.xlane.xlu0 %9473
        %v9475 = vsel %vm9448, %v9467, 0.0
        %9476 = vadd.xlane.f32.xlu0 %v9475
        %v9477 = vpop.xlane.xlu0 %9476
        %v9478 = vsel %vm9448, %v9468, 0.0
        %9479 = vadd.xlane.f32.xlu0 %v9478
        %v9480 = vpop.xlane.xlu0 %9479
        %v9485 = vlaneseq
        %v9486 = vshrl.u32 %v9485, 7
        %v9487 = vsub.s32 %v1167, %v9486
        %v9488 = vrot.slane %v9451, %v9487
        %v9489 = vlaneseq
        %v9490 = vshrl.u32 %v9489, 7
        %v9491 = vsub.s32 %v1167, %v9490
        %v9492 = vrot.slane %v9454, %v9491
        %v9493 = vlaneseq
        %v9494 = vshrl.u32 %v9493, 7
        %v9495 = vsub.s32 %v1167, %v9494
        %v9496 = vrot.slane %v9457, %v9495
        %v9497 = vlaneseq
        %v9498 = vshrl.u32 %v9497, 7
        %v9499 = vsub.s32 %v1167, %v9498
        %v9500 = vrot.slane %v9460, %v9499
        %vm9501 = vcmask 1041409
        %v9502 = vsel %vm9501, %v9492, %v9488
        %vm9503 = vcmask 1042434
        %v9504 = vsel %vm9503, %v9496, %v9502
        %vm9505 = vcmask 1043459
        %v9506 = vsel %vm9505, %v9500, %v9504
        %vm9508 = vcmask 60416
        %v9509 = vsel %vm9508, %v9506, 0.0
        %9510 = vadd.xlane.f32.xlu0 %v9509
        %v9511 = vpop.xlane.xlu0 %9510
        %v9516 = vlaneseq
        %v9517 = vshrl.u32 %v9516, 7
        %v9518 = vsub.s32 %v1167, %v9517
        %v9519 = vrot.slane %v9471, %v9518
        %v9520 = vlaneseq
        %v9521 = vshrl.u32 %v9520, 7
        %v9522 = vsub.s32 %v1167, %v9521
        %v9523 = vrot.slane %v9474, %v9522
        %v9524 = vlaneseq
        %v9525 = vshrl.u32 %v9524, 7
        %v9526 = vsub.s32 %v1167, %v9525
        %v9527 = vrot.slane %v9477, %v9526
        %v9528 = vlaneseq
        %v9529 = vshrl.u32 %v9528, 7
        %v9530 = vsub.s32 %v1167, %v9529
        %v9531 = vrot.slane %v9480, %v9530
        %v9532 = vsel %vm9501, %v9523, %v9519
        %v9533 = vsel %vm9503, %v9527, %v9532
        %v9534 = vsel %vm9505, %v9531, %v9533
        %v9536 = vsel %vm9508, %v9534, 0.0
        %9537 = vadd.xlane.f32.xlu0 %v9536
        %v9538 = vpop.xlane.xlu0 %9537
        %v9539 = vadd.f32 %v9511, %v9538
        %v9540 = vmax.f32 %v9539, 0.0
        %v9541 = vld [vmem:[%s8] sm:$0xff]
        %vm9542 = vcmask 31744
        %v9544 = vsel %vm9542, %v9541, 0
        %vm9546 = vcmask 1043456
        %v9548 = vsel %vm9546, %v9540, 0
        %9550 = vmatprep.subr.mxu0 0.0
        %9551 = vmatpush1.msra.mxu0 %v9548
        %9552 = vmatprep.subr.mxu0 0.0
        %9553 = vmatpush1.msra.mxu0 0.0
        %9554 = vmatprep.subr.mxu0 0.0
        %9555 = vmatpush1.msra.mxu0 0.0
        %9556 = vmatprep.subr.mxu0 0.0
        %9557 = vmatpush1.msra.mxu0 0.0
        %9558 = vmatprep.subr.mxu0 0.0
        %9559 = vmatpush1.msra.mxu0 0.0
        %9560 = vmatprep.subr.mxu0 0.0
        %9561 = vmatpush1.msra.mxu0 0.0
        %9562 = vmatprep.subr.mxu0 0.0
        %9563 = vmatpush1.msra.mxu0 0.0
        %9564 = vmatprep.subr.mxu0 0.0
        %9565 = vmatpush1.msra.mxu0 0.0
        %9566 = vmatprep.subr.mxu0 0.0
        %9567 = vmatpush1.msra.mxu0 0.0
        %9568 = vmatprep.subr.mxu0 0.0
        %9569 = vmatpush1.msra.mxu0 0.0
        %9570 = vmatprep.subr.mxu0 0.0
        %9571 = vmatpush1.msra.mxu0 0.0
        %9572 = vmatprep.subr.mxu0 0.0
        %9573 = vmatpush1.msra.mxu0 0.0
        %9574 = vmatprep.subr.mxu0 0.0
        %9575 = vmatpush1.msra.mxu0 0.0
        %9576 = vmatprep.subr.mxu0 0.0
        %9577 = vmatpush1.msra.mxu0 0.0
        %9578 = vmatprep.subr.mxu0 0.0
        %9579 = vmatpush1.msra.mxu0 0.0
        %9580 = vmatprep.subr.mxu0 0.0
        %9581 = vmatpush1.msra.mxu0 0.0
        %9582 = vmatprep.subr.mxu0 0.0
        %9583 = vmatpush1.msra.mxu0 0.0
        %9584 = vmatprep.subr.mxu0 0.0
        %9585 = vmatpush1.msra.mxu0 0.0
        %9586 = vmatprep.subr.mxu0 0.0
        %9587 = vmatpush1.msra.mxu0 0.0
        %9588 = vmatprep.subr.mxu0 0.0
        %9589 = vmatpush1.msra.mxu0 0.0
        %9590 = vmatprep.subr.mxu0 0.0
        %9591 = vmatpush1.msra.mxu0 0.0
        %9592 = vmatprep.subr.mxu0 0.0
        %9593 = vmatpush1.msra.mxu0 0.0
        %9594 = vmatprep.subr.mxu0 0.0
        %9595 = vmatpush1.msra.mxu0 0.0
        %9596 = vmatprep.subr.mxu0 0.0
        %9597 = vmatpush1.msra.mxu0 0.0
        %9598 = vmatprep.subr.mxu0 0.0
        %9599 = vmatpush1.msra.mxu0 0.0
        %9600 = vmatprep.subr.mxu0 0.0
        %9601 = vmatpush1.msra.mxu0 0.0
        %9602 = vmatprep.subr.mxu0 0.0
        %9603 = vmatpush1.msra.mxu0 0.0
        %9604 = vmatprep.subr.mxu0 0.0
        %9605 = vmatpush1.msra.mxu0 0.0
        %9606 = vmatprep.subr.mxu0 0.0
        %9607 = vmatpush1.msra.mxu0 0.0
        %9608 = vmatprep.subr.mxu0 0.0
        %9609 = vmatpush1.msra.mxu0 0.0
        %9610 = vmatprep.subr.mxu0 0.0
        %9611 = vmatpush1.msra.mxu0 0.0
        %9612 = vmatprep.subr.mxu0 0.0
        %9613 = vmatpush1.msra.mxu0 0.0
        %9614 = vmatprep.mubr.f32.mxu0 0.0
        %9615 = vmatmul.mubr.f32.gmra.mrb[0].mxu0 %v9544
        %v9616 = vpop.f32.mrb[0].mxu0
        %v9617 = vadd.f32 0.0, %v9616
        %v9618 = vpop.f32.mrb[0].mxu0
        %9619 = vdwg.mxu0
        %v9620 = vxor.u32 %v9617, 2147483648
        %v9621 = vmul.f32 %v9620, 1.442695
        %v9622 = vpow.pop %v9621
        %v9623 = vadd.f32 %v9622, 1.0
        %v9624 = vrcp.pop %v9623
        %v9625 = vmul.f32 1.0, %v9624
        %v9626 = vld [vmem:[%s9] sm:$0x1]
        %vm9627 = vcmask 64512
        %v9629 = vsel %vm9627, %v9626, 0
        %9631 = vmatprep.subr.mxu0 %v469
        %9632 = vmatpush1.msra.mxu0 %v468
        %9633 = vmatprep.subr.mxu0 0.0
        %9634 = vmatpush1.msra.mxu0 0.0
        %9635 = vmatprep.subr.mxu0 0.0
        %9636 = vmatpush1.msra.mxu0 0.0
        %9637 = vmatprep.subr.mxu0 0.0
        %9638 = vmatpush1.msra.mxu0 0.0
        %9639 = vmatprep.subr.mxu0 0.0
        %9640 = vmatpush1.msra.mxu0 0.0
        %9641 = vmatprep.subr.mxu0 0.0
        %9642 = vmatpush1.msra.mxu0 0.0
        %9643 = vmatprep.subr.mxu0 0.0
        %9644 = vmatpush1.msra.mxu0 0.0
        %9645 = vmatprep.subr.mxu0 0.0
        %9646 = vmatpush1.msra.mxu0 0.0
        %9647 = vmatprep.subr.mxu0 0.0
        %9648 = vmatpush1.msra.mxu0 0.0
        %9649 = vmatprep.subr.mxu0 0.0
        %9650 = vmatpush1.msra.mxu0 0.0
        %9651 = vmatprep.subr.mxu0 0.0
        %9652 = vmatpush1.msra.mxu0 0.0
        %9653 = vmatprep.subr.mxu0 0.0
        %9654 = vmatpush1.msra.mxu0 0.0
        %9655 = vmatprep.subr.mxu0 0.0
        %9656 = vmatpush1.msra.mxu0 0.0
        %9657 = vmatprep.subr.mxu0 0.0
        %9658 = vmatpush1.msra.mxu0 0.0
        %9659 = vmatprep.subr.mxu0 0.0
        %9660 = vmatpush1.msra.mxu0 0.0
        %9661 = vmatprep.subr.mxu0 0.0
        %9662 = vmatpush1.msra.mxu0 0.0
        %9663 = vmatprep.subr.mxu0 0.0
        %9664 = vmatpush1.msra.mxu0 0.0
        %9665 = vmatprep.subr.mxu0 0.0
        %9666 = vmatpush1.msra.mxu0 0.0
        %9667 = vmatprep.subr.mxu0 0.0
        %9668 = vmatpush1.msra.mxu0 0.0
        %9669 = vmatprep.subr.mxu0 0.0
        %9670 = vmatpush1.msra.mxu0 0.0
        %9671 = vmatprep.subr.mxu0 0.0
        %9672 = vmatpush1.msra.mxu0 0.0
        %9673 = vmatprep.subr.mxu0 0.0
        %9674 = vmatpush1.msra.mxu0 0.0
        %9675 = vmatprep.subr.mxu0 0.0
        %9676 = vmatpush1.msra.mxu0 0.0
        %9677 = vmatprep.subr.mxu0 0.0
        %9678 = vmatpush1.msra.mxu0 0.0
        %9679 = vmatprep.subr.mxu0 0.0
        %9680 = vmatpush1.msra.mxu0 0.0
        %9681 = vmatprep.subr.mxu0 0.0
        %9682 = vmatpush1.msra.mxu0 0.0
        %9683 = vmatprep.subr.mxu0 0.0
        %9684 = vmatpush1.msra.mxu0 0.0
        %9685 = vmatprep.subr.mxu0 0.0
        %9686 = vmatpush1.msra.mxu0 0.0
        %9687 = vmatprep.subr.mxu0 0.0
        %9688 = vmatpush1.msra.mxu0 0.0
        %9689 = vmatprep.subr.mxu0 0.0
        %9690 = vmatpush1.msra.mxu0 0.0
        %9691 = vmatprep.subr.mxu0 0.0
        %9692 = vmatpush1.msra.mxu0 0.0
        %9693 = vmatprep.subr.mxu0 0.0
        %9694 = vmatpush1.msra.mxu0 0.0
        %9695 = vmatprep.mubr.f32.mxu0 0.0
        %9696 = vmatmul.mubr.f32.gmra.mrb[0].mxu0 %v9629
        %v9697 = vpop.f32.mrb[0].mxu0
        %v9698 = vadd.f32 0.0, %v9697
        %v9699 = vpop.f32.mrb[0].mxu0
        %v9700 = vadd.f32 0.0, %v9699
        %9701 = vdwg.mxu0
        %9702 = vmatprep.subr.mxu0 %v471
        %9703 = vmatpush1.msra.mxu0 %v470
        %9704 = vmatprep.subr.mxu0 0.0
        %9705 = vmatpush1.msra.mxu0 0.0
        %9706 = vmatprep.subr.mxu0 0.0
        %9707 = vmatpush1.msra.mxu0 0.0
        %9708 = vmatprep.subr.mxu0 0.0
        %9709 = vmatpush1.msra.mxu0 0.0
        %9710 = vmatprep.subr.mxu0 0.0
        %9711 = vmatpush1.msra.mxu0 0.0
        %9712 = vmatprep.subr.mxu0 0.0
        %9713 = vmatpush1.msra.mxu0 0.0
        %9714 = vmatprep.subr.mxu0 0.0
        %9715 = vmatpush1.msra.mxu0 0.0
        %9716 = vmatprep.subr.mxu0 0.0
        %9717 = vmatpush1.msra.mxu0 0.0
        %9718 = vmatprep.subr.mxu0 0.0
        %9719 = vmatpush1.msra.mxu0 0.0
        %9720 = vmatprep.subr.mxu0 0.0
        %9721 = vmatpush1.msra.mxu0 0.0
        %9722 = vmatprep.subr.mxu0 0.0
        %9723 = vmatpush1.msra.mxu0 0.0
        %9724 = vmatprep.subr.mxu0 0.0
        %9725 = vmatpush1.msra.mxu0 0.0
        %9726 = vmatprep.subr.mxu0 0.0
        %9727 = vmatpush1.msra.mxu0 0.0
        %9728 = vmatprep.subr.mxu0 0.0
        %9729 = vmatpush1.msra.mxu0 0.0
        %9730 = vmatprep.subr.mxu0 0.0
        %9731 = vmatpush1.msra.mxu0 0.0
        %9732 = vmatprep.subr.mxu0 0.0
        %9733 = vmatpush1.msra.mxu0 0.0
        %9734 = vmatprep.subr.mxu0 0.0
        %9735 = vmatpush1.msra.mxu0 0.0
        %9736 = vmatprep.subr.mxu0 0.0
        %9737 = vmatpush1.msra.mxu0 0.0
        %9738 = vmatprep.subr.mxu0 0.0
        %9739 = vmatpush1.msra.mxu0 0.0
        %9740 = vmatprep.subr.mxu0 0.0
        %9741 = vmatpush1.msra.mxu0 0.0
        %9742 = vmatprep.subr.mxu0 0.0
        %9743 = vmatpush1.msra.mxu0 0.0
        %9744 = vmatprep.subr.mxu0 0.0
        %9745 = vmatpush1.msra.mxu0 0.0
        %9746 = vmatprep.subr.mxu0 0.0
        %9747 = vmatpush1.msra.mxu0 0.0
        %9748 = vmatprep.subr.mxu0 0.0
        %9749 = vmatpush1.msra.mxu0 0.0
        %9750 = vmatprep.subr.mxu0 0.0
        %9751 = vmatpush1.msra.mxu0 0.0
        %9752 = vmatprep.subr.mxu0 0.0
        %9753 = vmatpush1.msra.mxu0 0.0
        %9754 = vmatprep.subr.mxu0 0.0
        %9755 = vmatpush1.msra.mxu0 0.0
        %9756 = vmatprep.subr.mxu0 0.0
        %9757 = vmatpush1.msra.mxu0 0.0
        %9758 = vmatprep.subr.mxu0 0.0
        %9759 = vmatpush1.msra.mxu0 0.0
        %9760 = vmatprep.subr.mxu0 0.0
        %9761 = vmatpush1.msra.mxu0 0.0
        %9762 = vmatprep.subr.mxu0 0.0
        %9763 = vmatpush1.msra.mxu0 0.0
        %9764 = vmatprep.subr.mxu0 0.0
        %9765 = vmatpush1.msra.mxu0 0.0
        %9766 = vmatprep.mubr.f32.mxu0 0.0
        %9767 = vmatmul.mubr.f32.gmra.mrb[0].mxu0 %v9629
        %v9768 = vpop.f32.mrb[0].mxu0
        %v9769 = vadd.f32 0.0, %v9768
        %v9770 = vpop.f32.mrb[0].mxu0
        %v9771 = vadd.f32 0.0, %v9770
        %9772 = vdwg.mxu0
        %9773 = vmatprep.subr.mxu0 %v473
        %9774 = vmatpush1.msra.mxu0 %v472
        %9775 = vmatprep.subr.mxu0 0.0
        %9776 = vmatpush1.msra.mxu0 0.0
        %9777 = vmatprep.subr.mxu0 0.0
        %9778 = vmatpush1.msra.mxu0 0.0
        %9779 = vmatprep.subr.mxu0 0.0
        %9780 = vmatpush1.msra.mxu0 0.0
        %9781 = vmatprep.subr.mxu0 0.0
        %9782 = vmatpush1.msra.mxu0 0.0
        %9783 = vmatprep.subr.mxu0 0.0
        %9784 = vmatpush1.msra.mxu0 0.0
        %9785 = vmatprep.subr.mxu0 0.0
        %9786 = vmatpush1.msra.mxu0 0.0
        %9787 = vmatprep.subr.mxu0 0.0
        %9788 = vmatpush1.msra.mxu0 0.0
        %9789 = vmatprep.subr.mxu0 0.0
        %9790 = vmatpush1.msra.mxu0 0.0
        %9791 = vmatprep.subr.mxu0 0.0
        %9792 = vmatpush1.msra.mxu0 0.0
        %9793 = vmatprep.subr.mxu0 0.0
        %9794 = vmatpush1.msra.mxu0 0.0
        %9795 = vmatprep.subr.mxu0 0.0
        %9796 = vmatpush1.msra.mxu0 0.0
        %9797 = vmatprep.subr.mxu0 0.0
        %9798 = vmatpush1.msra.mxu0 0.0
        %9799 = vmatprep.subr.mxu0 0.0
        %9800 = vmatpush1.msra.mxu0 0.0
        %9801 = vmatprep.subr.mxu0 0.0
        %9802 = vmatpush1.msra.mxu0 0.0
        %9803 = vmatprep.subr.mxu0 0.0
        %9804 = vmatpush1.msra.mxu0 0.0
        %9805 = vmatprep.subr.mxu0 0.0
        %9806 = vmatpush1.msra.mxu0 0.0
        %9807 = vmatprep.subr.mxu0 0.0
        %9808 = vmatpush1.msra.mxu0 0.0
        %9809 = vmatprep.subr.mxu0 0.0
        %9810 = vmatpush1.msra.mxu0 0.0
        %9811 = vmatprep.subr.mxu0 0.0
        %9812 = vmatpush1.msra.mxu0 0.0
        %9813 = vmatprep.subr.mxu0 0.0
        %9814 = vmatpush1.msra.mxu0 0.0
        %9815 = vmatprep.subr.mxu0 0.0
        %9816 = vmatpush1.msra.mxu0 0.0
        %9817 = vmatprep.subr.mxu0 0.0
        %9818 = vmatpush1.msra.mxu0 0.0
        %9819 = vmatprep.subr.mxu0 0.0
        %9820 = vmatpush1.msra.mxu0 0.0
        %9821 = vmatprep.subr.mxu0 0.0
        %9822 = vmatpush1.msra.mxu0 0.0
        %9823 = vmatprep.subr.mxu0 0.0
        %9824 = vmatpush1.msra.mxu0 0.0
        %9825 = vmatprep.subr.mxu0 0.0
        %9826 = vmatpush1.msra.mxu0 0.0
        %9827 = vmatprep.subr.mxu0 0.0
        %9828 = vmatpush1.msra.mxu0 0.0
        %9829 = vmatprep.subr.mxu0 0.0
        %9830 = vmatpush1.msra.mxu0 0.0
        %9831 = vmatprep.subr.mxu0 0.0
        %9832 = vmatpush1.msra.mxu0 0.0
        %9833 = vmatprep.subr.mxu0 0.0
        %9834 = vmatpush1.msra.mxu0 0.0
        %9835 = vmatprep.subr.mxu0 0.0
        %9836 = vmatpush1.msra.mxu0 0.0
        %9837 = vmatprep.mubr.f32.mxu0 0.0
        %9838 = vmatmul.mubr.f32.gmra.mrb[0].mxu0 %v9629
        %v9839 = vpop.f32.mrb[0].mxu0
        %v9840 = vadd.f32 0.0, %v9839
        %v9841 = vpop.f32.mrb[0].mxu0
        %v9842 = vadd.f32 0.0, %v9841
        %9843 = vdwg.mxu0
        %9844 = vmatprep.subr.mxu0 %v475
        %9845 = vmatpush1.msra.mxu0 %v474
        %9846 = vmatprep.subr.mxu0 0.0
        %9847 = vmatpush1.msra.mxu0 0.0
        %9848 = vmatprep.subr.mxu0 0.0
        %9849 = vmatpush1.msra.mxu0 0.0
        %9850 = vmatprep.subr.mxu0 0.0
        %9851 = vmatpush1.msra.mxu0 0.0
        %9852 = vmatprep.subr.mxu0 0.0
        %9853 = vmatpush1.msra.mxu0 0.0
        %9854 = vmatprep.subr.mxu0 0.0
        %9855 = vmatpush1.msra.mxu0 0.0
        %9856 = vmatprep.subr.mxu0 0.0
        %9857 = vmatpush1.msra.mxu0 0.0
        %9858 = vmatprep.subr.mxu0 0.0
        %9859 = vmatpush1.msra.mxu0 0.0
        %9860 = vmatprep.subr.mxu0 0.0
        %9861 = vmatpush1.msra.mxu0 0.0
        %9862 = vmatprep.subr.mxu0 0.0
        %9863 = vmatpush1.msra.mxu0 0.0
        %9864 = vmatprep.subr.mxu0 0.0
        %9865 = vmatpush1.msra.mxu0 0.0
        %9866 = vmatprep.subr.mxu0 0.0
        %9867 = vmatpush1.msra.mxu0 0.0
        %9868 = vmatprep.subr.mxu0 0.0
        %9869 = vmatpush1.msra.mxu0 0.0
        %9870 = vmatprep.subr.mxu0 0.0
        %9871 = vmatpush1.msra.mxu0 0.0
        %9872 = vmatprep.subr.mxu0 0.0
        %9873 = vmatpush1.msra.mxu0 0.0
        %9874 = vmatprep.subr.mxu0 0.0
        %9875 = vmatpush1.msra.mxu0 0.0
        %9876 = vmatprep.subr.mxu0 0.0
        %9877 = vmatpush1.msra.mxu0 0.0
        %9878 = vmatprep.subr.mxu0 0.0
        %9879 = vmatpush1.msra.mxu0 0.0
        %9880 = vmatprep.subr.mxu0 0.0
        %9881 = vmatpush1.msra.mxu0 0.0
        %9882 = vmatprep.subr.mxu0 0.0
        %9883 = vmatpush1.msra.mxu0 0.0
        %9884 = vmatprep.subr.mxu0 0.0
        %9885 = vmatpush1.msra.mxu0 0.0
        %9886 = vmatprep.subr.mxu0 0.0
        %9887 = vmatpush1.msra.mxu0 0.0
        %9888 = vmatprep.subr.mxu0 0.0
        %9889 = vmatpush1.msra.mxu0 0.0
        %9890 = vmatprep.subr.mxu0 0.0
        %9891 = vmatpush1.msra.mxu0 0.0
        %9892 = vmatprep.subr.mxu0 0.0
        %9893 = vmatpush1.msra.mxu0 0.0
        %9894 = vmatprep.subr.mxu0 0.0
        %9895 = vmatpush1.msra.mxu0 0.0
        %9896 = vmatprep.subr.mxu0 0.0
        %9897 = vmatpush1.msra.mxu0 0.0
        %9898 = vmatprep.subr.mxu0 0.0
        %9899 = vmatpush1.msra.mxu0 0.0
        %9900 = vmatprep.subr.mxu0 0.0
        %9901 = vmatpush1.msra.mxu0 0.0
        %9902 = vmatprep.subr.mxu0 0.0
        %9903 = vmatpush1.msra.mxu0 0.0
        %9904 = vmatprep.subr.mxu0 0.0
        %9905 = vmatpush1.msra.mxu0 0.0
        %9906 = vmatprep.subr.mxu0 0.0
        %9907 = vmatpush1.msra.mxu0 0.0
        %9908 = vmatprep.mubr.f32.mxu0 0.0
        %9909 = vmatmul.mubr.f32.gmra.mrb[0].mxu0 %v9629
        %v9910 = vpop.f32.mrb[0].mxu0
        %v9911 = vadd.f32 0.0, %v9910
        %v9912 = vpop.f32.mrb[0].mxu0
        %v9913 = vadd.f32 0.0, %v9912
        %9914 = vdwg.mxu0
        %9915 = vmatprep.subr.mxu0 %v477
        %9916 = vmatpush1.msra.mxu0 %v476
        %9917 = vmatprep.subr.mxu0 0.0
        %9918 = vmatpush1.msra.mxu0 0.0
        %9919 = vmatprep.subr.mxu0 0.0
        %9920 = vmatpush1.msra.mxu0 0.0
        %9921 = vmatprep.subr.mxu0 0.0
        %9922 = vmatpush1.msra.mxu0 0.0
        %9923 = vmatprep.subr.mxu0 0.0
        %9924 = vmatpush1.msra.mxu0 0.0
        %9925 = vmatprep.subr.mxu0 0.0
        %9926 = vmatpush1.msra.mxu0 0.0
        %9927 = vmatprep.subr.mxu0 0.0
        %9928 = vmatpush1.msra.mxu0 0.0
        %9929 = vmatprep.subr.mxu0 0.0
        %9930 = vmatpush1.msra.mxu0 0.0
        %9931 = vmatprep.subr.mxu0 0.0
        %9932 = vmatpush1.msra.mxu0 0.0
        %9933 = vmatprep.subr.mxu0 0.0
        %9934 = vmatpush1.msra.mxu0 0.0
        %9935 = vmatprep.subr.mxu0 0.0
        %9936 = vmatpush1.msra.mxu0 0.0
        %9937 = vmatprep.subr.mxu0 0.0
        %9938 = vmatpush1.msra.mxu0 0.0
        %9939 = vmatprep.subr.mxu0 0.0
        %9940 = vmatpush1.msra.mxu0 0.0
        %9941 = vmatprep.subr.mxu0 0.0
        %9942 = vmatpush1.msra.mxu0 0.0
        %9943 = vmatprep.subr.mxu0 0.0
        %9944 = vmatpush1.msra.mxu0 0.0
        %9945 = vmatprep.subr.mxu0 0.0
        %9946 = vmatpush1.msra.mxu0 0.0
        %9947 = vmatprep.subr.mxu0 0.0
        %9948 = vmatpush1.msra.mxu0 0.0
        %9949 = vmatprep.subr.mxu0 0.0
        %9950 = vmatpush1.msra.mxu0 0.0
        %9951 = vmatprep.subr.mxu0 0.0
        %9952 = vmatpush1.msra.mxu0 0.0
        %9953 = vmatprep.subr.mxu0 0.0
        %9954 = vmatpush1.msra.mxu0 0.0
        %9955 = vmatprep.subr.mxu0 0.0
        %9956 = vmatpush1.msra.mxu0 0.0
        %9957 = vmatprep.subr.mxu0 0.0
        %9958 = vmatpush1.msra.mxu0 0.0
        %9959 = vmatprep.subr.mxu0 0.0
        %9960 = vmatpush1.msra.mxu0 0.0
        %9961 = vmatprep.subr.mxu0 0.0
        %9962 = vmatpush1.msra.mxu0 0.0
        %9963 = vmatprep.subr.mxu0 0.0
        %9964 = vmatpush1.msra.mxu0 0.0
        %9965 = vmatprep.subr.mxu0 0.0
        %9966 = vmatpush1.msra.mxu0 0.0
        %9967 = vmatprep.subr.mxu0 0.0
        %9968 = vmatpush1.msra.mxu0 0.0
        %9969 = vmatprep.subr.mxu0 0.0
        %9970 = vmatpush1.msra.mxu0 0.0
        %9971 = vmatprep.subr.mxu0 0.0
        %9972 = vmatpush1.msra.mxu0 0.0
        %9973 = vmatprep.subr.mxu0 0.0
        %9974 = vmatpush1.msra.mxu0 0.0
        %9975 = vmatprep.subr.mxu0 0.0
        %9976 = vmatpush1.msra.mxu0 0.0
        %9977 = vmatprep.subr.mxu0 0.0
        %9978 = vmatpush1.msra.mxu0 0.0
        %9979 = vmatprep.mubr.f32.mxu0 0.0
        %9980 = vmatmul.mubr.f32.gmra.mrb[0].mxu0 %v9629
        %v9981 = vpop.f32.mrb[0].mxu0
        %v9982 = vadd.f32 0.0, %v9981
        %v9983 = vpop.f32.mrb[0].mxu0
        %v9984 = vadd.f32 0.0, %v9983
        %9985 = vdwg.mxu0
        %9986 = vmatprep.subr.mxu0 %v479
        %9987 = vmatpush1.msra.mxu0 %v478
        %9988 = vmatprep.subr.mxu0 0.0
        %9989 = vmatpush1.msra.mxu0 0.0
        %9990 = vmatprep.subr.mxu0 0.0
        %9991 = vmatpush1.msra.mxu0 0.0
        %9992 = vmatprep.subr.mxu0 0.0
        %9993 = vmatpush1.msra.mxu0 0.0
        %9994 = vmatprep.subr.mxu0 0.0
        %9995 = vmatpush1.msra.mxu0 0.0
        %9996 = vmatprep.subr.mxu0 0.0
        %9997 = vmatpush1.msra.mxu0 0.0
        %9998 = vmatprep.subr.mxu0 0.0
        %9999 = vmatpush1.msra.mxu0 0.0
        %10000 = vmatprep.subr.mxu0 0.0
        %10001 = vmatpush1.msra.mxu0 0.0
        %10002 = vmatprep.subr.mxu0 0.0
        %10003 = vmatpush1.msra.mxu0 0.0
        %10004 = vmatprep.subr.mxu0 0.0
        %10005 = vmatpush1.msra.mxu0 0.0
        %10006 = vmatprep.subr.mxu0 0.0
        %10007 = vmatpush1.msra.mxu0 0.0
        %10008 = vmatprep.subr.mxu0 0.0
        %10009 = vmatpush1.msra.mxu0 0.0
        %10010 = vmatprep.subr.mxu0 0.0
        %10011 = vmatpush1.msra.mxu0 0.0
        %10012 = vmatprep.subr.mxu0 0.0
        %10013 = vmatpush1.msra.mxu0 0.0
        %10014 = vmatprep.subr.mxu0 0.0
        %10015 = vmatpush1.msra.mxu0 0.0
        %10016 = vmatprep.subr.mxu0 0.0
        %10017 = vmatpush1.msra.mxu0 0.0
        %10018 = vmatprep.subr.mxu0 0.0
        %10019 = vmatpush1.msra.mxu0 0.0
        %10020 = vmatprep.subr.mxu0 0.0
        %10021 = vmatpush1.msra.mxu0 0.0
        %10022 = vmatprep.subr.mxu0 0.0
        %10023 = vmatpush1.msra.mxu0 0.0
        %10024 = vmatprep.subr.mxu0 0.0
        %10025 = vmatpush1.msra.mxu0 0.0
        %10026 = vmatprep.subr.mxu0 0.0
        %10027 = vmatpush1.msra.mxu0 0.0
        %10028 = vmatprep.subr.mxu0 0.0
        %10029 = vmatpush1.msra.mxu0 0.0
        %10030 = vmatprep.subr.mxu0 0.0
        %10031 = vmatpush1.msra.mxu0 0.0
        %10032 = vmatprep.subr.mxu0 0.0
        %10033 = vmatpush1.msra.mxu0 0.0
        %10034 = vmatprep.subr.mxu0 0.0
        %10035 = vmatpush1.msra.mxu0 0.0
        %10036 = vmatprep.subr.mxu0 0.0
        %10037 = vmatpush1.msra.mxu0 0.0
        %10038 = vmatprep.subr.mxu0 0.0
        %10039 = vmatpush1.msra.mxu0 0.0
        %10040 = vmatprep.subr.mxu0 0.0
        %10041 = vmatpush1.msra.mxu0 0.0
        %10042 = vmatprep.subr.mxu0 0.0
        %10043 = vmatpush1.msra.mxu0 0.0
        %10044 = vmatprep.subr.mxu0 0.0
        %10045 = vmatpush1.msra.mxu0 0.0
        %10046 = vmatprep.subr.mxu0 0.0
        %10047 = vmatpush1.msra.mxu0 0.0
        %10048 = vmatprep.subr.mxu0 0.0
        %10049 = vmatpush1.msra.mxu0 0.0
        %10050 = vmatprep.mubr.f32.mxu0 0.0
        %10051 = vmatmul.mubr.f32.gmra.mrb[0].mxu0 %v9629
        %v10052 = vpop.f32.mrb[0].mxu0
        %v10053 = vadd.f32 0.0, %v10052
        %v10054 = vpop.f32.mrb[0].mxu0
        %v10055 = vadd.f32 0.0, %v10054
        %10056 = vdwg.mxu0
        %10057 = vmatprep.subr.mxu0 %v481
        %10058 = vmatpush1.msra.mxu0 %v480
        %10059 = vmatprep.subr.mxu0 0.0
        %10060 = vmatpush1.msra.mxu0 0.0
        %10061 = vmatprep.subr.mxu0 0.0
        %10062 = vmatpush1.msra.mxu0 0.0
        %10063 = vmatprep.subr.mxu0 0.0
        %10064 = vmatpush1.msra.mxu0 0.0
        %10065 = vmatprep.subr.mxu0 0.0
        %10066 = vmatpush1.msra.mxu0 0.0
        %10067 = vmatprep.subr.mxu0 0.0
        %10068 = vmatpush1.msra.mxu0 0.0
        %10069 = vmatprep.subr.mxu0 0.0
        %10070 = vmatpush1.msra.mxu0 0.0
        %10071 = vmatprep.subr.mxu0 0.0
        %10072 = vmatpush1.msra.mxu0 0.0
        %10073 = vmatprep.subr.mxu0 0.0
        %10074 = vmatpush1.msra.mxu0 0.0
        %10075 = vmatprep.subr.mxu0 0.0
        %10076 = vmatpush1.msra.mxu0 0.0
        %10077 = vmatprep.subr.mxu0 0.0
        %10078 = vmatpush1.msra.mxu0 0.0
        %10079 = vmatprep.subr.mxu0 0.0
        %10080 = vmatpush1.msra.mxu0 0.0
        %10081 = vmatprep.subr.mxu0 0.0
        %10082 = vmatpush1.msra.mxu0 0.0
        %10083 = vmatprep.subr.mxu0 0.0
        %10084 = vmatpush1.msra.mxu0 0.0
        %10085 = vmatprep.subr.mxu0 0.0
        %10086 = vmatpush1.msra.mxu0 0.0
        %10087 = vmatprep.subr.mxu0 0.0
        %10088 = vmatpush1.msra.mxu0 0.0
        %10089 = vmatprep.subr.mxu0 0.0
        %10090 = vmatpush1.msra.mxu0 0.0
        %10091 = vmatprep.subr.mxu0 0.0
        %10092 = vmatpush1.msra.mxu0 0.0
        %10093 = vmatprep.subr.mxu0 0.0
        %10094 = vmatpush1.msra.mxu0 0.0
        %10095 = vmatprep.subr.mxu0 0.0
        %10096 = vmatpush1.msra.mxu0 0.0
        %10097 = vmatprep.subr.mxu0 0.0
        %10098 = vmatpush1.msra.mxu0 0.0
        %10099 = vmatprep.subr.mxu0 0.0
        %10100 = vmatpush1.msra.mxu0 0.0
        %10101 = vmatprep.subr.mxu0 0.0
        %10102 = vmatpush1.msra.mxu0 0.0
        %10103 = vmatprep.subr.mxu0 0.0
        %10104 = vmatpush1.msra.mxu0 0.0
        %10105 = vmatprep.subr.mxu0 0.0
        %10106 = vmatpush1.msra.mxu0 0.0
        %10107 = vmatprep.subr.mxu0 0.0
        %10108 = vmatpush1.msra.mxu0 0.0
        %10109 = vmatprep.subr.mxu0 0.0
        %10110 = vmatpush1.msra.mxu0 0.0
        %10111 = vmatprep.subr.mxu0 0.0
        %10112 = vmatpush1.msra.mxu0 0.0
        %10113 = vmatprep.subr.mxu0 0.0
        %10114 = vmatpush1.msra.mxu0 0.0
        %10115 = vmatprep.subr.mxu0 0.0
        %10116 = vmatpush1.msra.mxu0 0.0
        %10117 = vmatprep.subr.mxu0 0.0
        %10118 = vmatpush1.msra.mxu0 0.0
        %10119 = vmatprep.subr.mxu0 0.0
        %10120 = vmatpush1.msra.mxu0 0.0
        %10121 = vmatprep.mubr.f32.mxu0 0.0
        %10122 = vmatmul.mubr.f32.gmra.mrb[0].mxu0 %v9629
        %v10123 = vpop.f32.mrb[0].mxu0
        %v10124 = vadd.f32 0.0, %v10123
        %v10125 = vpop.f32.mrb[0].mxu0
        %v10126 = vadd.f32 0.0, %v10125
        %10127 = vdwg.mxu0
        %10128 = vmatprep.subr.mxu0 %v483
        %10129 = vmatpush1.msra.mxu0 %v482
        %10130 = vmatprep.subr.mxu0 0.0
        %10131 = vmatpush1.msra.mxu0 0.0
        %10132 = vmatprep.subr.mxu0 0.0
        %10133 = vmatpush1.msra.mxu0 0.0
        %10134 = vmatprep.subr.mxu0 0.0
        %10135 = vmatpush1.msra.mxu0 0.0
        %10136 = vmatprep.subr.mxu0 0.0
        %10137 = vmatpush1.msra.mxu0 0.0
        %10138 = vmatprep.subr.mxu0 0.0
        %10139 = vmatpush1.msra.mxu0 0.0
        %10140 = vmatprep.subr.mxu0 0.0
        %10141 = vmatpush1.msra.mxu0 0.0
        %10142 = vmatprep.subr.mxu0 0.0
        %10143 = vmatpush1.msra.mxu0 0.0
        %10144 = vmatprep.subr.mxu0 0.0
        %10145 = vmatpush1.msra.mxu0 0.0
        %10146 = vmatprep.subr.mxu0 0.0
        %10147 = vmatpush1.msra.mxu0 0.0
        %10148 = vmatprep.subr.mxu0 0.0
        %10149 = vmatpush1.msra.mxu0 0.0
        %10150 = vmatprep.subr.mxu0 0.0
        %10151 = vmatpush1.msra.mxu0 0.0
        %10152 = vmatprep.subr.mxu0 0.0
        %10153 = vmatpush1.msra.mxu0 0.0
        %10154 = vmatprep.subr.mxu0 0.0
        %10155 = vmatpush1.msra.mxu0 0.0
        %10156 = vmatprep.subr.mxu0 0.0
        %10157 = vmatpush1.msra.mxu0 0.0
        %10158 = vmatprep.subr.mxu0 0.0
        %10159 = vmatpush1.msra.mxu0 0.0
        %10160 = vmatprep.subr.mxu0 0.0
        %10161 = vmatpush1.msra.mxu0 0.0
        %10162 = vmatprep.subr.mxu0 0.0
        %10163 = vmatpush1.msra.mxu0 0.0
        %10164 = vmatprep.subr.mxu0 0.0
        %10165 = vmatpush1.msra.mxu0 0.0
        %10166 = vmatprep.subr.mxu0 0.0
        %10167 = vmatpush1.msra.mxu0 0.0
        %10168 = vmatprep.subr.mxu0 0.0
        %10169 = vmatpush1.msra.mxu0 0.0
        %10170 = vmatprep.subr.mxu0 0.0
        %10171 = vmatpush1.msra.mxu0 0.0
        %10172 = vmatprep.subr.mxu0 0.0
        %10173 = vmatpush1.msra.mxu0 0.0
        %10174 = vmatprep.subr.mxu0 0.0
        %10175 = vmatpush1.msra.mxu0 0.0
        %10176 = vmatprep.subr.mxu0 0.0
        %10177 = vmatpush1.msra.mxu0 0.0
        %10178 = vmatprep.subr.mxu0 0.0
        %10179 = vmatpush1.msra.mxu0 0.0
        %10180 = vmatprep.subr.mxu0 0.0
        %10181 = vmatpush1.msra.mxu0 0.0
        %10182 = vmatprep.subr.mxu0 0.0
        %10183 = vmatpush1.msra.mxu0 0.0
        %10184 = vmatprep.subr.mxu0 0.0
        %10185 = vmatpush1.msra.mxu0 0.0
        %10186 = vmatprep.subr.mxu0 0.0
        %10187 = vmatpush1.msra.mxu0 0.0
        %10188 = vmatprep.subr.mxu0 0.0
        %10189 = vmatpush1.msra.mxu0 0.0
        %10190 = vmatprep.subr.mxu0 0.0
        %10191 = vmatpush1.msra.mxu0 0.0
        %10192 = vmatprep.mubr.f32.mxu0 0.0
        %10193 = vmatmul.mubr.f32.gmra.mrb[0].mxu0 %v9629
        %v10194 = vpop.f32.mrb[0].mxu0
        %v10195 = vadd.f32 0.0, %v10194
        %v10196 = vpop.f32.mrb[0].mxu0
        %v10197 = vadd.f32 0.0, %v10196
        %10198 = vdwg.mxu0
        %10199 = vmatprep.subr.mxu0 %v485
        %10200 = vmatpush1.msra.mxu0 %v484
        %10201 = vmatprep.subr.mxu0 0.0
        %10202 = vmatpush1.msra.mxu0 0.0
        %10203 = vmatprep.subr.mxu0 0.0
        %10204 = vmatpush1.msra.mxu0 0.0
        %10205 = vmatprep.subr.mxu0 0.0
        %10206 = vmatpush1.msra.mxu0 0.0
        %10207 = vmatprep.subr.mxu0 0.0
        %10208 = vmatpush1.msra.mxu0 0.0
        %10209 = vmatprep.subr.mxu0 0.0
        %10210 = vmatpush1.msra.mxu0 0.0
        %10211 = vmatprep.subr.mxu0 0.0
        %10212 = vmatpush1.msra.mxu0 0.0
        %10213 = vmatprep.subr.mxu0 0.0
        %10214 = vmatpush1.msra.mxu0 0.0
        %10215 = vmatprep.subr.mxu0 0.0
        %10216 = vmatpush1.msra.mxu0 0.0
        %10217 = vmatprep.subr.mxu0 0.0
        %10218 = vmatpush1.msra.mxu0 0.0
        %10219 = vmatprep.subr.mxu0 0.0
        %10220 = vmatpush1.msra.mxu0 0.0
        %10221 = vmatprep.subr.mxu0 0.0
        %10222 = vmatpush1.msra.mxu0 0.0
        %10223 = vmatprep.subr.mxu0 0.0
        %10224 = vmatpush1.msra.mxu0 0.0
        %10225 = vmatprep.subr.mxu0 0.0
        %10226 = vmatpush1.msra.mxu0 0.0
        %10227 = vmatprep.subr.mxu0 0.0
        %10228 = vmatpush1.msra.mxu0 0.0
        %10229 = vmatprep.subr.mxu0 0.0
        %10230 = vmatpush1.msra.mxu0 0.0
        %10231 = vmatprep.subr.mxu0 0.0
        %10232 = vmatpush1.msra.mxu0 0.0
        %10233 = vmatprep.subr.mxu0 0.0
        %10234 = vmatpush1.msra.mxu0 0.0
        %10235 = vmatprep.subr.mxu0 0.0
        %10236 = vmatpush1.msra.mxu0 0.0
        %10237 = vmatprep.subr.mxu0 0.0
        %10238 = vmatpush1.msra.mxu0 0.0
        %10239 = vmatprep.subr.mxu0 0.0
        %10240 = vmatpush1.msra.mxu0 0.0
        %10241 = vmatprep.subr.mxu0 0.0
        %10242 = vmatpush1.msra.mxu0 0.0
        %10243 = vmatprep.subr.mxu0 0.0
        %10244 = vmatpush1.msra.mxu0 0.0
        %10245 = vmatprep.subr.mxu0 0.0
        %10246 = vmatpush1.msra.mxu0 0.0
        %10247 = vmatprep.subr.mxu0 0.0
        %10248 = vmatpush1.msra.mxu0 0.0
        %10249 = vmatprep.subr.mxu0 0.0
        %10250 = vmatpush1.msra.mxu0 0.0
        %10251 = vmatprep.subr.mxu0 0.0
        %10252 = vmatpush1.msra.mxu0 0.0
        %10253 = vmatprep.subr.mxu0 0.0
        %10254 = vmatpush1.msra.mxu0 0.0
        %10255 = vmatprep.subr.mxu0 0.0
        %10256 = vmatpush1.msra.mxu0 0.0
        %10257 = vmatprep.subr.mxu0 0.0
        %10258 = vmatpush1.msra.mxu0 0.0
        %10259 = vmatprep.subr.mxu0 0.0
        %10260 = vmatpush1.msra.mxu0 0.0
        %10261 = vmatprep.subr.mxu0 0.0
        %10262 = vmatpush1.msra.mxu0 0.0
        %10263 = vmatprep.mubr.f32.mxu0 0.0
        %10264 = vmatmul.mubr.f32.gmra.mrb[0].mxu0 %v9629
        %v10265 = vpop.f32.mrb[0].mxu0
        %v10266 = vadd.f32 0.0, %v10265
        %v10267 = vpop.f32.mrb[0].mxu0
        %v10268 = vadd.f32 0.0, %v10267
        %10269 = vdwg.mxu0
        %v10270 = vxor.u32 %v9698, 2147483648
        %v10271 = vxor.u32 %v9700, 2147483648
        %v10272 = vxor.u32 %v9769, 2147483648
        %v10273 = vxor.u32 %v9771, 2147483648
        %v10274 = vxor.u32 %v9840, 2147483648
        %v10275 = vxor.u32 %v9842, 2147483648
        %v10276 = vxor.u32 %v9911, 2147483648
        %v10277 = vxor.u32 %v9913, 2147483648
        %v10278 = vxor.u32 %v9982, 2147483648
        %v10279 = vxor.u32 %v9984, 2147483648
        %v10280 = vxor.u32 %v10053, 2147483648
        %v10281 = vxor.u32 %v10055, 2147483648
        %v10282 = vxor.u32 %v10124, 2147483648
        %v10283 = vxor.u32 %v10126, 2147483648
        %v10284 = vxor.u32 %v10195, 2147483648
        %v10285 = vxor.u32 %v10197, 2147483648
        %v10286 = vxor.u32 %v10266, 2147483648
        %v10287 = vxor.u32 %v10268, 2147483648
        %v10288 = vmul.f32 %v10270, 1.442695
        %v10289 = vpow.pop %v10288
        %v10290 = vmul.f32 %v10271, 1.442695
        %v10291 = vpow.pop %v10290
        %v10292 = vmul.f32 %v10272, 1.442695
        %v10293 = vpow.pop %v10292
        %v10294 = vmul.f32 %v10273, 1.442695
        %v10295 = vpow.pop %v10294
        %v10296 = vmul.f32 %v10274, 1.442695
        %v10297 = vpow.pop %v10296
        %v10298 = vmul.f32 %v10275, 1.442695
        %v10299 = vpow.pop %v10298
        %v10300 = vmul.f32 %v10276, 1.442695
        %v10301 = vpow.pop %v10300
        %v10302 = vmul.f32 %v10277, 1.442695
        %v10303 = vpow.pop %v10302
        %v10304 = vmul.f32 %v10278, 1.442695
        %v10305 = vpow.pop %v10304
        %v10306 = vmul.f32 %v10279, 1.442695
        %v10307 = vpow.pop %v10306
        %v10308 = vmul.f32 %v10280, 1.442695
        %v10309 = vpow.pop %v10308
        %v10310 = vmul.f32 %v10281, 1.442695
        %v10311 = vpow.pop %v10310
        %v10312 = vmul.f32 %v10282, 1.442695
        %v10313 = vpow.pop %v10312
        %v10314 = vmul.f32 %v10283, 1.442695
        %v10315 = vpow.pop %v10314
        %v10316 = vmul.f32 %v10284, 1.442695
        %v10317 = vpow.pop %v10316
        %v10318 = vmul.f32 %v10285, 1.442695
        %v10319 = vpow.pop %v10318
        %v10320 = vmul.f32 %v10286, 1.442695
        %v10321 = vpow.pop %v10320
        %v10322 = vmul.f32 %v10287, 1.442695
        %v10323 = vpow.pop %v10322
        %v10324 = vadd.f32 %v10289, 1.0
        %v10325 = vadd.f32 %v10291, 1.0
        %v10326 = vadd.f32 %v10293, 1.0
        %v10327 = vadd.f32 %v10295, 1.0
        %v10328 = vadd.f32 %v10297, 1.0
        %v10329 = vadd.f32 %v10299, 1.0
        %v10330 = vadd.f32 %v10301, 1.0
        %v10331 = vadd.f32 %v10303, 1.0
        %v10332 = vadd.f32 %v10305, 1.0
        %v10333 = vadd.f32 %v10307, 1.0
        %v10334 = vadd.f32 %v10309, 1.0
        %v10335 = vadd.f32 %v10311, 1.0
        %v10336 = vadd.f32 %v10313, 1.0
        %v10337 = vadd.f32 %v10315, 1.0
        %v10338 = vadd.f32 %v10317, 1.0
        %v10339 = vadd.f32 %v10319, 1.0
        %v10340 = vadd.f32 %v10321, 1.0
        %v10341 = vadd.f32 %v10323, 1.0
        %v10342 = vrcp.pop %v10324
        %v10343 = vmul.f32 1.0, %v10342
        %v10344 = vrcp.pop %v10325
        %v10345 = vmul.f32 1.0, %v10344
        %v10346 = vrcp.pop %v10326
        %v10347 = vmul.f32 1.0, %v10346
        %v10348 = vrcp.pop %v10327
        %v10349 = vmul.f32 1.0, %v10348
        %v10350 = vrcp.pop %v10328
        %v10351 = vmul.f32 1.0, %v10350
        %v10352 = vrcp.pop %v10329
        %v10353 = vmul.f32 1.0, %v10352
        %v10354 = vrcp.pop %v10330
        %v10355 = vmul.f32 1.0, %v10354
        %v10356 = vrcp.pop %v10331
        %v10357 = vmul.f32 1.0, %v10356
        %v10358 = vrcp.pop %v10332
        %v10359 = vmul.f32 1.0, %v10358
        %v10360 = vrcp.pop %v10333
        %v10361 = vmul.f32 1.0, %v10360
        %v10362 = vrcp.pop %v10334
        %v10363 = vmul.f32 1.0, %v10362
        %v10364 = vrcp.pop %v10335
        %v10365 = vmul.f32 1.0, %v10364
        %v10366 = vrcp.pop %v10336
        %v10367 = vmul.f32 1.0, %v10366
        %v10368 = vrcp.pop %v10337
        %v10369 = vmul.f32 1.0, %v10368
        %v10370 = vrcp.pop %v10338
        %v10371 = vmul.f32 1.0, %v10370
        %v10372 = vrcp.pop %v10339
        %v10373 = vmul.f32 1.0, %v10372
        %v10374 = vrcp.pop %v10340
        %v10375 = vmul.f32 1.0, %v10374
        %v10376 = vrcp.pop %v10341
        %v10377 = vmul.f32 1.0, %v10376
        %10379 = vset.pattern.permute.xlu0 0
        %10380 = vperm.xlu0 %10379, %v9625
        %v10381 = vpop.permute.xlu0 %10380
        %v10383 = vlaneseq
        %v10384 = vshrl.u32 %v10383, 7
        %v10385 = vsub.s32 0, %v10384
        %v10386 = vrot.slane %v10343, %v10385
        %v10387 = vlaneseq
        %v10388 = vshrl.u32 %v10387, 7
        %v10389 = vsub.s32 0, %v10388
        %v10390 = vrot.slane %v10345, %v10389
        %v10391 = vlaneseq
        %v10392 = vshrl.u32 %v10391, 7
        %v10393 = vsub.s32 0, %v10392
        %v10394 = vrot.slane %v10347, %v10393
        %v10395 = vlaneseq
        %v10396 = vshrl.u32 %v10395, 7
        %v10397 = vsub.s32 0, %v10396
        %v10398 = vrot.slane %v10349, %v10397
        %v10399 = vlaneseq
        %v10400 = vshrl.u32 %v10399, 7
        %v10401 = vsub.s32 0, %v10400
        %v10402 = vrot.slane %v10351, %v10401
        %v10403 = vlaneseq
        %v10404 = vshrl.u32 %v10403, 7
        %v10405 = vsub.s32 0, %v10404
        %v10406 = vrot.slane %v10353, %v10405
        %v10407 = vlaneseq
        %v10408 = vshrl.u32 %v10407, 7
        %v10409 = vsub.s32 0, %v10408
        %v10410 = vrot.slane %v10355, %v10409
        %v10411 = vlaneseq
        %v10412 = vshrl.u32 %v10411, 7
        %v10413 = vsub.s32 0, %v10412
        %v10414 = vrot.slane %v10357, %v10413
        %v10415 = vlaneseq
        %v10416 = vshrl.u32 %v10415, 7
        %v10417 = vsub.s32 0, %v10416
        %v10418 = vrot.slane %v10359, %v10417
        %v10419 = vlaneseq
        %v10420 = vshrl.u32 %v10419, 7
        %v10421 = vsub.s32 0, %v10420
        %v10422 = vrot.slane %v10361, %v10421
        %v10423 = vlaneseq
        %v10424 = vshrl.u32 %v10423, 7
        %v10425 = vsub.s32 0, %v10424
        %v10426 = vrot.slane %v10363, %v10425
        %v10427 = vlaneseq
        %v10428 = vshrl.u32 %v10427, 7
        %v10429 = vsub.s32 0, %v10428
        %v10430 = vrot.slane %v10365, %v10429
        %v10431 = vlaneseq
        %v10432 = vshrl.u32 %v10431, 7
        %v10433 = vsub.s32 0, %v10432
        %v10434 = vrot.slane %v10367, %v10433
        %v10435 = vlaneseq
        %v10436 = vshrl.u32 %v10435, 7
        %v10437 = vsub.s32 0, %v10436
        %v10438 = vrot.slane %v10369, %v10437
        %v10439 = vlaneseq
        %v10440 = vshrl.u32 %v10439, 7
        %v10441 = vsub.s32 0, %v10440
        %v10442 = vrot.slane %v10371, %v10441
        %v10443 = vlaneseq
        %v10444 = vshrl.u32 %v10443, 7
        %v10445 = vsub.s32 0, %v10444
        %v10446 = vrot.slane %v10373, %v10445
        %v10447 = vlaneseq
        %v10448 = vshrl.u32 %v10447, 7
        %v10449 = vsub.s32 0, %v10448
        %v10450 = vrot.slane %v10375, %v10449
        %v10451 = vlaneseq
        %v10452 = vshrl.u32 %v10451, 7
        %v10453 = vsub.s32 0, %v10452
        %v10454 = vrot.slane %v10377, %v10453
        %v10455 = vadd.f32 %v10381, %v10386
        %v10456 = vadd.f32 %v10381, %v10390
        %v10457 = vadd.f32 %v10381, %v10394
        %v10458 = vadd.f32 %v10381, %v10398
        %v10459 = vadd.f32 %v10381, %v10402
        %v10460 = vadd.f32 %v10381, %v10406
        %v10461 = vadd.f32 %v10381, %v10410
        %v10462 = vadd.f32 %v10381, %v10414
        %v10463 = vadd.f32 %v10381, %v10418
        %v10464 = vadd.f32 %v10381, %v10422
        %v10465 = vadd.f32 %v10381, %v10426
        %v10466 = vadd.f32 %v10381, %v10430
        %v10467 = vadd.f32 %v10381, %v10434
        %v10468 = vadd.f32 %v10381, %v10438
        %v10469 = vadd.f32 %v10381, %v10442
        %v10470 = vadd.f32 %v10381, %v10446
        %v10471 = vadd.f32 %v10381, %v10450
        %v10472 = vadd.f32 %v10381, %v10454
        %v10473 = vmul.f32 %v7874, %v10455
        %v10474 = vmul.f32 %v7875, %v10456
        %v10475 = vmul.f32 %v7876, %v10457
        %v10476 = vmul.f32 %v7877, %v10458
        %v10477 = vmul.f32 %v7878, %v10459
        %v10478 = vmul.f32 %v7879, %v10460
        %v10479 = vmul.f32 %v7880, %v10461
        %v10480 = vmul.f32 %v7881, %v10462
        %v10481 = vmul.f32 %v7882, %v10463
        %v10482 = vmul.f32 %v7883, %v10464
        %v10483 = vmul.f32 %v7884, %v10465
        %v10484 = vmul.f32 %v7885, %v10466
        %v10485 = vmul.f32 %v7886, %v10467
        %v10486 = vmul.f32 %v7887, %v10468
        %v10487 = vmul.f32 %v7888, %v10469
        %v10488 = vmul.f32 %v7889, %v10470
        %v10489 = vmul.f32 %v7890, %v10471
        %v10490 = vmul.f32 %v7891, %v10472
        %v10491 = vld [vmem:[%s10] sm:$0xff]
        %v10492 = vld [vmem:[%s11] sm:$0xff]
        %10494 = vset.pattern.permute.xlu0 0
        %10495 = vperm.xlu0 %10494, %v10492
        %v10496 = vpop.permute.xlu0 %10495
        %v10499 = vsel %vm9627, %v10491, 0
        %10501 = vmatprep.subr.mxu0 %v10474
        %10502 = vmatpush1.msra.mxu0 %v10473
        %10503 = vmatprep.subr.mxu0 0.0
        %10504 = vmatpush1.msra.mxu0 0.0
        %10505 = vmatprep.subr.mxu0 0.0
        %10506 = vmatpush1.msra.mxu0 0.0
        %10507 = vmatprep.subr.mxu0 0.0
        %10508 = vmatpush1.msra.mxu0 0.0
        %10509 = vmatprep.subr.mxu0 0.0
        %10510 = vmatpush1.msra.mxu0 0.0
        %10511 = vmatprep.subr.mxu0 0.0
        %10512 = vmatpush1.msra.mxu0 0.0
        %10513 = vmatprep.subr.mxu0 0.0
        %10514 = vmatpush1.msra.mxu0 0.0
        %10515 = vmatprep.subr.mxu0 0.0
        %10516 = vmatpush1.msra.mxu0 0.0
        %10517 = vmatprep.subr.mxu0 0.0
        %10518 = vmatpush1.msra.mxu0 0.0
        %10519 = vmatprep.subr.mxu0 0.0
        %10520 = vmatpush1.msra.mxu0 0.0
        %10521 = vmatprep.subr.mxu0 0.0
        %10522 = vmatpush1.msra.mxu0 0.0
        %10523 = vmatprep.subr.mxu0 0.0
        %10524 = vmatpush1.msra.mxu0 0.0
        %10525 = vmatprep.subr.mxu0 0.0
        %10526 = vmatpush1.msra.mxu0 0.0
        %10527 = vmatprep.subr.mxu0 0.0
        %10528 = vmatpush1.msra.mxu0 0.0
        %10529 = vmatprep.subr.mxu0 0.0
        %10530 = vmatpush1.msra.mxu0 0.0
        %10531 = vmatprep.subr.mxu0 0.0
        %10532 = vmatpush1.msra.mxu0 0.0
        %10533 = vmatprep.subr.mxu0 0.0
        %10534 = vmatpush1.msra.mxu0 0.0
        %10535 = vmatprep.subr.mxu0 0.0
        %10536 = vmatpush1.msra.mxu0 0.0
        %10537 = vmatprep.subr.mxu0 0.0
        %10538 = vmatpush1.msra.mxu0 0.0
        %10539 = vmatprep.subr.mxu0 0.0
        %10540 = vmatpush1.msra.mxu0 0.0
        %10541 = vmatprep.subr.mxu0 0.0
        %10542 = vmatpush1.msra.mxu0 0.0
        %10543 = vmatprep.subr.mxu0 0.0
        %10544 = vmatpush1.msra.mxu0 0.0
        %10545 = vmatprep.subr.mxu0 0.0
        %10546 = vmatpush1.msra.mxu0 0.0
        %10547 = vmatprep.subr.mxu0 0.0
        %10548 = vmatpush1.msra.mxu0 0.0
        %10549 = vmatprep.subr.mxu0 0.0
        %10550 = vmatpush1.msra.mxu0 0.0
        %10551 = vmatprep.subr.mxu0 0.0
        %10552 = vmatpush1.msra.mxu0 0.0
        %10553 = vmatprep.subr.mxu0 0.0
        %10554 = vmatpush1.msra.mxu0 0.0
        %10555 = vmatprep.subr.mxu0 0.0
        %10556 = vmatpush1.msra.mxu0 0.0
        %10557 = vmatprep.subr.mxu0 0.0
        %10558 = vmatpush1.msra.mxu0 0.0
        %10559 = vmatprep.subr.mxu0 0.0
        %10560 = vmatpush1.msra.mxu0 0.0
        %10561 = vmatprep.subr.mxu0 0.0
        %10562 = vmatpush1.msra.mxu0 0.0
        %10563 = vmatprep.subr.mxu0 0.0
        %10564 = vmatpush1.msra.mxu0 0.0
        %10565 = vmatprep.mubr.f32.mxu0 0.0
        %10566 = vmatmul.mubr.f32.gmra.mrb[0].mxu0 %v10499
        %v10567 = vpop.f32.mrb[0].mxu0
        %v10568 = vadd.f32 %v10496, %v10567
        %v10569 = vpop.f32.mrb[0].mxu0
        %v10570 = vadd.f32 %v10496, %v10569
        %10571 = vdwg.mxu0
        %10572 = vmatprep.subr.mxu0 %v10476
        %10573 = vmatpush1.msra.mxu0 %v10475
        %10574 = vmatprep.subr.mxu0 0.0
        %10575 = vmatpush1.msra.mxu0 0.0
        %10576 = vmatprep.subr.mxu0 0.0
        %10577 = vmatpush1.msra.mxu0 0.0
        %10578 = vmatprep.subr.mxu0 0.0
        %10579 = vmatpush1.msra.mxu0 0.0
        %10580 = vmatprep.subr.mxu0 0.0
        %10581 = vmatpush1.msra.mxu0 0.0
        %10582 = vmatprep.subr.mxu0 0.0
        %10583 = vmatpush1.msra.mxu0 0.0
        %10584 = vmatprep.subr.mxu0 0.0
        %10585 = vmatpush1.msra.mxu0 0.0
        %10586 = vmatprep.subr.mxu0 0.0
        %10587 = vmatpush1.msra.mxu0 0.0
        %10588 = vmatprep.subr.mxu0 0.0
        %10589 = vmatpush1.msra.mxu0 0.0
        %10590 = vmatprep.subr.mxu0 0.0
        %10591 = vmatpush1.msra.mxu0 0.0
        %10592 = vmatprep.subr.mxu0 0.0
        %10593 = vmatpush1.msra.mxu0 0.0
        %10594 = vmatprep.subr.mxu0 0.0
        %10595 = vmatpush1.msra.mxu0 0.0
        %10596 = vmatprep.subr.mxu0 0.0
        %10597 = vmatpush1.msra.mxu0 0.0
        %10598 = vmatprep.subr.mxu0 0.0
        %10599 = vmatpush1.msra.mxu0 0.0
        %10600 = vmatprep.subr.mxu0 0.0
        %10601 = vmatpush1.msra.mxu0 0.0
        %10602 = vmatprep.subr.mxu0 0.0
        %10603 = vmatpush1.msra.mxu0 0.0
        %10604 = vmatprep.subr.mxu0 0.0
        %10605 = vmatpush1.msra.mxu0 0.0
        %10606 = vmatprep.subr.mxu0 0.0
        %10607 = vmatpush1.msra.mxu0 0.0
        %10608 = vmatprep.subr.mxu0 0.0
        %10609 = vmatpush1.msra.mxu0 0.0
        %10610 = vmatprep.subr.mxu0 0.0
        %10611 = vmatpush1.msra.mxu0 0.0
        %10612 = vmatprep.subr.mxu0 0.0
        %10613 = vmatpush1.msra.mxu0 0.0
        %10614 = vmatprep.subr.mxu0 0.0
        %10615 = vmatpush1.msra.mxu0 0.0
        %10616 = vmatprep.subr.mxu0 0.0
        %10617 = vmatpush1.msra.mxu0 0.0
        %10618 = vmatprep.subr.mxu0 0.0
        %10619 = vmatpush1.msra.mxu0 0.0
        %10620 = vmatprep.subr.mxu0 0.0
        %10621 = vmatpush1.msra.mxu0 0.0
        %10622 = vmatprep.subr.mxu0 0.0
        %10623 = vmatpush1.msra.mxu0 0.0
        %10624 = vmatprep.subr.mxu0 0.0
        %10625 = vmatpush1.msra.mxu0 0.0
        %10626 = vmatprep.subr.mxu0 0.0
        %10627 = vmatpush1.msra.mxu0 0.0
        %10628 = vmatprep.subr.mxu0 0.0
        %10629 = vmatpush1.msra.mxu0 0.0
        %10630 = vmatprep.subr.mxu0 0.0
        %10631 = vmatpush1.msra.mxu0 0.0
        %10632 = vmatprep.subr.mxu0 0.0
        %10633 = vmatpush1.msra.mxu0 0.0
        %10634 = vmatprep.subr.mxu0 0.0
        %10635 = vmatpush1.msra.mxu0 0.0
        %10636 = vmatprep.mubr.f32.mxu0 0.0
        %10637 = vmatmul.mubr.f32.gmra.mrb[0].mxu0 %v10499
        %v10638 = vpop.f32.mrb[0].mxu0
        %v10639 = vadd.f32 %v10496, %v10638
        %v10640 = vpop.f32.mrb[0].mxu0
        %v10641 = vadd.f32 %v10496, %v10640
        %10642 = vdwg.mxu0
        %10643 = vmatprep.subr.mxu0 %v10478
        %10644 = vmatpush1.msra.mxu0 %v10477
        %10645 = vmatprep.subr.mxu0 0.0
        %10646 = vmatpush1.msra.mxu0 0.0
        %10647 = vmatprep.subr.mxu0 0.0
        %10648 = vmatpush1.msra.mxu0 0.0
        %10649 = vmatprep.subr.mxu0 0.0
        %10650 = vmatpush1.msra.mxu0 0.0
        %10651 = vmatprep.subr.mxu0 0.0
        %10652 = vmatpush1.msra.mxu0 0.0
        %10653 = vmatprep.subr.mxu0 0.0
        %10654 = vmatpush1.msra.mxu0 0.0
        %10655 = vmatprep.subr.mxu0 0.0
        %10656 = vmatpush1.msra.mxu0 0.0
        %10657 = vmatprep.subr.mxu0 0.0
        %10658 = vmatpush1.msra.mxu0 0.0
        %10659 = vmatprep.subr.mxu0 0.0
        %10660 = vmatpush1.msra.mxu0 0.0
        %10661 = vmatprep.subr.mxu0 0.0
        %10662 = vmatpush1.msra.mxu0 0.0
        %10663 = vmatprep.subr.mxu0 0.0
        %10664 = vmatpush1.msra.mxu0 0.0
        %10665 = vmatprep.subr.mxu0 0.0
        %10666 = vmatpush1.msra.mxu0 0.0
        %10667 = vmatprep.subr.mxu0 0.0
        %10668 = vmatpush1.msra.mxu0 0.0
        %10669 = vmatprep.subr.mxu0 0.0
        %10670 = vmatpush1.msra.mxu0 0.0
        %10671 = vmatprep.subr.mxu0 0.0
        %10672 = vmatpush1.msra.mxu0 0.0
        %10673 = vmatprep.subr.mxu0 0.0
        %10674 = vmatpush1.msra.mxu0 0.0
        %10675 = vmatprep.subr.mxu0 0.0
        %10676 = vmatpush1.msra.mxu0 0.0
        %10677 = vmatprep.subr.mxu0 0.0
        %10678 = vmatpush1.msra.mxu0 0.0
        %10679 = vmatprep.subr.mxu0 0.0
        %10680 = vmatpush1.msra.mxu0 0.0
        %10681 = vmatprep.subr.mxu0 0.0
        %10682 = vmatpush1.msra.mxu0 0.0
        %10683 = vmatprep.subr.mxu0 0.0
        %10684 = vmatpush1.msra.mxu0 0.0
        %10685 = vmatprep.subr.mxu0 0.0
        %10686 = vmatpush1.msra.mxu0 0.0
        %10687 = vmatprep.subr.mxu0 0.0
        %10688 = vmatpush1.msra.mxu0 0.0
        %10689 = vmatprep.subr.mxu0 0.0
        %10690 = vmatpush1.msra.mxu0 0.0
        %10691 = vmatprep.subr.mxu0 0.0
        %10692 = vmatpush1.msra.mxu0 0.0
        %10693 = vmatprep.subr.mxu0 0.0
        %10694 = vmatpush1.msra.mxu0 0.0
        %10695 = vmatprep.subr.mxu0 0.0
        %10696 = vmatpush1.msra.mxu0 0.0
        %10697 = vmatprep.subr.mxu0 0.0
        %10698 = vmatpush1.msra.mxu0 0.0
        %10699 = vmatprep.subr.mxu0 0.0
        %10700 = vmatpush1.msra.mxu0 0.0
        %10701 = vmatprep.subr.mxu0 0.0
        %10702 = vmatpush1.msra.mxu0 0.0
        %10703 = vmatprep.subr.mxu0 0.0
        %10704 = vmatpush1.msra.mxu0 0.0
        %10705 = vmatprep.subr.mxu0 0.0
        %10706 = vmatpush1.msra.mxu0 0.0
        %10707 = vmatprep.mubr.f32.mxu0 0.0
        %10708 = vmatmul.mubr.f32.gmra.mrb[0].mxu0 %v10499
        %v10709 = vpop.f32.mrb[0].mxu0
        %v10710 = vadd.f32 %v10496, %v10709
        %v10711 = vpop.f32.mrb[0].mxu0
        %v10712 = vadd.f32 %v10496, %v10711
        %10713 = vdwg.mxu0
        %10714 = vmatprep.subr.mxu0 %v10480
        %10715 = vmatpush1.msra.mxu0 %v10479
        %10716 = vmatprep.subr.mxu0 0.0
        %10717 = vmatpush1.msra.mxu0 0.0
        %10718 = vmatprep.subr.mxu0 0.0
        %10719 = vmatpush1.msra.mxu0 0.0
        %10720 = vmatprep.subr.mxu0 0.0
        %10721 = vmatpush1.msra.mxu0 0.0
        %10722 = vmatprep.subr.mxu0 0.0
        %10723 = vmatpush1.msra.mxu0 0.0
        %10724 = vmatprep.subr.mxu0 0.0
        %10725 = vmatpush1.msra.mxu0 0.0
        %10726 = vmatprep.subr.mxu0 0.0
        %10727 = vmatpush1.msra.mxu0 0.0
        %10728 = vmatprep.subr.mxu0 0.0
        %10729 = vmatpush1.msra.mxu0 0.0
        %10730 = vmatprep.subr.mxu0 0.0
        %10731 = vmatpush1.msra.mxu0 0.0
        %10732 = vmatprep.subr.mxu0 0.0
        %10733 = vmatpush1.msra.mxu0 0.0
        %10734 = vmatprep.subr.mxu0 0.0
        %10735 = vmatpush1.msra.mxu0 0.0
        %10736 = vmatprep.subr.mxu0 0.0
        %10737 = vmatpush1.msra.mxu0 0.0
        %10738 = vmatprep.subr.mxu0 0.0
        %10739 = vmatpush1.msra.mxu0 0.0
        %10740 = vmatprep.subr.mxu0 0.0
        %10741 = vmatpush1.msra.mxu0 0.0
        %10742 = vmatprep.subr.mxu0 0.0
        %10743 = vmatpush1.msra.mxu0 0.0
        %10744 = vmatprep.subr.mxu0 0.0
        %10745 = vmatpush1.msra.mxu0 0.0
        %10746 = vmatprep.subr.mxu0 0.0
        %10747 = vmatpush1.msra.mxu0 0.0
        %10748 = vmatprep.subr.mxu0 0.0
        %10749 = vmatpush1.msra.mxu0 0.0
        %10750 = vmatprep.subr.mxu0 0.0
        %10751 = vmatpush1.msra.mxu0 0.0
        %10752 = vmatprep.subr.mxu0 0.0
        %10753 = vmatpush1.msra.mxu0 0.0
        %10754 = vmatprep.subr.mxu0 0.0
        %10755 = vmatpush1.msra.mxu0 0.0
        %10756 = vmatprep.subr.mxu0 0.0
        %10757 = vmatpush1.msra.mxu0 0.0
        %10758 = vmatprep.subr.mxu0 0.0
        %10759 = vmatpush1.msra.mxu0 0.0
        %10760 = vmatprep.subr.mxu0 0.0
        %10761 = vmatpush1.msra.mxu0 0.0
        %10762 = vmatprep.subr.mxu0 0.0
        %10763 = vmatpush1.msra.mxu0 0.0
        %10764 = vmatprep.subr.mxu0 0.0
        %10765 = vmatpush1.msra.mxu0 0.0
        %10766 = vmatprep.subr.mxu0 0.0
        %10767 = vmatpush1.msra.mxu0 0.0
        %10768 = vmatprep.subr.mxu0 0.0
        %10769 = vmatpush1.msra.mxu0 0.0
        %10770 = vmatprep.subr.mxu0 0.0
        %10771 = vmatpush1.msra.mxu0 0.0
        %10772 = vmatprep.subr.mxu0 0.0
        %10773 = vmatpush1.msra.mxu0 0.0
        %10774 = vmatprep.subr.mxu0 0.0
        %10775 = vmatpush1.msra.mxu0 0.0
        %10776 = vmatprep.subr.mxu0 0.0
        %10777 = vmatpush1.msra.mxu0 0.0
        %10778 = vmatprep.mubr.f32.mxu0 0.0
        %10779 = vmatmul.mubr.f32.gmra.mrb[0].mxu0 %v10499
        %v10780 = vpop.f32.mrb[0].mxu0
        %v10781 = vadd.f32 %v10496, %v10780
        %v10782 = vpop.f32.mrb[0].mxu0
        %v10783 = vadd.f32 %v10496, %v10782
        %10784 = vdwg.mxu0
        %10785 = vmatprep.subr.mxu0 %v10482
        %10786 = vmatpush1.msra.mxu0 %v10481
        %10787 = vmatprep.subr.mxu0 0.0
        %10788 = vmatpush1.msra.mxu0 0.0
        %10789 = vmatprep.subr.mxu0 0.0
        %10790 = vmatpush1.msra.mxu0 0.0
        %10791 = vmatprep.subr.mxu0 0.0
        %10792 = vmatpush1.msra.mxu0 0.0
        %10793 = vmatprep.subr.mxu0 0.0
        %10794 = vmatpush1.msra.mxu0 0.0
        %10795 = vmatprep.subr.mxu0 0.0
        %10796 = vmatpush1.msra.mxu0 0.0
        %10797 = vmatprep.subr.mxu0 0.0
        %10798 = vmatpush1.msra.mxu0 0.0
        %10799 = vmatprep.subr.mxu0 0.0
        %10800 = vmatpush1.msra.mxu0 0.0
        %10801 = vmatprep.subr.mxu0 0.0
        %10802 = vmatpush1.msra.mxu0 0.0
        %10803 = vmatprep.subr.mxu0 0.0
        %10804 = vmatpush1.msra.mxu0 0.0
        %10805 = vmatprep.subr.mxu0 0.0
        %10806 = vmatpush1.msra.mxu0 0.0
        %10807 = vmatprep.subr.mxu0 0.0
        %10808 = vmatpush1.msra.mxu0 0.0
        %10809 = vmatprep.subr.mxu0 0.0
        %10810 = vmatpush1.msra.mxu0 0.0
        %10811 = vmatprep.subr.mxu0 0.0
        %10812 = vmatpush1.msra.mxu0 0.0
        %10813 = vmatprep.subr.mxu0 0.0
        %10814 = vmatpush1.msra.mxu0 0.0
        %10815 = vmatprep.subr.mxu0 0.0
        %10816 = vmatpush1.msra.mxu0 0.0
        %10817 = vmatprep.subr.mxu0 0.0
        %10818 = vmatpush1.msra.mxu0 0.0
        %10819 = vmatprep.subr.mxu0 0.0
        %10820 = vmatpush1.msra.mxu0 0.0
        %10821 = vmatprep.subr.mxu0 0.0
        %10822 = vmatpush1.msra.mxu0 0.0
        %10823 = vmatprep.subr.mxu0 0.0
        %10824 = vmatpush1.msra.mxu0 0.0
        %10825 = vmatprep.subr.mxu0 0.0
        %10826 = vmatpush1.msra.mxu0 0.0
        %10827 = vmatprep.subr.mxu0 0.0
        %10828 = vmatpush1.msra.mxu0 0.0
        %10829 = vmatprep.subr.mxu0 0.0
        %10830 = vmatpush1.msra.mxu0 0.0
        %10831 = vmatprep.subr.mxu0 0.0
        %10832 = vmatpush1.msra.mxu0 0.0
        %10833 = vmatprep.subr.mxu0 0.0
        %10834 = vmatpush1.msra.mxu0 0.0
        %10835 = vmatprep.subr.mxu0 0.0
        %10836 = vmatpush1.msra.mxu0 0.0
        %10837 = vmatprep.subr.mxu0 0.0
        %10838 = vmatpush1.msra.mxu0 0.0
        %10839 = vmatprep.subr.mxu0 0.0
        %10840 = vmatpush1.msra.mxu0 0.0
        %10841 = vmatprep.subr.mxu0 0.0
        %10842 = vmatpush1.msra.mxu0 0.0
        %10843 = vmatprep.subr.mxu0 0.0
        %10844 = vmatpush1.msra.mxu0 0.0
        %10845 = vmatprep.subr.mxu0 0.0
        %10846 = vmatpush1.msra.mxu0 0.0
        %10847 = vmatprep.subr.mxu0 0.0
        %10848 = vmatpush1.msra.mxu0 0.0
        %10849 = vmatprep.mubr.f32.mxu0 0.0
        %10850 = vmatmul.mubr.f32.gmra.mrb[0].mxu0 %v10499
        %v10851 = vpop.f32.mrb[0].mxu0
        %v10852 = vadd.f32 %v10496, %v10851
        %v10853 = vpop.f32.mrb[0].mxu0
        %v10854 = vadd.f32 %v10496, %v10853
        %10855 = vdwg.mxu0
        %10856 = vmatprep.subr.mxu0 %v10484
        %10857 = vmatpush1.msra.mxu0 %v10483
        %10858 = vmatprep.subr.mxu0 0.0
        %10859 = vmatpush1.msra.mxu0 0.0
        %10860 = vmatprep.subr.mxu0 0.0
        %10861 = vmatpush1.msra.mxu0 0.0
        %10862 = vmatprep.subr.mxu0 0.0
        %10863 = vmatpush1.msra.mxu0 0.0
        %10864 = vmatprep.subr.mxu0 0.0
        %10865 = vmatpush1.msra.mxu0 0.0
        %10866 = vmatprep.subr.mxu0 0.0
        %10867 = vmatpush1.msra.mxu0 0.0
        %10868 = vmatprep.subr.mxu0 0.0
        %10869 = vmatpush1.msra.mxu0 0.0
        %10870 = vmatprep.subr.mxu0 0.0
        %10871 = vmatpush1.msra.mxu0 0.0
        %10872 = vmatprep.subr.mxu0 0.0
        %10873 = vmatpush1.msra.mxu0 0.0
        %10874 = vmatprep.subr.mxu0 0.0
        %10875 = vmatpush1.msra.mxu0 0.0
        %10876 = vmatprep.subr.mxu0 0.0
        %10877 = vmatpush1.msra.mxu0 0.0
        %10878 = vmatprep.subr.mxu0 0.0
        %10879 = vmatpush1.msra.mxu0 0.0
        %10880 = vmatprep.subr.mxu0 0.0
        %10881 = vmatpush1.msra.mxu0 0.0
        %10882 = vmatprep.subr.mxu0 0.0
        %10883 = vmatpush1.msra.mxu0 0.0
        %10884 = vmatprep.subr.mxu0 0.0
        %10885 = vmatpush1.msra.mxu0 0.0
        %10886 = vmatprep.subr.mxu0 0.0
        %10887 = vmatpush1.msra.mxu0 0.0
        %10888 = vmatprep.subr.mxu0 0.0
        %10889 = vmatpush1.msra.mxu0 0.0
        %10890 = vmatprep.subr.mxu0 0.0
        %10891 = vmatpush1.msra.mxu0 0.0
        %10892 = vmatprep.subr.mxu0 0.0
        %10893 = vmatpush1.msra.mxu0 0.0
        %10894 = vmatprep.subr.mxu0 0.0
        %10895 = vmatpush1.msra.mxu0 0.0
        %10896 = vmatprep.subr.mxu0 0.0
        %10897 = vmatpush1.msra.mxu0 0.0
        %10898 = vmatprep.subr.mxu0 0.0
        %10899 = vmatpush1.msra.mxu0 0.0
        %10900 = vmatprep.subr.mxu0 0.0
        %10901 = vmatpush1.msra.mxu0 0.0
        %10902 = vmatprep.subr.mxu0 0.0
        %10903 = vmatpush1.msra.mxu0 0.0
        %10904 = vmatprep.subr.mxu0 0.0
        %10905 = vmatpush1.msra.mxu0 0.0
        %10906 = vmatprep.subr.mxu0 0.0
        %10907 = vmatpush1.msra.mxu0 0.0
        %10908 = vmatprep.subr.mxu0 0.0
        %10909 = vmatpush1.msra.mxu0 0.0
        %10910 = vmatprep.subr.mxu0 0.0
        %10911 = vmatpush1.msra.mxu0 0.0
        %10912 = vmatprep.subr.mxu0 0.0
        %10913 = vmatpush1.msra.mxu0 0.0
        %10914 = vmatprep.subr.mxu0 0.0
        %10915 = vmatpush1.msra.mxu0 0.0
        %10916 = vmatprep.subr.mxu0 0.0
        %10917 = vmatpush1.msra.mxu0 0.0
        %10918 = vmatprep.subr.mxu0 0.0
        %10919 = vmatpush1.msra.mxu0 0.0
        %10920 = vmatprep.mubr.f32.mxu0 0.0
        %10921 = vmatmul.mubr.f32.gmra.mrb[0].mxu0 %v10499
        %v10922 = vpop.f32.mrb[0].mxu0
        %v10923 = vadd.f32 %v10496, %v10922
        %v10924 = vpop.f32.mrb[0].mxu0
        %v10925 = vadd.f32 %v10496, %v10924
        %10926 = vdwg.mxu0
        %10927 = vmatprep.subr.mxu0 %v10486
        %10928 = vmatpush1.msra.mxu0 %v10485
        %10929 = vmatprep.subr.mxu0 0.0
        %10930 = vmatpush1.msra.mxu0 0.0
        %10931 = vmatprep.subr.mxu0 0.0
        %10932 = vmatpush1.msra.mxu0 0.0
        %10933 = vmatprep.subr.mxu0 0.0
        %10934 = vmatpush1.msra.mxu0 0.0
        %10935 = vmatprep.subr.mxu0 0.0
        %10936 = vmatpush1.msra.mxu0 0.0
        %10937 = vmatprep.subr.mxu0 0.0
        %10938 = vmatpush1.msra.mxu0 0.0
        %10939 = vmatprep.subr.mxu0 0.0
        %10940 = vmatpush1.msra.mxu0 0.0
        %10941 = vmatprep.subr.mxu0 0.0
        %10942 = vmatpush1.msra.mxu0 0.0
        %10943 = vmatprep.subr.mxu0 0.0
        %10944 = vmatpush1.msra.mxu0 0.0
        %10945 = vmatprep.subr.mxu0 0.0
        %10946 = vmatpush1.msra.mxu0 0.0
        %10947 = vmatprep.subr.mxu0 0.0
        %10948 = vmatpush1.msra.mxu0 0.0
        %10949 = vmatprep.subr.mxu0 0.0
        %10950 = vmatpush1.msra.mxu0 0.0
        %10951 = vmatprep.subr.mxu0 0.0
        %10952 = vmatpush1.msra.mxu0 0.0
        %10953 = vmatprep.subr.mxu0 0.0
        %10954 = vmatpush1.msra.mxu0 0.0
        %10955 = vmatprep.subr.mxu0 0.0
        %10956 = vmatpush1.msra.mxu0 0.0
        %10957 = vmatprep.subr.mxu0 0.0
        %10958 = vmatpush1.msra.mxu0 0.0
        %10959 = vmatprep.subr.mxu0 0.0
        %10960 = vmatpush1.msra.mxu0 0.0
        %10961 = vmatprep.subr.mxu0 0.0
        %10962 = vmatpush1.msra.mxu0 0.0
        %10963 = vmatprep.subr.mxu0 0.0
        %10964 = vmatpush1.msra.mxu0 0.0
        %10965 = vmatprep.subr.mxu0 0.0
        %10966 = vmatpush1.msra.mxu0 0.0
        %10967 = vmatprep.subr.mxu0 0.0
        %10968 = vmatpush1.msra.mxu0 0.0
        %10969 = vmatprep.subr.mxu0 0.0
        %10970 = vmatpush1.msra.mxu0 0.0
        %10971 = vmatprep.subr.mxu0 0.0
        %10972 = vmatpush1.msra.mxu0 0.0
        %10973 = vmatprep.subr.mxu0 0.0
        %10974 = vmatpush1.msra.mxu0 0.0
        %10975 = vmatprep.subr.mxu0 0.0
        %10976 = vmatpush1.msra.mxu0 0.0
        %10977 = vmatprep.subr.mxu0 0.0
        %10978 = vmatpush1.msra.mxu0 0.0
        %10979 = vmatprep.subr.mxu0 0.0
        %10980 = vmatpush1.msra.mxu0 0.0
        %10981 = vmatprep.subr.mxu0 0.0
        %10982 = vmatpush1.msra.mxu0 0.0
        %10983 = vmatprep.subr.mxu0 0.0
        %10984 = vmatpush1.msra.mxu0 0.0
        %10985 = vmatprep.subr.mxu0 0.0
        %10986 = vmatpush1.msra.mxu0 0.0
        %10987 = vmatprep.subr.mxu0 0.0
        %10988 = vmatpush1.msra.mxu0 0.0
        %10989 = vmatprep.subr.mxu0 0.0
        %10990 = vmatpush1.msra.mxu0 0.0
        %10991 = vmatprep.mubr.f32.mxu0 0.0
        %10992 = vmatmul.mubr.f32.gmra.mrb[0].mxu0 %v10499
        %v10993 = vpop.f32.mrb[0].mxu0
        %v10994 = vadd.f32 %v10496, %v10993
        %v10995 = vpop.f32.mrb[0].mxu0
        %v10996 = vadd.f32 %v10496, %v10995
        %10997 = vdwg.mxu0
        %10998 = vmatprep.subr.mxu0 %v10488
        %10999 = vmatpush1.msra.mxu0 %v10487
        %11000 = vmatprep.subr.mxu0 0.0
        %11001 = vmatpush1.msra.mxu0 0.0
        %11002 = vmatprep.subr.mxu0 0.0
        %11003 = vmatpush1.msra.mxu0 0.0
        %11004 = vmatprep.subr.mxu0 0.0
        %11005 = vmatpush1.msra.mxu0 0.0
        %11006 = vmatprep.subr.mxu0 0.0
        %11007 = vmatpush1.msra.mxu0 0.0
        %11008 = vmatprep.subr.mxu0 0.0
        %11009 = vmatpush1.msra.mxu0 0.0
        %11010 = vmatprep.subr.mxu0 0.0
        %11011 = vmatpush1.msra.mxu0 0.0
        %11012 = vmatprep.subr.mxu0 0.0
        %11013 = vmatpush1.msra.mxu0 0.0
        %11014 = vmatprep.subr.mxu0 0.0
        %11015 = vmatpush1.msra.mxu0 0.0
        %11016 = vmatprep.subr.mxu0 0.0
        %11017 = vmatpush1.msra.mxu0 0.0
        %11018 = vmatprep.subr.mxu0 0.0
        %11019 = vmatpush1.msra.mxu0 0.0
        %11020 = vmatprep.subr.mxu0 0.0
        %11021 = vmatpush1.msra.mxu0 0.0
        %11022 = vmatprep.subr.mxu0 0.0
        %11023 = vmatpush1.msra.mxu0 0.0
        %11024 = vmatprep.subr.mxu0 0.0
        %11025 = vmatpush1.msra.mxu0 0.0
        %11026 = vmatprep.subr.mxu0 0.0
        %11027 = vmatpush1.msra.mxu0 0.0
        %11028 = vmatprep.subr.mxu0 0.0
        %11029 = vmatpush1.msra.mxu0 0.0
        %11030 = vmatprep.subr.mxu0 0.0
        %11031 = vmatpush1.msra.mxu0 0.0
        %11032 = vmatprep.subr.mxu0 0.0
        %11033 = vmatpush1.msra.mxu0 0.0
        %11034 = vmatprep.subr.mxu0 0.0
        %11035 = vmatpush1.msra.mxu0 0.0
        %11036 = vmatprep.subr.mxu0 0.0
        %11037 = vmatpush1.msra.mxu0 0.0
        %11038 = vmatprep.subr.mxu0 0.0
        %11039 = vmatpush1.msra.mxu0 0.0
        %11040 = vmatprep.subr.mxu0 0.0
        %11041 = vmatpush1.msra.mxu0 0.0
        %11042 = vmatprep.subr.mxu0 0.0
        %11043 = vmatpush1.msra.mxu0 0.0
        %11044 = vmatprep.subr.mxu0 0.0
        %11045 = vmatpush1.msra.mxu0 0.0
        %11046 = vmatprep.subr.mxu0 0.0
        %11047 = vmatpush1.msra.mxu0 0.0
        %11048 = vmatprep.subr.mxu0 0.0
        %11049 = vmatpush1.msra.mxu0 0.0
        %11050 = vmatprep.subr.mxu0 0.0
        %11051 = vmatpush1.msra.mxu0 0.0
        %11052 = vmatprep.subr.mxu0 0.0
        %11053 = vmatpush1.msra.mxu0 0.0
        %11054 = vmatprep.subr.mxu0 0.0
        %11055 = vmatpush1.msra.mxu0 0.0
        %11056 = vmatprep.subr.mxu0 0.0
        %11057 = vmatpush1.msra.mxu0 0.0
        %11058 = vmatprep.subr.mxu0 0.0
        %11059 = vmatpush1.msra.mxu0 0.0
        %11060 = vmatprep.subr.mxu0 0.0
        %11061 = vmatpush1.msra.mxu0 0.0
        %11062 = vmatprep.mubr.f32.mxu0 0.0
        %11063 = vmatmul.mubr.f32.gmra.mrb[0].mxu0 %v10499
        %v11064 = vpop.f32.mrb[0].mxu0
        %v11065 = vadd.f32 %v10496, %v11064
        %v11066 = vpop.f32.mrb[0].mxu0
        %v11067 = vadd.f32 %v10496, %v11066
        %11068 = vdwg.mxu0
        %11069 = vmatprep.subr.mxu0 %v10490
        %11070 = vmatpush1.msra.mxu0 %v10489
        %11071 = vmatprep.subr.mxu0 0.0
        %11072 = vmatpush1.msra.mxu0 0.0
        %11073 = vmatprep.subr.mxu0 0.0
        %11074 = vmatpush1.msra.mxu0 0.0
        %11075 = vmatprep.subr.mxu0 0.0
        %11076 = vmatpush1.msra.mxu0 0.0
        %11077 = vmatprep.subr.mxu0 0.0
        %11078 = vmatpush1.msra.mxu0 0.0
        %11079 = vmatprep.subr.mxu0 0.0
        %11080 = vmatpush1.msra.mxu0 0.0
        %11081 = vmatprep.subr.mxu0 0.0
        %11082 = vmatpush1.msra.mxu0 0.0
        %11083 = vmatprep.subr.mxu0 0.0
        %11084 = vmatpush1.msra.mxu0 0.0
        %11085 = vmatprep.subr.mxu0 0.0
        %11086 = vmatpush1.msra.mxu0 0.0
        %11087 = vmatprep.subr.mxu0 0.0
        %11088 = vmatpush1.msra.mxu0 0.0
        %11089 = vmatprep.subr.mxu0 0.0
        %11090 = vmatpush1.msra.mxu0 0.0
        %11091 = vmatprep.subr.mxu0 0.0
        %11092 = vmatpush1.msra.mxu0 0.0
        %11093 = vmatprep.subr.mxu0 0.0
        %11094 = vmatpush1.msra.mxu0 0.0
        %11095 = vmatprep.subr.mxu0 0.0
        %11096 = vmatpush1.msra.mxu0 0.0
        %11097 = vmatprep.subr.mxu0 0.0
        %11098 = vmatpush1.msra.mxu0 0.0
        %11099 = vmatprep.subr.mxu0 0.0
        %11100 = vmatpush1.msra.mxu0 0.0
        %11101 = vmatprep.subr.mxu0 0.0
        %11102 = vmatpush1.msra.mxu0 0.0
        %11103 = vmatprep.subr.mxu0 0.0
        %11104 = vmatpush1.msra.mxu0 0.0
        %11105 = vmatprep.subr.mxu0 0.0
        %11106 = vmatpush1.msra.mxu0 0.0
        %11107 = vmatprep.subr.mxu0 0.0
        %11108 = vmatpush1.msra.mxu0 0.0
        %11109 = vmatprep.subr.mxu0 0.0
        %11110 = vmatpush1.msra.mxu0 0.0
        %11111 = vmatprep.subr.mxu0 0.0
        %11112 = vmatpush1.msra.mxu0 0.0
        %11113 = vmatprep.subr.mxu0 0.0
        %11114 = vmatpush1.msra.mxu0 0.0
        %11115 = vmatprep.subr.mxu0 0.0
        %11116 = vmatpush1.msra.mxu0 0.0
        %11117 = vmatprep.subr.mxu0 0.0
        %11118 = vmatpush1.msra.mxu0 0.0
        %11119 = vmatprep.subr.mxu0 0.0
        %11120 = vmatpush1.msra.mxu0 0.0
        %11121 = vmatprep.subr.mxu0 0.0
        %11122 = vmatpush1.msra.mxu0 0.0
        %11123 = vmatprep.subr.mxu0 0.0
        %11124 = vmatpush1.msra.mxu0 0.0
        %11125 = vmatprep.subr.mxu0 0.0
        %11126 = vmatpush1.msra.mxu0 0.0
        %11127 = vmatprep.subr.mxu0 0.0
        %11128 = vmatpush1.msra.mxu0 0.0
        %11129 = vmatprep.subr.mxu0 0.0
        %11130 = vmatpush1.msra.mxu0 0.0
        %11131 = vmatprep.subr.mxu0 0.0
        %11132 = vmatpush1.msra.mxu0 0.0
        %11133 = vmatprep.mubr.f32.mxu0 0.0
        %11134 = vmatmul.mubr.f32.gmra.mrb[0].mxu0 %v10499
        %v11135 = vpop.f32.mrb[0].mxu0
        %v11136 = vadd.f32 %v10496, %v11135
        %v11137 = vpop.f32.mrb[0].mxu0
        %v11138 = vadd.f32 %v10496, %v11137
        %11139 = vdwg.mxu0
        %v11140 = vmax.f32 %v10568, 0.0
        %v11141 = vmax.f32 %v10570, 0.0
        %v11142 = vmax.f32 %v10639, 0.0
        %v11143 = vmax.f32 %v10641, 0.0
        %v11144 = vmax.f32 %v10710, 0.0
        %v11145 = vmax.f32 %v10712, 0.0
        %v11146 = vmax.f32 %v10781, 0.0
        %v11147 = vmax.f32 %v10783, 0.0
        %v11148 = vmax.f32 %v10852, 0.0
        %v11149 = vmax.f32 %v10854, 0.0
        %v11150 = vmax.f32 %v10923, 0.0
        %v11151 = vmax.f32 %v10925, 0.0
        %v11152 = vmax.f32 %v10994, 0.0
        %v11153 = vmax.f32 %v10996, 0.0
        %v11154 = vmax.f32 %v11065, 0.0
        %v11155 = vmax.f32 %v11067, 0.0
        %v11156 = vmax.f32 %v11136, 0.0
        %v11157 = vmax.f32 %v11138, 0.0
        %v11158 = vadd.f32 %v7874, %v11140
        %v11159 = vadd.f32 %v7875, %v11141
        %v11160 = vadd.f32 %v7876, %v11142
        %v11161 = vadd.f32 %v7877, %v11143
        %v11162 = vadd.f32 %v7878, %v11144
        %v11163 = vadd.f32 %v7879, %v11145
        %v11164 = vadd.f32 %v7880, %v11146
        %v11165 = vadd.f32 %v7881, %v11147
        %v11166 = vadd.f32 %v7882, %v11148
        %v11167 = vadd.f32 %v7883, %v11149
        %v11168 = vadd.f32 %v7884, %v11150
        %v11169 = vadd.f32 %v7885, %v11151
        %v11170 = vadd.f32 %v7886, %v11152
        %v11171 = vadd.f32 %v7887, %v11153
        %v11172 = vadd.f32 %v7888, %v11154
        %v11173 = vadd.f32 %v7889, %v11155
        %v11174 = vadd.f32 %v7890, %v11156
        %v11175 = vadd.f32 %v7891, %v11157
        %11176 = vst [vmem:[%s421] sm:$0xff] %v11158
        %11177 = vst [vmem:[%s421 + $0x8] sm:$0xff] %v11159
        %11178 = vst [vmem:[%s421 + $0x10] sm:$0xff] %v11160
        %11179 = vst [vmem:[%s421 + $0x18] sm:$0xff] %v11161
        %11180 = vst [vmem:[%s421 + $0x20] sm:$0xff] %v11162
        %11181 = vst [vmem:[%s421 + $0x28] sm:$0xff] %v11163
        %11182 = vst [vmem:[%s421 + $0x30] sm:$0xff] %v11164
        %11183 = vst [vmem:[%s421 + $0x38] sm:$0xff] %v11165
        %11184 = vst [vmem:[%s421 + $0x40] sm:$0xff] %v11166
        %11185 = vst [vmem:[%s421 + $0x48] sm:$0xff] %v11167
        %11186 = vst [vmem:[%s421 + $0x50] sm:$0xff] %v11168
        %11187 = vst [vmem:[%s421 + $0x58] sm:$0xff] %v11169
        %11188 = vst [vmem:[%s421 + $0x60] sm:$0xff] %v11170
        %11189 = vst [vmem:[%s421 + $0x68] sm:$0xff] %v11171
        %11190 = vst [vmem:[%s421 + $0x70] sm:$0xff] %v11172
        %11191 = vst [vmem:[%s421 + $0x78] sm:$0xff] %v11173
        %11192 = vst [vmem:[%s421 + $0x80] sm:$0xff] %v11174
        %11193 = vst [vmem:[%s421 + $0x88] sm:$0xff] %v11175
        %s11194 = sand.u32 %s296, 1
        %s11195 = scalar_lea.sflag [#allocation3], %s11194
        %s11196 = sand.u32 %s296, 1
        %s11197 = smul.addr %s11196, 144
        %s11198 = scalar_lea.vmem [#allocation2], %s11197
        // Predicated region
        $region69: #{tpu_custom_call.1} parent=67 // pred_check
          %p11199 = pneg %p306
        $region70: #{tpu_custom_call.1} parent=67 // pred_check_branch
          %11201 = sbr.rel (%p11199) target = $region72
        $region71: #{tpu_custom_call.1} parent=67 // pred_region
          %s11203 = ssub.s32 2304, 2304
          %11204 = vsyncadd %s11195, %s11203
          %s11205 = smul.addr %s26, 18
          %s11206 = smul.addr %s11205, 128
          %s11207 = scalar_lea.hbm %s12, %s11206
          %s11209 = sshll.u32 %s11198, 4
          %s11210 = int_to_ptr.vmem [resolvable:$true] %s11209
          %11212 = dma.vmem_to_hbm [thread:$0]  %s11210, 2304, %s11207, %s11195
        $region72: #{tpu_custom_call.1} parent=67 // pred_fallthru
          _
      $region68: #{tpu_custom_call.1} parent=5 // pred_fallthru
        _
      %p11213 = scmp.le.s32.totalorder 2, %s21
      // Predicated region
      $region73: #{tpu_custom_call.1} parent=5 // pred_check
        %p11214 = pneg %p11213
      $region74: #{tpu_custom_call.1} parent=5 // pred_check_branch
        %11216 = sbr.rel (%p11214) target = $region76
      $region75: #{tpu_custom_call.1} parent=5 // pred_region
        %s11217 = ssub.s32 %s21, 2
        // Predicated region
        $region77: #{tpu_custom_call.1} parent=75 // pred_check
          %p11218 = pneg %p312
        $region78: #{tpu_custom_call.1} parent=75 // pred_check_branch
          %11220 = sbr.rel (%p11218) target = $region80
        $region79: #{tpu_custom_call.1} parent=75 // pred_region
          %s11221 = sand.u32 %s297, 1
          %s11222 = scalar_lea.sflag [#allocation3], %s11221
          %s11223 = sand.u32 %s297, 1
          %s11224 = smul.addr %s11223, 144
          %s11225 = scalar_lea.vmem [#allocation2], %s11224
          %11226 = dma.done %s11222, 2304
        $region80: #{tpu_custom_call.1} parent=75 // pred_fallthru
          _
      $region76: #{tpu_custom_call.1} parent=5 // pred_fallthru
        _
    $region6: #{tpu_custom_call.1} parent=1 // loop_footer
      %s25 = sadd.s32 1, %s21
    $region7: #{tpu_custom_call.1} parent=1 // loop_footer_branch
      %20 = sbr.rel target = $region3
    $region8: #{tpu_custom_call.1} parent=1 // loop_exit
      _
    %11227 = vsyncpa [#allocation3], 1
    %s11228 = scalar_lea.sflag [#allocation3], 1
    %11229 = vsyncpa %s11228, 1

</llo_original>
